<compile_context>
chip_gen: v7x
topology: tpu7x:2x2x1
jax: 0.10.0
libtpu: 0.0.40
codegen_flags: <defaults>
</compile_context>

<pallas_src>
import functools

import jax
import jax.numpy as jnp
import numpy as np
from jax import lax
from jax.experimental import pallas as pl
from jax.experimental.pallas import tpu as pltpu

EPS = 1e-5
VMEM_LIMIT_BYTES = 32 * 1024 * 1024  # safe scoped-VMEM budget on v5e/v6e/v7x


def _compiler_params(n_parallel_axes):
    return pltpu.CompilerParams(
        dimension_semantics=("parallel",) * n_parallel_axes,
        vmem_limit_bytes=VMEM_LIMIT_BYTES,
    )


def _pick_row_tile(m, cap=2048):
    """Largest divisor of m that is <= cap and a multiple of 8 (or m itself)."""
    t = min(m, cap)
    while t > 1:
        if m % t == 0 and (t % 8 == 0 or t == m):
            return t
        t -= 1
    return m


# ----------------------------------------------------------------------------- conv kernels
def _make_conv_kernel(*, stride, wp, rows, cout, fuse_bn_relu_prologue):
    """3x3 conv (padding=1) over a flat (L, Cin) zero-padded image slab.

    Output row q = oh * wp + j; tap (kh, kw) contributes
        x[stride*q + kh*wp + kw, :] @ w[kh*3+kw]
    For stride=1 every tap is a contiguous slice of the slab.  For stride=2 the slab is
    pre-split (in XLA) into even/odd row phases so flat[2*q + s] == phase_{s%2}[q + s//2],
    making every tap a contiguous slice of one phase slab (no strided ref indexing).
    Columns j >= Wo of each output row are junk (masked out of the statistics, sliced
    off later in XLA).
    """

    def _write_stats(s_ref, acc, colmask):
        valid = acc * colmask
        stats = jnp.concatenate(
            [jnp.sum(valid, axis=0, keepdims=True),
             jnp.sum(valid * acc, axis=0, keepdims=True)], axis=0)
        s_ref[0] = stats

    if fuse_bn_relu_prologue:
        # conv2 (stride 1): BN1-normalize + ReLU fused into the prologue.  `inmask`
        # keeps the spatial zero-padding (and tail rows) exactly zero after the affine.
        def kernel(x_ref, w_ref, scale_ref, shift_ref, inmask_ref, colmask_ref,
                   y_ref, s_ref):
            act = jnp.maximum(
                x_ref[0] * scale_ref[...] + shift_ref[...], 0.0) * inmask_ref[...]
            acc = jnp.zeros((rows, cout), jnp.float32)
            for kh in range(3):
                for kw in range(3):
                    start = kh * wp + kw
                    tap = act[start:start + rows, :].astype(jnp.bfloat16)
                    acc += jnp.dot(tap, w_ref[kh * 3 + kw],
                                   preferred_element_type=jnp.float32)
            y_ref[0] = acc
            _write_stats(s_ref, acc, colmask_ref[...])
        return kernel

    if stride == 1:
        def kernel(x_ref, w_ref, colmask_ref, y_ref, s_ref):
            acc = jnp.zeros((rows, cout), jnp.float32)
            for kh in range(3):
                for kw in range(3):
                    start = kh * wp + kw
                    tap = x_ref[0, pl.ds(start, rows)].astype(jnp.bfloat16)
                    acc += jnp.dot(tap, w_ref[kh * 3 + kw],
                                   preferred_element_type=jnp.float32)
            y_ref[0] = acc
            _write_stats(s_ref, acc, colmask_ref[...])
        return kernel

    # stride == 2: even/odd row-phase slabs; tap start s reads phase_{s%2}[s//2 : s//2+rows]
    def kernel(xe_ref, xo_ref, w_ref, colmask_ref, y_ref, s_ref):
        acc = jnp.zeros((rows, cout), jnp.float32)
        for kh in range(3):
            for kw in range(3):
                s = kh * wp + kw
                base = s // 2
                src = xe_ref if (s % 2 == 0) else xo_ref
                tap = src[0, pl.ds(base, rows)].astype(jnp.bfloat16)
                acc += jnp.dot(tap, w_ref[kh * 3 + kw],
                               preferred_element_type=jnp.float32)
        y_ref[0] = acc
        _write_stats(s_ref, acc, colmask_ref[...])
    return kernel


def _prep_w3x3(w_oihw):
    """(Cout, Cin, 3, 3) torch layout -> (9, Cin, Cout) bf16, tap index = kh*3+kw."""
    cout, cin = w_oihw.shape[0], w_oihw.shape[1]
    return jnp.transpose(w_oihw, (2, 3, 1, 0)).reshape(9, cin, cout).astype(jnp.bfloat16)


def _conv3x3_pallas(img_nhwc, w9, *, stride, bn_prologue=None):
    """3x3 conv, padding=1.  img_nhwc: (N, Hin, Win, Cin) f32 (unpadded conv input).
    bn_prologue: None, or (scale, shift) each (1, Cin) applied as relu(x*scale+shift)
    to the input before convolving (only supported with stride=1).
    Returns (y, stats, ho, wo, wp):
      y     : (N, ho*wp, Cout) f32, padded-width layout (cols >= wo of each row = junk)
      stats : (N, 2, Cout) f32, per-image [sum, sum_sq] over the valid output positions.
    """
    assert stride in (1, 2)
    assert not (bn_prologue is not None and stride != 1)
    n, hin, win, cin = img_nhwc.shape
    cout = w9.shape[2]
    ho = (hin + 2 - 3) // stride + 1
    wo = (win + 2 - 3) // stride + 1
    hp, wp = hin + 2, win + 2
    rows = ho * wp

    # spatially zero-pad, flatten (Hp, Wp) -> rows
    xp = jnp.pad(img_nhwc, ((0, 0), (1, 1), (1, 1), (0, 0)))
    flat = xp.reshape(n, hp * wp, cin)

    # mask of valid output columns (junk cols excluded from the BN statistics)
    colmask = (jnp.arange(rows) % wp < wo).astype(jnp.float32)[:, None]

    kernel = _make_conv_kernel(stride=stride, wp=wp, rows=rows, cout=cout,
                               fuse_bn_relu_prologue=bn_prologue is not None)

    out_shape = (jax.ShapeDtypeStruct((n, rows, cout), jnp.float32),
                 jax.ShapeDtypeStruct((n, 2, cout), jnp.float32))
    out_specs = (pl.BlockSpec((1, rows, cout), lambda i: (i, 0, 0)),
                 pl.BlockSpec((1, 2, cout), lambda i: (i, 0, 0)))
    w_spec = pl.BlockSpec((9, cin, cout), lambda i: (0, 0, 0))
    colmask_spec = pl.BlockSpec((rows, 1), lambda i: (0, 0))

    if stride == 2:
        # Pad the slab so both phase slabs are long enough for the deepest tap:
        # max tap start = 2*wp + 2  =>  phase slab needs >= wp + 1 + rows entries.
        l_tot = max(hp * wp, 2 * (wp + 2 + rows))
        l_tot += l_tot % 2                       # even length so phases split cleanly
        if l_tot > hp * wp:
            flat = jnp.pad(flat, ((0, 0), (0, l_tot - hp * wp), (0, 0)))
        flat = flat.astype(jnp.bfloat16)         # bf16 A-operand in HBM (exact on zeros)
        flat_even = flat[:, 0::2, :]
        flat_odd = flat[:, 1::2, :]
        phase_len = l_tot // 2
        in_arrays = [flat_even, flat_odd, w9, colmask]
        in_specs = [pl.BlockSpec((1, phase_len, cin), lambda i: (i, 0, 0)),
                    pl.BlockSpec((1, phase_len, cin), lambda i: (i, 0, 0)),
                    w_spec, colmask_spec]
    else:
        # append a few zero rows so the overlapping tap slices never run past the slab end
        l_needed = rows + 2 * wp + 2
        extra = max(0, l_needed - hp * wp)
        if extra:
            flat = jnp.pad(flat, ((0, 0), (0, extra), (0, 0)))
        l_tot = hp * wp + extra
        if bn_prologue is None:
            flat = flat.astype(jnp.bfloat16)
        in_arrays = [flat, w9]
        in_specs = [pl.BlockSpec((1, l_tot, cin), lambda i: (i, 0, 0)), w_spec]
        if bn_prologue is not None:
            scale, shift = bn_prologue
            p = jnp.arange(l_tot)
            r, c = p // wp, p % wp
            inmask = ((r >= 1) & (r <= hin) & (c >= 1) & (c <= win)
                      ).astype(jnp.float32)[:, None]
            in_arrays += [scale, shift, inmask]
            in_specs += [pl.BlockSpec((1, cin), lambda i: (0, 0)),
                         pl.BlockSpec((1, cin), lambda i: (0, 0)),
                         pl.BlockSpec((l_tot, 1), lambda i: (0, 0))]
        in_arrays.append(colmask)
        in_specs.append(colmask_spec)

    # NOTE: grid is (N,) and marked parallel so v7x's two TensorCores each take images.
    # For very large spatial extents an additional H-tile grid axis would bound VMEM;
    # at ResNet-style sizes a whole image + weights fits comfortably.
    y, stats = pl.pallas_call(
        kernel,
        out_shape=out_shape,
        grid=(n,),
        in_specs=in_specs,
        out_specs=out_specs,
        compiler_params=_compiler_params(1),
    )(*in_arrays)
    return y, stats, ho, wo, wp


# ----------------------------------------------------------------------------- epilogue kernels
def _bn_add_relu_kernel(z_ref, id_ref, scale_ref, shift_ref, o_ref):
    o_ref[...] = jnp.maximum(
        z_ref[...] * scale_ref[...] + shift_ref[...] + id_ref[...], 0.0)


def _bn_proj_add_relu_kernel(z_ref, xs_ref, wid_ref, bid_ref, scale_ref, shift_ref, o_ref):
    # fused 1x1 identity projection (f32 MXU matmul) + BN2 affine + add + ReLU
    proj = jnp.dot(xs_ref[...], wid_ref[...],
                   preferred_element_type=jnp.float32) + bid_ref[...]
    o_ref[...] = jnp.maximum(
        z_ref[...] * scale_ref[...] + shift_ref[...] + proj, 0.0)


def _bn_add_relu(z_flat, id_flat, scale, shift):
    m, c = z_flat.shape
    tm = _pick_row_tile(m)
    row = lambda a: pl.BlockSpec((tm, a.shape[1]), lambda i: (i, 0))
    chan = lambda a: pl.BlockSpec(a.shape, lambda i: (0, 0))
    return pl.pallas_call(
        _bn_add_relu_kernel,
        out_shape=jax.ShapeDtypeStruct((m, c), jnp.float32),
        grid=(m // tm,),
        in_specs=[row(z_flat), row(id_flat), chan(scale), chan(shift)],
        out_specs=pl.BlockSpec((tm, c), lambda i: (i, 0)),
        compiler_params=_compiler_params(1),
    )(z_flat, id_flat, scale, shift)


def _bn_proj_add_relu(z_flat, xs_flat, wid, bid, scale, shift):
    m, c = z_flat.shape
    tm = _pick_row_tile(m)
    row = lambda a: pl.BlockSpec((tm, a.shape[1]), lambda i: (i, 0))
    chan = lambda a: pl.BlockSpec(a.shape, lambda i: (0, 0))
    return pl.pallas_call(
        _bn_proj_add_relu_kernel,
        out_shape=jax.ShapeDtypeStruct((m, c), jnp.float32),
        grid=(m // tm,),
        in_specs=[row(z_flat), row(xs_flat), chan(wid), chan(bid),
                  chan(scale), chan(shift)],
        out_specs=pl.BlockSpec((tm, c), lambda i: (i, 0)),
        compiler_params=_compiler_params(1),
    )(z_flat, xs_flat, wid, bid, scale, shift)


# ----------------------------------------------------------------------------- BN stat folding
def _bn_affine(stats, count, gamma, beta):
    """stats: (N, 2, C) per-image [sum, sum_sq] -> BN training-mode (scale, shift)."""
    s = jnp.sum(stats, axis=0)                     # (2, C), tiny reduction
    mean = s[0] / count
    var = s[1] / count - mean * mean               # biased variance (torch BN training)
    scale = gamma * lax.rsqrt(var + EPS)
    shift = beta - mean * scale
    return scale.reshape(1, -1).astype(jnp.float32), shift.reshape(1, -1).astype(jnp.float32)


# ----------------------------------------------------------------------------- block forward (Pallas)
@functools.partial(jax.jit, static_argnames=("stride",))
def block_forward(x_nchw, params, identity_params=None, *, stride=1):
    """Equivalent of block.forward. x: [N, Cin, H, W] (NCHW) -> [N, Cout, Ho, Wo]."""
    n, cin, h, w = x_nchw.shape
    x = jnp.transpose(x_nchw, (0, 2, 3, 1)).astype(jnp.float32)   # NHWC
    cout = params["conv1_w"].shape[0]

    # conv1 (bias dropped: a conv bias immediately followed by BN is a no-op)
    w1 = _prep_w3x3(params["conv1_w"])
    y1, s1, ho, wo, wp1 = _conv3x3_pallas(x, w1, stride=stride)
    scale1, shift1 = _bn_affine(s1, n * ho * wo, params["bn1_g"], params["bn1_b"])

    # conv2 with BN1+ReLU fused into its prologue (bias dropped as above)
    y1_img = y1.reshape(n, ho, wp1, cout)[:, :, :wo, :]            # drop junk cols
    w2 = _prep_w3x3(params["conv2_w"])
    z, s2, _, _, wp2 = _conv3x3_pallas(y1_img, w2, stride=1,
                                       bn_prologue=(scale1, shift1))
    scale2, shift2 = _bn_affine(s2, n * ho * wo, params["bn2_g"], params["bn2_b"])

    # compact conv2 output and run the fused BN2 + residual + ReLU epilogue
    m2 = n * ho * wo
    z_flat = z.reshape(n, ho, wp2, cout)[:, :, :wo, :].reshape(m2, cout)

    if identity_params is None:
        # stride == 1 and Cin == Cout in this configuration (as in the torch module)
        id_flat = x.reshape(n * h * w, cin)
        out_flat = _bn_add_relu(z_flat, id_flat, scale2, shift2)
    else:
        xs_flat = x[:, ::stride, ::stride, :].reshape(m2, cin)
        wid = identity_params["w"].reshape(cout, cin).T.astype(jnp.float32)
        bid = identity_params["b"].reshape(1, cout).astype(jnp.float32)
        out_flat = _bn_proj_add_relu(z_flat, xs_flat, wid, bid, scale2, shift2)

    out = out_flat.reshape(n, ho, wo, cout)
    return jnp.transpose(out, (0, 3, 1, 2))        # back to NCHW


# ----------------------------------------------------------------------------- pure-JAX reference
def _ref_conv(x, w, b, stride, pad, *, to_bf16):
    if to_bf16:   # match the bf16 MXU operands used by the Pallas path
        x = x.astype(jnp.bfloat16)
        w = w.astype(jnp.bfloat16)
    y = lax.conv_general_dilated(
        x, w, window_strides=(stride, stride), padding=((pad, pad), (pad, pad)),
        dimension_numbers=("NCHW", "OIHW", "NCHW"),
        preferred_element_type=jnp.float32, precision=lax.Precision.HIGHEST)
    return y + b[None, :, None, None]


def _ref_bn(x, g, b):
    m = jnp.mean(x, axis=(0, 2, 3), keepdims=True)
    v = jnp.var(x, axis=(0, 2, 3), keepdims=True)
    return (x - m) * lax.rsqrt(v + EPS) * g[None, :, None, None] + b[None, :, None, None]


def block_forward_ref(x, params, identity_params=None, *, stride=1):
    identity = x
    y = _ref_conv(x, params["conv1_w"], params["conv1_b"], stride, 1, to_bf16=True)
    y = jax.nn.relu(_ref_bn(y, params["bn1_g"], params["bn1_b"]))
    z = _ref_conv(y, params["conv2_w"], params["conv2_b"], 1, 1, to_bf16=True)
    z = _ref_bn(z, params["bn2_g"], params["bn2_b"])
    if identity_params is not None:
        identity = _ref_conv(identity, identity_params["w"], identity_params["b"],
                             stride, 0, to_bf16=False)
    return jax.nn.relu(z + identity)


# ----------------------------------------------------------------------------- param init
def make_params(key, cin, cout):
    ks = jax.random.split(key, 8)
    return {
        "conv1_w": 0.1 * jax.random.normal(ks[0], (cout, cin, 3, 3), jnp.float32),
        "conv1_b": 0.1 * jax.random.normal(ks[1], (cout,), jnp.float32),
        "bn1_g": 1.0 + 0.1 * jax.random.normal(ks[2], (cout,), jnp.float32),
        "bn1_b": 0.1 * jax.random.normal(ks[3], (cout,), jnp.float32),
        "conv2_w": 0.1 * jax.random.normal(ks[4], (cout, cout, 3, 3), jnp.float32),
        "conv2_b": 0.1 * jax.random.normal(ks[5], (cout,), jnp.float32),
        "bn2_g": 1.0 + 0.1 * jax.random.normal(ks[6], (cout,), jnp.float32),
        "bn2_b": 0.1 * jax.random.normal(ks[7], (cout,), jnp.float32),
    }


if __name__ == "__main__":
    key = jax.random.PRNGKey(0)
    k_x, k_p1, k_p2, k_id = jax.random.split(key, 4)

    # ---- case 1: identity_conv=None, stride=1, Cin == Cout ----
    N, Cin, H, W = 2, 4, 16, 16
    x = jax.random.normal(k_x, (N, Cin, H, W), jnp.float32)
    params1 = make_params(k_p1, Cin, Cin)

    out1 = jax.block_until_ready(block_forward(x, params1, None, stride=1))
    ref1 = jax.block_until_ready(block_forward_ref(x, params1, None, stride=1))
    np.testing.assert_allclose(np.asarray(out1), np.asarray(ref1), rtol=5e-3, atol=5e-3)
    assert out1.shape == (N, Cin, H, W)

    # ---- case 2: identity_conv = 1x1 conv (channel/stride adjust), stride=2, Cin=4 -> Cout=8 ----
    Cout = 8
    params2 = make_params(k_p2, Cin, Cout)
    kid_w, kid_b = jax.random.split(k_id)
    identity_params = {
        "w": 0.1 * jax.random.normal(kid_w, (Cout, Cin, 1, 1), jnp.float32),
        "b": 0.1 * jax.random.normal(kid_b, (Cout,), jnp.float32),
    }
    out2 = jax.block_until_ready(block_forward(x, params2, identity_params, stride=2))
    ref2 = jax.block_until_ready(block_forward_ref(x, params2, identity_params, stride=2))
    np.testing.assert_allclose(np.asarray(out2), np.asarray(ref2), rtol=5e-3, atol=5e-3)
    assert out2.shape == (N, Cout, H // 2, W // 2)

    print("KERNEL_OK")
</pallas_src>

<mosaic_0001>
module attributes {stable_mosaic.version = 11 : i64} {
  func.func @kernel(%arg0: i32, %arg1: memref<1x326x4xbf16, #tpu.memory_space<vmem>>, %arg2: memref<9x4x4xbf16, #tpu.memory_space<vmem>>, %arg3: memref<288x1xf32, #tpu.memory_space<vmem>>, %arg4: memref<1x288x4xf32, #tpu.memory_space<vmem>>, %arg5: memref<1x2x4xf32, #tpu.memory_space<vmem>>) attributes {dimension_semantics = [#tpu.dimension_semantics<parallel>], iteration_bounds = array<i64: 2>, scalar_prefetch = 0 : i64, scratch_operands = 0 : i64, tpu.core_type = #tpu.core_type<tc>, window_params = [{transform_indices = @transform_0, window_bounds = array<i64: 1, 326, 4>}, {pipeline_mode = #tpu.pipeline_mode<synchronous>, transform_indices = @transform_1, window_bounds = array<i64: 9, 4, 4>}, {pipeline_mode = #tpu.pipeline_mode<synchronous>, transform_indices = @transform_2, window_bounds = array<i64: 288, 1>}, {transform_indices = @transform_3, window_bounds = array<i64: 1, 288, 4>}, {transform_indices = @transform_4, window_bounds = array<i64: 1, 2, 4>}]} {
    %cst = arith.constant 0.000000e+00 : f32
    %0 = vector.broadcast %cst : f32 to vector<288x4xf32>
    %c0 = arith.constant 0 : index
    %c0_0 = arith.constant 0 : index
    %c0_1 = arith.constant 0 : index
    %1 = vector.load %arg1[%c0, %c0_0, %c0_1] : memref<1x326x4xbf16, #tpu.memory_space<vmem>>, vector<1x288x4xbf16>
    %2 = vector.shape_cast %1 : vector<1x288x4xbf16> to vector<288x4xbf16>
    %c0_2 = arith.constant 0 : index
    %c0_3 = arith.constant 0 : index
    %c0_4 = arith.constant 0 : index
    %3 = vector.load %arg2[%c0_2, %c0_3, %c0_4] : memref<9x4x4xbf16, #tpu.memory_space<vmem>>, vector<1x4x4xbf16>
    %4 = vector.shape_cast %3 : vector<1x4x4xbf16> to vector<4x4xbf16>
    %cst_5 = arith.constant dense<0.000000e+00> : vector<288x4xf32>
    %5 = tpu.matmul %2, %4, %cst_5 {dimension_numbers = #tpu.dot_dimension_numbers<[1], [0], [0], [1], [0, 0, 1, 1], [], []>} : vector<288x4xbf16>, vector<4x4xbf16>, vector<288x4xf32> -> vector<288x4xf32>
    %6 = arith.addf %0, %5 : vector<288x4xf32>
    %c0_6 = arith.constant 0 : index
    %c1 = arith.constant 1 : index
    %c0_7 = arith.constant 0 : index
    %7 = vector.load %arg1[%c0_6, %c1, %c0_7] : memref<1x326x4xbf16, #tpu.memory_space<vmem>>, vector<1x288x4xbf16>
    %8 = vector.shape_cast %7 : vector<1x288x4xbf16> to vector<288x4xbf16>
    %c1_8 = arith.constant 1 : index
    %c0_9 = arith.constant 0 : index
    %c0_10 = arith.constant 0 : index
    %9 = vector.load %arg2[%c1_8, %c0_9, %c0_10] : memref<9x4x4xbf16, #tpu.memory_space<vmem>>, vector<1x4x4xbf16>
    %10 = vector.shape_cast %9 : vector<1x4x4xbf16> to vector<4x4xbf16>
    %cst_11 = arith.constant dense<0.000000e+00> : vector<288x4xf32>
    %11 = tpu.matmul %8, %10, %cst_11 {dimension_numbers = #tpu.dot_dimension_numbers<[1], [0], [0], [1], [0, 0, 1, 1], [], []>} : vector<288x4xbf16>, vector<4x4xbf16>, vector<288x4xf32> -> vector<288x4xf32>
    %12 = arith.addf %6, %11 : vector<288x4xf32>
    %c0_12 = arith.constant 0 : index
    %c2 = arith.constant 2 : index
    %c0_13 = arith.constant 0 : index
    %13 = vector.load %arg1[%c0_12, %c2, %c0_13] : memref<1x326x4xbf16, #tpu.memory_space<vmem>>, vector<1x288x4xbf16>
    %14 = vector.shape_cast %13 : vector<1x288x4xbf16> to vector<288x4xbf16>
    %c2_14 = arith.constant 2 : index
    %c0_15 = arith.constant 0 : index
    %c0_16 = arith.constant 0 : index
    %15 = vector.load %arg2[%c2_14, %c0_15, %c0_16] : memref<9x4x4xbf16, #tpu.memory_space<vmem>>, vector<1x4x4xbf16>
    %16 = vector.shape_cast %15 : vector<1x4x4xbf16> to vector<4x4xbf16>
    %cst_17 = arith.constant dense<0.000000e+00> : vector<288x4xf32>
    %17 = tpu.matmul %14, %16, %cst_17 {dimension_numbers = #tpu.dot_dimension_numbers<[1], [0], [0], [1], [0, 0, 1, 1], [], []>} : vector<288x4xbf16>, vector<4x4xbf16>, vector<288x4xf32> -> vector<288x4xf32>
    %18 = arith.addf %12, %17 : vector<288x4xf32>
    %c0_18 = arith.constant 0 : index
    %c18 = arith.constant 18 : index
    %c0_19 = arith.constant 0 : index
    %19 = vector.load %arg1[%c0_18, %c18, %c0_19] : memref<1x326x4xbf16, #tpu.memory_space<vmem>>, vector<1x288x4xbf16>
    %20 = vector.shape_cast %19 : vector<1x288x4xbf16> to vector<288x4xbf16>
    %c3 = arith.constant 3 : index
    %c0_20 = arith.constant 0 : index
    %c0_21 = arith.constant 0 : index
    %21 = vector.load %arg2[%c3, %c0_20, %c0_21] : memref<9x4x4xbf16, #tpu.memory_space<vmem>>, vector<1x4x4xbf16>
    %22 = vector.shape_cast %21 : vector<1x4x4xbf16> to vector<4x4xbf16>
    %cst_22 = arith.constant dense<0.000000e+00> : vector<288x4xf32>
    %23 = tpu.matmul %20, %22, %cst_22 {dimension_numbers = #tpu.dot_dimension_numbers<[1], [0], [0], [1], [0, 0, 1, 1], [], []>} : vector<288x4xbf16>, vector<4x4xbf16>, vector<288x4xf32> -> vector<288x4xf32>
    %24 = arith.addf %18, %23 : vector<288x4xf32>
    %c0_23 = arith.constant 0 : index
    %c19 = arith.constant 19 : index
    %c0_24 = arith.constant 0 : index
    %25 = vector.load %arg1[%c0_23, %c19, %c0_24] : memref<1x326x4xbf16, #tpu.memory_space<vmem>>, vector<1x288x4xbf16>
    %26 = vector.shape_cast %25 : vector<1x288x4xbf16> to vector<288x4xbf16>
    %c4 = arith.constant 4 : index
    %c0_25 = arith.constant 0 : index
    %c0_26 = arith.constant 0 : index
    %27 = vector.load %arg2[%c4, %c0_25, %c0_26] : memref<9x4x4xbf16, #tpu.memory_space<vmem>>, vector<1x4x4xbf16>
    %28 = vector.shape_cast %27 : vector<1x4x4xbf16> to vector<4x4xbf16>
    %cst_27 = arith.constant dense<0.000000e+00> : vector<288x4xf32>
    %29 = tpu.matmul %26, %28, %cst_27 {dimension_numbers = #tpu.dot_dimension_numbers<[1], [0], [0], [1], [0, 0, 1, 1], [], []>} : vector<288x4xbf16>, vector<4x4xbf16>, vector<288x4xf32> -> vector<288x4xf32>
    %30 = arith.addf %24, %29 : vector<288x4xf32>
    %c0_28 = arith.constant 0 : index
    %c20 = arith.constant 20 : index
    %c0_29 = arith.constant 0 : index
    %31 = vector.load %arg1[%c0_28, %c20, %c0_29] : memref<1x326x4xbf16, #tpu.memory_space<vmem>>, vector<1x288x4xbf16>
    %32 = vector.shape_cast %31 : vector<1x288x4xbf16> to vector<288x4xbf16>
    %c5 = arith.constant 5 : index
    %c0_30 = arith.constant 0 : index
    %c0_31 = arith.constant 0 : index
    %33 = vector.load %arg2[%c5, %c0_30, %c0_31] : memref<9x4x4xbf16, #tpu.memory_space<vmem>>, vector<1x4x4xbf16>
    %34 = vector.shape_cast %33 : vector<1x4x4xbf16> to vector<4x4xbf16>
    %cst_32 = arith.constant dense<0.000000e+00> : vector<288x4xf32>
    %35 = tpu.matmul %32, %34, %cst_32 {dimension_numbers = #tpu.dot_dimension_numbers<[1], [0], [0], [1], [0, 0, 1, 1], [], []>} : vector<288x4xbf16>, vector<4x4xbf16>, vector<288x4xf32> -> vector<288x4xf32>
    %36 = arith.addf %30, %35 : vector<288x4xf32>
    %c0_33 = arith.constant 0 : index
    %c36 = arith.constant 36 : index
    %c0_34 = arith.constant 0 : index
    %37 = vector.load %arg1[%c0_33, %c36, %c0_34] : memref<1x326x4xbf16, #tpu.memory_space<vmem>>, vector<1x288x4xbf16>
    %38 = vector.shape_cast %37 : vector<1x288x4xbf16> to vector<288x4xbf16>
    %c6 = arith.constant 6 : index
    %c0_35 = arith.constant 0 : index
    %c0_36 = arith.constant 0 : index
    %39 = vector.load %arg2[%c6, %c0_35, %c0_36] : memref<9x4x4xbf16, #tpu.memory_space<vmem>>, vector<1x4x4xbf16>
    %40 = vector.shape_cast %39 : vector<1x4x4xbf16> to vector<4x4xbf16>
    %cst_37 = arith.constant dense<0.000000e+00> : vector<288x4xf32>
    %41 = tpu.matmul %38, %40, %cst_37 {dimension_numbers = #tpu.dot_dimension_numbers<[1], [0], [0], [1], [0, 0, 1, 1], [], []>} : vector<288x4xbf16>, vector<4x4xbf16>, vector<288x4xf32> -> vector<288x4xf32>
    %42 = arith.addf %36, %41 : vector<288x4xf32>
    %c0_38 = arith.constant 0 : index
    %c37 = arith.constant 37 : index
    %c0_39 = arith.constant 0 : index
    %43 = vector.load %arg1[%c0_38, %c37, %c0_39] : memref<1x326x4xbf16, #tpu.memory_space<vmem>>, vector<1x288x4xbf16>
    %44 = vector.shape_cast %43 : vector<1x288x4xbf16> to vector<288x4xbf16>
    %c7 = arith.constant 7 : index
    %c0_40 = arith.constant 0 : index
    %c0_41 = arith.constant 0 : index
    %45 = vector.load %arg2[%c7, %c0_40, %c0_41] : memref<9x4x4xbf16, #tpu.memory_space<vmem>>, vector<1x4x4xbf16>
    %46 = vector.shape_cast %45 : vector<1x4x4xbf16> to vector<4x4xbf16>
    %cst_42 = arith.constant dense<0.000000e+00> : vector<288x4xf32>
    %47 = tpu.matmul %44, %46, %cst_42 {dimension_numbers = #tpu.dot_dimension_numbers<[1], [0], [0], [1], [0, 0, 1, 1], [], []>} : vector<288x4xbf16>, vector<4x4xbf16>, vector<288x4xf32> -> vector<288x4xf32>
    %48 = arith.addf %42, %47 : vector<288x4xf32>
    %c0_43 = arith.constant 0 : index
    %c38 = arith.constant 38 : index
    %c0_44 = arith.constant 0 : index
    %49 = vector.load %arg1[%c0_43, %c38, %c0_44] : memref<1x326x4xbf16, #tpu.memory_space<vmem>>, vector<1x288x4xbf16>
    %50 = vector.shape_cast %49 : vector<1x288x4xbf16> to vector<288x4xbf16>
    %c8 = arith.constant 8 : index
    %c0_45 = arith.constant 0 : index
    %c0_46 = arith.constant 0 : index
    %51 = vector.load %arg2[%c8, %c0_45, %c0_46] : memref<9x4x4xbf16, #tpu.memory_space<vmem>>, vector<1x4x4xbf16>
    %52 = vector.shape_cast %51 : vector<1x4x4xbf16> to vector<4x4xbf16>
    %cst_47 = arith.constant dense<0.000000e+00> : vector<288x4xf32>
    %53 = tpu.matmul %50, %52, %cst_47 {dimension_numbers = #tpu.dot_dimension_numbers<[1], [0], [0], [1], [0, 0, 1, 1], [], []>} : vector<288x4xbf16>, vector<4x4xbf16>, vector<288x4xf32> -> vector<288x4xf32>
    %54 = arith.addf %48, %53 : vector<288x4xf32>
    %c0_48 = arith.constant 0 : index
    %c0_49 = arith.constant 0 : index
    %c0_50 = arith.constant 0 : index
    %55 = vector.load %arg4[%c0_48, %c0_49, %c0_50] : memref<1x288x4xf32, #tpu.memory_space<vmem>>, vector<1x288x4xf32>
    %56 = vector.shape_cast %55 : vector<1x288x4xf32> to vector<288x4xf32>
    %57 = vector.shape_cast %54 : vector<288x4xf32> to vector<1x288x4xf32>
    tpu.vector_store %arg4[%c0_48, %c0_49, %c0_50], %57 {strides = array<i32>} : memref<1x288x4xf32, #tpu.memory_space<vmem>>, vector<1x288x4xf32>,
    %c0_51 = arith.constant 0 : index
    %c0_52 = arith.constant 0 : index
    %58 = vector.load %arg3[%c0_51, %c0_52] : memref<288x1xf32, #tpu.memory_space<vmem>>, vector<288x1xf32>
    %59 = vector.broadcast %58 : vector<288x1xf32> to vector<288x4xf32>
    %60 = arith.mulf %54, %59 : vector<288x4xf32>
    %cst_53 = arith.constant dense<0.000000e+00> : vector<4xf32>
    %61 = vector.multi_reduction <add>, %60, %cst_53 [0] : vector<288x4xf32> to vector<4xf32>
    %62 = vector.shape_cast %61 : vector<4xf32> to vector<1x4xf32>
    %63 = arith.mulf %60, %54 : vector<288x4xf32>
    %cst_54 = arith.constant dense<0.000000e+00> : vector<4xf32>
    %64 = vector.multi_reduction <add>, %63, %cst_54 [0] : vector<288x4xf32> to vector<4xf32>
    %65 = vector.shape_cast %64 : vector<4xf32> to vector<1x4xf32>
    %66 = tpu.concatenate %62, %65 in 0 : vector<1x4xf32>, vector<1x4xf32> -> vector<2x4xf32>
    %c0_55 = arith.constant 0 : index
    %c0_56 = arith.constant 0 : index
    %c0_57 = arith.constant 0 : index
    %67 = vector.load %arg5[%c0_55, %c0_56, %c0_57] : memref<1x2x4xf32, #tpu.memory_space<vmem>>, vector<1x2x4xf32>
    %68 = vector.shape_cast %67 : vector<1x2x4xf32> to vector<2x4xf32>
    %69 = vector.shape_cast %66 : vector<2x4xf32> to vector<1x2x4xf32>
    tpu.vector_store %arg5[%c0_55, %c0_56, %c0_57], %69 {strides = array<i32>} : memref<1x2x4xf32, #tpu.memory_space<vmem>>, vector<1x2x4xf32>,
    return
  }
  func.func @transform_0(%arg0: i32) -> (i32, i32, i32) {
    %c0_i32 = arith.constant 0 : i32
    %c0_i32_0 = arith.constant 0 : i32
    %c0_i32_1 = arith.constant 0 : i32
    return %arg0, %c0_i32, %c0_i32_0 : i32, i32, i32
  }
  func.func @transform_1(%arg0: i32) -> (i32, i32, i32) {
    %c0_i32 = arith.constant 0 : i32
    %c0_i32_0 = arith.constant 0 : i32
    %c0_i32_1 = arith.constant 0 : i32
    %c0_i32_2 = arith.constant 0 : i32
    return %c0_i32, %c0_i32_0, %c0_i32_1 : i32, i32, i32
  }
  func.func @transform_2(%arg0: i32) -> (i32, i32) {
    %c0_i32 = arith.constant 0 : i32
    %c0_i32_0 = arith.constant 0 : i32
    %c0_i32_1 = arith.constant 0 : i32
    return %c0_i32, %c0_i32_0 : i32, i32
  }
  func.func @transform_3(%arg0: i32) -> (i32, i32, i32) {
    %c0_i32 = arith.constant 0 : i32
    %c0_i32_0 = arith.constant 0 : i32
    %c0_i32_1 = arith.constant 0 : i32
    return %arg0, %c0_i32, %c0_i32_0 : i32, i32, i32
  }
  func.func @transform_4(%arg0: i32) -> (i32, i32, i32) {
    %c0_i32 = arith.constant 0 : i32
    %c0_i32_0 = arith.constant 0 : i32
    %c0_i32_1 = arith.constant 0 : i32
    return %arg0, %c0_i32, %c0_i32_0 : i32, i32, i32
  }
}

module attributes {stable_mosaic.version = 11 : i64} {
  func.func @kernel(%arg0: i32, %arg1: memref<1x326x4xf32, #tpu.memory_space<vmem>>, %arg2: memref<9x4x4xbf16, #tpu.memory_space<vmem>>, %arg3: memref<1x4xf32, #tpu.memory_space<vmem>>, %arg4: memref<1x4xf32, #tpu.memory_space<vmem>>, %arg5: memref<326x1xf32, #tpu.memory_space<vmem>>, %arg6: memref<288x1xf32, #tpu.memory_space<vmem>>, %arg7: memref<1x288x4xf32, #tpu.memory_space<vmem>>, %arg8: memref<1x2x4xf32, #tpu.memory_space<vmem>>) attributes {dimension_semantics = [#tpu.dimension_semantics<parallel>], iteration_bounds = array<i64: 2>, scalar_prefetch = 0 : i64, scratch_operands = 0 : i64, tpu.core_type = #tpu.core_type<tc>, window_params = [{transform_indices = @transform_0, window_bounds = array<i64: 1, 326, 4>}, {pipeline_mode = #tpu.pipeline_mode<synchronous>, transform_indices = @transform_1, window_bounds = array<i64: 9, 4, 4>}, {pipeline_mode = #tpu.pipeline_mode<synchronous>, transform_indices = @transform_2, window_bounds = array<i64: 1, 4>}, {pipeline_mode = #tpu.pipeline_mode<synchronous>, transform_indices = @transform_3, window_bounds = array<i64: 1, 4>}, {pipeline_mode = #tpu.pipeline_mode<synchronous>, transform_indices = @transform_4, window_bounds = array<i64: 326, 1>}, {pipeline_mode = #tpu.pipeline_mode<synchronous>, transform_indices = @transform_5, window_bounds = array<i64: 288, 1>}, {transform_indices = @transform_6, window_bounds = array<i64: 1, 288, 4>}, {transform_indices = @transform_7, window_bounds = array<i64: 1, 2, 4>}]} {
    %c0 = arith.constant 0 : index
    %c0_0 = arith.constant 0 : index
    %c0_1 = arith.constant 0 : index
    %0 = vector.load %arg1[%c0, %c0_0, %c0_1] : memref<1x326x4xf32, #tpu.memory_space<vmem>>, vector<1x326x4xf32>
    %1 = vector.shape_cast %0 : vector<1x326x4xf32> to vector<326x4xf32>
    %c0_2 = arith.constant 0 : index
    %c0_3 = arith.constant 0 : index
    %2 = vector.load %arg3[%c0_2, %c0_3] : memref<1x4xf32, #tpu.memory_space<vmem>>, vector<1x4xf32>
    %3 = vector.broadcast %2 : vector<1x4xf32> to vector<326x4xf32>
    %4 = arith.mulf %1, %3 : vector<326x4xf32>
    %c0_4 = arith.constant 0 : index
    %c0_5 = arith.constant 0 : index
    %5 = vector.load %arg4[%c0_4, %c0_5] : memref<1x4xf32, #tpu.memory_space<vmem>>, vector<1x4xf32>
    %6 = vector.broadcast %5 : vector<1x4xf32> to vector<326x4xf32>
    %7 = arith.addf %4, %6 : vector<326x4xf32>
    %cst = arith.constant 0.000000e+00 : f32
    %8 = vector.broadcast %cst : f32 to vector<326x4xf32>
    %9 = arith.maximumf %7, %8 : vector<326x4xf32>
    %c0_6 = arith.constant 0 : index
    %c0_7 = arith.constant 0 : index
    %10 = vector.load %arg5[%c0_6, %c0_7] : memref<326x1xf32, #tpu.memory_space<vmem>>, vector<326x1xf32>
    %11 = vector.broadcast %10 : vector<326x1xf32> to vector<326x4xf32>
    %12 = arith.mulf %9, %11 : vector<326x4xf32>
    %cst_8 = arith.constant 0.000000e+00 : f32
    %13 = vector.broadcast %cst_8 : f32 to vector<288x4xf32>
    %14 = vector.extract_strided_slice %12 {offsets = [0, 0], sizes = [288, 4], strides = [1, 1]} : vector<326x4xf32> to vector<288x4xf32>
    %15 = arith.truncf %14 : vector<288x4xf32> to vector<288x4xbf16>
    %c0_9 = arith.constant 0 : index
    %c0_10 = arith.constant 0 : index
    %c0_11 = arith.constant 0 : index
    %16 = vector.load %arg2[%c0_9, %c0_10, %c0_11] : memref<9x4x4xbf16, #tpu.memory_space<vmem>>, vector<1x4x4xbf16>
    %17 = vector.shape_cast %16 : vector<1x4x4xbf16> to vector<4x4xbf16>
    %cst_12 = arith.constant dense<0.000000e+00> : vector<288x4xf32>
    %18 = tpu.matmul %15, %17, %cst_12 {dimension_numbers = #tpu.dot_dimension_numbers<[1], [0], [0], [1], [0, 0, 1, 1], [], []>} : vector<288x4xbf16>, vector<4x4xbf16>, vector<288x4xf32> -> vector<288x4xf32>
    %19 = arith.addf %13, %18 : vector<288x4xf32>
    %20 = vector.extract_strided_slice %12 {offsets = [1, 0], sizes = [288, 4], strides = [1, 1]} : vector<326x4xf32> to vector<288x4xf32>
    %21 = arith.truncf %20 : vector<288x4xf32> to vector<288x4xbf16>
    %c1 = arith.constant 1 : index
    %c0_13 = arith.constant 0 : index
    %c0_14 = arith.constant 0 : index
    %22 = vector.load %arg2[%c1, %c0_13, %c0_14] : memref<9x4x4xbf16, #tpu.memory_space<vmem>>, vector<1x4x4xbf16>
    %23 = vector.shape_cast %22 : vector<1x4x4xbf16> to vector<4x4xbf16>
    %cst_15 = arith.constant dense<0.000000e+00> : vector<288x4xf32>
    %24 = tpu.matmul %21, %23, %cst_15 {dimension_numbers = #tpu.dot_dimension_numbers<[1], [0], [0], [1], [0, 0, 1, 1], [], []>} : vector<288x4xbf16>, vector<4x4xbf16>, vector<288x4xf32> -> vector<288x4xf32>
    %25 = arith.addf %19, %24 : vector<288x4xf32>
    %26 = vector.extract_strided_slice %12 {offsets = [2, 0], sizes = [288, 4], strides = [1, 1]} : vector<326x4xf32> to vector<288x4xf32>
    %27 = arith.truncf %26 : vector<288x4xf32> to vector<288x4xbf16>
    %c2 = arith.constant 2 : index
    %c0_16 = arith.constant 0 : index
    %c0_17 = arith.constant 0 : index
    %28 = vector.load %arg2[%c2, %c0_16, %c0_17] : memref<9x4x4xbf16, #tpu.memory_space<vmem>>, vector<1x4x4xbf16>
    %29 = vector.shape_cast %28 : vector<1x4x4xbf16> to vector<4x4xbf16>
    %cst_18 = arith.constant dense<0.000000e+00> : vector<288x4xf32>
    %30 = tpu.matmul %27, %29, %cst_18 {dimension_numbers = #tpu.dot_dimension_numbers<[1], [0], [0], [1], [0, 0, 1, 1], [], []>} : vector<288x4xbf16>, vector<4x4xbf16>, vector<288x4xf32> -> vector<288x4xf32>
    %31 = arith.addf %25, %30 : vector<288x4xf32>
    %32 = vector.extract_strided_slice %12 {offsets = [18, 0], sizes = [288, 4], strides = [1, 1]} : vector<326x4xf32> to vector<288x4xf32>
    %33 = arith.truncf %32 : vector<288x4xf32> to vector<288x4xbf16>
    %c3 = arith.constant 3 : index
    %c0_19 = arith.constant 0 : index
    %c0_20 = arith.constant 0 : index
    %34 = vector.load %arg2[%c3, %c0_19, %c0_20] : memref<9x4x4xbf16, #tpu.memory_space<vmem>>, vector<1x4x4xbf16>
    %35 = vector.shape_cast %34 : vector<1x4x4xbf16> to vector<4x4xbf16>
    %cst_21 = arith.constant dense<0.000000e+00> : vector<288x4xf32>
    %36 = tpu.matmul %33, %35, %cst_21 {dimension_numbers = #tpu.dot_dimension_numbers<[1], [0], [0], [1], [0, 0, 1, 1], [], []>} : vector<288x4xbf16>, vector<4x4xbf16>, vector<288x4xf32> -> vector<288x4xf32>
    %37 = arith.addf %31, %36 : vector<288x4xf32>
    %38 = vector.extract_strided_slice %12 {offsets = [19, 0], sizes = [288, 4], strides = [1, 1]} : vector<326x4xf32> to vector<288x4xf32>
    %39 = arith.truncf %38 : vector<288x4xf32> to vector<288x4xbf16>
    %c4 = arith.constant 4 : index
    %c0_22 = arith.constant 0 : index
    %c0_23 = arith.constant 0 : index
    %40 = vector.load %arg2[%c4, %c0_22, %c0_23] : memref<9x4x4xbf16, #tpu.memory_space<vmem>>, vector<1x4x4xbf16>
    %41 = vector.shape_cast %40 : vector<1x4x4xbf16> to vector<4x4xbf16>
    %cst_24 = arith.constant dense<0.000000e+00> : vector<288x4xf32>
    %42 = tpu.matmul %39, %41, %cst_24 {dimension_numbers = #tpu.dot_dimension_numbers<[1], [0], [0], [1], [0, 0, 1, 1], [], []>} : vector<288x4xbf16>, vector<4x4xbf16>, vector<288x4xf32> -> vector<288x4xf32>
    %43 = arith.addf %37, %42 : vector<288x4xf32>
    %44 = vector.extract_strided_slice %12 {offsets = [20, 0], sizes = [288, 4], strides = [1, 1]} : vector<326x4xf32> to vector<288x4xf32>
    %45 = arith.truncf %44 : vector<288x4xf32> to vector<288x4xbf16>
    %c5 = arith.constant 5 : index
    %c0_25 = arith.constant 0 : index
    %c0_26 = arith.constant 0 : index
    %46 = vector.load %arg2[%c5, %c0_25, %c0_26] : memref<9x4x4xbf16, #tpu.memory_space<vmem>>, vector<1x4x4xbf16>
    %47 = vector.shape_cast %46 : vector<1x4x4xbf16> to vector<4x4xbf16>
    %cst_27 = arith.constant dense<0.000000e+00> : vector<288x4xf32>
    %48 = tpu.matmul %45, %47, %cst_27 {dimension_numbers = #tpu.dot_dimension_numbers<[1], [0], [0], [1], [0, 0, 1, 1], [], []>} : vector<288x4xbf16>, vector<4x4xbf16>, vector<288x4xf32> -> vector<288x4xf32>
    %49 = arith.addf %43, %48 : vector<288x4xf32>
    %50 = vector.extract_strided_slice %12 {offsets = [36, 0], sizes = [288, 4], strides = [1, 1]} : vector<326x4xf32> to vector<288x4xf32>
    %51 = arith.truncf %50 : vector<288x4xf32> to vector<288x4xbf16>
    %c6 = arith.constant 6 : index
    %c0_28 = arith.constant 0 : index
    %c0_29 = arith.constant 0 : index
    %52 = vector.load %arg2[%c6, %c0_28, %c0_29] : memref<9x4x4xbf16, #tpu.memory_space<vmem>>, vector<1x4x4xbf16>
    %53 = vector.shape_cast %52 : vector<1x4x4xbf16> to vector<4x4xbf16>
    %cst_30 = arith.constant dense<0.000000e+00> : vector<288x4xf32>
    %54 = tpu.matmul %51, %53, %cst_30 {dimension_numbers = #tpu.dot_dimension_numbers<[1], [0], [0], [1], [0, 0, 1, 1], [], []>} : vector<288x4xbf16>, vector<4x4xbf16>, vector<288x4xf32> -> vector<288x4xf32>
    %55 = arith.addf %49, %54 : vector<288x4xf32>
    %56 = vector.extract_strided_slice %12 {offsets = [37, 0], sizes = [288, 4], strides = [1, 1]} : vector<326x4xf32> to vector<288x4xf32>
    %57 = arith.truncf %56 : vector<288x4xf32> to vector<288x4xbf16>
    %c7 = arith.constant 7 : index
    %c0_31 = arith.constant 0 : index
    %c0_32 = arith.constant 0 : index
    %58 = vector.load %arg2[%c7, %c0_31, %c0_32] : memref<9x4x4xbf16, #tpu.memory_space<vmem>>, vector<1x4x4xbf16>
    %59 = vector.shape_cast %58 : vector<1x4x4xbf16> to vector<4x4xbf16>
    %cst_33 = arith.constant dense<0.000000e+00> : vector<288x4xf32>
    %60 = tpu.matmul %57, %59, %cst_33 {dimension_numbers = #tpu.dot_dimension_numbers<[1], [0], [0], [1], [0, 0, 1, 1], [], []>} : vector<288x4xbf16>, vector<4x4xbf16>, vector<288x4xf32> -> vector<288x4xf32>
    %61 = arith.addf %55, %60 : vector<288x4xf32>
    %62 = vector.extract_strided_slice %12 {offsets = [38, 0], sizes = [288, 4], strides = [1, 1]} : vector<326x4xf32> to vector<288x4xf32>
    %63 = arith.truncf %62 : vector<288x4xf32> to vector<288x4xbf16>
    %c8 = arith.constant 8 : index
    %c0_34 = arith.constant 0 : index
    %c0_35 = arith.constant 0 : index
    %64 = vector.load %arg2[%c8, %c0_34, %c0_35] : memref<9x4x4xbf16, #tpu.memory_space<vmem>>, vector<1x4x4xbf16>
    %65 = vector.shape_cast %64 : vector<1x4x4xbf16> to vector<4x4xbf16>
    %cst_36 = arith.constant dense<0.000000e+00> : vector<288x4xf32>
    %66 = tpu.matmul %63, %65, %cst_36 {dimension_numbers = #tpu.dot_dimension_numbers<[1], [0], [0], [1], [0, 0, 1, 1], [], []>} : vector<288x4xbf16>, vector<4x4xbf16>, vector<288x4xf32> -> vector<288x4xf32>
    %67 = arith.addf %61, %66 : vector<288x4xf32>
    %c0_37 = arith.constant 0 : index
    %c0_38 = arith.constant 0 : index
    %c0_39 = arith.constant 0 : index
    %68 = vector.load %arg7[%c0_37, %c0_38, %c0_39] : memref<1x288x4xf32, #tpu.memory_space<vmem>>, vector<1x288x4xf32>
    %69 = vector.shape_cast %68 : vector<1x288x4xf32> to vector<288x4xf32>
    %70 = vector.shape_cast %67 : vector<288x4xf32> to vector<1x288x4xf32>
    tpu.vector_store %arg7[%c0_37, %c0_38, %c0_39], %70 {strides = array<i32>} : memref<1x288x4xf32, #tpu.memory_space<vmem>>, vector<1x288x4xf32>,
    %c0_40 = arith.constant 0 : index
    %c0_41 = arith.constant 0 : index
    %71 = vector.load %arg6[%c0_40, %c0_41] : memref<288x1xf32, #tpu.memory_space<vmem>>, vector<288x1xf32>
    %72 = vector.broadcast %71 : vector<288x1xf32> to vector<288x4xf32>
    %73 = arith.mulf %67, %72 : vector<288x4xf32>
    %cst_42 = arith.constant dense<0.000000e+00> : vector<4xf32>
    %74 = vector.multi_reduction <add>, %73, %cst_42 [0] : vector<288x4xf32> to vector<4xf32>
    %75 = vector.shape_cast %74 : vector<4xf32> to vector<1x4xf32>
    %76 = arith.mulf %73, %67 : vector<288x4xf32>
    %cst_43 = arith.constant dense<0.000000e+00> : vector<4xf32>
    %77 = vector.multi_reduction <add>, %76, %cst_43 [0] : vector<288x4xf32> to vector<4xf32>
    %78 = vector.shape_cast %77 : vector<4xf32> to vector<1x4xf32>
    %79 = tpu.concatenate %75, %78 in 0 : vector<1x4xf32>, vector<1x4xf32> -> vector<2x4xf32>
    %c0_44 = arith.constant 0 : index
    %c0_45 = arith.constant 0 : index
    %c0_46 = arith.constant 0 : index
    %80 = vector.load %arg8[%c0_44, %c0_45, %c0_46] : memref<1x2x4xf32, #tpu.memory_space<vmem>>, vector<1x2x4xf32>
    %81 = vector.shape_cast %80 : vector<1x2x4xf32> to vector<2x4xf32>
    %82 = vector.shape_cast %79 : vector<2x4xf32> to vector<1x2x4xf32>
    tpu.vector_store %arg8[%c0_44, %c0_45, %c0_46], %82 {strides = array<i32>} : memref<1x2x4xf32, #tpu.memory_space<vmem>>, vector<1x2x4xf32>,
    return
  }
  func.func @transform_0(%arg0: i32) -> (i32, i32, i32) {
    %c0_i32 = arith.constant 0 : i32
    %c0_i32_0 = arith.constant 0 : i32
    %c0_i32_1 = arith.constant 0 : i32
    return %arg0, %c0_i32, %c0_i32_0 : i32, i32, i32
  }
  func.func @transform_1(%arg0: i32) -> (i32, i32, i32) {
    %c0_i32 = arith.constant 0 : i32
    %c0_i32_0 = arith.constant 0 : i32
    %c0_i32_1 = arith.constant 0 : i32
    %c0_i32_2 = arith.constant 0 : i32
    return %c0_i32, %c0_i32_0, %c0_i32_1 : i32, i32, i32
  }
  func.func @transform_2(%arg0: i32) -> (i32, i32) {
    %c0_i32 = arith.constant 0 : i32
    %c0_i32_0 = arith.constant 0 : i32
    %c0_i32_1 = arith.constant 0 : i32
    return %c0_i32, %c0_i32_0 : i32, i32
  }
  func.func @transform_3(%arg0: i32) -> (i32, i32) {
    %c0_i32 = arith.constant 0 : i32
    %c0_i32_0 = arith.constant 0 : i32
    %c0_i32_1 = arith.constant 0 : i32
    return %c0_i32, %c0_i32_0 : i32, i32
  }
  func.func @transform_4(%arg0: i32) -> (i32, i32) {
    %c0_i32 = arith.constant 0 : i32
    %c0_i32_0 = arith.constant 0 : i32
    %c0_i32_1 = arith.constant 0 : i32
    return %c0_i32, %c0_i32_0 : i32, i32
  }
  func.func @transform_5(%arg0: i32) -> (i32, i32) {
    %c0_i32 = arith.constant 0 : i32
    %c0_i32_0 = arith.constant 0 : i32
    %c0_i32_1 = arith.constant 0 : i32
    return %c0_i32, %c0_i32_0 : i32, i32
  }
  func.func @transform_6(%arg0: i32) -> (i32, i32, i32) {
    %c0_i32 = arith.constant 0 : i32
    %c0_i32_0 = arith.constant 0 : i32
    %c0_i32_1 = arith.constant 0 : i32
    return %arg0, %c0_i32, %c0_i32_0 : i32, i32, i32
  }
  func.func @transform_7(%arg0: i32) -> (i32, i32, i32) {
    %c0_i32 = arith.constant 0 : i32
    %c0_i32_0 = arith.constant 0 : i32
    %c0_i32_1 = arith.constant 0 : i32
    return %arg0, %c0_i32, %c0_i32_0 : i32, i32, i32
  }
}

module attributes {stable_mosaic.version = 11 : i64} {
  func.func @_bn_add_relu_kernel(%arg0: i32, %arg1: memref<512x4xf32, #tpu.memory_space<vmem>>, %arg2: memref<512x4xf32, #tpu.memory_space<vmem>>, %arg3: memref<1x4xf32, #tpu.memory_space<vmem>>, %arg4: memref<1x4xf32, #tpu.memory_space<vmem>>, %arg5: memref<512x4xf32, #tpu.memory_space<vmem>>) attributes {dimension_semantics = [#tpu.dimension_semantics<parallel>], iteration_bounds = array<i64: 1>, scalar_prefetch = 0 : i64, scratch_operands = 0 : i64, tpu.core_type = #tpu.core_type<tc>, window_params = [{transform_indices = @transform_0, window_bounds = array<i64: 512, 4>}, {transform_indices = @transform_1, window_bounds = array<i64: 512, 4>}, {pipeline_mode = #tpu.pipeline_mode<synchronous>, transform_indices = @transform_2, window_bounds = array<i64: 1, 4>}, {pipeline_mode = #tpu.pipeline_mode<synchronous>, transform_indices = @transform_3, window_bounds = array<i64: 1, 4>}, {transform_indices = @transform_4, window_bounds = array<i64: 512, 4>}]} {
    %c0 = arith.constant 0 : index
    %c0_0 = arith.constant 0 : index
    %0 = vector.load %arg1[%c0, %c0_0] : memref<512x4xf32, #tpu.memory_space<vmem>>, vector<512x4xf32>
    %c0_1 = arith.constant 0 : index
    %c0_2 = arith.constant 0 : index
    %1 = vector.load %arg3[%c0_1, %c0_2] : memref<1x4xf32, #tpu.memory_space<vmem>>, vector<1x4xf32>
    %2 = vector.broadcast %1 : vector<1x4xf32> to vector<512x4xf32>
    %3 = arith.mulf %0, %2 : vector<512x4xf32>
    %c0_3 = arith.constant 0 : index
    %c0_4 = arith.constant 0 : index
    %4 = vector.load %arg4[%c0_3, %c0_4] : memref<1x4xf32, #tpu.memory_space<vmem>>, vector<1x4xf32>
    %5 = vector.broadcast %4 : vector<1x4xf32> to vector<512x4xf32>
    %6 = arith.addf %3, %5 : vector<512x4xf32>
    %c0_5 = arith.constant 0 : index
    %c0_6 = arith.constant 0 : index
    %7 = vector.load %arg2[%c0_5, %c0_6] : memref<512x4xf32, #tpu.memory_space<vmem>>, vector<512x4xf32>
    %8 = arith.addf %6, %7 : vector<512x4xf32>
    %cst = arith.constant 0.000000e+00 : f32
    %9 = vector.broadcast %cst : f32 to vector<512x4xf32>
    %10 = arith.maximumf %8, %9 : vector<512x4xf32>
    %c0_7 = arith.constant 0 : index
    %c0_8 = arith.constant 0 : index
    %11 = vector.load %arg5[%c0_7, %c0_8] : memref<512x4xf32, #tpu.memory_space<vmem>>, vector<512x4xf32>
    tpu.vector_store %arg5[%c0_7, %c0_8], %10 {strides = array<i32>} : memref<512x4xf32, #tpu.memory_space<vmem>>, vector<512x4xf32>,
    return
  }
  func.func @transform_0(%arg0: i32) -> (i32, i32) {
    %c0_i32 = arith.constant 0 : i32
    %c0_i32_0 = arith.constant 0 : i32
    return %arg0, %c0_i32 : i32, i32
  }
  func.func @transform_1(%arg0: i32) -> (i32, i32) {
    %c0_i32 = arith.constant 0 : i32
    %c0_i32_0 = arith.constant 0 : i32
    return %arg0, %c0_i32 : i32, i32
  }
  func.func @transform_2(%arg0: i32) -> (i32, i32) {
    %c0_i32 = arith.constant 0 : i32
    %c0_i32_0 = arith.constant 0 : i32
    %c0_i32_1 = arith.constant 0 : i32
    return %c0_i32, %c0_i32_0 : i32, i32
  }
  func.func @transform_3(%arg0: i32) -> (i32, i32) {
    %c0_i32 = arith.constant 0 : i32
    %c0_i32_0 = arith.constant 0 : i32
    %c0_i32_1 = arith.constant 0 : i32
    return %c0_i32, %c0_i32_0 : i32, i32
  }
  func.func @transform_4(%arg0: i32) -> (i32, i32) {
    %c0_i32 = arith.constant 0 : i32
    %c0_i32_0 = arith.constant 0 : i32
    return %arg0, %c0_i32 : i32, i32
  }
}

</mosaic_0001>

<llo_original>
// kernel: block_forward.5
$region0: #{block_forward.5}
  #allocation0 [shape = 'u32[]', space=smem, size = 0x4, offset = 0x4, fixed_abs, tag = 'smem constant byte address 0x4 - core index']
  #allocation1 [shape = 'u32[144,128]{1,0:T(1,128)}', space=vmem, size = 0x12000, scoped, tag = 'internal scratch']
  %s0 = inlined_call_operand.vmem [shape: f32[512,4], index: 0, kind: input, shape index: {}]
  %s1 = inlined_call_operand.vmem [shape: f32[512,4], index: 1, kind: input, shape index: {}]
  %s2 = inlined_call_operand.vmem [shape: f32[1,4], index: 2, kind: input, shape index: {}]
  %s3 = inlined_call_operand.vmem [shape: f32[1,4], index: 3, kind: input, shape index: {}]
  %s4 = inlined_call_operand.vmem [shape: f32[512,4], index: 4, kind: output, shape index: {}]
  %s5 = sld [smem:[#allocation0]]
  $region26: #{block_forward.5} parent=0
    _
  %s7 = ssub.s32 1, %s5
  %s8 = scalar_select 0, %s7, %s5
  // Predicated region
  $region2: #{block_forward.5} parent=0 // pred_check
    _
  $region3: #{block_forward.5} parent=0 // pred_check_branch
    %10 = sbr.rel (0) target = $region5
  $region4: #{block_forward.5} parent=0 // pred_region
    _
  $region5: #{block_forward.5} parent=0 // pred_fallthru
    _
  // Predicated region
  $region6: #{block_forward.5} parent=0 // pred_check
    _
  $region7: #{block_forward.5} parent=0 // pred_check_branch
    %12 = sbr.rel (0) target = $region9
  $region8: #{block_forward.5} parent=0 // pred_region
    _
  $region9: #{block_forward.5} parent=0 // pred_fallthru
    _
  // Predicated region
  $region10: #{block_forward.5} parent=0 // pred_check
    _
  $region11: #{block_forward.5} parent=0 // pred_check_branch
    %14 = sbr.rel (0) target = $region13
  $region12: #{block_forward.5} parent=0 // pred_region
    _
  $region13: #{block_forward.5} parent=0 // pred_fallthru
    _
  // Predicated region
  $region14: #{block_forward.5} parent=0 // pred_check
    _
  $region15: #{block_forward.5} parent=0 // pred_check_branch
    %16 = sbr.rel (0) target = $region17
  $region16: #{block_forward.5} parent=0 // pred_region
    _
  $region17: #{block_forward.5} parent=0 // pred_fallthru
    _
  %v17 = vld [vmem:[%s0] sm:$0xff]
  %v18 = vld [vmem:[%s0 + $0x8] sm:$0xff]
  %v19 = vld [vmem:[%s0 + $0x10] sm:$0xff]
  %v20 = vld [vmem:[%s0 + $0x18] sm:$0xff]
  %v21 = vld [vmem:[%s0 + $0x20] sm:$0xff]
  %v22 = vld [vmem:[%s0 + $0x28] sm:$0xff]
  %v23 = vld [vmem:[%s0 + $0x30] sm:$0xff]
  %v24 = vld [vmem:[%s0 + $0x38] sm:$0xff]
  %v25 = vld [vmem:[%s0 + $0x40] sm:$0xff]
  %v26 = vld [vmem:[%s0 + $0x48] sm:$0xff]
  %v27 = vld [vmem:[%s0 + $0x50] sm:$0xff]
  %v28 = vld [vmem:[%s0 + $0x58] sm:$0xff]
  %v29 = vld [vmem:[%s0 + $0x60] sm:$0xff]
  %v30 = vld [vmem:[%s0 + $0x68] sm:$0xff]
  %v31 = vld [vmem:[%s0 + $0x70] sm:$0xff]
  %v32 = vld [vmem:[%s0 + $0x78] sm:$0xff]
  %v33 = vld [vmem:[%s0 + $0x80] sm:$0xff]
  %v34 = vld [vmem:[%s0 + $0x88] sm:$0xff]
  %v35 = vld [vmem:[%s0 + $0x90] sm:$0xff]
  %v36 = vld [vmem:[%s0 + $0x98] sm:$0xff]
  %v37 = vld [vmem:[%s0 + $0xa0] sm:$0xff]
  %v38 = vld [vmem:[%s0 + $0xa8] sm:$0xff]
  %v39 = vld [vmem:[%s0 + $0xb0] sm:$0xff]
  %v40 = vld [vmem:[%s0 + $0xb8] sm:$0xff]
  %v41 = vld [vmem:[%s0 + $0xc0] sm:$0xff]
  %v42 = vld [vmem:[%s0 + $0xc8] sm:$0xff]
  %v43 = vld [vmem:[%s0 + $0xd0] sm:$0xff]
  %v44 = vld [vmem:[%s0 + $0xd8] sm:$0xff]
  %v45 = vld [vmem:[%s0 + $0xe0] sm:$0xff]
  %v46 = vld [vmem:[%s0 + $0xe8] sm:$0xff]
  %v47 = vld [vmem:[%s0 + $0xf0] sm:$0xff]
  %v48 = vld [vmem:[%s0 + $0xf8] sm:$0xff]
  %v49 = vld [vmem:[%s0 + $0x100] sm:$0xff]
  %v50 = vld [vmem:[%s0 + $0x108] sm:$0xff]
  %v51 = vld [vmem:[%s0 + $0x110] sm:$0xff]
  %v52 = vld [vmem:[%s0 + $0x118] sm:$0xff]
  %v53 = vld [vmem:[%s0 + $0x120] sm:$0xff]
  %v54 = vld [vmem:[%s0 + $0x128] sm:$0xff]
  %v55 = vld [vmem:[%s0 + $0x130] sm:$0xff]
  %v56 = vld [vmem:[%s0 + $0x138] sm:$0xff]
  %v57 = vld [vmem:[%s0 + $0x140] sm:$0xff]
  %v58 = vld [vmem:[%s0 + $0x148] sm:$0xff]
  %v59 = vld [vmem:[%s0 + $0x150] sm:$0xff]
  %v60 = vld [vmem:[%s0 + $0x158] sm:$0xff]
  %v61 = vld [vmem:[%s0 + $0x160] sm:$0xff]
  %v62 = vld [vmem:[%s0 + $0x168] sm:$0xff]
  %v63 = vld [vmem:[%s0 + $0x170] sm:$0xff]
  %v64 = vld [vmem:[%s0 + $0x178] sm:$0xff]
  %v65 = vld [vmem:[%s0 + $0x180] sm:$0xff]
  %v66 = vld [vmem:[%s0 + $0x188] sm:$0xff]
  %v67 = vld [vmem:[%s0 + $0x190] sm:$0xff]
  %v68 = vld [vmem:[%s0 + $0x198] sm:$0xff]
  %v69 = vld [vmem:[%s0 + $0x1a0] sm:$0xff]
  %v70 = vld [vmem:[%s0 + $0x1a8] sm:$0xff]
  %v71 = vld [vmem:[%s0 + $0x1b0] sm:$0xff]
  %v72 = vld [vmem:[%s0 + $0x1b8] sm:$0xff]
  %v73 = vld [vmem:[%s0 + $0x1c0] sm:$0xff]
  %v74 = vld [vmem:[%s0 + $0x1c8] sm:$0xff]
  %v75 = vld [vmem:[%s0 + $0x1d0] sm:$0xff]
  %v76 = vld [vmem:[%s0 + $0x1d8] sm:$0xff]
  %v77 = vld [vmem:[%s0 + $0x1e0] sm:$0xff]
  %v78 = vld [vmem:[%s0 + $0x1e8] sm:$0xff]
  %v79 = vld [vmem:[%s0 + $0x1f0] sm:$0xff]
  %v80 = vld [vmem:[%s0 + $0x1f8] sm:$0xff]
  %v81 = vld [vmem:[%s2] sm:$0x1]
  %v83 = vlaneseq
  %v84 = vshrl.u32 %v83, 7
  %v85 = vsub.s32 0, %v84
  %v86 = vrot.slane %v81, %v85
  %v88 = vmul.f32 %v17, %v86
  %v89 = vmul.f32 %v18, %v86
  %v90 = vmul.f32 %v19, %v86
  %v91 = vmul.f32 %v20, %v86
  %v92 = vmul.f32 %v21, %v86
  %v93 = vmul.f32 %v22, %v86
  %v94 = vmul.f32 %v23, %v86
  %v95 = vmul.f32 %v24, %v86
  %v96 = vmul.f32 %v25, %v86
  %v97 = vmul.f32 %v26, %v86
  %v98 = vmul.f32 %v27, %v86
  %v99 = vmul.f32 %v28, %v86
  %v100 = vmul.f32 %v29, %v86
  %v101 = vmul.f32 %v30, %v86
  %v102 = vmul.f32 %v31, %v86
  %v103 = vmul.f32 %v32, %v86
  %v104 = vmul.f32 %v33, %v86
  %v105 = vmul.f32 %v34, %v86
  %v106 = vmul.f32 %v35, %v86
  %v107 = vmul.f32 %v36, %v86
  %v108 = vmul.f32 %v37, %v86
  %v109 = vmul.f32 %v38, %v86
  %v110 = vmul.f32 %v39, %v86
  %v111 = vmul.f32 %v40, %v86
  %v112 = vmul.f32 %v41, %v86
  %v113 = vmul.f32 %v42, %v86
  %v114 = vmul.f32 %v43, %v86
  %v115 = vmul.f32 %v44, %v86
  %v116 = vmul.f32 %v45, %v86
  %v117 = vmul.f32 %v46, %v86
  %v118 = vmul.f32 %v47, %v86
  %v119 = vmul.f32 %v48, %v86
  %v120 = vmul.f32 %v49, %v86
  %v121 = vmul.f32 %v50, %v86
  %v122 = vmul.f32 %v51, %v86
  %v123 = vmul.f32 %v52, %v86
  %v124 = vmul.f32 %v53, %v86
  %v125 = vmul.f32 %v54, %v86
  %v126 = vmul.f32 %v55, %v86
  %v127 = vmul.f32 %v56, %v86
  %v128 = vmul.f32 %v57, %v86
  %v129 = vmul.f32 %v58, %v86
  %v130 = vmul.f32 %v59, %v86
  %v131 = vmul.f32 %v60, %v86
  %v132 = vmul.f32 %v61, %v86
  %v133 = vmul.f32 %v62, %v86
  %v134 = vmul.f32 %v63, %v86
  %v135 = vmul.f32 %v64, %v86
  %v136 = vmul.f32 %v65, %v86
  %v137 = vmul.f32 %v66, %v86
  %v138 = vmul.f32 %v67, %v86
  %v139 = vmul.f32 %v68, %v86
  %v140 = vmul.f32 %v69, %v86
  %v141 = vmul.f32 %v70, %v86
  %v142 = vmul.f32 %v71, %v86
  %v143 = vmul.f32 %v72, %v86
  %v144 = vmul.f32 %v73, %v86
  %v145 = vmul.f32 %v74, %v86
  %v146 = vmul.f32 %v75, %v86
  %v147 = vmul.f32 %v76, %v86
  %v148 = vmul.f32 %v77, %v86
  %v149 = vmul.f32 %v78, %v86
  %v150 = vmul.f32 %v79, %v86
  %v151 = vmul.f32 %v80, %v86
  %v152 = vld [vmem:[%s3] sm:$0x1]
  %v154 = vlaneseq
  %v155 = vshrl.u32 %v154, 7
  %v156 = vsub.s32 0, %v155
  %v157 = vrot.slane %v152, %v156
  %v159 = vadd.f32 %v88, %v157
  %v160 = vadd.f32 %v89, %v157
  %v161 = vadd.f32 %v90, %v157
  %v162 = vadd.f32 %v91, %v157
  %v163 = vadd.f32 %v92, %v157
  %v164 = vadd.f32 %v93, %v157
  %v165 = vadd.f32 %v94, %v157
  %v166 = vadd.f32 %v95, %v157
  %v167 = vadd.f32 %v96, %v157
  %v168 = vadd.f32 %v97, %v157
  %v169 = vadd.f32 %v98, %v157
  %v170 = vadd.f32 %v99, %v157
  %v171 = vadd.f32 %v100, %v157
  %v172 = vadd.f32 %v101, %v157
  %v173 = vadd.f32 %v102, %v157
  %v174 = vadd.f32 %v103, %v157
  %v175 = vadd.f32 %v104, %v157
  %v176 = vadd.f32 %v105, %v157
  %v177 = vadd.f32 %v106, %v157
  %v178 = vadd.f32 %v107, %v157
  %v179 = vadd.f32 %v108, %v157
  %v180 = vadd.f32 %v109, %v157
  %v181 = vadd.f32 %v110, %v157
  %v182 = vadd.f32 %v111, %v157
  %v183 = vadd.f32 %v112, %v157
  %v184 = vadd.f32 %v113, %v157
  %v185 = vadd.f32 %v114, %v157
  %v186 = vadd.f32 %v115, %v157
  %v187 = vadd.f32 %v116, %v157
  %v188 = vadd.f32 %v117, %v157
  %v189 = vadd.f32 %v118, %v157
  %v190 = vadd.f32 %v119, %v157
  %v191 = vadd.f32 %v120, %v157
  %v192 = vadd.f32 %v121, %v157
  %v193 = vadd.f32 %v122, %v157
  %v194 = vadd.f32 %v123, %v157
  %v195 = vadd.f32 %v124, %v157
  %v196 = vadd.f32 %v125, %v157
  %v197 = vadd.f32 %v126, %v157
  %v198 = vadd.f32 %v127, %v157
  %v199 = vadd.f32 %v128, %v157
  %v200 = vadd.f32 %v129, %v157
  %v201 = vadd.f32 %v130, %v157
  %v202 = vadd.f32 %v131, %v157
  %v203 = vadd.f32 %v132, %v157
  %v204 = vadd.f32 %v133, %v157
  %v205 = vadd.f32 %v134, %v157
  %v206 = vadd.f32 %v135, %v157
  %v207 = vadd.f32 %v136, %v157
  %v208 = vadd.f32 %v137, %v157
  %v209 = vadd.f32 %v138, %v157
  %v210 = vadd.f32 %v139, %v157
  %v211 = vadd.f32 %v140, %v157
  %v212 = vadd.f32 %v141, %v157
  %v213 = vadd.f32 %v142, %v157
  %v214 = vadd.f32 %v143, %v157
  %v215 = vadd.f32 %v144, %v157
  %v216 = vadd.f32 %v145, %v157
  %v217 = vadd.f32 %v146, %v157
  %v218 = vadd.f32 %v147, %v157
  %v219 = vadd.f32 %v148, %v157
  %v220 = vadd.f32 %v149, %v157
  %v221 = vadd.f32 %v150, %v157
  %v222 = vadd.f32 %v151, %v157
  %v223 = vld [vmem:[%s1] sm:$0xff]
  %v224 = vld [vmem:[%s1 + $0x8] sm:$0xff]
  %v225 = vld [vmem:[%s1 + $0x10] sm:$0xff]
  %v226 = vld [vmem:[%s1 + $0x18] sm:$0xff]
  %v227 = vld [vmem:[%s1 + $0x20] sm:$0xff]
  %v228 = vld [vmem:[%s1 + $0x28] sm:$0xff]
  %v229 = vld [vmem:[%s1 + $0x30] sm:$0xff]
  %v230 = vld [vmem:[%s1 + $0x38] sm:$0xff]
  %v231 = vld [vmem:[%s1 + $0x40] sm:$0xff]
  %v232 = vld [vmem:[%s1 + $0x48] sm:$0xff]
  %v233 = vld [vmem:[%s1 + $0x50] sm:$0xff]
  %v234 = vld [vmem:[%s1 + $0x58] sm:$0xff]
  %v235 = vld [vmem:[%s1 + $0x60] sm:$0xff]
  %v236 = vld [vmem:[%s1 + $0x68] sm:$0xff]
  %v237 = vld [vmem:[%s1 + $0x70] sm:$0xff]
  %v238 = vld [vmem:[%s1 + $0x78] sm:$0xff]
  %v239 = vld [vmem:[%s1 + $0x80] sm:$0xff]
  %v240 = vld [vmem:[%s1 + $0x88] sm:$0xff]
  %v241 = vld [vmem:[%s1 + $0x90] sm:$0xff]
  %v242 = vld [vmem:[%s1 + $0x98] sm:$0xff]
  %v243 = vld [vmem:[%s1 + $0xa0] sm:$0xff]
  %v244 = vld [vmem:[%s1 + $0xa8] sm:$0xff]
  %v245 = vld [vmem:[%s1 + $0xb0] sm:$0xff]
  %v246 = vld [vmem:[%s1 + $0xb8] sm:$0xff]
  %v247 = vld [vmem:[%s1 + $0xc0] sm:$0xff]
  %v248 = vld [vmem:[%s1 + $0xc8] sm:$0xff]
  %v249 = vld [vmem:[%s1 + $0xd0] sm:$0xff]
  %v250 = vld [vmem:[%s1 + $0xd8] sm:$0xff]
  %v251 = vld [vmem:[%s1 + $0xe0] sm:$0xff]
  %v252 = vld [vmem:[%s1 + $0xe8] sm:$0xff]
  %v253 = vld [vmem:[%s1 + $0xf0] sm:$0xff]
  %v254 = vld [vmem:[%s1 + $0xf8] sm:$0xff]
  %v255 = vld [vmem:[%s1 + $0x100] sm:$0xff]
  %v256 = vld [vmem:[%s1 + $0x108] sm:$0xff]
  %v257 = vld [vmem:[%s1 + $0x110] sm:$0xff]
  %v258 = vld [vmem:[%s1 + $0x118] sm:$0xff]
  %v259 = vld [vmem:[%s1 + $0x120] sm:$0xff]
  %v260 = vld [vmem:[%s1 + $0x128] sm:$0xff]
  %v261 = vld [vmem:[%s1 + $0x130] sm:$0xff]
  %v262 = vld [vmem:[%s1 + $0x138] sm:$0xff]
  %v263 = vld [vmem:[%s1 + $0x140] sm:$0xff]
  %v264 = vld [vmem:[%s1 + $0x148] sm:$0xff]
  %v265 = vld [vmem:[%s1 + $0x150] sm:$0xff]
  %v266 = vld [vmem:[%s1 + $0x158] sm:$0xff]
  %v267 = vld [vmem:[%s1 + $0x160] sm:$0xff]
  %v268 = vld [vmem:[%s1 + $0x168] sm:$0xff]
  %v269 = vld [vmem:[%s1 + $0x170] sm:$0xff]
  %v270 = vld [vmem:[%s1 + $0x178] sm:$0xff]
  %v271 = vld [vmem:[%s1 + $0x180] sm:$0xff]
  %v272 = vld [vmem:[%s1 + $0x188] sm:$0xff]
  %v273 = vld [vmem:[%s1 + $0x190] sm:$0xff]
  %v274 = vld [vmem:[%s1 + $0x198] sm:$0xff]
  %v275 = vld [vmem:[%s1 + $0x1a0] sm:$0xff]
  %v276 = vld [vmem:[%s1 + $0x1a8] sm:$0xff]
  %v277 = vld [vmem:[%s1 + $0x1b0] sm:$0xff]
  %v278 = vld [vmem:[%s1 + $0x1b8] sm:$0xff]
  %v279 = vld [vmem:[%s1 + $0x1c0] sm:$0xff]
  %v280 = vld [vmem:[%s1 + $0x1c8] sm:$0xff]
  %v281 = vld [vmem:[%s1 + $0x1d0] sm:$0xff]
  %v282 = vld [vmem:[%s1 + $0x1d8] sm:$0xff]
  %v283 = vld [vmem:[%s1 + $0x1e0] sm:$0xff]
  %v284 = vld [vmem:[%s1 + $0x1e8] sm:$0xff]
  %v285 = vld [vmem:[%s1 + $0x1f0] sm:$0xff]
  %v286 = vld [vmem:[%s1 + $0x1f8] sm:$0xff]
  %v287 = vadd.f32 %v159, %v223
  %v288 = vadd.f32 %v160, %v224
  %v289 = vadd.f32 %v161, %v225
  %v290 = vadd.f32 %v162, %v226
  %v291 = vadd.f32 %v163, %v227
  %v292 = vadd.f32 %v164, %v228
  %v293 = vadd.f32 %v165, %v229
  %v294 = vadd.f32 %v166, %v230
  %v295 = vadd.f32 %v167, %v231
  %v296 = vadd.f32 %v168, %v232
  %v297 = vadd.f32 %v169, %v233
  %v298 = vadd.f32 %v170, %v234
  %v299 = vadd.f32 %v171, %v235
  %v300 = vadd.f32 %v172, %v236
  %v301 = vadd.f32 %v173, %v237
  %v302 = vadd.f32 %v174, %v238
  %v303 = vadd.f32 %v175, %v239
  %v304 = vadd.f32 %v176, %v240
  %v305 = vadd.f32 %v177, %v241
  %v306 = vadd.f32 %v178, %v242
  %v307 = vadd.f32 %v179, %v243
  %v308 = vadd.f32 %v180, %v244
  %v309 = vadd.f32 %v181, %v245
  %v310 = vadd.f32 %v182, %v246
  %v311 = vadd.f32 %v183, %v247
  %v312 = vadd.f32 %v184, %v248
  %v313 = vadd.f32 %v185, %v249
  %v314 = vadd.f32 %v186, %v250
  %v315 = vadd.f32 %v187, %v251
  %v316 = vadd.f32 %v188, %v252
  %v317 = vadd.f32 %v189, %v253
  %v318 = vadd.f32 %v190, %v254
  %v319 = vadd.f32 %v191, %v255
  %v320 = vadd.f32 %v192, %v256
  %v321 = vadd.f32 %v193, %v257
  %v322 = vadd.f32 %v194, %v258
  %v323 = vadd.f32 %v195, %v259
  %v324 = vadd.f32 %v196, %v260
  %v325 = vadd.f32 %v197, %v261
  %v326 = vadd.f32 %v198, %v262
  %v327 = vadd.f32 %v199, %v263
  %v328 = vadd.f32 %v200, %v264
  %v329 = vadd.f32 %v201, %v265
  %v330 = vadd.f32 %v202, %v266
  %v331 = vadd.f32 %v203, %v267
  %v332 = vadd.f32 %v204, %v268
  %v333 = vadd.f32 %v205, %v269
  %v334 = vadd.f32 %v206, %v270
  %v335 = vadd.f32 %v207, %v271
  %v336 = vadd.f32 %v208, %v272
  %v337 = vadd.f32 %v209, %v273
  %v338 = vadd.f32 %v210, %v274
  %v339 = vadd.f32 %v211, %v275
  %v340 = vadd.f32 %v212, %v276
  %v341 = vadd.f32 %v213, %v277
  %v342 = vadd.f32 %v214, %v278
  %v343 = vadd.f32 %v215, %v279
  %v344 = vadd.f32 %v216, %v280
  %v345 = vadd.f32 %v217, %v281
  %v346 = vadd.f32 %v218, %v282
  %v347 = vadd.f32 %v219, %v283
  %v348 = vadd.f32 %v220, %v284
  %v349 = vadd.f32 %v221, %v285
  %v350 = vadd.f32 %v222, %v286
  %v351 = vmax.f32 %v287, 0.0
  %v352 = vmax.f32 %v288, 0.0
  %v353 = vmax.f32 %v289, 0.0
  %v354 = vmax.f32 %v290, 0.0
  %v355 = vmax.f32 %v291, 0.0
  %v356 = vmax.f32 %v292, 0.0
  %v357 = vmax.f32 %v293, 0.0
  %v358 = vmax.f32 %v294, 0.0
  %v359 = vmax.f32 %v295, 0.0
  %v360 = vmax.f32 %v296, 0.0
  %v361 = vmax.f32 %v297, 0.0
  %v362 = vmax.f32 %v298, 0.0
  %v363 = vmax.f32 %v299, 0.0
  %v364 = vmax.f32 %v300, 0.0
  %v365 = vmax.f32 %v301, 0.0
  %v366 = vmax.f32 %v302, 0.0
  %v367 = vmax.f32 %v303, 0.0
  %v368 = vmax.f32 %v304, 0.0
  %v369 = vmax.f32 %v305, 0.0
  %v370 = vmax.f32 %v306, 0.0
  %v371 = vmax.f32 %v307, 0.0
  %v372 = vmax.f32 %v308, 0.0
  %v373 = vmax.f32 %v309, 0.0
  %v374 = vmax.f32 %v310, 0.0
  %v375 = vmax.f32 %v311, 0.0
  %v376 = vmax.f32 %v312, 0.0
  %v377 = vmax.f32 %v313, 0.0
  %v378 = vmax.f32 %v314, 0.0
  %v379 = vmax.f32 %v315, 0.0
  %v380 = vmax.f32 %v316, 0.0
  %v381 = vmax.f32 %v317, 0.0
  %v382 = vmax.f32 %v318, 0.0
  %v383 = vmax.f32 %v319, 0.0
  %v384 = vmax.f32 %v320, 0.0
  %v385 = vmax.f32 %v321, 0.0
  %v386 = vmax.f32 %v322, 0.0
  %v387 = vmax.f32 %v323, 0.0
  %v388 = vmax.f32 %v324, 0.0
  %v389 = vmax.f32 %v325, 0.0
  %v390 = vmax.f32 %v326, 0.0
  %v391 = vmax.f32 %v327, 0.0
  %v392 = vmax.f32 %v328, 0.0
  %v393 = vmax.f32 %v329, 0.0
  %v394 = vmax.f32 %v330, 0.0
  %v395 = vmax.f32 %v331, 0.0
  %v396 = vmax.f32 %v332, 0.0
  %v397 = vmax.f32 %v333, 0.0
  %v398 = vmax.f32 %v334, 0.0
  %v399 = vmax.f32 %v335, 0.0
  %v400 = vmax.f32 %v336, 0.0
  %v401 = vmax.f32 %v337, 0.0
  %v402 = vmax.f32 %v338, 0.0
  %v403 = vmax.f32 %v339, 0.0
  %v404 = vmax.f32 %v340, 0.0
  %v405 = vmax.f32 %v341, 0.0
  %v406 = vmax.f32 %v342, 0.0
  %v407 = vmax.f32 %v343, 0.0
  %v408 = vmax.f32 %v344, 0.0
  %v409 = vmax.f32 %v345, 0.0
  %v410 = vmax.f32 %v346, 0.0
  %v411 = vmax.f32 %v347, 0.0
  %v412 = vmax.f32 %v348, 0.0
  %v413 = vmax.f32 %v349, 0.0
  %v414 = vmax.f32 %v350, 0.0
  %vm415 = vcmask 31744
  %416 = vst.msk [vmem:[%s4] sm:$0xff] %vm415, %v351
  %417 = vst.msk [vmem:[%s4 + $0x8] sm:$0xff] %vm415, %v352
  %418 = vst.msk [vmem:[%s4 + $0x10] sm:$0xff] %vm415, %v353
  %419 = vst.msk [vmem:[%s4 + $0x18] sm:$0xff] %vm415, %v354
  %420 = vst.msk [vmem:[%s4 + $0x20] sm:$0xff] %vm415, %v355
  %421 = vst.msk [vmem:[%s4 + $0x28] sm:$0xff] %vm415, %v356
  %422 = vst.msk [vmem:[%s4 + $0x30] sm:$0xff] %vm415, %v357
  %423 = vst.msk [vmem:[%s4 + $0x38] sm:$0xff] %vm415, %v358
  %424 = vst.msk [vmem:[%s4 + $0x40] sm:$0xff] %vm415, %v359
  %425 = vst.msk [vmem:[%s4 + $0x48] sm:$0xff] %vm415, %v360
  %426 = vst.msk [vmem:[%s4 + $0x50] sm:$0xff] %vm415, %v361
  %427 = vst.msk [vmem:[%s4 + $0x58] sm:$0xff] %vm415, %v362
  %428 = vst.msk [vmem:[%s4 + $0x60] sm:$0xff] %vm415, %v363
  %429 = vst.msk [vmem:[%s4 + $0x68] sm:$0xff] %vm415, %v364
  %430 = vst.msk [vmem:[%s4 + $0x70] sm:$0xff] %vm415, %v365
  %431 = vst.msk [vmem:[%s4 + $0x78] sm:$0xff] %vm415, %v366
  %432 = vst.msk [vmem:[%s4 + $0x80] sm:$0xff] %vm415, %v367
  %433 = vst.msk [vmem:[%s4 + $0x88] sm:$0xff] %vm415, %v368
  %434 = vst.msk [vmem:[%s4 + $0x90] sm:$0xff] %vm415, %v369
  %435 = vst.msk [vmem:[%s4 + $0x98] sm:$0xff] %vm415, %v370
  %436 = vst.msk [vmem:[%s4 + $0xa0] sm:$0xff] %vm415, %v371
  %437 = vst.msk [vmem:[%s4 + $0xa8] sm:$0xff] %vm415, %v372
  %438 = vst.msk [vmem:[%s4 + $0xb0] sm:$0xff] %vm415, %v373
  %439 = vst.msk [vmem:[%s4 + $0xb8] sm:$0xff] %vm415, %v374
  %440 = vst.msk [vmem:[%s4 + $0xc0] sm:$0xff] %vm415, %v375
  %441 = vst.msk [vmem:[%s4 + $0xc8] sm:$0xff] %vm415, %v376
  %442 = vst.msk [vmem:[%s4 + $0xd0] sm:$0xff] %vm415, %v377
  %443 = vst.msk [vmem:[%s4 + $0xd8] sm:$0xff] %vm415, %v378
  %444 = vst.msk [vmem:[%s4 + $0xe0] sm:$0xff] %vm415, %v379
  %445 = vst.msk [vmem:[%s4 + $0xe8] sm:$0xff] %vm415, %v380
  %446 = vst.msk [vmem:[%s4 + $0xf0] sm:$0xff] %vm415, %v381
  %447 = vst.msk [vmem:[%s4 + $0xf8] sm:$0xff] %vm415, %v382
  %448 = vst.msk [vmem:[%s4 + $0x100] sm:$0xff] %vm415, %v383
  %449 = vst.msk [vmem:[%s4 + $0x108] sm:$0xff] %vm415, %v384
  %450 = vst.msk [vmem:[%s4 + $0x110] sm:$0xff] %vm415, %v385
  %451 = vst.msk [vmem:[%s4 + $0x118] sm:$0xff] %vm415, %v386
  %452 = vst.msk [vmem:[%s4 + $0x120] sm:$0xff] %vm415, %v387
  %453 = vst.msk [vmem:[%s4 + $0x128] sm:$0xff] %vm415, %v388
  %454 = vst.msk [vmem:[%s4 + $0x130] sm:$0xff] %vm415, %v389
  %455 = vst.msk [vmem:[%s4 + $0x138] sm:$0xff] %vm415, %v390
  %456 = vst.msk [vmem:[%s4 + $0x140] sm:$0xff] %vm415, %v391
  %457 = vst.msk [vmem:[%s4 + $0x148] sm:$0xff] %vm415, %v392
  %458 = vst.msk [vmem:[%s4 + $0x150] sm:$0xff] %vm415, %v393
  %459 = vst.msk [vmem:[%s4 + $0x158] sm:$0xff] %vm415, %v394
  %460 = vst.msk [vmem:[%s4 + $0x160] sm:$0xff] %vm415, %v395
  %461 = vst.msk [vmem:[%s4 + $0x168] sm:$0xff] %vm415, %v396
  %462 = vst.msk [vmem:[%s4 + $0x170] sm:$0xff] %vm415, %v397
  %463 = vst.msk [vmem:[%s4 + $0x178] sm:$0xff] %vm415, %v398
  %464 = vst.msk [vmem:[%s4 + $0x180] sm:$0xff] %vm415, %v399
  %465 = vst.msk [vmem:[%s4 + $0x188] sm:$0xff] %vm415, %v400
  %466 = vst.msk [vmem:[%s4 + $0x190] sm:$0xff] %vm415, %v401
  %467 = vst.msk [vmem:[%s4 + $0x198] sm:$0xff] %vm415, %v402
  %468 = vst.msk [vmem:[%s4 + $0x1a0] sm:$0xff] %vm415, %v403
  %469 = vst.msk [vmem:[%s4 + $0x1a8] sm:$0xff] %vm415, %v404
  %470 = vst.msk [vmem:[%s4 + $0x1b0] sm:$0xff] %vm415, %v405
  %471 = vst.msk [vmem:[%s4 + $0x1b8] sm:$0xff] %vm415, %v406
  %472 = vst.msk [vmem:[%s4 + $0x1c0] sm:$0xff] %vm415, %v407
  %473 = vst.msk [vmem:[%s4 + $0x1c8] sm:$0xff] %vm415, %v408
  %474 = vst.msk [vmem:[%s4 + $0x1d0] sm:$0xff] %vm415, %v409
  %475 = vst.msk [vmem:[%s4 + $0x1d8] sm:$0xff] %vm415, %v410
  %476 = vst.msk [vmem:[%s4 + $0x1e0] sm:$0xff] %vm415, %v411
  %477 = vst.msk [vmem:[%s4 + $0x1e8] sm:$0xff] %vm415, %v412
  %478 = vst.msk [vmem:[%s4 + $0x1f0] sm:$0xff] %vm415, %v413
  %479 = vst.msk [vmem:[%s4 + $0x1f8] sm:$0xff] %vm415, %v414
  // Predicated region
  $region18: #{block_forward.5} parent=0 // pred_check
    _
  $region19: #{block_forward.5} parent=0 // pred_check_branch
    %481 = sbr.rel (0) target = $region21
  $region20: #{block_forward.5} parent=0 // pred_region
    _
  $region21: #{block_forward.5} parent=0 // pred_fallthru
    _
  // Predicated region
  $region22: #{block_forward.5} parent=0 // pred_check
    _
  $region23: #{block_forward.5} parent=0 // pred_check_branch
    %483 = sbr.rel (0) target = $region25
  $region24: #{block_forward.5} parent=0 // pred_region
    _
  $region25: #{block_forward.5} parent=0 // pred_fallthru
    _

// kernel: block_forward.4
$region0: #{block_forward.4}
  #allocation0 [shape = 'u32[]', space=smem, size = 0x4, offset = 0x4, fixed_abs, tag = 'smem constant byte address 0x4 - core index']
  #allocation1 [shape = 'u32[144,128]{1,0:T(1,128)}', space=vmem, size = 0x12000, scoped, tag = 'internal scratch']
  %s0 = inlined_call_operand.vmem [shape: f32[2,326,4], index: 0, kind: input, shape index: {}]
  %s1 = inlined_call_operand.vmem [shape: bf16[9,4,4], index: 1, kind: input, shape index: {}]
  %s2 = inlined_call_operand.vmem [shape: f32[1,4], index: 2, kind: input, shape index: {}]
  %s3 = inlined_call_operand.vmem [shape: f32[1,4], index: 3, kind: input, shape index: {}]
  %s4 = inlined_call_operand.vmem [shape: f32[326,1], index: 4, kind: input, shape index: {}]
  %s5 = inlined_call_operand.vmem [shape: f32[288,1], index: 5, kind: input, shape index: {}]
  %s6 = inlined_call_operand.vmem [shape: f32[2,288,4], index: 6, kind: output, shape index: {0}]
  %s7 = inlined_call_operand.vmem [shape: f32[2,2,4], index: 7, kind: output, shape index: {1}]
  %8 = xla_tuple %s6, %s7
  %s9 = sld [smem:[#allocation0]]
  $region65: #{block_forward.4} parent=0
    _
  %s11 = ssub.s32 1, %s9
  %s12 = scalar_select 0, %s11, %s9
  loop: start=0, step=1, limit=4
  $region2: #{block_forward.4} parent=0 // loop_pre_header
    _
  $region3: #{block_forward.4} parent=0 // loop_header
    %s14 = sphi 0, %s18
    %p15 = scmp.ge.s32.totalorder %s14, 4
    %s24 = sphi 0, %s26
    %s27 = sphi 0, %s24
    %s28 = sphi 0, %s27
    %s44 = sphi 0, %s28
    %s48 = sphi 0, %s48
    %s50 = sphi 0, %s48
    %s51 = sphi 0, %s50
    %s65 = sphi 0, %s51
    %s69 = sphi 0, %s69
    %s71 = sphi 0, %s69
    %s72 = sphi 0, %s71
    %s86 = sphi 0, %s72
    %s90 = sphi 0, %s90
    %s92 = sphi 0, %s90
    %s93 = sphi 0, %s92
    %s107 = sphi 0, %s93
    %s111 = sphi 0, %s111
    %s113 = sphi 0, %s111
    %s114 = sphi 0, %s113
    %s128 = sphi 0, %s114
    %s132 = sphi 0, %s132
    %s134 = sphi 0, %s132
    %s135 = sphi 0, %s134
    %s149 = sphi 0, %s135
    %s155 = sphi 0, %s157
    %s158 = sphi 0, %s155
    %s159 = sphi 0, %s158
    %s175 = sphi 0, %s159
    %s181 = sphi 0, %s183
    %s184 = sphi 0, %s181
    %s185 = sphi 0, %s184
    %s201 = sphi 0, %s185
  $region4: #{block_forward.4} parent=0 // loop_header_branch
    %17 = sbr.rel (%p15) target = $region8
  $region5: #{block_forward.4} parent=0 // loop_body
    %s19 = ssub.s32 %s14, 1
    %s20 = ssub.s32 %s14, 2
    %s21 = sadd.s32 %s14, 1
    %s22 = ssub.s32 %s14, %s21
    %p23 = scmp.eq.s32.totalorder %s22, 0
    %s25 = sadd.s32 %s24, 1
    %s26 = scalar_select %p23, %s24, %s25
    %p29 = pneg %p23
    %p30 = scmp.eq.s32.totalorder %s14, 1
    %p31 = por %p29, %p30
    %p32 = scmp.ne.s32.totalorder %s24, %s27
    %p33 = scmp.eq.s32.totalorder %s14, 0
    %p34 = por %p32, %p33
    %p35 = scmp.ne.s32.totalorder %s24, %s27
    %p36 = scmp.eq.s32.totalorder %s19, 1
    %p37 = por %p35, %p36
    %p38 = scmp.ne.s32.totalorder %s27, %s28
    %p39 = scmp.eq.s32.totalorder %s19, 0
    %p40 = por %p38, %p39
    %p41 = scmp.ne.s32.totalorder %s27, %s28
    %p42 = scmp.eq.s32.totalorder %s20, 1
    %p43 = por %p41, %p42
    %p45 = scmp.ne.s32.totalorder %s28, %s44
    %p46 = scmp.eq.s32.totalorder %s20, 0
    %p47 = por %p45, %p46
    %s49 = sadd.s32 %s48, 1
    %p52 = scmp.eq.s32.totalorder %s14, 1
    %p53 = scmp.ne.s32.totalorder %s48, %s50
    %p54 = scmp.eq.s32.totalorder %s14, 0
    %p55 = por %p53, %p54
    %p56 = scmp.ne.s32.totalorder %s48, %s50
    %p57 = scmp.eq.s32.totalorder %s19, 1
    %p58 = por %p56, %p57
    %p59 = scmp.ne.s32.totalorder %s50, %s51
    %p60 = scmp.eq.s32.totalorder %s19, 0
    %p61 = por %p59, %p60
    %p62 = scmp.ne.s32.totalorder %s50, %s51
    %p63 = scmp.eq.s32.totalorder %s20, 1
    %p64 = por %p62, %p63
    %p66 = scmp.ne.s32.totalorder %s51, %s65
    %p67 = scmp.eq.s32.totalorder %s20, 0
    %p68 = por %p66, %p67
    %s70 = sadd.s32 %s69, 1
    %p73 = scmp.eq.s32.totalorder %s14, 1
    %p74 = scmp.ne.s32.totalorder %s69, %s71
    %p75 = scmp.eq.s32.totalorder %s14, 0
    %p76 = por %p74, %p75
    %p77 = scmp.ne.s32.totalorder %s69, %s71
    %p78 = scmp.eq.s32.totalorder %s19, 1
    %p79 = por %p77, %p78
    %p80 = scmp.ne.s32.totalorder %s71, %s72
    %p81 = scmp.eq.s32.totalorder %s19, 0
    %p82 = por %p80, %p81
    %p83 = scmp.ne.s32.totalorder %s71, %s72
    %p84 = scmp.eq.s32.totalorder %s20, 1
    %p85 = por %p83, %p84
    %p87 = scmp.ne.s32.totalorder %s72, %s86
    %p88 = scmp.eq.s32.totalorder %s20, 0
    %p89 = por %p87, %p88
    %s91 = sadd.s32 %s90, 1
    %p94 = scmp.eq.s32.totalorder %s14, 1
    %p95 = scmp.ne.s32.totalorder %s90, %s92
    %p96 = scmp.eq.s32.totalorder %s14, 0
    %p97 = por %p95, %p96
    %p98 = scmp.ne.s32.totalorder %s90, %s92
    %p99 = scmp.eq.s32.totalorder %s19, 1
    %p100 = por %p98, %p99
    %p101 = scmp.ne.s32.totalorder %s92, %s93
    %p102 = scmp.eq.s32.totalorder %s19, 0
    %p103 = por %p101, %p102
    %p104 = scmp.ne.s32.totalorder %s92, %s93
    %p105 = scmp.eq.s32.totalorder %s20, 1
    %p106 = por %p104, %p105
    %p108 = scmp.ne.s32.totalorder %s93, %s107
    %p109 = scmp.eq.s32.totalorder %s20, 0
    %p110 = por %p108, %p109
    %s112 = sadd.s32 %s111, 1
    %p115 = scmp.eq.s32.totalorder %s14, 1
    %p116 = scmp.ne.s32.totalorder %s111, %s113
    %p117 = scmp.eq.s32.totalorder %s14, 0
    %p118 = por %p116, %p117
    %p119 = scmp.ne.s32.totalorder %s111, %s113
    %p120 = scmp.eq.s32.totalorder %s19, 1
    %p121 = por %p119, %p120
    %p122 = scmp.ne.s32.totalorder %s113, %s114
    %p123 = scmp.eq.s32.totalorder %s19, 0
    %p124 = por %p122, %p123
    %p125 = scmp.ne.s32.totalorder %s113, %s114
    %p126 = scmp.eq.s32.totalorder %s20, 1
    %p127 = por %p125, %p126
    %p129 = scmp.ne.s32.totalorder %s114, %s128
    %p130 = scmp.eq.s32.totalorder %s20, 0
    %p131 = por %p129, %p130
    %s133 = sadd.s32 %s132, 1
    %p136 = scmp.eq.s32.totalorder %s14, 1
    %p137 = scmp.ne.s32.totalorder %s132, %s134
    %p138 = scmp.eq.s32.totalorder %s14, 0
    %p139 = por %p137, %p138
    %p140 = scmp.ne.s32.totalorder %s132, %s134
    %p141 = scmp.eq.s32.totalorder %s19, 1
    %p142 = por %p140, %p141
    %p143 = scmp.ne.s32.totalorder %s134, %s135
    %p144 = scmp.eq.s32.totalorder %s19, 0
    %p145 = por %p143, %p144
    %p146 = scmp.ne.s32.totalorder %s134, %s135
    %p147 = scmp.eq.s32.totalorder %s20, 1
    %p148 = por %p146, %p147
    %p150 = scmp.ne.s32.totalorder %s135, %s149
    %p151 = scmp.eq.s32.totalorder %s20, 0
    %p152 = por %p150, %p151
    %s153 = ssub.s32 %s14, %s21
    %p154 = scmp.eq.s32.totalorder %s153, 0
    %s156 = sadd.s32 %s155, 1
    %s157 = scalar_select %p154, %s155, %s156
    %p160 = pneg %p154
    %p161 = scmp.eq.s32.totalorder %s14, 1
    %p162 = por %p160, %p161
    %p163 = scmp.ne.s32.totalorder %s155, %s158
    %p164 = scmp.eq.s32.totalorder %s14, 0
    %p165 = por %p163, %p164
    %p166 = scmp.ne.s32.totalorder %s155, %s158
    %p167 = scmp.eq.s32.totalorder %s19, 1
    %p168 = por %p166, %p167
    %p169 = scmp.ne.s32.totalorder %s158, %s159
    %p170 = scmp.eq.s32.totalorder %s19, 0
    %p171 = por %p169, %p170
    %p172 = scmp.ne.s32.totalorder %s158, %s159
    %p173 = scmp.eq.s32.totalorder %s20, 1
    %p174 = por %p172, %p173
    %p176 = scmp.ne.s32.totalorder %s159, %s175
    %p177 = scmp.eq.s32.totalorder %s20, 0
    %p178 = por %p176, %p177
    %s179 = ssub.s32 %s14, %s21
    %p180 = scmp.eq.s32.totalorder %s179, 0
    %s182 = sadd.s32 %s181, 1
    %s183 = scalar_select %p180, %s181, %s182
    %p186 = pneg %p180
    %p187 = scmp.eq.s32.totalorder %s14, 1
    %p188 = por %p186, %p187
    %p189 = scmp.ne.s32.totalorder %s181, %s184
    %p190 = scmp.eq.s32.totalorder %s14, 0
    %p191 = por %p189, %p190
    %p192 = scmp.ne.s32.totalorder %s181, %s184
    %p193 = scmp.eq.s32.totalorder %s19, 1
    %p194 = por %p192, %p193
    %p195 = scmp.ne.s32.totalorder %s184, %s185
    %p196 = scmp.eq.s32.totalorder %s19, 0
    %p197 = por %p195, %p196
    %p198 = scmp.ne.s32.totalorder %s184, %s185
    %p199 = scmp.eq.s32.totalorder %s20, 1
    %p200 = por %p198, %p199
    %p202 = scmp.ne.s32.totalorder %s185, %s201
    %p203 = scmp.eq.s32.totalorder %s20, 0
    %p204 = por %p202, %p203
    %p205 = scmp.le.s32.totalorder 1, %s14
    %p206 = scmp.lt.s32.totalorder %s14, 3
    %p207 = pnand %p205, %p206
    %p208 = pneg %p207
    // Predicated region
    $region9: #{block_forward.4} parent=5 // pred_check
      _
    $region10: #{block_forward.4} parent=5 // pred_check_branch
      %210 = sbr.rel (%p207) target = $region12
    $region11: #{block_forward.4} parent=5 // pred_region
      %s211 = ssub.s32 %s14, 1
      // Predicated region
      $region13: #{block_forward.4} parent=11 // pred_check
        %p212 = pneg %p61
      $region14: #{block_forward.4} parent=11 // pred_check_branch
        %214 = sbr.rel (%p212) target = $region16
      $region15: #{block_forward.4} parent=11 // pred_region
        _
      $region16: #{block_forward.4} parent=11 // pred_fallthru
        _
      // Predicated region
      $region17: #{block_forward.4} parent=11 // pred_check
        %p215 = pneg %p82
      $region18: #{block_forward.4} parent=11 // pred_check_branch
        %217 = sbr.rel (%p215) target = $region20
      $region19: #{block_forward.4} parent=11 // pred_region
        _
      $region20: #{block_forward.4} parent=11 // pred_fallthru
        _
      // Predicated region
      $region21: #{block_forward.4} parent=11 // pred_check
        %p218 = pneg %p103
      $region22: #{block_forward.4} parent=11 // pred_check_branch
        %220 = sbr.rel (%p218) target = $region24
      $region23: #{block_forward.4} parent=11 // pred_region
        _
      $region24: #{block_forward.4} parent=11 // pred_fallthru
        _
      // Predicated region
      $region25: #{block_forward.4} parent=11 // pred_check
        %p221 = pneg %p124
      $region26: #{block_forward.4} parent=11 // pred_check_branch
        %223 = sbr.rel (%p221) target = $region28
      $region27: #{block_forward.4} parent=11 // pred_region
        _
      $region28: #{block_forward.4} parent=11 // pred_fallthru
        _
      // Predicated region
      $region29: #{block_forward.4} parent=11 // pred_check
        %p224 = pneg %p145
      $region30: #{block_forward.4} parent=11 // pred_check_branch
        %226 = sbr.rel (%p224) target = $region32
      $region31: #{block_forward.4} parent=11 // pred_region
        _
      $region32: #{block_forward.4} parent=11 // pred_fallthru
        _
    $region12: #{block_forward.4} parent=5 // pred_fallthru
      _
    %p227 = scmp.lt.s32.totalorder %s14, 2
    // Predicated region
    $region33: #{block_forward.4} parent=5 // pred_check
      %p228 = pneg %p227
    $region34: #{block_forward.4} parent=5 // pred_check_branch
      %230 = sbr.rel (%p228) target = $region36
    $region35: #{block_forward.4} parent=5 // pred_region
      // Predicated region
      $region37: #{block_forward.4} parent=35 // pred_check
        %p231 = pneg %p34
      $region38: #{block_forward.4} parent=35 // pred_check_branch
        %233 = sbr.rel (%p231) target = $region40
      $region39: #{block_forward.4} parent=35 // pred_region
        %p234 = scmp.lt.s32.totalorder %s14, 1
        %s235 = scalar_select %p234, %s14, 1
        %s236 = smul.addr %s235, 41
        %s237 = smul.addr %s236, 8
        %s238 = scalar_lea.vmem %s0, %s237
      $region40: #{block_forward.4} parent=35 // pred_fallthru
        _
    $region36: #{block_forward.4} parent=5 // pred_fallthru
      _
    %p239 = scmp.le.s32.totalorder 1, %s14
    %p240 = scmp.lt.s32.totalorder %s14, 3
    %p241 = pnand %p239, %p240
    %p242 = pneg %p241
    // Predicated region
    $region41: #{block_forward.4} parent=5 // pred_check
      _
    $region42: #{block_forward.4} parent=5 // pred_check_branch
      %244 = sbr.rel (%p241) target = $region44
    $region43: #{block_forward.4} parent=5 // pred_region
      %s245 = ssub.s32 %s14, 1
      %p246 = scmp.lt.s32.totalorder %s19, 1
      %s247 = scalar_select %p246, %s19, 1
      %s248 = smul.addr %s247, 41
      %s249 = smul.addr %s248, 8
      %s250 = scalar_lea.vmem %s0, %s249
      %p251 = pneg %p40
      %p252 = pneg %p37
      %p253 = pneg %p61
      %p254 = pneg %p58
      %p255 = pneg %p82
      %p256 = pneg %p79
      %p257 = pneg %p103
      %p258 = pneg %p100
      %p259 = pneg %p124
      %p260 = pneg %p121
      %p261 = pneg %p145
      %p262 = pneg %p142
      %p263 = pneg %p171
      %p264 = pneg %p168
      %p265 = scmp.lt.s32.totalorder %s19, 1
      %s266 = scalar_select %p265, %s19, 1
      %s267 = smul.addr %s266, 36
      %s268 = smul.addr %s267, 8
      %s269 = scalar_lea.vmem %s6, %s268
      %p270 = pneg %p197
      %p271 = pneg %p194
      %p272 = scmp.lt.s32.totalorder %s19, 1
      %s273 = scalar_select %p272, %s19, 1
      %s274 = smul.addr %s273, 2
      %s275 = scalar_lea.vmem %s7, %s274
      %p276 = scmp.lt.s32.totalorder %s19, 1
      %s277 = scalar_select %p276, %s19, 1
      %s278 = smul.addr %s277, 41
      %s279 = smul.addr %s278, 8
      %s280 = scalar_lea.vmem %s0, %s279
      %p281 = scmp.lt.s32.totalorder %s19, 1
      %s282 = scalar_select %p281, %s19, 1
      %s283 = smul.addr %s282, 36
      %s284 = smul.addr %s283, 8
      %s285 = scalar_lea.vmem %s6, %s284
      %p286 = scmp.lt.s32.totalorder %s19, 1
      %s287 = scalar_select %p286, %s19, 1
      %s288 = smul.addr %s287, 2
      %s289 = scalar_lea.vmem %s7, %s288
      %v291 = vld [vmem:[%s280] sm:$0xff]
      %v292 = vld [vmem:[%s280 + $0x8] sm:$0xff]
      %v293 = vld [vmem:[%s280 + $0x10] sm:$0xff]
      %v294 = vld [vmem:[%s280 + $0x18] sm:$0xff]
      %v295 = vld [vmem:[%s280 + $0x20] sm:$0xff]
      %v296 = vld [vmem:[%s280 + $0x28] sm:$0xff]
      %v297 = vld [vmem:[%s280 + $0x30] sm:$0xff]
      %v298 = vld [vmem:[%s280 + $0x38] sm:$0xff]
      %v299 = vld [vmem:[%s280 + $0x40] sm:$0xff]
      %v300 = vld [vmem:[%s280 + $0x48] sm:$0xff]
      %v301 = vld [vmem:[%s280 + $0x50] sm:$0xff]
      %v302 = vld [vmem:[%s280 + $0x58] sm:$0xff]
      %v303 = vld [vmem:[%s280 + $0x60] sm:$0xff]
      %v304 = vld [vmem:[%s280 + $0x68] sm:$0xff]
      %v305 = vld [vmem:[%s280 + $0x70] sm:$0xff]
      %v306 = vld [vmem:[%s280 + $0x78] sm:$0xff]
      %v307 = vld [vmem:[%s280 + $0x80] sm:$0xff]
      %v308 = vld [vmem:[%s280 + $0x88] sm:$0xff]
      %v309 = vld [vmem:[%s280 + $0x90] sm:$0xff]
      %v310 = vld [vmem:[%s280 + $0x98] sm:$0xff]
      %v311 = vld [vmem:[%s280 + $0xa0] sm:$0xff]
      %v312 = vld [vmem:[%s280 + $0xa8] sm:$0xff]
      %v313 = vld [vmem:[%s280 + $0xb0] sm:$0xff]
      %v314 = vld [vmem:[%s280 + $0xb8] sm:$0xff]
      %v315 = vld [vmem:[%s280 + $0xc0] sm:$0xff]
      %v316 = vld [vmem:[%s280 + $0xc8] sm:$0xff]
      %v317 = vld [vmem:[%s280 + $0xd0] sm:$0xff]
      %v318 = vld [vmem:[%s280 + $0xd8] sm:$0xff]
      %v319 = vld [vmem:[%s280 + $0xe0] sm:$0xff]
      %v320 = vld [vmem:[%s280 + $0xe8] sm:$0xff]
      %v321 = vld [vmem:[%s280 + $0xf0] sm:$0xff]
      %v322 = vld [vmem:[%s280 + $0xf8] sm:$0xff]
      %v323 = vld [vmem:[%s280 + $0x100] sm:$0xff]
      %v324 = vld [vmem:[%s280 + $0x108] sm:$0xff]
      %v325 = vld [vmem:[%s280 + $0x110] sm:$0xff]
      %v326 = vld [vmem:[%s280 + $0x118] sm:$0xff]
      %v327 = vld [vmem:[%s280 + $0x120] sm:$0xff]
      %v328 = vld [vmem:[%s280 + $0x128] sm:$0xff]
      %v329 = vld [vmem:[%s280 + $0x130] sm:$0xff]
      %v330 = vld [vmem:[%s280 + $0x138] sm:$0xff]
      %v331 = vld [vmem:[%s280 + $0x140] sm:$0x3f]
      %v332 = vld [vmem:[%s2] sm:$0x1]
      %v334 = vlaneseq
      %v335 = vshrl.u32 %v334, 7
      %v336 = vsub.s32 0, %v335
      %v337 = vrot.slane %v332, %v336
      %v339 = vmul.f32 %v291, %v337
      %v340 = vmul.f32 %v292, %v337
      %v341 = vmul.f32 %v293, %v337
      %v342 = vmul.f32 %v294, %v337
      %v343 = vmul.f32 %v295, %v337
      %v344 = vmul.f32 %v296, %v337
      %v345 = vmul.f32 %v297, %v337
      %v346 = vmul.f32 %v298, %v337
      %v347 = vmul.f32 %v299, %v337
      %v348 = vmul.f32 %v300, %v337
      %v349 = vmul.f32 %v301, %v337
      %v350 = vmul.f32 %v302, %v337
      %v351 = vmul.f32 %v303, %v337
      %v352 = vmul.f32 %v304, %v337
      %v353 = vmul.f32 %v305, %v337
      %v354 = vmul.f32 %v306, %v337
      %v355 = vmul.f32 %v307, %v337
      %v356 = vmul.f32 %v308, %v337
      %v357 = vmul.f32 %v309, %v337
      %v358 = vmul.f32 %v310, %v337
      %v359 = vmul.f32 %v311, %v337
      %v360 = vmul.f32 %v312, %v337
      %v361 = vmul.f32 %v313, %v337
      %v362 = vmul.f32 %v314, %v337
      %v363 = vmul.f32 %v315, %v337
      %v364 = vmul.f32 %v316, %v337
      %v365 = vmul.f32 %v317, %v337
      %v366 = vmul.f32 %v318, %v337
      %v367 = vmul.f32 %v319, %v337
      %v368 = vmul.f32 %v320, %v337
      %v369 = vmul.f32 %v321, %v337
      %v370 = vmul.f32 %v322, %v337
      %v371 = vmul.f32 %v323, %v337
      %v372 = vmul.f32 %v324, %v337
      %v373 = vmul.f32 %v325, %v337
      %v374 = vmul.f32 %v326, %v337
      %v375 = vmul.f32 %v327, %v337
      %v376 = vmul.f32 %v328, %v337
      %v377 = vmul.f32 %v329, %v337
      %v378 = vmul.f32 %v330, %v337
      %v379 = vmul.f32 %v331, %v337
      %v380 = vld [vmem:[%s3] sm:$0x1]
      %v382 = vlaneseq
      %v383 = vshrl.u32 %v382, 7
      %v384 = vsub.s32 0, %v383
      %v385 = vrot.slane %v380, %v384
      %v387 = vadd.f32 %v339, %v385
      %v388 = vadd.f32 %v340, %v385
      %v389 = vadd.f32 %v341, %v385
      %v390 = vadd.f32 %v342, %v385
      %v391 = vadd.f32 %v343, %v385
      %v392 = vadd.f32 %v344, %v385
      %v393 = vadd.f32 %v345, %v385
      %v394 = vadd.f32 %v346, %v385
      %v395 = vadd.f32 %v347, %v385
      %v396 = vadd.f32 %v348, %v385
      %v397 = vadd.f32 %v349, %v385
      %v398 = vadd.f32 %v350, %v385
      %v399 = vadd.f32 %v351, %v385
      %v400 = vadd.f32 %v352, %v385
      %v401 = vadd.f32 %v353, %v385
      %v402 = vadd.f32 %v354, %v385
      %v403 = vadd.f32 %v355, %v385
      %v404 = vadd.f32 %v356, %v385
      %v405 = vadd.f32 %v357, %v385
      %v406 = vadd.f32 %v358, %v385
      %v407 = vadd.f32 %v359, %v385
      %v408 = vadd.f32 %v360, %v385
      %v409 = vadd.f32 %v361, %v385
      %v410 = vadd.f32 %v362, %v385
      %v411 = vadd.f32 %v363, %v385
      %v412 = vadd.f32 %v364, %v385
      %v413 = vadd.f32 %v365, %v385
      %v414 = vadd.f32 %v366, %v385
      %v415 = vadd.f32 %v367, %v385
      %v416 = vadd.f32 %v368, %v385
      %v417 = vadd.f32 %v369, %v385
      %v418 = vadd.f32 %v370, %v385
      %v419 = vadd.f32 %v371, %v385
      %v420 = vadd.f32 %v372, %v385
      %v421 = vadd.f32 %v373, %v385
      %v422 = vadd.f32 %v374, %v385
      %v423 = vadd.f32 %v375, %v385
      %v424 = vadd.f32 %v376, %v385
      %v425 = vadd.f32 %v377, %v385
      %v426 = vadd.f32 %v378, %v385
      %v427 = vadd.f32 %v379, %v385
      %v428 = vmax.f32 %v387, 0.0
      %v429 = vmax.f32 %v388, 0.0
      %v430 = vmax.f32 %v389, 0.0
      %v431 = vmax.f32 %v390, 0.0
      %v432 = vmax.f32 %v391, 0.0
      %v433 = vmax.f32 %v392, 0.0
      %v434 = vmax.f32 %v393, 0.0
      %v435 = vmax.f32 %v394, 0.0
      %v436 = vmax.f32 %v395, 0.0
      %v437 = vmax.f32 %v396, 0.0
      %v438 = vmax.f32 %v397, 0.0
      %v439 = vmax.f32 %v398, 0.0
      %v440 = vmax.f32 %v399, 0.0
      %v441 = vmax.f32 %v400, 0.0
      %v442 = vmax.f32 %v401, 0.0
      %v443 = vmax.f32 %v402, 0.0
      %v444 = vmax.f32 %v403, 0.0
      %v445 = vmax.f32 %v404, 0.0
      %v446 = vmax.f32 %v405, 0.0
      %v447 = vmax.f32 %v406, 0.0
      %v448 = vmax.f32 %v407, 0.0
      %v449 = vmax.f32 %v408, 0.0
      %v450 = vmax.f32 %v409, 0.0
      %v451 = vmax.f32 %v410, 0.0
      %v452 = vmax.f32 %v411, 0.0
      %v453 = vmax.f32 %v412, 0.0
      %v454 = vmax.f32 %v413, 0.0
      %v455 = vmax.f32 %v414, 0.0
      %v456 = vmax.f32 %v415, 0.0
      %v457 = vmax.f32 %v416, 0.0
      %v458 = vmax.f32 %v417, 0.0
      %v459 = vmax.f32 %v418, 0.0
      %v460 = vmax.f32 %v419, 0.0
      %v461 = vmax.f32 %v420, 0.0
      %v462 = vmax.f32 %v421, 0.0
      %v463 = vmax.f32 %v422, 0.0
      %v464 = vmax.f32 %v423, 0.0
      %v465 = vmax.f32 %v424, 0.0
      %v466 = vmax.f32 %v425, 0.0
      %v467 = vmax.f32 %v426, 0.0
      %v468 = vmax.f32 %v427, 0.0
      %v469 = vld [vmem:[%s4] sm:$0xff]
      %v470 = vld [vmem:[%s4 + $0x8] sm:$0xff]
      %v471 = vld [vmem:[%s4 + $0x10] sm:$0xff]
      %v472 = vld [vmem:[%s4 + $0x18] sm:$0xff]
      %v473 = vld [vmem:[%s4 + $0x20] sm:$0xff]
      %v474 = vld [vmem:[%s4 + $0x28] sm:$0xff]
      %v475 = vld [vmem:[%s4 + $0x30] sm:$0xff]
      %v476 = vld [vmem:[%s4 + $0x38] sm:$0xff]
      %v477 = vld [vmem:[%s4 + $0x40] sm:$0xff]
      %v478 = vld [vmem:[%s4 + $0x48] sm:$0xff]
      %v479 = vld [vmem:[%s4 + $0x50] sm:$0xff]
      %v480 = vld [vmem:[%s4 + $0x58] sm:$0xff]
      %v481 = vld [vmem:[%s4 + $0x60] sm:$0xff]
      %v482 = vld [vmem:[%s4 + $0x68] sm:$0xff]
      %v483 = vld [vmem:[%s4 + $0x70] sm:$0xff]
      %v484 = vld [vmem:[%s4 + $0x78] sm:$0xff]
      %v485 = vld [vmem:[%s4 + $0x80] sm:$0xff]
      %v486 = vld [vmem:[%s4 + $0x88] sm:$0xff]
      %v487 = vld [vmem:[%s4 + $0x90] sm:$0xff]
      %v488 = vld [vmem:[%s4 + $0x98] sm:$0xff]
      %v489 = vld [vmem:[%s4 + $0xa0] sm:$0xff]
      %v490 = vld [vmem:[%s4 + $0xa8] sm:$0xff]
      %v491 = vld [vmem:[%s4 + $0xb0] sm:$0xff]
      %v492 = vld [vmem:[%s4 + $0xb8] sm:$0xff]
      %v493 = vld [vmem:[%s4 + $0xc0] sm:$0xff]
      %v494 = vld [vmem:[%s4 + $0xc8] sm:$0xff]
      %v495 = vld [vmem:[%s4 + $0xd0] sm:$0xff]
      %v496 = vld [vmem:[%s4 + $0xd8] sm:$0xff]
      %v497 = vld [vmem:[%s4 + $0xe0] sm:$0xff]
      %v498 = vld [vmem:[%s4 + $0xe8] sm:$0xff]
      %v499 = vld [vmem:[%s4 + $0xf0] sm:$0xff]
      %v500 = vld [vmem:[%s4 + $0xf8] sm:$0xff]
      %v501 = vld [vmem:[%s4 + $0x100] sm:$0xff]
      %v502 = vld [vmem:[%s4 + $0x108] sm:$0xff]
      %v503 = vld [vmem:[%s4 + $0x110] sm:$0xff]
      %v504 = vld [vmem:[%s4 + $0x118] sm:$0xff]
      %v505 = vld [vmem:[%s4 + $0x120] sm:$0xff]
      %v506 = vld [vmem:[%s4 + $0x128] sm:$0xff]
      %v507 = vld [vmem:[%s4 + $0x130] sm:$0xff]
      %v508 = vld [vmem:[%s4 + $0x138] sm:$0xff]
      %v509 = vld [vmem:[%s4 + $0x140] sm:$0x3f]
      %511 = vset.pattern.permute.xlu0 0
      %512 = vperm.xlu0 %511, %v469
      %v513 = vpop.permute.xlu0 %512
      %516 = vset.pattern.permute.xlu0 0
      %517 = vperm.xlu0 %516, %v470
      %v518 = vpop.permute.xlu0 %517
      %521 = vset.pattern.permute.xlu0 0
      %522 = vperm.xlu0 %521, %v471
      %v523 = vpop.permute.xlu0 %522
      %526 = vset.pattern.permute.xlu0 0
      %527 = vperm.xlu0 %526, %v472
      %v528 = vpop.permute.xlu0 %527
      %531 = vset.pattern.permute.xlu0 0
      %532 = vperm.xlu0 %531, %v473
      %v533 = vpop.permute.xlu0 %532
      %536 = vset.pattern.permute.xlu0 0
      %537 = vperm.xlu0 %536, %v474
      %v538 = vpop.permute.xlu0 %537
      %541 = vset.pattern.permute.xlu0 0
      %542 = vperm.xlu0 %541, %v475
      %v543 = vpop.permute.xlu0 %542
      %546 = vset.pattern.permute.xlu0 0
      %547 = vperm.xlu0 %546, %v476
      %v548 = vpop.permute.xlu0 %547
      %551 = vset.pattern.permute.xlu0 0
      %552 = vperm.xlu0 %551, %v477
      %v553 = vpop.permute.xlu0 %552
      %556 = vset.pattern.permute.xlu0 0
      %557 = vperm.xlu0 %556, %v478
      %v558 = vpop.permute.xlu0 %557
      %561 = vset.pattern.permute.xlu0 0
      %562 = vperm.xlu0 %561, %v479
      %v563 = vpop.permute.xlu0 %562
      %566 = vset.pattern.permute.xlu0 0
      %567 = vperm.xlu0 %566, %v480
      %v568 = vpop.permute.xlu0 %567
      %571 = vset.pattern.permute.xlu0 0
      %572 = vperm.xlu0 %571, %v481
      %v573 = vpop.permute.xlu0 %572
      %576 = vset.pattern.permute.xlu0 0
      %577 = vperm.xlu0 %576, %v482
      %v578 = vpop.permute.xlu0 %577
      %581 = vset.pattern.permute.xlu0 0
      %582 = vperm.xlu0 %581, %v483
      %v583 = vpop.permute.xlu0 %582
      %586 = vset.pattern.permute.xlu0 0
      %587 = vperm.xlu0 %586, %v484
      %v588 = vpop.permute.xlu0 %587
      %591 = vset.pattern.permute.xlu0 0
      %592 = vperm.xlu0 %591, %v485
      %v593 = vpop.permute.xlu0 %592
      %596 = vset.pattern.permute.xlu0 0
      %597 = vperm.xlu0 %596, %v486
      %v598 = vpop.permute.xlu0 %597
      %601 = vset.pattern.permute.xlu0 0
      %602 = vperm.xlu0 %601, %v487
      %v603 = vpop.permute.xlu0 %602
      %606 = vset.pattern.permute.xlu0 0
      %607 = vperm.xlu0 %606, %v488
      %v608 = vpop.permute.xlu0 %607
      %611 = vset.pattern.permute.xlu0 0
      %612 = vperm.xlu0 %611, %v489
      %v613 = vpop.permute.xlu0 %612
      %616 = vset.pattern.permute.xlu0 0
      %617 = vperm.xlu0 %616, %v490
      %v618 = vpop.permute.xlu0 %617
      %621 = vset.pattern.permute.xlu0 0
      %622 = vperm.xlu0 %621, %v491
      %v623 = vpop.permute.xlu0 %622
      %626 = vset.pattern.permute.xlu0 0
      %627 = vperm.xlu0 %626, %v492
      %v628 = vpop.permute.xlu0 %627
      %631 = vset.pattern.permute.xlu0 0
      %632 = vperm.xlu0 %631, %v493
      %v633 = vpop.permute.xlu0 %632
      %636 = vset.pattern.permute.xlu0 0
      %637 = vperm.xlu0 %636, %v494
      %v638 = vpop.permute.xlu0 %637
      %641 = vset.pattern.permute.xlu0 0
      %642 = vperm.xlu0 %641, %v495
      %v643 = vpop.permute.xlu0 %642
      %646 = vset.pattern.permute.xlu0 0
      %647 = vperm.xlu0 %646, %v496
      %v648 = vpop.permute.xlu0 %647
      %651 = vset.pattern.permute.xlu0 0
      %652 = vperm.xlu0 %651, %v497
      %v653 = vpop.permute.xlu0 %652
      %656 = vset.pattern.permute.xlu0 0
      %657 = vperm.xlu0 %656, %v498
      %v658 = vpop.permute.xlu0 %657
      %661 = vset.pattern.permute.xlu0 0
      %662 = vperm.xlu0 %661, %v499
      %v663 = vpop.permute.xlu0 %662
      %666 = vset.pattern.permute.xlu0 0
      %667 = vperm.xlu0 %666, %v500
      %v668 = vpop.permute.xlu0 %667
      %671 = vset.pattern.permute.xlu0 0
      %672 = vperm.xlu0 %671, %v501
      %v673 = vpop.permute.xlu0 %672
      %676 = vset.pattern.permute.xlu0 0
      %677 = vperm.xlu0 %676, %v502
      %v678 = vpop.permute.xlu0 %677
      %681 = vset.pattern.permute.xlu0 0
      %682 = vperm.xlu0 %681, %v503
      %v683 = vpop.permute.xlu0 %682
      %686 = vset.pattern.permute.xlu0 0
      %687 = vperm.xlu0 %686, %v504
      %v688 = vpop.permute.xlu0 %687
      %691 = vset.pattern.permute.xlu0 0
      %692 = vperm.xlu0 %691, %v505
      %v693 = vpop.permute.xlu0 %692
      %696 = vset.pattern.permute.xlu0 0
      %697 = vperm.xlu0 %696, %v506
      %v698 = vpop.permute.xlu0 %697
      %701 = vset.pattern.permute.xlu0 0
      %702 = vperm.xlu0 %701, %v507
      %v703 = vpop.permute.xlu0 %702
      %706 = vset.pattern.permute.xlu0 0
      %707 = vperm.xlu0 %706, %v508
      %v708 = vpop.permute.xlu0 %707
      %711 = vset.pattern.permute.xlu0 0
      %712 = vperm.xlu0 %711, %v509
      %v713 = vpop.permute.xlu0 %712
      %v715 = vmul.f32 %v428, %v513
      %v716 = vmul.f32 %v429, %v518
      %v717 = vmul.f32 %v430, %v523
      %v718 = vmul.f32 %v431, %v528
      %v719 = vmul.f32 %v432, %v533
      %v720 = vmul.f32 %v433, %v538
      %v721 = vmul.f32 %v434, %v543
      %v722 = vmul.f32 %v435, %v548
      %v723 = vmul.f32 %v436, %v553
      %v724 = vmul.f32 %v437, %v558
      %v725 = vmul.f32 %v438, %v563
      %v726 = vmul.f32 %v439, %v568
      %v727 = vmul.f32 %v440, %v573
      %v728 = vmul.f32 %v441, %v578
      %v729 = vmul.f32 %v442, %v583
      %v730 = vmul.f32 %v443, %v588
      %v731 = vmul.f32 %v444, %v593
      %v732 = vmul.f32 %v445, %v598
      %v733 = vmul.f32 %v446, %v603
      %v734 = vmul.f32 %v447, %v608
      %v735 = vmul.f32 %v448, %v613
      %v736 = vmul.f32 %v449, %v618
      %v737 = vmul.f32 %v450, %v623
      %v738 = vmul.f32 %v451, %v628
      %v739 = vmul.f32 %v452, %v633
      %v740 = vmul.f32 %v453, %v638
      %v741 = vmul.f32 %v454, %v643
      %v742 = vmul.f32 %v455, %v648
      %v743 = vmul.f32 %v456, %v653
      %v744 = vmul.f32 %v457, %v658
      %v745 = vmul.f32 %v458, %v663
      %v746 = vmul.f32 %v459, %v668
      %v747 = vmul.f32 %v460, %v673
      %v748 = vmul.f32 %v461, %v678
      %v749 = vmul.f32 %v462, %v683
      %v750 = vmul.f32 %v463, %v688
      %v751 = vmul.f32 %v464, %v693
      %v752 = vmul.f32 %v465, %v698
      %v753 = vmul.f32 %v466, %v703
      %v754 = vmul.f32 %v467, %v708
      %v755 = vmul.f32 %v468, %v713
      %v756 = vpack.c.bf16 %v716, %v715
      %v757 = vpack.c.bf16 %v718, %v717
      %v758 = vpack.c.bf16 %v720, %v719
      %v759 = vpack.c.bf16 %v722, %v721
      %v760 = vpack.c.bf16 %v724, %v723
      %v761 = vpack.c.bf16 %v726, %v725
      %v762 = vpack.c.bf16 %v728, %v727
      %v763 = vpack.c.bf16 %v730, %v729
      %v764 = vpack.c.bf16 %v732, %v731
      %v765 = vpack.c.bf16 %v734, %v733
      %v766 = vpack.c.bf16 %v736, %v735
      %v767 = vpack.c.bf16 %v738, %v737
      %v768 = vpack.c.bf16 %v740, %v739
      %v769 = vpack.c.bf16 %v742, %v741
      %v770 = vpack.c.bf16 %v744, %v743
      %v771 = vpack.c.bf16 %v746, %v745
      %v772 = vpack.c.bf16 %v748, %v747
      %v773 = vpack.c.bf16 %v750, %v749
      %v774 = vld [vmem:[%s1] sm:$0x3]
      %v775 = vpack.c.bf16 %v751, %v751
      %s776 = scalar_lea.vmem %s1, 2
      %v777 = vld [vmem:[%s776] sm:$0x3]
      %vm778 = vsmask.f32 7424
      %v780 = vshrl.u32 %v756, 16
      %v782 = vshll.u32 %v756, 16
      %v784 = vrot.slane %v782, 1
      %v785 = vor.u32 %v780, %v784
      %v787 = vshll.u32 %v757, 16
      %v789 = vrot.slane %v787, 1
      %v790 = vsel %vm778, %v785, %v789
      %v791 = vshrl.u32 %v757, 16
      %v793 = vor.u32 %v791, %v789
      %v795 = vshll.u32 %v758, 16
      %v797 = vrot.slane %v795, 1
      %v798 = vsel %vm778, %v793, %v797
      %v799 = vshrl.u32 %v758, 16
      %v801 = vor.u32 %v799, %v797
      %v803 = vshll.u32 %v759, 16
      %v805 = vrot.slane %v803, 1
      %v806 = vsel %vm778, %v801, %v805
      %v807 = vshrl.u32 %v759, 16
      %v809 = vor.u32 %v807, %v805
      %v811 = vshll.u32 %v760, 16
      %v813 = vrot.slane %v811, 1
      %v814 = vsel %vm778, %v809, %v813
      %v815 = vshrl.u32 %v760, 16
      %v817 = vor.u32 %v815, %v813
      %v819 = vshll.u32 %v761, 16
      %v821 = vrot.slane %v819, 1
      %v822 = vsel %vm778, %v817, %v821
      %v823 = vshrl.u32 %v761, 16
      %v825 = vor.u32 %v823, %v821
      %v827 = vshll.u32 %v762, 16
      %v829 = vrot.slane %v827, 1
      %v830 = vsel %vm778, %v825, %v829
      %v831 = vshrl.u32 %v762, 16
      %v833 = vor.u32 %v831, %v829
      %v835 = vshll.u32 %v763, 16
      %v837 = vrot.slane %v835, 1
      %v838 = vsel %vm778, %v833, %v837
      %v839 = vshrl.u32 %v763, 16
      %v841 = vor.u32 %v839, %v837
      %v843 = vshll.u32 %v764, 16
      %v845 = vrot.slane %v843, 1
      %v846 = vsel %vm778, %v841, %v845
      %v847 = vshrl.u32 %v764, 16
      %v849 = vor.u32 %v847, %v845
      %v851 = vshll.u32 %v765, 16
      %v853 = vrot.slane %v851, 1
      %v854 = vsel %vm778, %v849, %v853
      %v855 = vshrl.u32 %v765, 16
      %v857 = vor.u32 %v855, %v853
      %v859 = vshll.u32 %v766, 16
      %v861 = vrot.slane %v859, 1
      %v862 = vsel %vm778, %v857, %v861
      %v863 = vshrl.u32 %v766, 16
      %v865 = vor.u32 %v863, %v861
      %v867 = vshll.u32 %v767, 16
      %v869 = vrot.slane %v867, 1
      %v870 = vsel %vm778, %v865, %v869
      %v871 = vshrl.u32 %v767, 16
      %v873 = vor.u32 %v871, %v869
      %v875 = vshll.u32 %v768, 16
      %v877 = vrot.slane %v875, 1
      %v878 = vsel %vm778, %v873, %v877
      %v879 = vshrl.u32 %v768, 16
      %v881 = vor.u32 %v879, %v877
      %v883 = vshll.u32 %v769, 16
      %v885 = vrot.slane %v883, 1
      %v886 = vsel %vm778, %v881, %v885
      %v887 = vshrl.u32 %v769, 16
      %v889 = vor.u32 %v887, %v885
      %v891 = vshll.u32 %v770, 16
      %v893 = vrot.slane %v891, 1
      %v894 = vsel %vm778, %v889, %v893
      %v895 = vshrl.u32 %v770, 16
      %v897 = vor.u32 %v895, %v893
      %v899 = vshll.u32 %v771, 16
      %v901 = vrot.slane %v899, 1
      %v902 = vsel %vm778, %v897, %v901
      %v903 = vshrl.u32 %v771, 16
      %v905 = vor.u32 %v903, %v901
      %v907 = vshll.u32 %v772, 16
      %v909 = vrot.slane %v907, 1
      %v910 = vsel %vm778, %v905, %v909
      %v911 = vshrl.u32 %v772, 16
      %v913 = vor.u32 %v911, %v909
      %v915 = vshll.u32 %v773, 16
      %v917 = vrot.slane %v915, 1
      %v918 = vsel %vm778, %v913, %v917
      %v919 = vshrl.u32 %v773, 16
      %v921 = vor.u32 %v919, %v917
      %v923 = vshll.u32 %v775, 16
      %v925 = vrot.slane %v923, 1
      %v926 = vsel %vm778, %v921, %v925
      %vm927 = vcmask 31744
      %v929 = vsel %vm927, %v790, 0
      %v932 = vsel %vm927, %v798, 0
      %v935 = vsel %vm927, %v806, 0
      %v938 = vsel %vm927, %v814, 0
      %v941 = vsel %vm927, %v822, 0
      %v944 = vsel %vm927, %v830, 0
      %v947 = vsel %vm927, %v838, 0
      %v950 = vsel %vm927, %v846, 0
      %v953 = vsel %vm927, %v854, 0
      %v956 = vsel %vm927, %v862, 0
      %v959 = vsel %vm927, %v870, 0
      %v962 = vsel %vm927, %v878, 0
      %v965 = vsel %vm927, %v886, 0
      %v968 = vsel %vm927, %v894, 0
      %v971 = vsel %vm927, %v902, 0
      %v974 = vsel %vm927, %v910, 0
      %v977 = vsel %vm927, %v918, 0
      %v980 = vsel %vm927, %v926, 0
      %vm982 = vcmask 1041408
      %v984 = vsel %vm982, %v777, 0
      %986 = vmatprep.subr.bf16.mxu0 0
      %987 = vmatpush1.bf16.msra.mxu0 %v984
      %988 = vmatprep.subr.bf16.mxu0 0
      %989 = vmatpush1.bf16.msra.mxu0 0
      %990 = vmatprep.subr.bf16.mxu0 0
      %991 = vmatpush1.bf16.msra.mxu0 0
      %992 = vmatprep.subr.bf16.mxu0 0
      %993 = vmatpush1.bf16.msra.mxu0 0
      %994 = vmatprep.subr.bf16.mxu0 0
      %995 = vmatpush1.bf16.msra.mxu0 0
      %996 = vmatprep.subr.bf16.mxu0 0
      %997 = vmatpush1.bf16.msra.mxu0 0
      %998 = vmatprep.subr.bf16.mxu0 0
      %999 = vmatpush1.bf16.msra.mxu0 0
      %1000 = vmatprep.subr.bf16.mxu0 0
      %1001 = vmatpush1.bf16.msra.mxu0 0
      %1002 = vmatprep.subr.bf16.mxu0 0
      %1003 = vmatpush1.bf16.msra.mxu0 0
      %1004 = vmatprep.subr.bf16.mxu0 0
      %1005 = vmatpush1.bf16.msra.mxu0 0
      %1006 = vmatprep.subr.bf16.mxu0 0
      %1007 = vmatpush1.bf16.msra.mxu0 0
      %1008 = vmatprep.subr.bf16.mxu0 0
      %1009 = vmatpush1.bf16.msra.mxu0 0
      %1010 = vmatprep.subr.bf16.mxu0 0
      %1011 = vmatpush1.bf16.msra.mxu0 0
      %1012 = vmatprep.subr.bf16.mxu0 0
      %1013 = vmatpush1.bf16.msra.mxu0 0
      %1014 = vmatprep.subr.bf16.mxu0 0
      %1015 = vmatpush1.bf16.msra.mxu0 0
      %1016 = vmatprep.subr.bf16.mxu0 0
      %1017 = vmatpush1.bf16.msra.mxu0 0
      %1018 = vmatprep.mubr.bf16.mxu0 0
      %1019 = vmatmul.mubr.bf16.gmra.mrb[0].mxu0 %v929
      %v1020 = vpop.f32.mrb[0].mxu0
      %v1021 = vadd.f32 0.0, %v1020
      %v1022 = vpop.f32.mrb[0].mxu0
      %v1023 = vpop.f32.mrb[0].mxu0
      %v1024 = vadd.f32 0.0, %v1023
      %v1025 = vpop.f32.mrb[0].mxu0
      %1026 = vmatprep.mubr.bf16.mxu0 0
      %1027 = vmatmul.mubr.bf16.gmra.mrb[0].mxu0 %v932
      %v1028 = vpop.f32.mrb[0].mxu0
      %v1029 = vadd.f32 0.0, %v1028
      %v1030 = vpop.f32.mrb[0].mxu0
      %v1031 = vpop.f32.mrb[0].mxu0
      %v1032 = vadd.f32 0.0, %v1031
      %v1033 = vpop.f32.mrb[0].mxu0
      %1034 = vmatprep.mubr.bf16.mxu0 0
      %1035 = vmatmul.mubr.bf16.gmra.mrb[0].mxu0 %v935
      %v1036 = vpop.f32.mrb[0].mxu0
      %v1037 = vadd.f32 0.0, %v1036
      %v1038 = vpop.f32.mrb[0].mxu0
      %v1039 = vpop.f32.mrb[0].mxu0
      %v1040 = vadd.f32 0.0, %v1039
      %v1041 = vpop.f32.mrb[0].mxu0
      %1042 = vmatprep.mubr.bf16.mxu0 0
      %1043 = vmatmul.mubr.bf16.gmra.mrb[0].mxu0 %v938
      %v1044 = vpop.f32.mrb[0].mxu0
      %v1045 = vadd.f32 0.0, %v1044
      %v1046 = vpop.f32.mrb[0].mxu0
      %v1047 = vpop.f32.mrb[0].mxu0
      %v1048 = vadd.f32 0.0, %v1047
      %v1049 = vpop.f32.mrb[0].mxu0
      %1050 = vmatprep.mubr.bf16.mxu0 0
      %1051 = vmatmul.mubr.bf16.gmra.mrb[0].mxu0 %v941
      %v1052 = vpop.f32.mrb[0].mxu0
      %v1053 = vadd.f32 0.0, %v1052
      %v1054 = vpop.f32.mrb[0].mxu0
      %v1055 = vpop.f32.mrb[0].mxu0
      %v1056 = vadd.f32 0.0, %v1055
      %v1057 = vpop.f32.mrb[0].mxu0
      %1058 = vmatprep.mubr.bf16.mxu0 0
      %1059 = vmatmul.mubr.bf16.gmra.mrb[0].mxu0 %v944
      %v1060 = vpop.f32.mrb[0].mxu0
      %v1061 = vadd.f32 0.0, %v1060
      %v1062 = vpop.f32.mrb[0].mxu0
      %v1063 = vpop.f32.mrb[0].mxu0
      %v1064 = vadd.f32 0.0, %v1063
      %v1065 = vpop.f32.mrb[0].mxu0
      %1066 = vmatprep.mubr.bf16.mxu0 0
      %1067 = vmatmul.mubr.bf16.gmra.mrb[0].mxu0 %v947
      %v1068 = vpop.f32.mrb[0].mxu0
      %v1069 = vadd.f32 0.0, %v1068
      %v1070 = vpop.f32.mrb[0].mxu0
      %v1071 = vpop.f32.mrb[0].mxu0
      %v1072 = vadd.f32 0.0, %v1071
      %v1073 = vpop.f32.mrb[0].mxu0
      %1074 = vmatprep.mubr.bf16.mxu0 0
      %1075 = vmatmul.mubr.bf16.gmra.mrb[0].mxu0 %v950
      %v1076 = vpop.f32.mrb[0].mxu0
      %v1077 = vadd.f32 0.0, %v1076
      %v1078 = vpop.f32.mrb[0].mxu0
      %v1079 = vpop.f32.mrb[0].mxu0
      %v1080 = vadd.f32 0.0, %v1079
      %v1081 = vpop.f32.mrb[0].mxu0
      %1082 = vmatprep.mubr.bf16.mxu0 0
      %1083 = vmatmul.mubr.bf16.gmra.mrb[0].mxu0 %v953
      %v1084 = vpop.f32.mrb[0].mxu0
      %v1085 = vadd.f32 0.0, %v1084
      %v1086 = vpop.f32.mrb[0].mxu0
      %v1087 = vpop.f32.mrb[0].mxu0
      %v1088 = vadd.f32 0.0, %v1087
      %v1089 = vpop.f32.mrb[0].mxu0
      %1090 = vmatprep.mubr.bf16.mxu0 0
      %1091 = vmatmul.mubr.bf16.gmra.mrb[0].mxu0 %v956
      %v1092 = vpop.f32.mrb[0].mxu0
      %v1093 = vadd.f32 0.0, %v1092
      %v1094 = vpop.f32.mrb[0].mxu0
      %v1095 = vpop.f32.mrb[0].mxu0
      %v1096 = vadd.f32 0.0, %v1095
      %v1097 = vpop.f32.mrb[0].mxu0
      %1098 = vmatprep.mubr.bf16.mxu0 0
      %1099 = vmatmul.mubr.bf16.gmra.mrb[0].mxu0 %v959
      %v1100 = vpop.f32.mrb[0].mxu0
      %v1101 = vadd.f32 0.0, %v1100
      %v1102 = vpop.f32.mrb[0].mxu0
      %v1103 = vpop.f32.mrb[0].mxu0
      %v1104 = vadd.f32 0.0, %v1103
      %v1105 = vpop.f32.mrb[0].mxu0
      %1106 = vmatprep.mubr.bf16.mxu0 0
      %1107 = vmatmul.mubr.bf16.gmra.mrb[0].mxu0 %v962
      %v1108 = vpop.f32.mrb[0].mxu0
      %v1109 = vadd.f32 0.0, %v1108
      %v1110 = vpop.f32.mrb[0].mxu0
      %v1111 = vpop.f32.mrb[0].mxu0
      %v1112 = vadd.f32 0.0, %v1111
      %v1113 = vpop.f32.mrb[0].mxu0
      %1114 = vmatprep.mubr.bf16.mxu0 0
      %1115 = vmatmul.mubr.bf16.gmra.mrb[0].mxu0 %v965
      %v1116 = vpop.f32.mrb[0].mxu0
      %v1117 = vadd.f32 0.0, %v1116
      %v1118 = vpop.f32.mrb[0].mxu0
      %v1119 = vpop.f32.mrb[0].mxu0
      %v1120 = vadd.f32 0.0, %v1119
      %v1121 = vpop.f32.mrb[0].mxu0
      %1122 = vmatprep.mubr.bf16.mxu0 0
      %1123 = vmatmul.mubr.bf16.gmra.mrb[0].mxu0 %v968
      %v1124 = vpop.f32.mrb[0].mxu0
      %v1125 = vadd.f32 0.0, %v1124
      %v1126 = vpop.f32.mrb[0].mxu0
      %v1127 = vpop.f32.mrb[0].mxu0
      %v1128 = vadd.f32 0.0, %v1127
      %v1129 = vpop.f32.mrb[0].mxu0
      %1130 = vmatprep.mubr.bf16.mxu0 0
      %1131 = vmatmul.mubr.bf16.gmra.mrb[0].mxu0 %v971
      %v1132 = vpop.f32.mrb[0].mxu0
      %v1133 = vadd.f32 0.0, %v1132
      %v1134 = vpop.f32.mrb[0].mxu0
      %v1135 = vpop.f32.mrb[0].mxu0
      %v1136 = vadd.f32 0.0, %v1135
      %v1137 = vpop.f32.mrb[0].mxu0
      %1138 = vmatprep.mubr.bf16.mxu0 0
      %1139 = vmatmul.mubr.bf16.gmra.mrb[0].mxu0 %v974
      %v1140 = vpop.f32.mrb[0].mxu0
      %v1141 = vadd.f32 0.0, %v1140
      %v1142 = vpop.f32.mrb[0].mxu0
      %v1143 = vpop.f32.mrb[0].mxu0
      %v1144 = vadd.f32 0.0, %v1143
      %v1145 = vpop.f32.mrb[0].mxu0
      %1146 = vmatprep.mubr.bf16.mxu0 0
      %1147 = vmatmul.mubr.bf16.gmra.mrb[0].mxu0 %v977
      %v1148 = vpop.f32.mrb[0].mxu0
      %v1149 = vadd.f32 0.0, %v1148
      %v1150 = vpop.f32.mrb[0].mxu0
      %v1151 = vpop.f32.mrb[0].mxu0
      %v1152 = vadd.f32 0.0, %v1151
      %v1153 = vpop.f32.mrb[0].mxu0
      %1154 = vmatprep.mubr.bf16.mxu0 0
      %1155 = vmatmul.mubr.bf16.gmra.mrb[0].mxu0 %v980
      %v1156 = vpop.f32.mrb[0].mxu0
      %v1157 = vadd.f32 0.0, %v1156
      %v1158 = vpop.f32.mrb[0].mxu0
      %v1159 = vpop.f32.mrb[0].mxu0
      %v1160 = vadd.f32 0.0, %v1159
      %v1161 = vpop.f32.mrb[0].mxu0
      %1162 = vdwg.mxu0
      %v1163 = vsel %vm927, %v756, 0
      %v1165 = vsel %vm927, %v757, 0
      %v1167 = vsel %vm927, %v758, 0
      %v1169 = vsel %vm927, %v759, 0
      %v1171 = vsel %vm927, %v760, 0
      %v1173 = vsel %vm927, %v761, 0
      %v1175 = vsel %vm927, %v762, 0
      %v1177 = vsel %vm927, %v763, 0
      %v1179 = vsel %vm927, %v764, 0
      %v1181 = vsel %vm927, %v765, 0
      %v1183 = vsel %vm927, %v766, 0
      %v1185 = vsel %vm927, %v767, 0
      %v1187 = vsel %vm927, %v768, 0
      %v1189 = vsel %vm927, %v769, 0
      %v1191 = vsel %vm927, %v770, 0
      %v1193 = vsel %vm927, %v771, 0
      %v1195 = vsel %vm927, %v772, 0
      %v1197 = vsel %vm927, %v773, 0
      %v1200 = vsel %vm982, %v774, 0
      %1202 = vmatprep.subr.bf16.mxu0 0
      %1203 = vmatpush1.bf16.msra.mxu0 %v1200
      %1204 = vmatprep.subr.bf16.mxu0 0
      %1205 = vmatpush1.bf16.msra.mxu0 0
      %1206 = vmatprep.subr.bf16.mxu0 0
      %1207 = vmatpush1.bf16.msra.mxu0 0
      %1208 = vmatprep.subr.bf16.mxu0 0
      %1209 = vmatpush1.bf16.msra.mxu0 0
      %1210 = vmatprep.subr.bf16.mxu0 0
      %1211 = vmatpush1.bf16.msra.mxu0 0
      %1212 = vmatprep.subr.bf16.mxu0 0
      %1213 = vmatpush1.bf16.msra.mxu0 0
      %1214 = vmatprep.subr.bf16.mxu0 0
      %1215 = vmatpush1.bf16.msra.mxu0 0
      %1216 = vmatprep.subr.bf16.mxu0 0
      %1217 = vmatpush1.bf16.msra.mxu0 0
      %1218 = vmatprep.subr.bf16.mxu0 0
      %1219 = vmatpush1.bf16.msra.mxu0 0
      %1220 = vmatprep.subr.bf16.mxu0 0
      %1221 = vmatpush1.bf16.msra.mxu0 0
      %1222 = vmatprep.subr.bf16.mxu0 0
      %1223 = vmatpush1.bf16.msra.mxu0 0
      %1224 = vmatprep.subr.bf16.mxu0 0
      %1225 = vmatpush1.bf16.msra.mxu0 0
      %1226 = vmatprep.subr.bf16.mxu0 0
      %1227 = vmatpush1.bf16.msra.mxu0 0
      %1228 = vmatprep.subr.bf16.mxu0 0
      %1229 = vmatpush1.bf16.msra.mxu0 0
      %1230 = vmatprep.subr.bf16.mxu0 0
      %1231 = vmatpush1.bf16.msra.mxu0 0
      %1232 = vmatprep.subr.bf16.mxu0 0
      %1233 = vmatpush1.bf16.msra.mxu0 0
      %1234 = vmatprep.mubr.bf16.mxu0 0
      %1235 = vmatmul.mubr.bf16.gmra.mrb[0].mxu0 %v1163
      %v1236 = vpop.f32.mrb[0].mxu0
      %v1237 = vadd.f32 %v1021, %v1236
      %v1238 = vpop.f32.mrb[0].mxu0
      %v1239 = vpop.f32.mrb[0].mxu0
      %v1240 = vadd.f32 %v1024, %v1239
      %v1241 = vpop.f32.mrb[0].mxu0
      %1242 = vmatprep.mubr.bf16.mxu0 0
      %1243 = vmatmul.mubr.bf16.gmra.mrb[0].mxu0 %v1165
      %v1244 = vpop.f32.mrb[0].mxu0
      %v1245 = vadd.f32 %v1029, %v1244
      %v1246 = vpop.f32.mrb[0].mxu0
      %v1247 = vpop.f32.mrb[0].mxu0
      %v1248 = vadd.f32 %v1032, %v1247
      %v1249 = vpop.f32.mrb[0].mxu0
      %1250 = vmatprep.mubr.bf16.mxu0 0
      %1251 = vmatmul.mubr.bf16.gmra.mrb[0].mxu0 %v1167
      %v1252 = vpop.f32.mrb[0].mxu0
      %v1253 = vadd.f32 %v1037, %v1252
      %v1254 = vpop.f32.mrb[0].mxu0
      %v1255 = vpop.f32.mrb[0].mxu0
      %v1256 = vadd.f32 %v1040, %v1255
      %v1257 = vpop.f32.mrb[0].mxu0
      %1258 = vmatprep.mubr.bf16.mxu0 0
      %1259 = vmatmul.mubr.bf16.gmra.mrb[0].mxu0 %v1169
      %v1260 = vpop.f32.mrb[0].mxu0
      %v1261 = vadd.f32 %v1045, %v1260
      %v1262 = vpop.f32.mrb[0].mxu0
      %v1263 = vpop.f32.mrb[0].mxu0
      %v1264 = vadd.f32 %v1048, %v1263
      %v1265 = vpop.f32.mrb[0].mxu0
      %1266 = vmatprep.mubr.bf16.mxu0 0
      %1267 = vmatmul.mubr.bf16.gmra.mrb[0].mxu0 %v1171
      %v1268 = vpop.f32.mrb[0].mxu0
      %v1269 = vadd.f32 %v1053, %v1268
      %v1270 = vpop.f32.mrb[0].mxu0
      %v1271 = vpop.f32.mrb[0].mxu0
      %v1272 = vadd.f32 %v1056, %v1271
      %v1273 = vpop.f32.mrb[0].mxu0
      %1274 = vmatprep.mubr.bf16.mxu0 0
      %1275 = vmatmul.mubr.bf16.gmra.mrb[0].mxu0 %v1173
      %v1276 = vpop.f32.mrb[0].mxu0
      %v1277 = vadd.f32 %v1061, %v1276
      %v1278 = vpop.f32.mrb[0].mxu0
      %v1279 = vpop.f32.mrb[0].mxu0
      %v1280 = vadd.f32 %v1064, %v1279
      %v1281 = vpop.f32.mrb[0].mxu0
      %1282 = vmatprep.mubr.bf16.mxu0 0
      %1283 = vmatmul.mubr.bf16.gmra.mrb[0].mxu0 %v1175
      %v1284 = vpop.f32.mrb[0].mxu0
      %v1285 = vadd.f32 %v1069, %v1284
      %v1286 = vpop.f32.mrb[0].mxu0
      %v1287 = vpop.f32.mrb[0].mxu0
      %v1288 = vadd.f32 %v1072, %v1287
      %v1289 = vpop.f32.mrb[0].mxu0
      %1290 = vmatprep.mubr.bf16.mxu0 0
      %1291 = vmatmul.mubr.bf16.gmra.mrb[0].mxu0 %v1177
      %v1292 = vpop.f32.mrb[0].mxu0
      %v1293 = vadd.f32 %v1077, %v1292
      %v1294 = vpop.f32.mrb[0].mxu0
      %v1295 = vpop.f32.mrb[0].mxu0
      %v1296 = vadd.f32 %v1080, %v1295
      %v1297 = vpop.f32.mrb[0].mxu0
      %1298 = vmatprep.mubr.bf16.mxu0 0
      %1299 = vmatmul.mubr.bf16.gmra.mrb[0].mxu0 %v1179
      %v1300 = vpop.f32.mrb[0].mxu0
      %v1301 = vadd.f32 %v1085, %v1300
      %v1302 = vpop.f32.mrb[0].mxu0
      %v1303 = vpop.f32.mrb[0].mxu0
      %v1304 = vadd.f32 %v1088, %v1303
      %v1305 = vpop.f32.mrb[0].mxu0
      %1306 = vmatprep.mubr.bf16.mxu0 0
      %1307 = vmatmul.mubr.bf16.gmra.mrb[0].mxu0 %v1181
      %v1308 = vpop.f32.mrb[0].mxu0
      %v1309 = vadd.f32 %v1093, %v1308
      %v1310 = vpop.f32.mrb[0].mxu0
      %v1311 = vpop.f32.mrb[0].mxu0
      %v1312 = vadd.f32 %v1096, %v1311
      %v1313 = vpop.f32.mrb[0].mxu0
      %1314 = vmatprep.mubr.bf16.mxu0 0
      %1315 = vmatmul.mubr.bf16.gmra.mrb[0].mxu0 %v1183
      %v1316 = vpop.f32.mrb[0].mxu0
      %v1317 = vadd.f32 %v1101, %v1316
      %v1318 = vpop.f32.mrb[0].mxu0
      %v1319 = vpop.f32.mrb[0].mxu0
      %v1320 = vadd.f32 %v1104, %v1319
      %v1321 = vpop.f32.mrb[0].mxu0
      %1322 = vmatprep.mubr.bf16.mxu0 0
      %1323 = vmatmul.mubr.bf16.gmra.mrb[0].mxu0 %v1185
      %v1324 = vpop.f32.mrb[0].mxu0
      %v1325 = vadd.f32 %v1109, %v1324
      %v1326 = vpop.f32.mrb[0].mxu0
      %v1327 = vpop.f32.mrb[0].mxu0
      %v1328 = vadd.f32 %v1112, %v1327
      %v1329 = vpop.f32.mrb[0].mxu0
      %1330 = vmatprep.mubr.bf16.mxu0 0
      %1331 = vmatmul.mubr.bf16.gmra.mrb[0].mxu0 %v1187
      %v1332 = vpop.f32.mrb[0].mxu0
      %v1333 = vadd.f32 %v1117, %v1332
      %v1334 = vpop.f32.mrb[0].mxu0
      %v1335 = vpop.f32.mrb[0].mxu0
      %v1336 = vadd.f32 %v1120, %v1335
      %v1337 = vpop.f32.mrb[0].mxu0
      %1338 = vmatprep.mubr.bf16.mxu0 0
      %1339 = vmatmul.mubr.bf16.gmra.mrb[0].mxu0 %v1189
      %v1340 = vpop.f32.mrb[0].mxu0
      %v1341 = vadd.f32 %v1125, %v1340
      %v1342 = vpop.f32.mrb[0].mxu0
      %v1343 = vpop.f32.mrb[0].mxu0
      %v1344 = vadd.f32 %v1128, %v1343
      %v1345 = vpop.f32.mrb[0].mxu0
      %1346 = vmatprep.mubr.bf16.mxu0 0
      %1347 = vmatmul.mubr.bf16.gmra.mrb[0].mxu0 %v1191
      %v1348 = vpop.f32.mrb[0].mxu0
      %v1349 = vadd.f32 %v1133, %v1348
      %v1350 = vpop.f32.mrb[0].mxu0
      %v1351 = vpop.f32.mrb[0].mxu0
      %v1352 = vadd.f32 %v1136, %v1351
      %v1353 = vpop.f32.mrb[0].mxu0
      %1354 = vmatprep.mubr.bf16.mxu0 0
      %1355 = vmatmul.mubr.bf16.gmra.mrb[0].mxu0 %v1193
      %v1356 = vpop.f32.mrb[0].mxu0
      %v1357 = vadd.f32 %v1141, %v1356
      %v1358 = vpop.f32.mrb[0].mxu0
      %v1359 = vpop.f32.mrb[0].mxu0
      %v1360 = vadd.f32 %v1144, %v1359
      %v1361 = vpop.f32.mrb[0].mxu0
      %1362 = vmatprep.mubr.bf16.mxu0 0
      %1363 = vmatmul.mubr.bf16.gmra.mrb[0].mxu0 %v1195
      %v1364 = vpop.f32.mrb[0].mxu0
      %v1365 = vadd.f32 %v1149, %v1364
      %v1366 = vpop.f32.mrb[0].mxu0
      %v1367 = vpop.f32.mrb[0].mxu0
      %v1368 = vadd.f32 %v1152, %v1367
      %v1369 = vpop.f32.mrb[0].mxu0
      %1370 = vmatprep.mubr.bf16.mxu0 0
      %1371 = vmatmul.mubr.bf16.gmra.mrb[0].mxu0 %v1197
      %v1372 = vpop.f32.mrb[0].mxu0
      %v1373 = vadd.f32 %v1157, %v1372
      %v1374 = vpop.f32.mrb[0].mxu0
      %v1375 = vpop.f32.mrb[0].mxu0
      %v1376 = vadd.f32 %v1160, %v1375
      %v1377 = vpop.f32.mrb[0].mxu0
      %1378 = vdwg.mxu0
      %s1379 = scalar_lea.vmem %s1, 4
      %v1380 = vld [vmem:[%s1379] sm:$0x3]
      %vm1400 = vcmask 1046528
      %v1401 = vrot.slane %v756, 1
      %v1402 = vrot.slane %v757, 1
      %v1403 = vsel %vm1400, %v1401, %v1402
      %v1404 = vrot.slane %v758, 1
      %v1405 = vsel %vm1400, %v1402, %v1404
      %v1406 = vrot.slane %v759, 1
      %v1407 = vsel %vm1400, %v1404, %v1406
      %v1408 = vrot.slane %v760, 1
      %v1409 = vsel %vm1400, %v1406, %v1408
      %v1410 = vrot.slane %v761, 1
      %v1411 = vsel %vm1400, %v1408, %v1410
      %v1412 = vrot.slane %v762, 1
      %v1413 = vsel %vm1400, %v1410, %v1412
      %v1414 = vrot.slane %v763, 1
      %v1415 = vsel %vm1400, %v1412, %v1414
      %v1416 = vrot.slane %v764, 1
      %v1417 = vsel %vm1400, %v1414, %v1416
      %v1418 = vrot.slane %v765, 1
      %v1419 = vsel %vm1400, %v1416, %v1418
      %v1420 = vrot.slane %v766, 1
      %v1421 = vsel %vm1400, %v1418, %v1420
      %v1422 = vrot.slane %v767, 1
      %v1423 = vsel %vm1400, %v1420, %v1422
      %v1424 = vrot.slane %v768, 1
      %v1425 = vsel %vm1400, %v1422, %v1424
      %v1426 = vrot.slane %v769, 1
      %v1427 = vsel %vm1400, %v1424, %v1426
      %v1428 = vrot.slane %v770, 1
      %v1429 = vsel %vm1400, %v1426, %v1428
      %v1430 = vrot.slane %v771, 1
      %v1431 = vsel %vm1400, %v1428, %v1430
      %v1432 = vrot.slane %v772, 1
      %v1433 = vsel %vm1400, %v1430, %v1432
      %v1434 = vrot.slane %v773, 1
      %v1435 = vsel %vm1400, %v1432, %v1434
      %v1436 = vrot.slane %v775, 1
      %v1437 = vsel %vm1400, %v1434, %v1436
      %v1439 = vsel %vm927, %v1403, 0
      %v1442 = vsel %vm927, %v1405, 0
      %v1445 = vsel %vm927, %v1407, 0
      %v1448 = vsel %vm927, %v1409, 0
      %v1451 = vsel %vm927, %v1411, 0
      %v1454 = vsel %vm927, %v1413, 0
      %v1457 = vsel %vm927, %v1415, 0
      %v1460 = vsel %vm927, %v1417, 0
      %v1463 = vsel %vm927, %v1419, 0
      %v1466 = vsel %vm927, %v1421, 0
      %v1469 = vsel %vm927, %v1423, 0
      %v1472 = vsel %vm927, %v1425, 0
      %v1475 = vsel %vm927, %v1427, 0
      %v1478 = vsel %vm927, %v1429, 0
      %v1481 = vsel %vm927, %v1431, 0
      %v1484 = vsel %vm927, %v1433, 0
      %v1487 = vsel %vm927, %v1435, 0
      %v1490 = vsel %vm927, %v1437, 0
      %v1493 = vsel %vm982, %v1380, 0
      %1495 = vmatprep.subr.bf16.mxu0 0
      %1496 = vmatpush1.bf16.msra.mxu0 %v1493
      %1497 = vmatprep.subr.bf16.mxu0 0
      %1498 = vmatpush1.bf16.msra.mxu0 0
      %1499 = vmatprep.subr.bf16.mxu0 0
      %1500 = vmatpush1.bf16.msra.mxu0 0
      %1501 = vmatprep.subr.bf16.mxu0 0
      %1502 = vmatpush1.bf16.msra.mxu0 0
      %1503 = vmatprep.subr.bf16.mxu0 0
      %1504 = vmatpush1.bf16.msra.mxu0 0
      %1505 = vmatprep.subr.bf16.mxu0 0
      %1506 = vmatpush1.bf16.msra.mxu0 0
      %1507 = vmatprep.subr.bf16.mxu0 0
      %1508 = vmatpush1.bf16.msra.mxu0 0
      %1509 = vmatprep.subr.bf16.mxu0 0
      %1510 = vmatpush1.bf16.msra.mxu0 0
      %1511 = vmatprep.subr.bf16.mxu0 0
      %1512 = vmatpush1.bf16.msra.mxu0 0
      %1513 = vmatprep.subr.bf16.mxu0 0
      %1514 = vmatpush1.bf16.msra.mxu0 0
      %1515 = vmatprep.subr.bf16.mxu0 0
      %1516 = vmatpush1.bf16.msra.mxu0 0
      %1517 = vmatprep.subr.bf16.mxu0 0
      %1518 = vmatpush1.bf16.msra.mxu0 0
      %1519 = vmatprep.subr.bf16.mxu0 0
      %1520 = vmatpush1.bf16.msra.mxu0 0
      %1521 = vmatprep.subr.bf16.mxu0 0
      %1522 = vmatpush1.bf16.msra.mxu0 0
      %1523 = vmatprep.subr.bf16.mxu0 0
      %1524 = vmatpush1.bf16.msra.mxu0 0
      %1525 = vmatprep.subr.bf16.mxu0 0
      %1526 = vmatpush1.bf16.msra.mxu0 0
      %1527 = vmatprep.mubr.bf16.mxu0 0
      %1528 = vmatmul.mubr.bf16.gmra.mrb[0].mxu0 %v1439
      %v1529 = vpop.f32.mrb[0].mxu0
      %v1530 = vadd.f32 0.0, %v1529
      %v1531 = vpop.f32.mrb[0].mxu0
      %v1532 = vpop.f32.mrb[0].mxu0
      %v1533 = vadd.f32 0.0, %v1532
      %v1534 = vpop.f32.mrb[0].mxu0
      %1535 = vmatprep.mubr.bf16.mxu0 0
      %1536 = vmatmul.mubr.bf16.gmra.mrb[0].mxu0 %v1442
      %v1537 = vpop.f32.mrb[0].mxu0
      %v1538 = vadd.f32 0.0, %v1537
      %v1539 = vpop.f32.mrb[0].mxu0
      %v1540 = vpop.f32.mrb[0].mxu0
      %v1541 = vadd.f32 0.0, %v1540
      %v1542 = vpop.f32.mrb[0].mxu0
      %1543 = vmatprep.mubr.bf16.mxu0 0
      %1544 = vmatmul.mubr.bf16.gmra.mrb[0].mxu0 %v1445
      %v1545 = vpop.f32.mrb[0].mxu0
      %v1546 = vadd.f32 0.0, %v1545
      %v1547 = vpop.f32.mrb[0].mxu0
      %v1548 = vpop.f32.mrb[0].mxu0
      %v1549 = vadd.f32 0.0, %v1548
      %v1550 = vpop.f32.mrb[0].mxu0
      %1551 = vmatprep.mubr.bf16.mxu0 0
      %1552 = vmatmul.mubr.bf16.gmra.mrb[0].mxu0 %v1448
      %v1553 = vpop.f32.mrb[0].mxu0
      %v1554 = vadd.f32 0.0, %v1553
      %v1555 = vpop.f32.mrb[0].mxu0
      %v1556 = vpop.f32.mrb[0].mxu0
      %v1557 = vadd.f32 0.0, %v1556
      %v1558 = vpop.f32.mrb[0].mxu0
      %1559 = vmatprep.mubr.bf16.mxu0 0
      %1560 = vmatmul.mubr.bf16.gmra.mrb[0].mxu0 %v1451
      %v1561 = vpop.f32.mrb[0].mxu0
      %v1562 = vadd.f32 0.0, %v1561
      %v1563 = vpop.f32.mrb[0].mxu0
      %v1564 = vpop.f32.mrb[0].mxu0
      %v1565 = vadd.f32 0.0, %v1564
      %v1566 = vpop.f32.mrb[0].mxu0
      %1567 = vmatprep.mubr.bf16.mxu0 0
      %1568 = vmatmul.mubr.bf16.gmra.mrb[0].mxu0 %v1454
      %v1569 = vpop.f32.mrb[0].mxu0
      %v1570 = vadd.f32 0.0, %v1569
      %v1571 = vpop.f32.mrb[0].mxu0
      %v1572 = vpop.f32.mrb[0].mxu0
      %v1573 = vadd.f32 0.0, %v1572
      %v1574 = vpop.f32.mrb[0].mxu0
      %1575 = vmatprep.mubr.bf16.mxu0 0
      %1576 = vmatmul.mubr.bf16.gmra.mrb[0].mxu0 %v1457
      %v1577 = vpop.f32.mrb[0].mxu0
      %v1578 = vadd.f32 0.0, %v1577
      %v1579 = vpop.f32.mrb[0].mxu0
      %v1580 = vpop.f32.mrb[0].mxu0
      %v1581 = vadd.f32 0.0, %v1580
      %v1582 = vpop.f32.mrb[0].mxu0
      %1583 = vmatprep.mubr.bf16.mxu0 0
      %1584 = vmatmul.mubr.bf16.gmra.mrb[0].mxu0 %v1460
      %v1585 = vpop.f32.mrb[0].mxu0
      %v1586 = vadd.f32 0.0, %v1585
      %v1587 = vpop.f32.mrb[0].mxu0
      %v1588 = vpop.f32.mrb[0].mxu0
      %v1589 = vadd.f32 0.0, %v1588
      %v1590 = vpop.f32.mrb[0].mxu0
      %1591 = vmatprep.mubr.bf16.mxu0 0
      %1592 = vmatmul.mubr.bf16.gmra.mrb[0].mxu0 %v1463
      %v1593 = vpop.f32.mrb[0].mxu0
      %v1594 = vadd.f32 0.0, %v1593
      %v1595 = vpop.f32.mrb[0].mxu0
      %v1596 = vpop.f32.mrb[0].mxu0
      %v1597 = vadd.f32 0.0, %v1596
      %v1598 = vpop.f32.mrb[0].mxu0
      %1599 = vmatprep.mubr.bf16.mxu0 0
      %1600 = vmatmul.mubr.bf16.gmra.mrb[0].mxu0 %v1466
      %v1601 = vpop.f32.mrb[0].mxu0
      %v1602 = vadd.f32 0.0, %v1601
      %v1603 = vpop.f32.mrb[0].mxu0
      %v1604 = vpop.f32.mrb[0].mxu0
      %v1605 = vadd.f32 0.0, %v1604
      %v1606 = vpop.f32.mrb[0].mxu0
      %1607 = vmatprep.mubr.bf16.mxu0 0
      %1608 = vmatmul.mubr.bf16.gmra.mrb[0].mxu0 %v1469
      %v1609 = vpop.f32.mrb[0].mxu0
      %v1610 = vadd.f32 0.0, %v1609
      %v1611 = vpop.f32.mrb[0].mxu0
      %v1612 = vpop.f32.mrb[0].mxu0
      %v1613 = vadd.f32 0.0, %v1612
      %v1614 = vpop.f32.mrb[0].mxu0
      %1615 = vmatprep.mubr.bf16.mxu0 0
      %1616 = vmatmul.mubr.bf16.gmra.mrb[0].mxu0 %v1472
      %v1617 = vpop.f32.mrb[0].mxu0
      %v1618 = vadd.f32 0.0, %v1617
      %v1619 = vpop.f32.mrb[0].mxu0
      %v1620 = vpop.f32.mrb[0].mxu0
      %v1621 = vadd.f32 0.0, %v1620
      %v1622 = vpop.f32.mrb[0].mxu0
      %1623 = vmatprep.mubr.bf16.mxu0 0
      %1624 = vmatmul.mubr.bf16.gmra.mrb[0].mxu0 %v1475
      %v1625 = vpop.f32.mrb[0].mxu0
      %v1626 = vadd.f32 0.0, %v1625
      %v1627 = vpop.f32.mrb[0].mxu0
      %v1628 = vpop.f32.mrb[0].mxu0
      %v1629 = vadd.f32 0.0, %v1628
      %v1630 = vpop.f32.mrb[0].mxu0
      %1631 = vmatprep.mubr.bf16.mxu0 0
      %1632 = vmatmul.mubr.bf16.gmra.mrb[0].mxu0 %v1478
      %v1633 = vpop.f32.mrb[0].mxu0
      %v1634 = vadd.f32 0.0, %v1633
      %v1635 = vpop.f32.mrb[0].mxu0
      %v1636 = vpop.f32.mrb[0].mxu0
      %v1637 = vadd.f32 0.0, %v1636
      %v1638 = vpop.f32.mrb[0].mxu0
      %1639 = vmatprep.mubr.bf16.mxu0 0
      %1640 = vmatmul.mubr.bf16.gmra.mrb[0].mxu0 %v1481
      %v1641 = vpop.f32.mrb[0].mxu0
      %v1642 = vadd.f32 0.0, %v1641
      %v1643 = vpop.f32.mrb[0].mxu0
      %v1644 = vpop.f32.mrb[0].mxu0
      %v1645 = vadd.f32 0.0, %v1644
      %v1646 = vpop.f32.mrb[0].mxu0
      %1647 = vmatprep.mubr.bf16.mxu0 0
      %1648 = vmatmul.mubr.bf16.gmra.mrb[0].mxu0 %v1484
      %v1649 = vpop.f32.mrb[0].mxu0
      %v1650 = vadd.f32 0.0, %v1649
      %v1651 = vpop.f32.mrb[0].mxu0
      %v1652 = vpop.f32.mrb[0].mxu0
      %v1653 = vadd.f32 0.0, %v1652
      %v1654 = vpop.f32.mrb[0].mxu0
      %1655 = vmatprep.mubr.bf16.mxu0 0
      %1656 = vmatmul.mubr.bf16.gmra.mrb[0].mxu0 %v1487
      %v1657 = vpop.f32.mrb[0].mxu0
      %v1658 = vadd.f32 0.0, %v1657
      %v1659 = vpop.f32.mrb[0].mxu0
      %v1660 = vpop.f32.mrb[0].mxu0
      %v1661 = vadd.f32 0.0, %v1660
      %v1662 = vpop.f32.mrb[0].mxu0
      %1663 = vmatprep.mubr.bf16.mxu0 0
      %1664 = vmatmul.mubr.bf16.gmra.mrb[0].mxu0 %v1490
      %v1665 = vpop.f32.mrb[0].mxu0
      %v1666 = vadd.f32 0.0, %v1665
      %v1667 = vpop.f32.mrb[0].mxu0
      %v1668 = vpop.f32.mrb[0].mxu0
      %v1669 = vadd.f32 0.0, %v1668
      %v1670 = vpop.f32.mrb[0].mxu0
      %1671 = vdwg.mxu0
      %v1672 = vadd.f32 %v1237, %v1530
      %v1673 = vadd.f32 %v1240, %v1533
      %v1674 = vadd.f32 %v1245, %v1538
      %v1675 = vadd.f32 %v1248, %v1541
      %v1676 = vadd.f32 %v1253, %v1546
      %v1677 = vadd.f32 %v1256, %v1549
      %v1678 = vadd.f32 %v1261, %v1554
      %v1679 = vadd.f32 %v1264, %v1557
      %v1680 = vadd.f32 %v1269, %v1562
      %v1681 = vadd.f32 %v1272, %v1565
      %v1682 = vadd.f32 %v1277, %v1570
      %v1683 = vadd.f32 %v1280, %v1573
      %v1684 = vadd.f32 %v1285, %v1578
      %v1685 = vadd.f32 %v1288, %v1581
      %v1686 = vadd.f32 %v1293, %v1586
      %v1687 = vadd.f32 %v1296, %v1589
      %v1688 = vadd.f32 %v1301, %v1594
      %v1689 = vadd.f32 %v1304, %v1597
      %v1690 = vadd.f32 %v1309, %v1602
      %v1691 = vadd.f32 %v1312, %v1605
      %v1692 = vadd.f32 %v1317, %v1610
      %v1693 = vadd.f32 %v1320, %v1613
      %v1694 = vadd.f32 %v1325, %v1618
      %v1695 = vadd.f32 %v1328, %v1621
      %v1696 = vadd.f32 %v1333, %v1626
      %v1697 = vadd.f32 %v1336, %v1629
      %v1698 = vadd.f32 %v1341, %v1634
      %v1699 = vadd.f32 %v1344, %v1637
      %v1700 = vadd.f32 %v1349, %v1642
      %v1701 = vadd.f32 %v1352, %v1645
      %v1702 = vadd.f32 %v1357, %v1650
      %v1703 = vadd.f32 %v1360, %v1653
      %v1704 = vadd.f32 %v1365, %v1658
      %v1705 = vadd.f32 %v1368, %v1661
      %v1706 = vadd.f32 %v1373, %v1666
      %v1707 = vadd.f32 %v1376, %v1669
      %v1708 = vpack.c.bf16 %v752, %v751
      %v1709 = vpack.c.bf16 %v753, %v753
      %s1710 = scalar_lea.vmem %s1, 6
      %v1711 = vld [vmem:[%s1710] sm:$0x3]
      %v1714 = vrot.slane %v1708, 1
      %v1715 = vsel %vm1400, %v1434, %v1714
      %v1716 = vrot.slane %v1709, 1
      %v1717 = vsel %vm1400, %v1714, %v1716
      %v1719 = vsel %vm927, %v1715, 0
      %v1722 = vsel %vm927, %v1717, 0
      %v1725 = vsel %vm982, %v1711, 0
      %1727 = vmatprep.subr.bf16.mxu0 0
      %1728 = vmatpush1.bf16.msra.mxu0 %v1725
      %1729 = vmatprep.subr.bf16.mxu0 0
      %1730 = vmatpush1.bf16.msra.mxu0 0
      %1731 = vmatprep.subr.bf16.mxu0 0
      %1732 = vmatpush1.bf16.msra.mxu0 0
      %1733 = vmatprep.subr.bf16.mxu0 0
      %1734 = vmatpush1.bf16.msra.mxu0 0
      %1735 = vmatprep.subr.bf16.mxu0 0
      %1736 = vmatpush1.bf16.msra.mxu0 0
      %1737 = vmatprep.subr.bf16.mxu0 0
      %1738 = vmatpush1.bf16.msra.mxu0 0
      %1739 = vmatprep.subr.bf16.mxu0 0
      %1740 = vmatpush1.bf16.msra.mxu0 0
      %1741 = vmatprep.subr.bf16.mxu0 0
      %1742 = vmatpush1.bf16.msra.mxu0 0
      %1743 = vmatprep.subr.bf16.mxu0 0
      %1744 = vmatpush1.bf16.msra.mxu0 0
      %1745 = vmatprep.subr.bf16.mxu0 0
      %1746 = vmatpush1.bf16.msra.mxu0 0
      %1747 = vmatprep.subr.bf16.mxu0 0
      %1748 = vmatpush1.bf16.msra.mxu0 0
      %1749 = vmatprep.subr.bf16.mxu0 0
      %1750 = vmatpush1.bf16.msra.mxu0 0
      %1751 = vmatprep.subr.bf16.mxu0 0
      %1752 = vmatpush1.bf16.msra.mxu0 0
      %1753 = vmatprep.subr.bf16.mxu0 0
      %1754 = vmatpush1.bf16.msra.mxu0 0
      %1755 = vmatprep.subr.bf16.mxu0 0
      %1756 = vmatpush1.bf16.msra.mxu0 0
      %1757 = vmatprep.subr.bf16.mxu0 0
      %1758 = vmatpush1.bf16.msra.mxu0 0
      %1759 = vmatprep.mubr.bf16.mxu0 0
      %1760 = vmatmul.mubr.bf16.gmra.mrb[0].mxu0 %v1442
      %v1761 = vpop.f32.mrb[0].mxu0
      %v1762 = vadd.f32 0.0, %v1761
      %v1763 = vpop.f32.mrb[0].mxu0
      %v1764 = vpop.f32.mrb[0].mxu0
      %v1765 = vadd.f32 0.0, %v1764
      %v1766 = vpop.f32.mrb[0].mxu0
      %1767 = vmatprep.mubr.bf16.mxu0 0
      %1768 = vmatmul.mubr.bf16.gmra.mrb[0].mxu0 %v1445
      %v1769 = vpop.f32.mrb[0].mxu0
      %v1770 = vadd.f32 0.0, %v1769
      %v1771 = vpop.f32.mrb[0].mxu0
      %v1772 = vpop.f32.mrb[0].mxu0
      %v1773 = vadd.f32 0.0, %v1772
      %v1774 = vpop.f32.mrb[0].mxu0
      %1775 = vmatprep.mubr.bf16.mxu0 0
      %1776 = vmatmul.mubr.bf16.gmra.mrb[0].mxu0 %v1448
      %v1777 = vpop.f32.mrb[0].mxu0
      %v1778 = vadd.f32 0.0, %v1777
      %v1779 = vpop.f32.mrb[0].mxu0
      %v1780 = vpop.f32.mrb[0].mxu0
      %v1781 = vadd.f32 0.0, %v1780
      %v1782 = vpop.f32.mrb[0].mxu0
      %1783 = vmatprep.mubr.bf16.mxu0 0
      %1784 = vmatmul.mubr.bf16.gmra.mrb[0].mxu0 %v1451
      %v1785 = vpop.f32.mrb[0].mxu0
      %v1786 = vadd.f32 0.0, %v1785
      %v1787 = vpop.f32.mrb[0].mxu0
      %v1788 = vpop.f32.mrb[0].mxu0
      %v1789 = vadd.f32 0.0, %v1788
      %v1790 = vpop.f32.mrb[0].mxu0
      %1791 = vmatprep.mubr.bf16.mxu0 0
      %1792 = vmatmul.mubr.bf16.gmra.mrb[0].mxu0 %v1454
      %v1793 = vpop.f32.mrb[0].mxu0
      %v1794 = vadd.f32 0.0, %v1793
      %v1795 = vpop.f32.mrb[0].mxu0
      %v1796 = vpop.f32.mrb[0].mxu0
      %v1797 = vadd.f32 0.0, %v1796
      %v1798 = vpop.f32.mrb[0].mxu0
      %1799 = vmatprep.mubr.bf16.mxu0 0
      %1800 = vmatmul.mubr.bf16.gmra.mrb[0].mxu0 %v1457
      %v1801 = vpop.f32.mrb[0].mxu0
      %v1802 = vadd.f32 0.0, %v1801
      %v1803 = vpop.f32.mrb[0].mxu0
      %v1804 = vpop.f32.mrb[0].mxu0
      %v1805 = vadd.f32 0.0, %v1804
      %v1806 = vpop.f32.mrb[0].mxu0
      %1807 = vmatprep.mubr.bf16.mxu0 0
      %1808 = vmatmul.mubr.bf16.gmra.mrb[0].mxu0 %v1460
      %v1809 = vpop.f32.mrb[0].mxu0
      %v1810 = vadd.f32 0.0, %v1809
      %v1811 = vpop.f32.mrb[0].mxu0
      %v1812 = vpop.f32.mrb[0].mxu0
      %v1813 = vadd.f32 0.0, %v1812
      %v1814 = vpop.f32.mrb[0].mxu0
      %1815 = vmatprep.mubr.bf16.mxu0 0
      %1816 = vmatmul.mubr.bf16.gmra.mrb[0].mxu0 %v1463
      %v1817 = vpop.f32.mrb[0].mxu0
      %v1818 = vadd.f32 0.0, %v1817
      %v1819 = vpop.f32.mrb[0].mxu0
      %v1820 = vpop.f32.mrb[0].mxu0
      %v1821 = vadd.f32 0.0, %v1820
      %v1822 = vpop.f32.mrb[0].mxu0
      %1823 = vmatprep.mubr.bf16.mxu0 0
      %1824 = vmatmul.mubr.bf16.gmra.mrb[0].mxu0 %v1466
      %v1825 = vpop.f32.mrb[0].mxu0
      %v1826 = vadd.f32 0.0, %v1825
      %v1827 = vpop.f32.mrb[0].mxu0
      %v1828 = vpop.f32.mrb[0].mxu0
      %v1829 = vadd.f32 0.0, %v1828
      %v1830 = vpop.f32.mrb[0].mxu0
      %1831 = vmatprep.mubr.bf16.mxu0 0
      %1832 = vmatmul.mubr.bf16.gmra.mrb[0].mxu0 %v1469
      %v1833 = vpop.f32.mrb[0].mxu0
      %v1834 = vadd.f32 0.0, %v1833
      %v1835 = vpop.f32.mrb[0].mxu0
      %v1836 = vpop.f32.mrb[0].mxu0
      %v1837 = vadd.f32 0.0, %v1836
      %v1838 = vpop.f32.mrb[0].mxu0
      %1839 = vmatprep.mubr.bf16.mxu0 0
      %1840 = vmatmul.mubr.bf16.gmra.mrb[0].mxu0 %v1472
      %v1841 = vpop.f32.mrb[0].mxu0
      %v1842 = vadd.f32 0.0, %v1841
      %v1843 = vpop.f32.mrb[0].mxu0
      %v1844 = vpop.f32.mrb[0].mxu0
      %v1845 = vadd.f32 0.0, %v1844
      %v1846 = vpop.f32.mrb[0].mxu0
      %1847 = vmatprep.mubr.bf16.mxu0 0
      %1848 = vmatmul.mubr.bf16.gmra.mrb[0].mxu0 %v1475
      %v1849 = vpop.f32.mrb[0].mxu0
      %v1850 = vadd.f32 0.0, %v1849
      %v1851 = vpop.f32.mrb[0].mxu0
      %v1852 = vpop.f32.mrb[0].mxu0
      %v1853 = vadd.f32 0.0, %v1852
      %v1854 = vpop.f32.mrb[0].mxu0
      %1855 = vmatprep.mubr.bf16.mxu0 0
      %1856 = vmatmul.mubr.bf16.gmra.mrb[0].mxu0 %v1478
      %v1857 = vpop.f32.mrb[0].mxu0
      %v1858 = vadd.f32 0.0, %v1857
      %v1859 = vpop.f32.mrb[0].mxu0
      %v1860 = vpop.f32.mrb[0].mxu0
      %v1861 = vadd.f32 0.0, %v1860
      %v1862 = vpop.f32.mrb[0].mxu0
      %1863 = vmatprep.mubr.bf16.mxu0 0
      %1864 = vmatmul.mubr.bf16.gmra.mrb[0].mxu0 %v1481
      %v1865 = vpop.f32.mrb[0].mxu0
      %v1866 = vadd.f32 0.0, %v1865
      %v1867 = vpop.f32.mrb[0].mxu0
      %v1868 = vpop.f32.mrb[0].mxu0
      %v1869 = vadd.f32 0.0, %v1868
      %v1870 = vpop.f32.mrb[0].mxu0
      %1871 = vmatprep.mubr.bf16.mxu0 0
      %1872 = vmatmul.mubr.bf16.gmra.mrb[0].mxu0 %v1484
      %v1873 = vpop.f32.mrb[0].mxu0
      %v1874 = vadd.f32 0.0, %v1873
      %v1875 = vpop.f32.mrb[0].mxu0
      %v1876 = vpop.f32.mrb[0].mxu0
      %v1877 = vadd.f32 0.0, %v1876
      %v1878 = vpop.f32.mrb[0].mxu0
      %1879 = vmatprep.mubr.bf16.mxu0 0
      %1880 = vmatmul.mubr.bf16.gmra.mrb[0].mxu0 %v1487
      %v1881 = vpop.f32.mrb[0].mxu0
      %v1882 = vadd.f32 0.0, %v1881
      %v1883 = vpop.f32.mrb[0].mxu0
      %v1884 = vpop.f32.mrb[0].mxu0
      %v1885 = vadd.f32 0.0, %v1884
      %v1886 = vpop.f32.mrb[0].mxu0
      %1887 = vmatprep.mubr.bf16.mxu0 0
      %1888 = vmatmul.mubr.bf16.gmra.mrb[0].mxu0 %v1719
      %v1889 = vpop.f32.mrb[0].mxu0
      %v1890 = vadd.f32 0.0, %v1889
      %v1891 = vpop.f32.mrb[0].mxu0
      %v1892 = vpop.f32.mrb[0].mxu0
      %v1893 = vadd.f32 0.0, %v1892
      %v1894 = vpop.f32.mrb[0].mxu0
      %1895 = vmatprep.mubr.bf16.mxu0 0
      %1896 = vmatmul.mubr.bf16.gmra.mrb[0].mxu0 %v1722
      %v1897 = vpop.f32.mrb[0].mxu0
      %v1898 = vadd.f32 0.0, %v1897
      %v1899 = vpop.f32.mrb[0].mxu0
      %v1900 = vpop.f32.mrb[0].mxu0
      %v1901 = vadd.f32 0.0, %v1900
      %v1902 = vpop.f32.mrb[0].mxu0
      %1903 = vdwg.mxu0
      %v1904 = vadd.f32 %v1672, %v1762
      %v1905 = vadd.f32 %v1673, %v1765
      %v1906 = vadd.f32 %v1674, %v1770
      %v1907 = vadd.f32 %v1675, %v1773
      %v1908 = vadd.f32 %v1676, %v1778
      %v1909 = vadd.f32 %v1677, %v1781
      %v1910 = vadd.f32 %v1678, %v1786
      %v1911 = vadd.f32 %v1679, %v1789
      %v1912 = vadd.f32 %v1680, %v1794
      %v1913 = vadd.f32 %v1681, %v1797
      %v1914 = vadd.f32 %v1682, %v1802
      %v1915 = vadd.f32 %v1683, %v1805
      %v1916 = vadd.f32 %v1684, %v1810
      %v1917 = vadd.f32 %v1685, %v1813
      %v1918 = vadd.f32 %v1686, %v1818
      %v1919 = vadd.f32 %v1687, %v1821
      %v1920 = vadd.f32 %v1688, %v1826
      %v1921 = vadd.f32 %v1689, %v1829
      %v1922 = vadd.f32 %v1690, %v1834
      %v1923 = vadd.f32 %v1691, %v1837
      %v1924 = vadd.f32 %v1692, %v1842
      %v1925 = vadd.f32 %v1693, %v1845
      %v1926 = vadd.f32 %v1694, %v1850
      %v1927 = vadd.f32 %v1695, %v1853
      %v1928 = vadd.f32 %v1696, %v1858
      %v1929 = vadd.f32 %v1697, %v1861
      %v1930 = vadd.f32 %v1698, %v1866
      %v1931 = vadd.f32 %v1699, %v1869
      %v1932 = vadd.f32 %v1700, %v1874
      %v1933 = vadd.f32 %v1701, %v1877
      %v1934 = vadd.f32 %v1702, %v1882
      %v1935 = vadd.f32 %v1703, %v1885
      %v1936 = vadd.f32 %v1704, %v1890
      %v1937 = vadd.f32 %v1705, %v1893
      %v1938 = vadd.f32 %v1706, %v1898
      %v1939 = vadd.f32 %v1707, %v1901
      %s1940 = scalar_lea.vmem %s1, 8
      %v1941 = vld [vmem:[%s1940] sm:$0x3]
      %vm1942 = vsmask.f32 6400
      %v1943 = vrot.slane %v791, 1
      %v1944 = vrot.slane %v787, 2
      %v1945 = vor.u32 %v1943, %v1944
      %v1946 = vrot.slane %v799, 1
      %v1947 = vrot.slane %v795, 2
      %v1948 = vor.u32 %v1946, %v1947
      %v1949 = vsel %vm1942, %v1945, %v1948
      %v1950 = vrot.slane %v807, 1
      %v1951 = vrot.slane %v803, 2
      %v1952 = vor.u32 %v1950, %v1951
      %v1953 = vsel %vm1942, %v1948, %v1952
      %v1954 = vrot.slane %v815, 1
      %v1955 = vrot.slane %v811, 2
      %v1956 = vor.u32 %v1954, %v1955
      %v1957 = vsel %vm1942, %v1952, %v1956
      %v1958 = vrot.slane %v823, 1
      %v1959 = vrot.slane %v819, 2
      %v1960 = vor.u32 %v1958, %v1959
      %v1961 = vsel %vm1942, %v1956, %v1960
      %v1962 = vrot.slane %v831, 1
      %v1963 = vrot.slane %v827, 2
      %v1964 = vor.u32 %v1962, %v1963
      %v1965 = vsel %vm1942, %v1960, %v1964
      %v1966 = vrot.slane %v839, 1
      %v1967 = vrot.slane %v835, 2
      %v1968 = vor.u32 %v1966, %v1967
      %v1969 = vsel %vm1942, %v1964, %v1968
      %v1970 = vrot.slane %v847, 1
      %v1971 = vrot.slane %v843, 2
      %v1972 = vor.u32 %v1970, %v1971
      %v1973 = vsel %vm1942, %v1968, %v1972
      %v1974 = vrot.slane %v855, 1
      %v1975 = vrot.slane %v851, 2
      %v1976 = vor.u32 %v1974, %v1975
      %v1977 = vsel %vm1942, %v1972, %v1976
      %v1978 = vrot.slane %v863, 1
      %v1979 = vrot.slane %v859, 2
      %v1980 = vor.u32 %v1978, %v1979
      %v1981 = vsel %vm1942, %v1976, %v1980
      %v1982 = vrot.slane %v871, 1
      %v1983 = vrot.slane %v867, 2
      %v1984 = vor.u32 %v1982, %v1983
      %v1985 = vsel %vm1942, %v1980, %v1984
      %v1986 = vrot.slane %v879, 1
      %v1987 = vrot.slane %v875, 2
      %v1988 = vor.u32 %v1986, %v1987
      %v1989 = vsel %vm1942, %v1984, %v1988
      %v1990 = vrot.slane %v887, 1
      %v1991 = vrot.slane %v883, 2
      %v1992 = vor.u32 %v1990, %v1991
      %v1993 = vsel %vm1942, %v1988, %v1992
      %v1994 = vrot.slane %v895, 1
      %v1995 = vrot.slane %v891, 2
      %v1996 = vor.u32 %v1994, %v1995
      %v1997 = vsel %vm1942, %v1992, %v1996
      %v1998 = vrot.slane %v903, 1
      %v1999 = vrot.slane %v899, 2
      %v2000 = vor.u32 %v1998, %v1999
      %v2001 = vsel %vm1942, %v1996, %v2000
      %v2002 = vrot.slane %v911, 1
      %v2003 = vrot.slane %v907, 2
      %v2004 = vor.u32 %v2002, %v2003
      %v2005 = vsel %vm1942, %v2000, %v2004
      %v2006 = vrot.slane %v919, 1
      %v2007 = vrot.slane %v915, 2
      %v2008 = vor.u32 %v2006, %v2007
      %v2009 = vsel %vm1942, %v2004, %v2008
      %v2011 = vshrl.u32 %v1708, 16
      %v2013 = vrot.slane %v2011, 1
      %v2014 = vshll.u32 %v1708, 16
      %v2016 = vrot.slane %v2014, 2
      %v2017 = vor.u32 %v2013, %v2016
      %v2018 = vsel %vm1942, %v2008, %v2017
      %v2020 = vshrl.u32 %v1709, 16
      %v2022 = vrot.slane %v2020, 1
      %v2023 = vshll.u32 %v1709, 16
      %v2025 = vrot.slane %v2023, 2
      %v2026 = vor.u32 %v2022, %v2025
      %v2027 = vsel %vm1942, %v2017, %v2026
      %v2029 = vsel %vm927, %v1949, 0
      %v2032 = vsel %vm927, %v1953, 0
      %v2035 = vsel %vm927, %v1957, 0
      %v2038 = vsel %vm927, %v1961, 0
      %v2041 = vsel %vm927, %v1965, 0
      %v2044 = vsel %vm927, %v1969, 0
      %v2047 = vsel %vm927, %v1973, 0
      %v2050 = vsel %vm927, %v1977, 0
      %v2053 = vsel %vm927, %v1981, 0
      %v2056 = vsel %vm927, %v1985, 0
      %v2059 = vsel %vm927, %v1989, 0
      %v2062 = vsel %vm927, %v1993, 0
      %v2065 = vsel %vm927, %v1997, 0
      %v2068 = vsel %vm927, %v2001, 0
      %v2071 = vsel %vm927, %v2005, 0
      %v2074 = vsel %vm927, %v2009, 0
      %v2077 = vsel %vm927, %v2018, 0
      %v2080 = vsel %vm927, %v2027, 0
      %v2083 = vsel %vm982, %v1941, 0
      %2085 = vmatprep.subr.bf16.mxu0 0
      %2086 = vmatpush1.bf16.msra.mxu0 %v2083
      %2087 = vmatprep.subr.bf16.mxu0 0
      %2088 = vmatpush1.bf16.msra.mxu0 0
      %2089 = vmatprep.subr.bf16.mxu0 0
      %2090 = vmatpush1.bf16.msra.mxu0 0
      %2091 = vmatprep.subr.bf16.mxu0 0
      %2092 = vmatpush1.bf16.msra.mxu0 0
      %2093 = vmatprep.subr.bf16.mxu0 0
      %2094 = vmatpush1.bf16.msra.mxu0 0
      %2095 = vmatprep.subr.bf16.mxu0 0
      %2096 = vmatpush1.bf16.msra.mxu0 0
      %2097 = vmatprep.subr.bf16.mxu0 0
      %2098 = vmatpush1.bf16.msra.mxu0 0
      %2099 = vmatprep.subr.bf16.mxu0 0
      %2100 = vmatpush1.bf16.msra.mxu0 0
      %2101 = vmatprep.subr.bf16.mxu0 0
      %2102 = vmatpush1.bf16.msra.mxu0 0
      %2103 = vmatprep.subr.bf16.mxu0 0
      %2104 = vmatpush1.bf16.msra.mxu0 0
      %2105 = vmatprep.subr.bf16.mxu0 0
      %2106 = vmatpush1.bf16.msra.mxu0 0
      %2107 = vmatprep.subr.bf16.mxu0 0
      %2108 = vmatpush1.bf16.msra.mxu0 0
      %2109 = vmatprep.subr.bf16.mxu0 0
      %2110 = vmatpush1.bf16.msra.mxu0 0
      %2111 = vmatprep.subr.bf16.mxu0 0
      %2112 = vmatpush1.bf16.msra.mxu0 0
      %2113 = vmatprep.subr.bf16.mxu0 0
      %2114 = vmatpush1.bf16.msra.mxu0 0
      %2115 = vmatprep.subr.bf16.mxu0 0
      %2116 = vmatpush1.bf16.msra.mxu0 0
      %2117 = vmatprep.mubr.bf16.mxu0 0
      %2118 = vmatmul.mubr.bf16.gmra.mrb[0].mxu0 %v2029
      %v2119 = vpop.f32.mrb[0].mxu0
      %v2120 = vadd.f32 0.0, %v2119
      %v2121 = vpop.f32.mrb[0].mxu0
      %v2122 = vpop.f32.mrb[0].mxu0
      %v2123 = vadd.f32 0.0, %v2122
      %v2124 = vpop.f32.mrb[0].mxu0
      %2125 = vmatprep.mubr.bf16.mxu0 0
      %2126 = vmatmul.mubr.bf16.gmra.mrb[0].mxu0 %v2032
      %v2127 = vpop.f32.mrb[0].mxu0
      %v2128 = vadd.f32 0.0, %v2127
      %v2129 = vpop.f32.mrb[0].mxu0
      %v2130 = vpop.f32.mrb[0].mxu0
      %v2131 = vadd.f32 0.0, %v2130
      %v2132 = vpop.f32.mrb[0].mxu0
      %2133 = vmatprep.mubr.bf16.mxu0 0
      %2134 = vmatmul.mubr.bf16.gmra.mrb[0].mxu0 %v2035
      %v2135 = vpop.f32.mrb[0].mxu0
      %v2136 = vadd.f32 0.0, %v2135
      %v2137 = vpop.f32.mrb[0].mxu0
      %v2138 = vpop.f32.mrb[0].mxu0
      %v2139 = vadd.f32 0.0, %v2138
      %v2140 = vpop.f32.mrb[0].mxu0
      %2141 = vmatprep.mubr.bf16.mxu0 0
      %2142 = vmatmul.mubr.bf16.gmra.mrb[0].mxu0 %v2038
      %v2143 = vpop.f32.mrb[0].mxu0
      %v2144 = vadd.f32 0.0, %v2143
      %v2145 = vpop.f32.mrb[0].mxu0
      %v2146 = vpop.f32.mrb[0].mxu0
      %v2147 = vadd.f32 0.0, %v2146
      %v2148 = vpop.f32.mrb[0].mxu0
      %2149 = vmatprep.mubr.bf16.mxu0 0
      %2150 = vmatmul.mubr.bf16.gmra.mrb[0].mxu0 %v2041
      %v2151 = vpop.f32.mrb[0].mxu0
      %v2152 = vadd.f32 0.0, %v2151
      %v2153 = vpop.f32.mrb[0].mxu0
      %v2154 = vpop.f32.mrb[0].mxu0
      %v2155 = vadd.f32 0.0, %v2154
      %v2156 = vpop.f32.mrb[0].mxu0
      %2157 = vmatprep.mubr.bf16.mxu0 0
      %2158 = vmatmul.mubr.bf16.gmra.mrb[0].mxu0 %v2044
      %v2159 = vpop.f32.mrb[0].mxu0
      %v2160 = vadd.f32 0.0, %v2159
      %v2161 = vpop.f32.mrb[0].mxu0
      %v2162 = vpop.f32.mrb[0].mxu0
      %v2163 = vadd.f32 0.0, %v2162
      %v2164 = vpop.f32.mrb[0].mxu0
      %2165 = vmatprep.mubr.bf16.mxu0 0
      %2166 = vmatmul.mubr.bf16.gmra.mrb[0].mxu0 %v2047
      %v2167 = vpop.f32.mrb[0].mxu0
      %v2168 = vadd.f32 0.0, %v2167
      %v2169 = vpop.f32.mrb[0].mxu0
      %v2170 = vpop.f32.mrb[0].mxu0
      %v2171 = vadd.f32 0.0, %v2170
      %v2172 = vpop.f32.mrb[0].mxu0
      %2173 = vmatprep.mubr.bf16.mxu0 0
      %2174 = vmatmul.mubr.bf16.gmra.mrb[0].mxu0 %v2050
      %v2175 = vpop.f32.mrb[0].mxu0
      %v2176 = vadd.f32 0.0, %v2175
      %v2177 = vpop.f32.mrb[0].mxu0
      %v2178 = vpop.f32.mrb[0].mxu0
      %v2179 = vadd.f32 0.0, %v2178
      %v2180 = vpop.f32.mrb[0].mxu0
      %2181 = vmatprep.mubr.bf16.mxu0 0
      %2182 = vmatmul.mubr.bf16.gmra.mrb[0].mxu0 %v2053
      %v2183 = vpop.f32.mrb[0].mxu0
      %v2184 = vadd.f32 0.0, %v2183
      %v2185 = vpop.f32.mrb[0].mxu0
      %v2186 = vpop.f32.mrb[0].mxu0
      %v2187 = vadd.f32 0.0, %v2186
      %v2188 = vpop.f32.mrb[0].mxu0
      %2189 = vmatprep.mubr.bf16.mxu0 0
      %2190 = vmatmul.mubr.bf16.gmra.mrb[0].mxu0 %v2056
      %v2191 = vpop.f32.mrb[0].mxu0
      %v2192 = vadd.f32 0.0, %v2191
      %v2193 = vpop.f32.mrb[0].mxu0
      %v2194 = vpop.f32.mrb[0].mxu0
      %v2195 = vadd.f32 0.0, %v2194
      %v2196 = vpop.f32.mrb[0].mxu0
      %2197 = vmatprep.mubr.bf16.mxu0 0
      %2198 = vmatmul.mubr.bf16.gmra.mrb[0].mxu0 %v2059
      %v2199 = vpop.f32.mrb[0].mxu0
      %v2200 = vadd.f32 0.0, %v2199
      %v2201 = vpop.f32.mrb[0].mxu0
      %v2202 = vpop.f32.mrb[0].mxu0
      %v2203 = vadd.f32 0.0, %v2202
      %v2204 = vpop.f32.mrb[0].mxu0
      %2205 = vmatprep.mubr.bf16.mxu0 0
      %2206 = vmatmul.mubr.bf16.gmra.mrb[0].mxu0 %v2062
      %v2207 = vpop.f32.mrb[0].mxu0
      %v2208 = vadd.f32 0.0, %v2207
      %v2209 = vpop.f32.mrb[0].mxu0
      %v2210 = vpop.f32.mrb[0].mxu0
      %v2211 = vadd.f32 0.0, %v2210
      %v2212 = vpop.f32.mrb[0].mxu0
      %2213 = vmatprep.mubr.bf16.mxu0 0
      %2214 = vmatmul.mubr.bf16.gmra.mrb[0].mxu0 %v2065
      %v2215 = vpop.f32.mrb[0].mxu0
      %v2216 = vadd.f32 0.0, %v2215
      %v2217 = vpop.f32.mrb[0].mxu0
      %v2218 = vpop.f32.mrb[0].mxu0
      %v2219 = vadd.f32 0.0, %v2218
      %v2220 = vpop.f32.mrb[0].mxu0
      %2221 = vmatprep.mubr.bf16.mxu0 0
      %2222 = vmatmul.mubr.bf16.gmra.mrb[0].mxu0 %v2068
      %v2223 = vpop.f32.mrb[0].mxu0
      %v2224 = vadd.f32 0.0, %v2223
      %v2225 = vpop.f32.mrb[0].mxu0
      %v2226 = vpop.f32.mrb[0].mxu0
      %v2227 = vadd.f32 0.0, %v2226
      %v2228 = vpop.f32.mrb[0].mxu0
      %2229 = vmatprep.mubr.bf16.mxu0 0
      %2230 = vmatmul.mubr.bf16.gmra.mrb[0].mxu0 %v2071
      %v2231 = vpop.f32.mrb[0].mxu0
      %v2232 = vadd.f32 0.0, %v2231
      %v2233 = vpop.f32.mrb[0].mxu0
      %v2234 = vpop.f32.mrb[0].mxu0
      %v2235 = vadd.f32 0.0, %v2234
      %v2236 = vpop.f32.mrb[0].mxu0
      %2237 = vmatprep.mubr.bf16.mxu0 0
      %2238 = vmatmul.mubr.bf16.gmra.mrb[0].mxu0 %v2074
      %v2239 = vpop.f32.mrb[0].mxu0
      %v2240 = vadd.f32 0.0, %v2239
      %v2241 = vpop.f32.mrb[0].mxu0
      %v2242 = vpop.f32.mrb[0].mxu0
      %v2243 = vadd.f32 0.0, %v2242
      %v2244 = vpop.f32.mrb[0].mxu0
      %2245 = vmatprep.mubr.bf16.mxu0 0
      %2246 = vmatmul.mubr.bf16.gmra.mrb[0].mxu0 %v2077
      %v2247 = vpop.f32.mrb[0].mxu0
      %v2248 = vadd.f32 0.0, %v2247
      %v2249 = vpop.f32.mrb[0].mxu0
      %v2250 = vpop.f32.mrb[0].mxu0
      %v2251 = vadd.f32 0.0, %v2250
      %v2252 = vpop.f32.mrb[0].mxu0
      %2253 = vmatprep.mubr.bf16.mxu0 0
      %2254 = vmatmul.mubr.bf16.gmra.mrb[0].mxu0 %v2080
      %v2255 = vpop.f32.mrb[0].mxu0
      %v2256 = vadd.f32 0.0, %v2255
      %v2257 = vpop.f32.mrb[0].mxu0
      %v2258 = vpop.f32.mrb[0].mxu0
      %v2259 = vadd.f32 0.0, %v2258
      %v2260 = vpop.f32.mrb[0].mxu0
      %2261 = vdwg.mxu0
      %v2262 = vadd.f32 %v1904, %v2120
      %v2263 = vadd.f32 %v1905, %v2123
      %v2264 = vadd.f32 %v1906, %v2128
      %v2265 = vadd.f32 %v1907, %v2131
      %v2266 = vadd.f32 %v1908, %v2136
      %v2267 = vadd.f32 %v1909, %v2139
      %v2268 = vadd.f32 %v1910, %v2144
      %v2269 = vadd.f32 %v1911, %v2147
      %v2270 = vadd.f32 %v1912, %v2152
      %v2271 = vadd.f32 %v1913, %v2155
      %v2272 = vadd.f32 %v1914, %v2160
      %v2273 = vadd.f32 %v1915, %v2163
      %v2274 = vadd.f32 %v1916, %v2168
      %v2275 = vadd.f32 %v1917, %v2171
      %v2276 = vadd.f32 %v1918, %v2176
      %v2277 = vadd.f32 %v1919, %v2179
      %v2278 = vadd.f32 %v1920, %v2184
      %v2279 = vadd.f32 %v1921, %v2187
      %v2280 = vadd.f32 %v1922, %v2192
      %v2281 = vadd.f32 %v1923, %v2195
      %v2282 = vadd.f32 %v1924, %v2200
      %v2283 = vadd.f32 %v1925, %v2203
      %v2284 = vadd.f32 %v1926, %v2208
      %v2285 = vadd.f32 %v1927, %v2211
      %v2286 = vadd.f32 %v1928, %v2216
      %v2287 = vadd.f32 %v1929, %v2219
      %v2288 = vadd.f32 %v1930, %v2224
      %v2289 = vadd.f32 %v1931, %v2227
      %v2290 = vadd.f32 %v1932, %v2232
      %v2291 = vadd.f32 %v1933, %v2235
      %v2292 = vadd.f32 %v1934, %v2240
      %v2293 = vadd.f32 %v1935, %v2243
      %v2294 = vadd.f32 %v1936, %v2248
      %v2295 = vadd.f32 %v1937, %v2251
      %v2296 = vadd.f32 %v1938, %v2256
      %v2297 = vadd.f32 %v1939, %v2259
      %s2298 = scalar_lea.vmem %s1, 10
      %v2299 = vld [vmem:[%s2298] sm:$0x3]
      %vm2300 = vcmask 1045504
      %v2301 = vrot.slane %v757, 2
      %v2302 = vrot.slane %v758, 2
      %v2303 = vsel %vm2300, %v2301, %v2302
      %v2304 = vrot.slane %v759, 2
      %v2305 = vsel %vm2300, %v2302, %v2304
      %v2306 = vrot.slane %v760, 2
      %v2307 = vsel %vm2300, %v2304, %v2306
      %v2308 = vrot.slane %v761, 2
      %v2309 = vsel %vm2300, %v2306, %v2308
      %v2310 = vrot.slane %v762, 2
      %v2311 = vsel %vm2300, %v2308, %v2310
      %v2312 = vrot.slane %v763, 2
      %v2313 = vsel %vm2300, %v2310, %v2312
      %v2314 = vrot.slane %v764, 2
      %v2315 = vsel %vm2300, %v2312, %v2314
      %v2316 = vrot.slane %v765, 2
      %v2317 = vsel %vm2300, %v2314, %v2316
      %v2318 = vrot.slane %v766, 2
      %v2319 = vsel %vm2300, %v2316, %v2318
      %v2320 = vrot.slane %v767, 2
      %v2321 = vsel %vm2300, %v2318, %v2320
      %v2322 = vrot.slane %v768, 2
      %v2323 = vsel %vm2300, %v2320, %v2322
      %v2324 = vrot.slane %v769, 2
      %v2325 = vsel %vm2300, %v2322, %v2324
      %v2326 = vrot.slane %v770, 2
      %v2327 = vsel %vm2300, %v2324, %v2326
      %v2328 = vrot.slane %v771, 2
      %v2329 = vsel %vm2300, %v2326, %v2328
      %v2330 = vrot.slane %v772, 2
      %v2331 = vsel %vm2300, %v2328, %v2330
      %v2332 = vrot.slane %v773, 2
      %v2333 = vsel %vm2300, %v2330, %v2332
      %v2334 = vrot.slane %v1708, 2
      %v2335 = vsel %vm2300, %v2332, %v2334
      %v2336 = vrot.slane %v1709, 2
      %v2337 = vsel %vm2300, %v2334, %v2336
      %v2339 = vsel %vm927, %v2303, 0
      %v2342 = vsel %vm927, %v2305, 0
      %v2345 = vsel %vm927, %v2307, 0
      %v2348 = vsel %vm927, %v2309, 0
      %v2351 = vsel %vm927, %v2311, 0
      %v2354 = vsel %vm927, %v2313, 0
      %v2357 = vsel %vm927, %v2315, 0
      %v2360 = vsel %vm927, %v2317, 0
      %v2363 = vsel %vm927, %v2319, 0
      %v2366 = vsel %vm927, %v2321, 0
      %v2369 = vsel %vm927, %v2323, 0
      %v2372 = vsel %vm927, %v2325, 0
      %v2375 = vsel %vm927, %v2327, 0
      %v2378 = vsel %vm927, %v2329, 0
      %v2381 = vsel %vm927, %v2331, 0
      %v2384 = vsel %vm927, %v2333, 0
      %v2387 = vsel %vm927, %v2335, 0
      %v2390 = vsel %vm927, %v2337, 0
      %v2393 = vsel %vm982, %v2299, 0
      %2395 = vmatprep.subr.bf16.mxu0 0
      %2396 = vmatpush1.bf16.msra.mxu0 %v2393
      %2397 = vmatprep.subr.bf16.mxu0 0
      %2398 = vmatpush1.bf16.msra.mxu0 0
      %2399 = vmatprep.subr.bf16.mxu0 0
      %2400 = vmatpush1.bf16.msra.mxu0 0
      %2401 = vmatprep.subr.bf16.mxu0 0
      %2402 = vmatpush1.bf16.msra.mxu0 0
      %2403 = vmatprep.subr.bf16.mxu0 0
      %2404 = vmatpush1.bf16.msra.mxu0 0
      %2405 = vmatprep.subr.bf16.mxu0 0
      %2406 = vmatpush1.bf16.msra.mxu0 0
      %2407 = vmatprep.subr.bf16.mxu0 0
      %2408 = vmatpush1.bf16.msra.mxu0 0
      %2409 = vmatprep.subr.bf16.mxu0 0
      %2410 = vmatpush1.bf16.msra.mxu0 0
      %2411 = vmatprep.subr.bf16.mxu0 0
      %2412 = vmatpush1.bf16.msra.mxu0 0
      %2413 = vmatprep.subr.bf16.mxu0 0
      %2414 = vmatpush1.bf16.msra.mxu0 0
      %2415 = vmatprep.subr.bf16.mxu0 0
      %2416 = vmatpush1.bf16.msra.mxu0 0
      %2417 = vmatprep.subr.bf16.mxu0 0
      %2418 = vmatpush1.bf16.msra.mxu0 0
      %2419 = vmatprep.subr.bf16.mxu0 0
      %2420 = vmatpush1.bf16.msra.mxu0 0
      %2421 = vmatprep.subr.bf16.mxu0 0
      %2422 = vmatpush1.bf16.msra.mxu0 0
      %2423 = vmatprep.subr.bf16.mxu0 0
      %2424 = vmatpush1.bf16.msra.mxu0 0
      %2425 = vmatprep.subr.bf16.mxu0 0
      %2426 = vmatpush1.bf16.msra.mxu0 0
      %2427 = vmatprep.mubr.bf16.mxu0 0
      %2428 = vmatmul.mubr.bf16.gmra.mrb[0].mxu0 %v2339
      %v2429 = vpop.f32.mrb[0].mxu0
      %v2430 = vadd.f32 0.0, %v2429
      %v2431 = vpop.f32.mrb[0].mxu0
      %v2432 = vpop.f32.mrb[0].mxu0
      %v2433 = vadd.f32 0.0, %v2432
      %v2434 = vpop.f32.mrb[0].mxu0
      %2435 = vmatprep.mubr.bf16.mxu0 0
      %2436 = vmatmul.mubr.bf16.gmra.mrb[0].mxu0 %v2342
      %v2437 = vpop.f32.mrb[0].mxu0
      %v2438 = vadd.f32 0.0, %v2437
      %v2439 = vpop.f32.mrb[0].mxu0
      %v2440 = vpop.f32.mrb[0].mxu0
      %v2441 = vadd.f32 0.0, %v2440
      %v2442 = vpop.f32.mrb[0].mxu0
      %2443 = vmatprep.mubr.bf16.mxu0 0
      %2444 = vmatmul.mubr.bf16.gmra.mrb[0].mxu0 %v2345
      %v2445 = vpop.f32.mrb[0].mxu0
      %v2446 = vadd.f32 0.0, %v2445
      %v2447 = vpop.f32.mrb[0].mxu0
      %v2448 = vpop.f32.mrb[0].mxu0
      %v2449 = vadd.f32 0.0, %v2448
      %v2450 = vpop.f32.mrb[0].mxu0
      %2451 = vmatprep.mubr.bf16.mxu0 0
      %2452 = vmatmul.mubr.bf16.gmra.mrb[0].mxu0 %v2348
      %v2453 = vpop.f32.mrb[0].mxu0
      %v2454 = vadd.f32 0.0, %v2453
      %v2455 = vpop.f32.mrb[0].mxu0
      %v2456 = vpop.f32.mrb[0].mxu0
      %v2457 = vadd.f32 0.0, %v2456
      %v2458 = vpop.f32.mrb[0].mxu0
      %2459 = vmatprep.mubr.bf16.mxu0 0
      %2460 = vmatmul.mubr.bf16.gmra.mrb[0].mxu0 %v2351
      %v2461 = vpop.f32.mrb[0].mxu0
      %v2462 = vadd.f32 0.0, %v2461
      %v2463 = vpop.f32.mrb[0].mxu0
      %v2464 = vpop.f32.mrb[0].mxu0
      %v2465 = vadd.f32 0.0, %v2464
      %v2466 = vpop.f32.mrb[0].mxu0
      %2467 = vmatprep.mubr.bf16.mxu0 0
      %2468 = vmatmul.mubr.bf16.gmra.mrb[0].mxu0 %v2354
      %v2469 = vpop.f32.mrb[0].mxu0
      %v2470 = vadd.f32 0.0, %v2469
      %v2471 = vpop.f32.mrb[0].mxu0
      %v2472 = vpop.f32.mrb[0].mxu0
      %v2473 = vadd.f32 0.0, %v2472
      %v2474 = vpop.f32.mrb[0].mxu0
      %2475 = vmatprep.mubr.bf16.mxu0 0
      %2476 = vmatmul.mubr.bf16.gmra.mrb[0].mxu0 %v2357
      %v2477 = vpop.f32.mrb[0].mxu0
      %v2478 = vadd.f32 0.0, %v2477
      %v2479 = vpop.f32.mrb[0].mxu0
      %v2480 = vpop.f32.mrb[0].mxu0
      %v2481 = vadd.f32 0.0, %v2480
      %v2482 = vpop.f32.mrb[0].mxu0
      %2483 = vmatprep.mubr.bf16.mxu0 0
      %2484 = vmatmul.mubr.bf16.gmra.mrb[0].mxu0 %v2360
      %v2485 = vpop.f32.mrb[0].mxu0
      %v2486 = vadd.f32 0.0, %v2485
      %v2487 = vpop.f32.mrb[0].mxu0
      %v2488 = vpop.f32.mrb[0].mxu0
      %v2489 = vadd.f32 0.0, %v2488
      %v2490 = vpop.f32.mrb[0].mxu0
      %2491 = vmatprep.mubr.bf16.mxu0 0
      %2492 = vmatmul.mubr.bf16.gmra.mrb[0].mxu0 %v2363
      %v2493 = vpop.f32.mrb[0].mxu0
      %v2494 = vadd.f32 0.0, %v2493
      %v2495 = vpop.f32.mrb[0].mxu0
      %v2496 = vpop.f32.mrb[0].mxu0
      %v2497 = vadd.f32 0.0, %v2496
      %v2498 = vpop.f32.mrb[0].mxu0
      %2499 = vmatprep.mubr.bf16.mxu0 0
      %2500 = vmatmul.mubr.bf16.gmra.mrb[0].mxu0 %v2366
      %v2501 = vpop.f32.mrb[0].mxu0
      %v2502 = vadd.f32 0.0, %v2501
      %v2503 = vpop.f32.mrb[0].mxu0
      %v2504 = vpop.f32.mrb[0].mxu0
      %v2505 = vadd.f32 0.0, %v2504
      %v2506 = vpop.f32.mrb[0].mxu0
      %2507 = vmatprep.mubr.bf16.mxu0 0
      %2508 = vmatmul.mubr.bf16.gmra.mrb[0].mxu0 %v2369
      %v2509 = vpop.f32.mrb[0].mxu0
      %v2510 = vadd.f32 0.0, %v2509
      %v2511 = vpop.f32.mrb[0].mxu0
      %v2512 = vpop.f32.mrb[0].mxu0
      %v2513 = vadd.f32 0.0, %v2512
      %v2514 = vpop.f32.mrb[0].mxu0
      %2515 = vmatprep.mubr.bf16.mxu0 0
      %2516 = vmatmul.mubr.bf16.gmra.mrb[0].mxu0 %v2372
      %v2517 = vpop.f32.mrb[0].mxu0
      %v2518 = vadd.f32 0.0, %v2517
      %v2519 = vpop.f32.mrb[0].mxu0
      %v2520 = vpop.f32.mrb[0].mxu0
      %v2521 = vadd.f32 0.0, %v2520
      %v2522 = vpop.f32.mrb[0].mxu0
      %2523 = vmatprep.mubr.bf16.mxu0 0
      %2524 = vmatmul.mubr.bf16.gmra.mrb[0].mxu0 %v2375
      %v2525 = vpop.f32.mrb[0].mxu0
      %v2526 = vadd.f32 0.0, %v2525
      %v2527 = vpop.f32.mrb[0].mxu0
      %v2528 = vpop.f32.mrb[0].mxu0
      %v2529 = vadd.f32 0.0, %v2528
      %v2530 = vpop.f32.mrb[0].mxu0
      %2531 = vmatprep.mubr.bf16.mxu0 0
      %2532 = vmatmul.mubr.bf16.gmra.mrb[0].mxu0 %v2378
      %v2533 = vpop.f32.mrb[0].mxu0
      %v2534 = vadd.f32 0.0, %v2533
      %v2535 = vpop.f32.mrb[0].mxu0
      %v2536 = vpop.f32.mrb[0].mxu0
      %v2537 = vadd.f32 0.0, %v2536
      %v2538 = vpop.f32.mrb[0].mxu0
      %2539 = vmatprep.mubr.bf16.mxu0 0
      %2540 = vmatmul.mubr.bf16.gmra.mrb[0].mxu0 %v2381
      %v2541 = vpop.f32.mrb[0].mxu0
      %v2542 = vadd.f32 0.0, %v2541
      %v2543 = vpop.f32.mrb[0].mxu0
      %v2544 = vpop.f32.mrb[0].mxu0
      %v2545 = vadd.f32 0.0, %v2544
      %v2546 = vpop.f32.mrb[0].mxu0
      %2547 = vmatprep.mubr.bf16.mxu0 0
      %2548 = vmatmul.mubr.bf16.gmra.mrb[0].mxu0 %v2384
      %v2549 = vpop.f32.mrb[0].mxu0
      %v2550 = vadd.f32 0.0, %v2549
      %v2551 = vpop.f32.mrb[0].mxu0
      %v2552 = vpop.f32.mrb[0].mxu0
      %v2553 = vadd.f32 0.0, %v2552
      %v2554 = vpop.f32.mrb[0].mxu0
      %2555 = vmatprep.mubr.bf16.mxu0 0
      %2556 = vmatmul.mubr.bf16.gmra.mrb[0].mxu0 %v2387
      %v2557 = vpop.f32.mrb[0].mxu0
      %v2558 = vadd.f32 0.0, %v2557
      %v2559 = vpop.f32.mrb[0].mxu0
      %v2560 = vpop.f32.mrb[0].mxu0
      %v2561 = vadd.f32 0.0, %v2560
      %v2562 = vpop.f32.mrb[0].mxu0
      %2563 = vmatprep.mubr.bf16.mxu0 0
      %2564 = vmatmul.mubr.bf16.gmra.mrb[0].mxu0 %v2390
      %v2565 = vpop.f32.mrb[0].mxu0
      %v2566 = vadd.f32 0.0, %v2565
      %v2567 = vpop.f32.mrb[0].mxu0
      %v2568 = vpop.f32.mrb[0].mxu0
      %v2569 = vadd.f32 0.0, %v2568
      %v2570 = vpop.f32.mrb[0].mxu0
      %2571 = vdwg.mxu0
      %v2572 = vadd.f32 %v2262, %v2430
      %v2573 = vadd.f32 %v2263, %v2433
      %v2574 = vadd.f32 %v2264, %v2438
      %v2575 = vadd.f32 %v2265, %v2441
      %v2576 = vadd.f32 %v2266, %v2446
      %v2577 = vadd.f32 %v2267, %v2449
      %v2578 = vadd.f32 %v2268, %v2454
      %v2579 = vadd.f32 %v2269, %v2457
      %v2580 = vadd.f32 %v2270, %v2462
      %v2581 = vadd.f32 %v2271, %v2465
      %v2582 = vadd.f32 %v2272, %v2470
      %v2583 = vadd.f32 %v2273, %v2473
      %v2584 = vadd.f32 %v2274, %v2478
      %v2585 = vadd.f32 %v2275, %v2481
      %v2586 = vadd.f32 %v2276, %v2486
      %v2587 = vadd.f32 %v2277, %v2489
      %v2588 = vadd.f32 %v2278, %v2494
      %v2589 = vadd.f32 %v2279, %v2497
      %v2590 = vadd.f32 %v2280, %v2502
      %v2591 = vadd.f32 %v2281, %v2505
      %v2592 = vadd.f32 %v2282, %v2510
      %v2593 = vadd.f32 %v2283, %v2513
      %v2594 = vadd.f32 %v2284, %v2518
      %v2595 = vadd.f32 %v2285, %v2521
      %v2596 = vadd.f32 %v2286, %v2526
      %v2597 = vadd.f32 %v2287, %v2529
      %v2598 = vadd.f32 %v2288, %v2534
      %v2599 = vadd.f32 %v2289, %v2537
      %v2600 = vadd.f32 %v2290, %v2542
      %v2601 = vadd.f32 %v2291, %v2545
      %v2602 = vadd.f32 %v2292, %v2550
      %v2603 = vadd.f32 %v2293, %v2553
      %v2604 = vadd.f32 %v2294, %v2558
      %v2605 = vadd.f32 %v2295, %v2561
      %v2606 = vadd.f32 %v2296, %v2566
      %v2607 = vadd.f32 %v2297, %v2569
      %v2608 = vpack.c.bf16 %v754, %v753
      %v2609 = vpack.c.bf16 %v755, %v755
      %s2610 = scalar_lea.vmem %s1, 12
      %v2611 = vld [vmem:[%s2610] sm:$0x3]
      %v2614 = vrot.slane %v2608, 2
      %v2615 = vsel %vm2300, %v2334, %v2614
      %v2616 = vrot.slane %v2609, 2
      %v2617 = vsel %vm2300, %v2614, %v2616
      %v2619 = vsel %vm927, %v2615, 0
      %v2622 = vsel %vm927, %v2617, 0
      %v2625 = vsel %vm982, %v2611, 0
      %2627 = vmatprep.subr.bf16.mxu0 0
      %2628 = vmatpush1.bf16.msra.mxu0 %v2625
      %2629 = vmatprep.subr.bf16.mxu0 0
      %2630 = vmatpush1.bf16.msra.mxu0 0
      %2631 = vmatprep.subr.bf16.mxu0 0
      %2632 = vmatpush1.bf16.msra.mxu0 0
      %2633 = vmatprep.subr.bf16.mxu0 0
      %2634 = vmatpush1.bf16.msra.mxu0 0
      %2635 = vmatprep.subr.bf16.mxu0 0
      %2636 = vmatpush1.bf16.msra.mxu0 0
      %2637 = vmatprep.subr.bf16.mxu0 0
      %2638 = vmatpush1.bf16.msra.mxu0 0
      %2639 = vmatprep.subr.bf16.mxu0 0
      %2640 = vmatpush1.bf16.msra.mxu0 0
      %2641 = vmatprep.subr.bf16.mxu0 0
      %2642 = vmatpush1.bf16.msra.mxu0 0
      %2643 = vmatprep.subr.bf16.mxu0 0
      %2644 = vmatpush1.bf16.msra.mxu0 0
      %2645 = vmatprep.subr.bf16.mxu0 0
      %2646 = vmatpush1.bf16.msra.mxu0 0
      %2647 = vmatprep.subr.bf16.mxu0 0
      %2648 = vmatpush1.bf16.msra.mxu0 0
      %2649 = vmatprep.subr.bf16.mxu0 0
      %2650 = vmatpush1.bf16.msra.mxu0 0
      %2651 = vmatprep.subr.bf16.mxu0 0
      %2652 = vmatpush1.bf16.msra.mxu0 0
      %2653 = vmatprep.subr.bf16.mxu0 0
      %2654 = vmatpush1.bf16.msra.mxu0 0
      %2655 = vmatprep.subr.bf16.mxu0 0
      %2656 = vmatpush1.bf16.msra.mxu0 0
      %2657 = vmatprep.subr.bf16.mxu0 0
      %2658 = vmatpush1.bf16.msra.mxu0 0
      %2659 = vmatprep.mubr.bf16.mxu0 0
      %2660 = vmatmul.mubr.bf16.gmra.mrb[0].mxu0 %v2342
      %v2661 = vpop.f32.mrb[0].mxu0
      %v2662 = vadd.f32 0.0, %v2661
      %v2663 = vpop.f32.mrb[0].mxu0
      %v2664 = vpop.f32.mrb[0].mxu0
      %v2665 = vadd.f32 0.0, %v2664
      %v2666 = vpop.f32.mrb[0].mxu0
      %2667 = vmatprep.mubr.bf16.mxu0 0
      %2668 = vmatmul.mubr.bf16.gmra.mrb[0].mxu0 %v2345
      %v2669 = vpop.f32.mrb[0].mxu0
      %v2670 = vadd.f32 0.0, %v2669
      %v2671 = vpop.f32.mrb[0].mxu0
      %v2672 = vpop.f32.mrb[0].mxu0
      %v2673 = vadd.f32 0.0, %v2672
      %v2674 = vpop.f32.mrb[0].mxu0
      %2675 = vmatprep.mubr.bf16.mxu0 0
      %2676 = vmatmul.mubr.bf16.gmra.mrb[0].mxu0 %v2348
      %v2677 = vpop.f32.mrb[0].mxu0
      %v2678 = vadd.f32 0.0, %v2677
      %v2679 = vpop.f32.mrb[0].mxu0
      %v2680 = vpop.f32.mrb[0].mxu0
      %v2681 = vadd.f32 0.0, %v2680
      %v2682 = vpop.f32.mrb[0].mxu0
      %2683 = vmatprep.mubr.bf16.mxu0 0
      %2684 = vmatmul.mubr.bf16.gmra.mrb[0].mxu0 %v2351
      %v2685 = vpop.f32.mrb[0].mxu0
      %v2686 = vadd.f32 0.0, %v2685
      %v2687 = vpop.f32.mrb[0].mxu0
      %v2688 = vpop.f32.mrb[0].mxu0
      %v2689 = vadd.f32 0.0, %v2688
      %v2690 = vpop.f32.mrb[0].mxu0
      %2691 = vmatprep.mubr.bf16.mxu0 0
      %2692 = vmatmul.mubr.bf16.gmra.mrb[0].mxu0 %v2354
      %v2693 = vpop.f32.mrb[0].mxu0
      %v2694 = vadd.f32 0.0, %v2693
      %v2695 = vpop.f32.mrb[0].mxu0
      %v2696 = vpop.f32.mrb[0].mxu0
      %v2697 = vadd.f32 0.0, %v2696
      %v2698 = vpop.f32.mrb[0].mxu0
      %2699 = vmatprep.mubr.bf16.mxu0 0
      %2700 = vmatmul.mubr.bf16.gmra.mrb[0].mxu0 %v2357
      %v2701 = vpop.f32.mrb[0].mxu0
      %v2702 = vadd.f32 0.0, %v2701
      %v2703 = vpop.f32.mrb[0].mxu0
      %v2704 = vpop.f32.mrb[0].mxu0
      %v2705 = vadd.f32 0.0, %v2704
      %v2706 = vpop.f32.mrb[0].mxu0
      %2707 = vmatprep.mubr.bf16.mxu0 0
      %2708 = vmatmul.mubr.bf16.gmra.mrb[0].mxu0 %v2360
      %v2709 = vpop.f32.mrb[0].mxu0
      %v2710 = vadd.f32 0.0, %v2709
      %v2711 = vpop.f32.mrb[0].mxu0
      %v2712 = vpop.f32.mrb[0].mxu0
      %v2713 = vadd.f32 0.0, %v2712
      %v2714 = vpop.f32.mrb[0].mxu0
      %2715 = vmatprep.mubr.bf16.mxu0 0
      %2716 = vmatmul.mubr.bf16.gmra.mrb[0].mxu0 %v2363
      %v2717 = vpop.f32.mrb[0].mxu0
      %v2718 = vadd.f32 0.0, %v2717
      %v2719 = vpop.f32.mrb[0].mxu0
      %v2720 = vpop.f32.mrb[0].mxu0
      %v2721 = vadd.f32 0.0, %v2720
      %v2722 = vpop.f32.mrb[0].mxu0
      %2723 = vmatprep.mubr.bf16.mxu0 0
      %2724 = vmatmul.mubr.bf16.gmra.mrb[0].mxu0 %v2366
      %v2725 = vpop.f32.mrb[0].mxu0
      %v2726 = vadd.f32 0.0, %v2725
      %v2727 = vpop.f32.mrb[0].mxu0
      %v2728 = vpop.f32.mrb[0].mxu0
      %v2729 = vadd.f32 0.0, %v2728
      %v2730 = vpop.f32.mrb[0].mxu0
      %2731 = vmatprep.mubr.bf16.mxu0 0
      %2732 = vmatmul.mubr.bf16.gmra.mrb[0].mxu0 %v2369
      %v2733 = vpop.f32.mrb[0].mxu0
      %v2734 = vadd.f32 0.0, %v2733
      %v2735 = vpop.f32.mrb[0].mxu0
      %v2736 = vpop.f32.mrb[0].mxu0
      %v2737 = vadd.f32 0.0, %v2736
      %v2738 = vpop.f32.mrb[0].mxu0
      %2739 = vmatprep.mubr.bf16.mxu0 0
      %2740 = vmatmul.mubr.bf16.gmra.mrb[0].mxu0 %v2372
      %v2741 = vpop.f32.mrb[0].mxu0
      %v2742 = vadd.f32 0.0, %v2741
      %v2743 = vpop.f32.mrb[0].mxu0
      %v2744 = vpop.f32.mrb[0].mxu0
      %v2745 = vadd.f32 0.0, %v2744
      %v2746 = vpop.f32.mrb[0].mxu0
      %2747 = vmatprep.mubr.bf16.mxu0 0
      %2748 = vmatmul.mubr.bf16.gmra.mrb[0].mxu0 %v2375
      %v2749 = vpop.f32.mrb[0].mxu0
      %v2750 = vadd.f32 0.0, %v2749
      %v2751 = vpop.f32.mrb[0].mxu0
      %v2752 = vpop.f32.mrb[0].mxu0
      %v2753 = vadd.f32 0.0, %v2752
      %v2754 = vpop.f32.mrb[0].mxu0
      %2755 = vmatprep.mubr.bf16.mxu0 0
      %2756 = vmatmul.mubr.bf16.gmra.mrb[0].mxu0 %v2378
      %v2757 = vpop.f32.mrb[0].mxu0
      %v2758 = vadd.f32 0.0, %v2757
      %v2759 = vpop.f32.mrb[0].mxu0
      %v2760 = vpop.f32.mrb[0].mxu0
      %v2761 = vadd.f32 0.0, %v2760
      %v2762 = vpop.f32.mrb[0].mxu0
      %2763 = vmatprep.mubr.bf16.mxu0 0
      %2764 = vmatmul.mubr.bf16.gmra.mrb[0].mxu0 %v2381
      %v2765 = vpop.f32.mrb[0].mxu0
      %v2766 = vadd.f32 0.0, %v2765
      %v2767 = vpop.f32.mrb[0].mxu0
      %v2768 = vpop.f32.mrb[0].mxu0
      %v2769 = vadd.f32 0.0, %v2768
      %v2770 = vpop.f32.mrb[0].mxu0
      %2771 = vmatprep.mubr.bf16.mxu0 0
      %2772 = vmatmul.mubr.bf16.gmra.mrb[0].mxu0 %v2384
      %v2773 = vpop.f32.mrb[0].mxu0
      %v2774 = vadd.f32 0.0, %v2773
      %v2775 = vpop.f32.mrb[0].mxu0
      %v2776 = vpop.f32.mrb[0].mxu0
      %v2777 = vadd.f32 0.0, %v2776
      %v2778 = vpop.f32.mrb[0].mxu0
      %2779 = vmatprep.mubr.bf16.mxu0 0
      %2780 = vmatmul.mubr.bf16.gmra.mrb[0].mxu0 %v2387
      %v2781 = vpop.f32.mrb[0].mxu0
      %v2782 = vadd.f32 0.0, %v2781
      %v2783 = vpop.f32.mrb[0].mxu0
      %v2784 = vpop.f32.mrb[0].mxu0
      %v2785 = vadd.f32 0.0, %v2784
      %v2786 = vpop.f32.mrb[0].mxu0
      %2787 = vmatprep.mubr.bf16.mxu0 0
      %2788 = vmatmul.mubr.bf16.gmra.mrb[0].mxu0 %v2619
      %v2789 = vpop.f32.mrb[0].mxu0
      %v2790 = vadd.f32 0.0, %v2789
      %v2791 = vpop.f32.mrb[0].mxu0
      %v2792 = vpop.f32.mrb[0].mxu0
      %v2793 = vadd.f32 0.0, %v2792
      %v2794 = vpop.f32.mrb[0].mxu0
      %2795 = vmatprep.mubr.bf16.mxu0 0
      %2796 = vmatmul.mubr.bf16.gmra.mrb[0].mxu0 %v2622
      %v2797 = vpop.f32.mrb[0].mxu0
      %v2798 = vadd.f32 0.0, %v2797
      %v2799 = vpop.f32.mrb[0].mxu0
      %v2800 = vpop.f32.mrb[0].mxu0
      %v2801 = vadd.f32 0.0, %v2800
      %v2802 = vpop.f32.mrb[0].mxu0
      %2803 = vdwg.mxu0
      %v2804 = vadd.f32 %v2572, %v2662
      %v2805 = vadd.f32 %v2573, %v2665
      %v2806 = vadd.f32 %v2574, %v2670
      %v2807 = vadd.f32 %v2575, %v2673
      %v2808 = vadd.f32 %v2576, %v2678
      %v2809 = vadd.f32 %v2577, %v2681
      %v2810 = vadd.f32 %v2578, %v2686
      %v2811 = vadd.f32 %v2579, %v2689
      %v2812 = vadd.f32 %v2580, %v2694
      %v2813 = vadd.f32 %v2581, %v2697
      %v2814 = vadd.f32 %v2582, %v2702
      %v2815 = vadd.f32 %v2583, %v2705
      %v2816 = vadd.f32 %v2584, %v2710
      %v2817 = vadd.f32 %v2585, %v2713
      %v2818 = vadd.f32 %v2586, %v2718
      %v2819 = vadd.f32 %v2587, %v2721
      %v2820 = vadd.f32 %v2588, %v2726
      %v2821 = vadd.f32 %v2589, %v2729
      %v2822 = vadd.f32 %v2590, %v2734
      %v2823 = vadd.f32 %v2591, %v2737
      %v2824 = vadd.f32 %v2592, %v2742
      %v2825 = vadd.f32 %v2593, %v2745
      %v2826 = vadd.f32 %v2594, %v2750
      %v2827 = vadd.f32 %v2595, %v2753
      %v2828 = vadd.f32 %v2596, %v2758
      %v2829 = vadd.f32 %v2597, %v2761
      %v2830 = vadd.f32 %v2598, %v2766
      %v2831 = vadd.f32 %v2599, %v2769
      %v2832 = vadd.f32 %v2600, %v2774
      %v2833 = vadd.f32 %v2601, %v2777
      %v2834 = vadd.f32 %v2602, %v2782
      %v2835 = vadd.f32 %v2603, %v2785
      %v2836 = vadd.f32 %v2604, %v2790
      %v2837 = vadd.f32 %v2605, %v2793
      %v2838 = vadd.f32 %v2606, %v2798
      %v2839 = vadd.f32 %v2607, %v2801
      %s2840 = scalar_lea.vmem %s1, 14
      %v2841 = vld [vmem:[%s2840] sm:$0x3]
      %vm2842 = vsmask.f32 5376
      %v2843 = vrot.slane %v799, 2
      %v2844 = vrot.slane %v795, 3
      %v2845 = vor.u32 %v2843, %v2844
      %v2846 = vrot.slane %v807, 2
      %v2847 = vrot.slane %v803, 3
      %v2848 = vor.u32 %v2846, %v2847
      %v2849 = vsel %vm2842, %v2845, %v2848
      %v2850 = vrot.slane %v815, 2
      %v2851 = vrot.slane %v811, 3
      %v2852 = vor.u32 %v2850, %v2851
      %v2853 = vsel %vm2842, %v2848, %v2852
      %v2854 = vrot.slane %v823, 2
      %v2855 = vrot.slane %v819, 3
      %v2856 = vor.u32 %v2854, %v2855
      %v2857 = vsel %vm2842, %v2852, %v2856
      %v2858 = vrot.slane %v831, 2
      %v2859 = vrot.slane %v827, 3
      %v2860 = vor.u32 %v2858, %v2859
      %v2861 = vsel %vm2842, %v2856, %v2860
      %v2862 = vrot.slane %v839, 2
      %v2863 = vrot.slane %v835, 3
      %v2864 = vor.u32 %v2862, %v2863
      %v2865 = vsel %vm2842, %v2860, %v2864
      %v2866 = vrot.slane %v847, 2
      %v2867 = vrot.slane %v843, 3
      %v2868 = vor.u32 %v2866, %v2867
      %v2869 = vsel %vm2842, %v2864, %v2868
      %v2870 = vrot.slane %v855, 2
      %v2871 = vrot.slane %v851, 3
      %v2872 = vor.u32 %v2870, %v2871
      %v2873 = vsel %vm2842, %v2868, %v2872
      %v2874 = vrot.slane %v863, 2
      %v2875 = vrot.slane %v859, 3
      %v2876 = vor.u32 %v2874, %v2875
      %v2877 = vsel %vm2842, %v2872, %v2876
      %v2878 = vrot.slane %v871, 2
      %v2879 = vrot.slane %v867, 3
      %v2880 = vor.u32 %v2878, %v2879
      %v2881 = vsel %vm2842, %v2876, %v2880
      %v2882 = vrot.slane %v879, 2
      %v2883 = vrot.slane %v875, 3
      %v2884 = vor.u32 %v2882, %v2883
      %v2885 = vsel %vm2842, %v2880, %v2884
      %v2886 = vrot.slane %v887, 2
      %v2887 = vrot.slane %v883, 3
      %v2888 = vor.u32 %v2886, %v2887
      %v2889 = vsel %vm2842, %v2884, %v2888
      %v2890 = vrot.slane %v895, 2
      %v2891 = vrot.slane %v891, 3
      %v2892 = vor.u32 %v2890, %v2891
      %v2893 = vsel %vm2842, %v2888, %v2892
      %v2894 = vrot.slane %v903, 2
      %v2895 = vrot.slane %v899, 3
      %v2896 = vor.u32 %v2894, %v2895
      %v2897 = vsel %vm2842, %v2892, %v2896
      %v2898 = vrot.slane %v911, 2
      %v2899 = vrot.slane %v907, 3
      %v2900 = vor.u32 %v2898, %v2899
      %v2901 = vsel %vm2842, %v2896, %v2900
      %v2902 = vrot.slane %v919, 2
      %v2903 = vrot.slane %v915, 3
      %v2904 = vor.u32 %v2902, %v2903
      %v2905 = vsel %vm2842, %v2900, %v2904
      %v2906 = vrot.slane %v2011, 2
      %v2907 = vrot.slane %v2014, 3
      %v2908 = vor.u32 %v2906, %v2907
      %v2909 = vsel %vm2842, %v2904, %v2908
      %v2911 = vshrl.u32 %v2608, 16
      %v2913 = vrot.slane %v2911, 2
      %v2914 = vshll.u32 %v2608, 16
      %v2916 = vrot.slane %v2914, 3
      %v2917 = vor.u32 %v2913, %v2916
      %v2918 = vsel %vm2842, %v2908, %v2917
      %v2920 = vshrl.u32 %v2609, 16
      %v2922 = vrot.slane %v2920, 2
      %v2923 = vshll.u32 %v2609, 16
      %v2925 = vrot.slane %v2923, 3
      %v2926 = vor.u32 %v2922, %v2925
      %v2927 = vsel %vm2842, %v2917, %v2926
      %v2929 = vsel %vm927, %v2849, 0
      %v2932 = vsel %vm927, %v2853, 0
      %v2935 = vsel %vm927, %v2857, 0
      %v2938 = vsel %vm927, %v2861, 0
      %v2941 = vsel %vm927, %v2865, 0
      %v2944 = vsel %vm927, %v2869, 0
      %v2947 = vsel %vm927, %v2873, 0
      %v2950 = vsel %vm927, %v2877, 0
      %v2953 = vsel %vm927, %v2881, 0
      %v2956 = vsel %vm927, %v2885, 0
      %v2959 = vsel %vm927, %v2889, 0
      %v2962 = vsel %vm927, %v2893, 0
      %v2965 = vsel %vm927, %v2897, 0
      %v2968 = vsel %vm927, %v2901, 0
      %v2971 = vsel %vm927, %v2905, 0
      %v2974 = vsel %vm927, %v2909, 0
      %v2977 = vsel %vm927, %v2918, 0
      %v2980 = vsel %vm927, %v2927, 0
      %v2983 = vsel %vm982, %v2841, 0
      %2985 = vmatprep.subr.bf16.mxu0 0
      %2986 = vmatpush1.bf16.msra.mxu0 %v2983
      %2987 = vmatprep.subr.bf16.mxu0 0
      %2988 = vmatpush1.bf16.msra.mxu0 0
      %2989 = vmatprep.subr.bf16.mxu0 0
      %2990 = vmatpush1.bf16.msra.mxu0 0
      %2991 = vmatprep.subr.bf16.mxu0 0
      %2992 = vmatpush1.bf16.msra.mxu0 0
      %2993 = vmatprep.subr.bf16.mxu0 0
      %2994 = vmatpush1.bf16.msra.mxu0 0
      %2995 = vmatprep.subr.bf16.mxu0 0
      %2996 = vmatpush1.bf16.msra.mxu0 0
      %2997 = vmatprep.subr.bf16.mxu0 0
      %2998 = vmatpush1.bf16.msra.mxu0 0
      %2999 = vmatprep.subr.bf16.mxu0 0
      %3000 = vmatpush1.bf16.msra.mxu0 0
      %3001 = vmatprep.subr.bf16.mxu0 0
      %3002 = vmatpush1.bf16.msra.mxu0 0
      %3003 = vmatprep.subr.bf16.mxu0 0
      %3004 = vmatpush1.bf16.msra.mxu0 0
      %3005 = vmatprep.subr.bf16.mxu0 0
      %3006 = vmatpush1.bf16.msra.mxu0 0
      %3007 = vmatprep.subr.bf16.mxu0 0
      %3008 = vmatpush1.bf16.msra.mxu0 0
      %3009 = vmatprep.subr.bf16.mxu0 0
      %3010 = vmatpush1.bf16.msra.mxu0 0
      %3011 = vmatprep.subr.bf16.mxu0 0
      %3012 = vmatpush1.bf16.msra.mxu0 0
      %3013 = vmatprep.subr.bf16.mxu0 0
      %3014 = vmatpush1.bf16.msra.mxu0 0
      %3015 = vmatprep.subr.bf16.mxu0 0
      %3016 = vmatpush1.bf16.msra.mxu0 0
      %3017 = vmatprep.mubr.bf16.mxu0 0
      %3018 = vmatmul.mubr.bf16.gmra.mrb[0].mxu0 %v2929
      %v3019 = vpop.f32.mrb[0].mxu0
      %v3020 = vadd.f32 0.0, %v3019
      %v3021 = vpop.f32.mrb[0].mxu0
      %v3022 = vpop.f32.mrb[0].mxu0
      %v3023 = vadd.f32 0.0, %v3022
      %v3024 = vpop.f32.mrb[0].mxu0
      %3025 = vmatprep.mubr.bf16.mxu0 0
      %3026 = vmatmul.mubr.bf16.gmra.mrb[0].mxu0 %v2932
      %v3027 = vpop.f32.mrb[0].mxu0
      %v3028 = vadd.f32 0.0, %v3027
      %v3029 = vpop.f32.mrb[0].mxu0
      %v3030 = vpop.f32.mrb[0].mxu0
      %v3031 = vadd.f32 0.0, %v3030
      %v3032 = vpop.f32.mrb[0].mxu0
      %3033 = vmatprep.mubr.bf16.mxu0 0
      %3034 = vmatmul.mubr.bf16.gmra.mrb[0].mxu0 %v2935
      %v3035 = vpop.f32.mrb[0].mxu0
      %v3036 = vadd.f32 0.0, %v3035
      %v3037 = vpop.f32.mrb[0].mxu0
      %v3038 = vpop.f32.mrb[0].mxu0
      %v3039 = vadd.f32 0.0, %v3038
      %v3040 = vpop.f32.mrb[0].mxu0
      %3041 = vmatprep.mubr.bf16.mxu0 0
      %3042 = vmatmul.mubr.bf16.gmra.mrb[0].mxu0 %v2938
      %v3043 = vpop.f32.mrb[0].mxu0
      %v3044 = vadd.f32 0.0, %v3043
      %v3045 = vpop.f32.mrb[0].mxu0
      %v3046 = vpop.f32.mrb[0].mxu0
      %v3047 = vadd.f32 0.0, %v3046
      %v3048 = vpop.f32.mrb[0].mxu0
      %3049 = vmatprep.mubr.bf16.mxu0 0
      %3050 = vmatmul.mubr.bf16.gmra.mrb[0].mxu0 %v2941
      %v3051 = vpop.f32.mrb[0].mxu0
      %v3052 = vadd.f32 0.0, %v3051
      %v3053 = vpop.f32.mrb[0].mxu0
      %v3054 = vpop.f32.mrb[0].mxu0
      %v3055 = vadd.f32 0.0, %v3054
      %v3056 = vpop.f32.mrb[0].mxu0
      %3057 = vmatprep.mubr.bf16.mxu0 0
      %3058 = vmatmul.mubr.bf16.gmra.mrb[0].mxu0 %v2944
      %v3059 = vpop.f32.mrb[0].mxu0
      %v3060 = vadd.f32 0.0, %v3059
      %v3061 = vpop.f32.mrb[0].mxu0
      %v3062 = vpop.f32.mrb[0].mxu0
      %v3063 = vadd.f32 0.0, %v3062
      %v3064 = vpop.f32.mrb[0].mxu0
      %3065 = vmatprep.mubr.bf16.mxu0 0
      %3066 = vmatmul.mubr.bf16.gmra.mrb[0].mxu0 %v2947
      %v3067 = vpop.f32.mrb[0].mxu0
      %v3068 = vadd.f32 0.0, %v3067
      %v3069 = vpop.f32.mrb[0].mxu0
      %v3070 = vpop.f32.mrb[0].mxu0
      %v3071 = vadd.f32 0.0, %v3070
      %v3072 = vpop.f32.mrb[0].mxu0
      %3073 = vmatprep.mubr.bf16.mxu0 0
      %3074 = vmatmul.mubr.bf16.gmra.mrb[0].mxu0 %v2950
      %v3075 = vpop.f32.mrb[0].mxu0
      %v3076 = vadd.f32 0.0, %v3075
      %v3077 = vpop.f32.mrb[0].mxu0
      %v3078 = vpop.f32.mrb[0].mxu0
      %v3079 = vadd.f32 0.0, %v3078
      %v3080 = vpop.f32.mrb[0].mxu0
      %3081 = vmatprep.mubr.bf16.mxu0 0
      %3082 = vmatmul.mubr.bf16.gmra.mrb[0].mxu0 %v2953
      %v3083 = vpop.f32.mrb[0].mxu0
      %v3084 = vadd.f32 0.0, %v3083
      %v3085 = vpop.f32.mrb[0].mxu0
      %v3086 = vpop.f32.mrb[0].mxu0
      %v3087 = vadd.f32 0.0, %v3086
      %v3088 = vpop.f32.mrb[0].mxu0
      %3089 = vmatprep.mubr.bf16.mxu0 0
      %3090 = vmatmul.mubr.bf16.gmra.mrb[0].mxu0 %v2956
      %v3091 = vpop.f32.mrb[0].mxu0
      %v3092 = vadd.f32 0.0, %v3091
      %v3093 = vpop.f32.mrb[0].mxu0
      %v3094 = vpop.f32.mrb[0].mxu0
      %v3095 = vadd.f32 0.0, %v3094
      %v3096 = vpop.f32.mrb[0].mxu0
      %3097 = vmatprep.mubr.bf16.mxu0 0
      %3098 = vmatmul.mubr.bf16.gmra.mrb[0].mxu0 %v2959
      %v3099 = vpop.f32.mrb[0].mxu0
      %v3100 = vadd.f32 0.0, %v3099
      %v3101 = vpop.f32.mrb[0].mxu0
      %v3102 = vpop.f32.mrb[0].mxu0
      %v3103 = vadd.f32 0.0, %v3102
      %v3104 = vpop.f32.mrb[0].mxu0
      %3105 = vmatprep.mubr.bf16.mxu0 0
      %3106 = vmatmul.mubr.bf16.gmra.mrb[0].mxu0 %v2962
      %v3107 = vpop.f32.mrb[0].mxu0
      %v3108 = vadd.f32 0.0, %v3107
      %v3109 = vpop.f32.mrb[0].mxu0
      %v3110 = vpop.f32.mrb[0].mxu0
      %v3111 = vadd.f32 0.0, %v3110
      %v3112 = vpop.f32.mrb[0].mxu0
      %3113 = vmatprep.mubr.bf16.mxu0 0
      %3114 = vmatmul.mubr.bf16.gmra.mrb[0].mxu0 %v2965
      %v3115 = vpop.f32.mrb[0].mxu0
      %v3116 = vadd.f32 0.0, %v3115
      %v3117 = vpop.f32.mrb[0].mxu0
      %v3118 = vpop.f32.mrb[0].mxu0
      %v3119 = vadd.f32 0.0, %v3118
      %v3120 = vpop.f32.mrb[0].mxu0
      %3121 = vmatprep.mubr.bf16.mxu0 0
      %3122 = vmatmul.mubr.bf16.gmra.mrb[0].mxu0 %v2968
      %v3123 = vpop.f32.mrb[0].mxu0
      %v3124 = vadd.f32 0.0, %v3123
      %v3125 = vpop.f32.mrb[0].mxu0
      %v3126 = vpop.f32.mrb[0].mxu0
      %v3127 = vadd.f32 0.0, %v3126
      %v3128 = vpop.f32.mrb[0].mxu0
      %3129 = vmatprep.mubr.bf16.mxu0 0
      %3130 = vmatmul.mubr.bf16.gmra.mrb[0].mxu0 %v2971
      %v3131 = vpop.f32.mrb[0].mxu0
      %v3132 = vadd.f32 0.0, %v3131
      %v3133 = vpop.f32.mrb[0].mxu0
      %v3134 = vpop.f32.mrb[0].mxu0
      %v3135 = vadd.f32 0.0, %v3134
      %v3136 = vpop.f32.mrb[0].mxu0
      %3137 = vmatprep.mubr.bf16.mxu0 0
      %3138 = vmatmul.mubr.bf16.gmra.mrb[0].mxu0 %v2974
      %v3139 = vpop.f32.mrb[0].mxu0
      %v3140 = vadd.f32 0.0, %v3139
      %v3141 = vpop.f32.mrb[0].mxu0
      %v3142 = vpop.f32.mrb[0].mxu0
      %v3143 = vadd.f32 0.0, %v3142
      %v3144 = vpop.f32.mrb[0].mxu0
      %3145 = vmatprep.mubr.bf16.mxu0 0
      %3146 = vmatmul.mubr.bf16.gmra.mrb[0].mxu0 %v2977
      %v3147 = vpop.f32.mrb[0].mxu0
      %v3148 = vadd.f32 0.0, %v3147
      %v3149 = vpop.f32.mrb[0].mxu0
      %v3150 = vpop.f32.mrb[0].mxu0
      %v3151 = vadd.f32 0.0, %v3150
      %v3152 = vpop.f32.mrb[0].mxu0
      %3153 = vmatprep.mubr.bf16.mxu0 0
      %3154 = vmatmul.mubr.bf16.gmra.mrb[0].mxu0 %v2980
      %v3155 = vpop.f32.mrb[0].mxu0
      %v3156 = vadd.f32 0.0, %v3155
      %v3157 = vpop.f32.mrb[0].mxu0
      %v3158 = vpop.f32.mrb[0].mxu0
      %v3159 = vadd.f32 0.0, %v3158
      %v3160 = vpop.f32.mrb[0].mxu0
      %3161 = vdwg.mxu0
      %v3162 = vadd.f32 %v2804, %v3020
      %v3163 = vadd.f32 %v2805, %v3023
      %v3164 = vadd.f32 %v2806, %v3028
      %v3165 = vadd.f32 %v2807, %v3031
      %v3166 = vadd.f32 %v2808, %v3036
      %v3167 = vadd.f32 %v2809, %v3039
      %v3168 = vadd.f32 %v2810, %v3044
      %v3169 = vadd.f32 %v2811, %v3047
      %v3170 = vadd.f32 %v2812, %v3052
      %v3171 = vadd.f32 %v2813, %v3055
      %v3172 = vadd.f32 %v2814, %v3060
      %v3173 = vadd.f32 %v2815, %v3063
      %v3174 = vadd.f32 %v2816, %v3068
      %v3175 = vadd.f32 %v2817, %v3071
      %v3176 = vadd.f32 %v2818, %v3076
      %v3177 = vadd.f32 %v2819, %v3079
      %v3178 = vadd.f32 %v2820, %v3084
      %v3179 = vadd.f32 %v2821, %v3087
      %v3180 = vadd.f32 %v2822, %v3092
      %v3181 = vadd.f32 %v2823, %v3095
      %v3182 = vadd.f32 %v2824, %v3100
      %v3183 = vadd.f32 %v2825, %v3103
      %v3184 = vadd.f32 %v2826, %v3108
      %v3185 = vadd.f32 %v2827, %v3111
      %v3186 = vadd.f32 %v2828, %v3116
      %v3187 = vadd.f32 %v2829, %v3119
      %v3188 = vadd.f32 %v2830, %v3124
      %v3189 = vadd.f32 %v2831, %v3127
      %v3190 = vadd.f32 %v2832, %v3132
      %v3191 = vadd.f32 %v2833, %v3135
      %v3192 = vadd.f32 %v2834, %v3140
      %v3193 = vadd.f32 %v2835, %v3143
      %v3194 = vadd.f32 %v2836, %v3148
      %v3195 = vadd.f32 %v2837, %v3151
      %v3196 = vadd.f32 %v2838, %v3156
      %v3197 = vadd.f32 %v2839, %v3159
      %s3198 = scalar_lea.vmem %s1, 16
      %v3199 = vld [vmem:[%s3198] sm:$0x3]
      %vm3200 = vcmask 1044480
      %v3201 = vrot.slane %v758, 3
      %v3202 = vrot.slane %v759, 3
      %v3203 = vsel %vm3200, %v3201, %v3202
      %v3204 = vrot.slane %v760, 3
      %v3205 = vsel %vm3200, %v3202, %v3204
      %v3206 = vrot.slane %v761, 3
      %v3207 = vsel %vm3200, %v3204, %v3206
      %v3208 = vrot.slane %v762, 3
      %v3209 = vsel %vm3200, %v3206, %v3208
      %v3210 = vrot.slane %v763, 3
      %v3211 = vsel %vm3200, %v3208, %v3210
      %v3212 = vrot.slane %v764, 3
      %v3213 = vsel %vm3200, %v3210, %v3212
      %v3214 = vrot.slane %v765, 3
      %v3215 = vsel %vm3200, %v3212, %v3214
      %v3216 = vrot.slane %v766, 3
      %v3217 = vsel %vm3200, %v3214, %v3216
      %v3218 = vrot.slane %v767, 3
      %v3219 = vsel %vm3200, %v3216, %v3218
      %v3220 = vrot.slane %v768, 3
      %v3221 = vsel %vm3200, %v3218, %v3220
      %v3222 = vrot.slane %v769, 3
      %v3223 = vsel %vm3200, %v3220, %v3222
      %v3224 = vrot.slane %v770, 3
      %v3225 = vsel %vm3200, %v3222, %v3224
      %v3226 = vrot.slane %v771, 3
      %v3227 = vsel %vm3200, %v3224, %v3226
      %v3228 = vrot.slane %v772, 3
      %v3229 = vsel %vm3200, %v3226, %v3228
      %v3230 = vrot.slane %v773, 3
      %v3231 = vsel %vm3200, %v3228, %v3230
      %v3232 = vrot.slane %v1708, 3
      %v3233 = vsel %vm3200, %v3230, %v3232
      %v3234 = vrot.slane %v2608, 3
      %v3235 = vsel %vm3200, %v3232, %v3234
      %v3236 = vrot.slane %v2609, 3
      %v3237 = vsel %vm3200, %v3234, %v3236
      %v3239 = vsel %vm927, %v3203, 0
      %v3242 = vsel %vm927, %v3205, 0
      %v3245 = vsel %vm927, %v3207, 0
      %v3248 = vsel %vm927, %v3209, 0
      %v3251 = vsel %vm927, %v3211, 0
      %v3254 = vsel %vm927, %v3213, 0
      %v3257 = vsel %vm927, %v3215, 0
      %v3260 = vsel %vm927, %v3217, 0
      %v3263 = vsel %vm927, %v3219, 0
      %v3266 = vsel %vm927, %v3221, 0
      %v3269 = vsel %vm927, %v3223, 0
      %v3272 = vsel %vm927, %v3225, 0
      %v3275 = vsel %vm927, %v3227, 0
      %v3278 = vsel %vm927, %v3229, 0
      %v3281 = vsel %vm927, %v3231, 0
      %v3284 = vsel %vm927, %v3233, 0
      %v3287 = vsel %vm927, %v3235, 0
      %v3290 = vsel %vm927, %v3237, 0
      %v3293 = vsel %vm982, %v3199, 0
      %3295 = vmatprep.subr.bf16.mxu0 0
      %3296 = vmatpush1.bf16.msra.mxu0 %v3293
      %3297 = vmatprep.subr.bf16.mxu0 0
      %3298 = vmatpush1.bf16.msra.mxu0 0
      %3299 = vmatprep.subr.bf16.mxu0 0
      %3300 = vmatpush1.bf16.msra.mxu0 0
      %3301 = vmatprep.subr.bf16.mxu0 0
      %3302 = vmatpush1.bf16.msra.mxu0 0
      %3303 = vmatprep.subr.bf16.mxu0 0
      %3304 = vmatpush1.bf16.msra.mxu0 0
      %3305 = vmatprep.subr.bf16.mxu0 0
      %3306 = vmatpush1.bf16.msra.mxu0 0
      %3307 = vmatprep.subr.bf16.mxu0 0
      %3308 = vmatpush1.bf16.msra.mxu0 0
      %3309 = vmatprep.subr.bf16.mxu0 0
      %3310 = vmatpush1.bf16.msra.mxu0 0
      %3311 = vmatprep.subr.bf16.mxu0 0
      %3312 = vmatpush1.bf16.msra.mxu0 0
      %3313 = vmatprep.subr.bf16.mxu0 0
      %3314 = vmatpush1.bf16.msra.mxu0 0
      %3315 = vmatprep.subr.bf16.mxu0 0
      %3316 = vmatpush1.bf16.msra.mxu0 0
      %3317 = vmatprep.subr.bf16.mxu0 0
      %3318 = vmatpush1.bf16.msra.mxu0 0
      %3319 = vmatprep.subr.bf16.mxu0 0
      %3320 = vmatpush1.bf16.msra.mxu0 0
      %3321 = vmatprep.subr.bf16.mxu0 0
      %3322 = vmatpush1.bf16.msra.mxu0 0
      %3323 = vmatprep.subr.bf16.mxu0 0
      %3324 = vmatpush1.bf16.msra.mxu0 0
      %3325 = vmatprep.subr.bf16.mxu0 0
      %3326 = vmatpush1.bf16.msra.mxu0 0
      %3327 = vmatprep.mubr.bf16.mxu0 0
      %3328 = vmatmul.mubr.bf16.gmra.mrb[0].mxu0 %v3239
      %v3329 = vpop.f32.mrb[0].mxu0
      %v3330 = vadd.f32 0.0, %v3329
      %v3331 = vpop.f32.mrb[0].mxu0
      %v3332 = vpop.f32.mrb[0].mxu0
      %v3333 = vadd.f32 0.0, %v3332
      %v3334 = vpop.f32.mrb[0].mxu0
      %3335 = vmatprep.mubr.bf16.mxu0 0
      %3336 = vmatmul.mubr.bf16.gmra.mrb[0].mxu0 %v3242
      %v3337 = vpop.f32.mrb[0].mxu0
      %v3338 = vadd.f32 0.0, %v3337
      %v3339 = vpop.f32.mrb[0].mxu0
      %v3340 = vpop.f32.mrb[0].mxu0
      %v3341 = vadd.f32 0.0, %v3340
      %v3342 = vpop.f32.mrb[0].mxu0
      %3343 = vmatprep.mubr.bf16.mxu0 0
      %3344 = vmatmul.mubr.bf16.gmra.mrb[0].mxu0 %v3245
      %v3345 = vpop.f32.mrb[0].mxu0
      %v3346 = vadd.f32 0.0, %v3345
      %v3347 = vpop.f32.mrb[0].mxu0
      %v3348 = vpop.f32.mrb[0].mxu0
      %v3349 = vadd.f32 0.0, %v3348
      %v3350 = vpop.f32.mrb[0].mxu0
      %3351 = vmatprep.mubr.bf16.mxu0 0
      %3352 = vmatmul.mubr.bf16.gmra.mrb[0].mxu0 %v3248
      %v3353 = vpop.f32.mrb[0].mxu0
      %v3354 = vadd.f32 0.0, %v3353
      %v3355 = vpop.f32.mrb[0].mxu0
      %v3356 = vpop.f32.mrb[0].mxu0
      %v3357 = vadd.f32 0.0, %v3356
      %v3358 = vpop.f32.mrb[0].mxu0
      %3359 = vmatprep.mubr.bf16.mxu0 0
      %3360 = vmatmul.mubr.bf16.gmra.mrb[0].mxu0 %v3251
      %v3361 = vpop.f32.mrb[0].mxu0
      %v3362 = vadd.f32 0.0, %v3361
      %v3363 = vpop.f32.mrb[0].mxu0
      %v3364 = vpop.f32.mrb[0].mxu0
      %v3365 = vadd.f32 0.0, %v3364
      %v3366 = vpop.f32.mrb[0].mxu0
      %3367 = vmatprep.mubr.bf16.mxu0 0
      %3368 = vmatmul.mubr.bf16.gmra.mrb[0].mxu0 %v3254
      %v3369 = vpop.f32.mrb[0].mxu0
      %v3370 = vadd.f32 0.0, %v3369
      %v3371 = vpop.f32.mrb[0].mxu0
      %v3372 = vpop.f32.mrb[0].mxu0
      %v3373 = vadd.f32 0.0, %v3372
      %v3374 = vpop.f32.mrb[0].mxu0
      %3375 = vmatprep.mubr.bf16.mxu0 0
      %3376 = vmatmul.mubr.bf16.gmra.mrb[0].mxu0 %v3257
      %v3377 = vpop.f32.mrb[0].mxu0
      %v3378 = vadd.f32 0.0, %v3377
      %v3379 = vpop.f32.mrb[0].mxu0
      %v3380 = vpop.f32.mrb[0].mxu0
      %v3381 = vadd.f32 0.0, %v3380
      %v3382 = vpop.f32.mrb[0].mxu0
      %3383 = vmatprep.mubr.bf16.mxu0 0
      %3384 = vmatmul.mubr.bf16.gmra.mrb[0].mxu0 %v3260
      %v3385 = vpop.f32.mrb[0].mxu0
      %v3386 = vadd.f32 0.0, %v3385
      %v3387 = vpop.f32.mrb[0].mxu0
      %v3388 = vpop.f32.mrb[0].mxu0
      %v3389 = vadd.f32 0.0, %v3388
      %v3390 = vpop.f32.mrb[0].mxu0
      %3391 = vmatprep.mubr.bf16.mxu0 0
      %3392 = vmatmul.mubr.bf16.gmra.mrb[0].mxu0 %v3263
      %v3393 = vpop.f32.mrb[0].mxu0
      %v3394 = vadd.f32 0.0, %v3393
      %v3395 = vpop.f32.mrb[0].mxu0
      %v3396 = vpop.f32.mrb[0].mxu0
      %v3397 = vadd.f32 0.0, %v3396
      %v3398 = vpop.f32.mrb[0].mxu0
      %3399 = vmatprep.mubr.bf16.mxu0 0
      %3400 = vmatmul.mubr.bf16.gmra.mrb[0].mxu0 %v3266
      %v3401 = vpop.f32.mrb[0].mxu0
      %v3402 = vadd.f32 0.0, %v3401
      %v3403 = vpop.f32.mrb[0].mxu0
      %v3404 = vpop.f32.mrb[0].mxu0
      %v3405 = vadd.f32 0.0, %v3404
      %v3406 = vpop.f32.mrb[0].mxu0
      %3407 = vmatprep.mubr.bf16.mxu0 0
      %3408 = vmatmul.mubr.bf16.gmra.mrb[0].mxu0 %v3269
      %v3409 = vpop.f32.mrb[0].mxu0
      %v3410 = vadd.f32 0.0, %v3409
      %v3411 = vpop.f32.mrb[0].mxu0
      %v3412 = vpop.f32.mrb[0].mxu0
      %v3413 = vadd.f32 0.0, %v3412
      %v3414 = vpop.f32.mrb[0].mxu0
      %3415 = vmatprep.mubr.bf16.mxu0 0
      %3416 = vmatmul.mubr.bf16.gmra.mrb[0].mxu0 %v3272
      %v3417 = vpop.f32.mrb[0].mxu0
      %v3418 = vadd.f32 0.0, %v3417
      %v3419 = vpop.f32.mrb[0].mxu0
      %v3420 = vpop.f32.mrb[0].mxu0
      %v3421 = vadd.f32 0.0, %v3420
      %v3422 = vpop.f32.mrb[0].mxu0
      %3423 = vmatprep.mubr.bf16.mxu0 0
      %3424 = vmatmul.mubr.bf16.gmra.mrb[0].mxu0 %v3275
      %v3425 = vpop.f32.mrb[0].mxu0
      %v3426 = vadd.f32 0.0, %v3425
      %v3427 = vpop.f32.mrb[0].mxu0
      %v3428 = vpop.f32.mrb[0].mxu0
      %v3429 = vadd.f32 0.0, %v3428
      %v3430 = vpop.f32.mrb[0].mxu0
      %3431 = vmatprep.mubr.bf16.mxu0 0
      %3432 = vmatmul.mubr.bf16.gmra.mrb[0].mxu0 %v3278
      %v3433 = vpop.f32.mrb[0].mxu0
      %v3434 = vadd.f32 0.0, %v3433
      %v3435 = vpop.f32.mrb[0].mxu0
      %v3436 = vpop.f32.mrb[0].mxu0
      %v3437 = vadd.f32 0.0, %v3436
      %v3438 = vpop.f32.mrb[0].mxu0
      %3439 = vmatprep.mubr.bf16.mxu0 0
      %3440 = vmatmul.mubr.bf16.gmra.mrb[0].mxu0 %v3281
      %v3441 = vpop.f32.mrb[0].mxu0
      %v3442 = vadd.f32 0.0, %v3441
      %v3443 = vpop.f32.mrb[0].mxu0
      %v3444 = vpop.f32.mrb[0].mxu0
      %v3445 = vadd.f32 0.0, %v3444
      %v3446 = vpop.f32.mrb[0].mxu0
      %3447 = vmatprep.mubr.bf16.mxu0 0
      %3448 = vmatmul.mubr.bf16.gmra.mrb[0].mxu0 %v3284
      %v3449 = vpop.f32.mrb[0].mxu0
      %v3450 = vadd.f32 0.0, %v3449
      %v3451 = vpop.f32.mrb[0].mxu0
      %v3452 = vpop.f32.mrb[0].mxu0
      %v3453 = vadd.f32 0.0, %v3452
      %v3454 = vpop.f32.mrb[0].mxu0
      %3455 = vmatprep.mubr.bf16.mxu0 0
      %3456 = vmatmul.mubr.bf16.gmra.mrb[0].mxu0 %v3287
      %v3457 = vpop.f32.mrb[0].mxu0
      %v3458 = vadd.f32 0.0, %v3457
      %v3459 = vpop.f32.mrb[0].mxu0
      %v3460 = vpop.f32.mrb[0].mxu0
      %v3461 = vadd.f32 0.0, %v3460
      %v3462 = vpop.f32.mrb[0].mxu0
      %3463 = vmatprep.mubr.bf16.mxu0 0
      %3464 = vmatmul.mubr.bf16.gmra.mrb[0].mxu0 %v3290
      %v3465 = vpop.f32.mrb[0].mxu0
      %v3466 = vadd.f32 0.0, %v3465
      %v3467 = vpop.f32.mrb[0].mxu0
      %v3468 = vpop.f32.mrb[0].mxu0
      %v3469 = vadd.f32 0.0, %v3468
      %v3470 = vpop.f32.mrb[0].mxu0
      %3471 = vdwg.mxu0
      %v3472 = vadd.f32 %v3162, %v3330
      %v3473 = vadd.f32 %v3163, %v3333
      %v3474 = vadd.f32 %v3164, %v3338
      %v3475 = vadd.f32 %v3165, %v3341
      %v3476 = vadd.f32 %v3166, %v3346
      %v3477 = vadd.f32 %v3167, %v3349
      %v3478 = vadd.f32 %v3168, %v3354
      %v3479 = vadd.f32 %v3169, %v3357
      %v3480 = vadd.f32 %v3170, %v3362
      %v3481 = vadd.f32 %v3171, %v3365
      %v3482 = vadd.f32 %v3172, %v3370
      %v3483 = vadd.f32 %v3173, %v3373
      %v3484 = vadd.f32 %v3174, %v3378
      %v3485 = vadd.f32 %v3175, %v3381
      %v3486 = vadd.f32 %v3176, %v3386
      %v3487 = vadd.f32 %v3177, %v3389
      %v3488 = vadd.f32 %v3178, %v3394
      %v3489 = vadd.f32 %v3179, %v3397
      %v3490 = vadd.f32 %v3180, %v3402
      %v3491 = vadd.f32 %v3181, %v3405
      %v3492 = vadd.f32 %v3182, %v3410
      %v3493 = vadd.f32 %v3183, %v3413
      %v3494 = vadd.f32 %v3184, %v3418
      %v3495 = vadd.f32 %v3185, %v3421
      %v3496 = vadd.f32 %v3186, %v3426
      %v3497 = vadd.f32 %v3187, %v3429
      %v3498 = vadd.f32 %v3188, %v3434
      %v3499 = vadd.f32 %v3189, %v3437
      %v3500 = vadd.f32 %v3190, %v3442
      %v3501 = vadd.f32 %v3191, %v3445
      %v3502 = vadd.f32 %v3192, %v3450
      %v3503 = vadd.f32 %v3193, %v3453
      %v3504 = vadd.f32 %v3194, %v3458
      %v3505 = vadd.f32 %v3195, %v3461
      %v3506 = vadd.f32 %v3196, %v3466
      %v3507 = vadd.f32 %v3197, %v3469
      %3508 = vst.msk [vmem:[%s285] sm:$0xff] %vm927, %v3472
      %3509 = vst.msk [vmem:[%s285 + $0x8] sm:$0xff] %vm927, %v3473
      %3510 = vst.msk [vmem:[%s285 + $0x10] sm:$0xff] %vm927, %v3474
      %3511 = vst.msk [vmem:[%s285 + $0x18] sm:$0xff] %vm927, %v3475
      %3512 = vst.msk [vmem:[%s285 + $0x20] sm:$0xff] %vm927, %v3476
      %3513 = vst.msk [vmem:[%s285 + $0x28] sm:$0xff] %vm927, %v3477
      %3514 = vst.msk [vmem:[%s285 + $0x30] sm:$0xff] %vm927, %v3478
      %3515 = vst.msk [vmem:[%s285 + $0x38] sm:$0xff] %vm927, %v3479
      %3516 = vst.msk [vmem:[%s285 + $0x40] sm:$0xff] %vm927, %v3480
      %3517 = vst.msk [vmem:[%s285 + $0x48] sm:$0xff] %vm927, %v3481
      %3518 = vst.msk [vmem:[%s285 + $0x50] sm:$0xff] %vm927, %v3482
      %3519 = vst.msk [vmem:[%s285 + $0x58] sm:$0xff] %vm927, %v3483
      %3520 = vst.msk [vmem:[%s285 + $0x60] sm:$0xff] %vm927, %v3484
      %3521 = vst.msk [vmem:[%s285 + $0x68] sm:$0xff] %vm927, %v3485
      %3522 = vst.msk [vmem:[%s285 + $0x70] sm:$0xff] %vm927, %v3486
      %3523 = vst.msk [vmem:[%s285 + $0x78] sm:$0xff] %vm927, %v3487
      %3524 = vst.msk [vmem:[%s285 + $0x80] sm:$0xff] %vm927, %v3488
      %3525 = vst.msk [vmem:[%s285 + $0x88] sm:$0xff] %vm927, %v3489
      %3526 = vst.msk [vmem:[%s285 + $0x90] sm:$0xff] %vm927, %v3490
      %3527 = vst.msk [vmem:[%s285 + $0x98] sm:$0xff] %vm927, %v3491
      %3528 = vst.msk [vmem:[%s285 + $0xa0] sm:$0xff] %vm927, %v3492
      %3529 = vst.msk [vmem:[%s285 + $0xa8] sm:$0xff] %vm927, %v3493
      %3530 = vst.msk [vmem:[%s285 + $0xb0] sm:$0xff] %vm927, %v3494
      %3531 = vst.msk [vmem:[%s285 + $0xb8] sm:$0xff] %vm927, %v3495
      %3532 = vst.msk [vmem:[%s285 + $0xc0] sm:$0xff] %vm927, %v3496
      %3533 = vst.msk [vmem:[%s285 + $0xc8] sm:$0xff] %vm927, %v3497
      %3534 = vst.msk [vmem:[%s285 + $0xd0] sm:$0xff] %vm927, %v3498
      %3535 = vst.msk [vmem:[%s285 + $0xd8] sm:$0xff] %vm927, %v3499
      %3536 = vst.msk [vmem:[%s285 + $0xe0] sm:$0xff] %vm927, %v3500
      %3537 = vst.msk [vmem:[%s285 + $0xe8] sm:$0xff] %vm927, %v3501
      %3538 = vst.msk [vmem:[%s285 + $0xf0] sm:$0xff] %vm927, %v3502
      %3539 = vst.msk [vmem:[%s285 + $0xf8] sm:$0xff] %vm927, %v3503
      %3540 = vst.msk [vmem:[%s285 + $0x100] sm:$0xff] %vm927, %v3504
      %3541 = vst.msk [vmem:[%s285 + $0x108] sm:$0xff] %vm927, %v3505
      %3542 = vst.msk [vmem:[%s285 + $0x110] sm:$0xff] %vm927, %v3506
      %3543 = vst.msk [vmem:[%s285 + $0x118] sm:$0xff] %vm927, %v3507
      %v3544 = vld [vmem:[%s5] sm:$0xff]
      %v3545 = vld [vmem:[%s5 + $0x8] sm:$0xff]
      %v3546 = vld [vmem:[%s5 + $0x10] sm:$0xff]
      %v3547 = vld [vmem:[%s5 + $0x18] sm:$0xff]
      %v3548 = vld [vmem:[%s5 + $0x20] sm:$0xff]
      %v3549 = vld [vmem:[%s5 + $0x28] sm:$0xff]
      %v3550 = vld [vmem:[%s5 + $0x30] sm:$0xff]
      %v3551 = vld [vmem:[%s5 + $0x38] sm:$0xff]
      %v3552 = vld [vmem:[%s5 + $0x40] sm:$0xff]
      %v3553 = vld [vmem:[%s5 + $0x48] sm:$0xff]
      %v3554 = vld [vmem:[%s5 + $0x50] sm:$0xff]
      %v3555 = vld [vmem:[%s5 + $0x58] sm:$0xff]
      %v3556 = vld [vmem:[%s5 + $0x60] sm:$0xff]
      %v3557 = vld [vmem:[%s5 + $0x68] sm:$0xff]
      %v3558 = vld [vmem:[%s5 + $0x70] sm:$0xff]
      %v3559 = vld [vmem:[%s5 + $0x78] sm:$0xff]
      %v3560 = vld [vmem:[%s5 + $0x80] sm:$0xff]
      %v3561 = vld [vmem:[%s5 + $0x88] sm:$0xff]
      %v3562 = vld [vmem:[%s5 + $0x90] sm:$0xff]
      %v3563 = vld [vmem:[%s5 + $0x98] sm:$0xff]
      %v3564 = vld [vmem:[%s5 + $0xa0] sm:$0xff]
      %v3565 = vld [vmem:[%s5 + $0xa8] sm:$0xff]
      %v3566 = vld [vmem:[%s5 + $0xb0] sm:$0xff]
      %v3567 = vld [vmem:[%s5 + $0xb8] sm:$0xff]
      %v3568 = vld [vmem:[%s5 + $0xc0] sm:$0xff]
      %v3569 = vld [vmem:[%s5 + $0xc8] sm:$0xff]
      %v3570 = vld [vmem:[%s5 + $0xd0] sm:$0xff]
      %v3571 = vld [vmem:[%s5 + $0xd8] sm:$0xff]
      %v3572 = vld [vmem:[%s5 + $0xe0] sm:$0xff]
      %v3573 = vld [vmem:[%s5 + $0xe8] sm:$0xff]
      %v3574 = vld [vmem:[%s5 + $0xf0] sm:$0xff]
      %v3575 = vld [vmem:[%s5 + $0xf8] sm:$0xff]
      %v3576 = vld [vmem:[%s5 + $0x100] sm:$0xff]
      %v3577 = vld [vmem:[%s5 + $0x108] sm:$0xff]
      %v3578 = vld [vmem:[%s5 + $0x110] sm:$0xff]
      %v3579 = vld [vmem:[%s5 + $0x118] sm:$0xff]
      %3581 = vset.pattern.permute.xlu0 0
      %3582 = vperm.xlu0 %3581, %v3544
      %v3583 = vpop.permute.xlu0 %3582
      %3586 = vset.pattern.permute.xlu0 0
      %3587 = vperm.xlu0 %3586, %v3545
      %v3588 = vpop.permute.xlu0 %3587
      %3591 = vset.pattern.permute.xlu0 0
      %3592 = vperm.xlu0 %3591, %v3546
      %v3593 = vpop.permute.xlu0 %3592
      %3596 = vset.pattern.permute.xlu0 0
      %3597 = vperm.xlu0 %3596, %v3547
      %v3598 = vpop.permute.xlu0 %3597
      %3601 = vset.pattern.permute.xlu0 0
      %3602 = vperm.xlu0 %3601, %v3548
      %v3603 = vpop.permute.xlu0 %3602
      %3606 = vset.pattern.permute.xlu0 0
      %3607 = vperm.xlu0 %3606, %v3549
      %v3608 = vpop.permute.xlu0 %3607
      %3611 = vset.pattern.permute.xlu0 0
      %3612 = vperm.xlu0 %3611, %v3550
      %v3613 = vpop.permute.xlu0 %3612
      %3616 = vset.pattern.permute.xlu0 0
      %3617 = vperm.xlu0 %3616, %v3551
      %v3618 = vpop.permute.xlu0 %3617
      %3621 = vset.pattern.permute.xlu0 0
      %3622 = vperm.xlu0 %3621, %v3552
      %v3623 = vpop.permute.xlu0 %3622
      %3626 = vset.pattern.permute.xlu0 0
      %3627 = vperm.xlu0 %3626, %v3553
      %v3628 = vpop.permute.xlu0 %3627
      %3631 = vset.pattern.permute.xlu0 0
      %3632 = vperm.xlu0 %3631, %v3554
      %v3633 = vpop.permute.xlu0 %3632
      %3636 = vset.pattern.permute.xlu0 0
      %3637 = vperm.xlu0 %3636, %v3555
      %v3638 = vpop.permute.xlu0 %3637
      %3641 = vset.pattern.permute.xlu0 0
      %3642 = vperm.xlu0 %3641, %v3556
      %v3643 = vpop.permute.xlu0 %3642
      %3646 = vset.pattern.permute.xlu0 0
      %3647 = vperm.xlu0 %3646, %v3557
      %v3648 = vpop.permute.xlu0 %3647
      %3651 = vset.pattern.permute.xlu0 0
      %3652 = vperm.xlu0 %3651, %v3558
      %v3653 = vpop.permute.xlu0 %3652
      %3656 = vset.pattern.permute.xlu0 0
      %3657 = vperm.xlu0 %3656, %v3559
      %v3658 = vpop.permute.xlu0 %3657
      %3661 = vset.pattern.permute.xlu0 0
      %3662 = vperm.xlu0 %3661, %v3560
      %v3663 = vpop.permute.xlu0 %3662
      %3666 = vset.pattern.permute.xlu0 0
      %3667 = vperm.xlu0 %3666, %v3561
      %v3668 = vpop.permute.xlu0 %3667
      %3671 = vset.pattern.permute.xlu0 0
      %3672 = vperm.xlu0 %3671, %v3562
      %v3673 = vpop.permute.xlu0 %3672
      %3676 = vset.pattern.permute.xlu0 0
      %3677 = vperm.xlu0 %3676, %v3563
      %v3678 = vpop.permute.xlu0 %3677
      %3681 = vset.pattern.permute.xlu0 0
      %3682 = vperm.xlu0 %3681, %v3564
      %v3683 = vpop.permute.xlu0 %3682
      %3686 = vset.pattern.permute.xlu0 0
      %3687 = vperm.xlu0 %3686, %v3565
      %v3688 = vpop.permute.xlu0 %3687
      %3691 = vset.pattern.permute.xlu0 0
      %3692 = vperm.xlu0 %3691, %v3566
      %v3693 = vpop.permute.xlu0 %3692
      %3696 = vset.pattern.permute.xlu0 0
      %3697 = vperm.xlu0 %3696, %v3567
      %v3698 = vpop.permute.xlu0 %3697
      %3701 = vset.pattern.permute.xlu0 0
      %3702 = vperm.xlu0 %3701, %v3568
      %v3703 = vpop.permute.xlu0 %3702
      %3706 = vset.pattern.permute.xlu0 0
      %3707 = vperm.xlu0 %3706, %v3569
      %v3708 = vpop.permute.xlu0 %3707
      %3711 = vset.pattern.permute.xlu0 0
      %3712 = vperm.xlu0 %3711, %v3570
      %v3713 = vpop.permute.xlu0 %3712
      %3716 = vset.pattern.permute.xlu0 0
      %3717 = vperm.xlu0 %3716, %v3571
      %v3718 = vpop.permute.xlu0 %3717
      %3721 = vset.pattern.permute.xlu0 0
      %3722 = vperm.xlu0 %3721, %v3572
      %v3723 = vpop.permute.xlu0 %3722
      %3726 = vset.pattern.permute.xlu0 0
      %3727 = vperm.xlu0 %3726, %v3573
      %v3728 = vpop.permute.xlu0 %3727
      %3731 = vset.pattern.permute.xlu0 0
      %3732 = vperm.xlu0 %3731, %v3574
      %v3733 = vpop.permute.xlu0 %3732
      %3736 = vset.pattern.permute.xlu0 0
      %3737 = vperm.xlu0 %3736, %v3575
      %v3738 = vpop.permute.xlu0 %3737
      %3741 = vset.pattern.permute.xlu0 0
      %3742 = vperm.xlu0 %3741, %v3576
      %v3743 = vpop.permute.xlu0 %3742
      %3746 = vset.pattern.permute.xlu0 0
      %3747 = vperm.xlu0 %3746, %v3577
      %v3748 = vpop.permute.xlu0 %3747
      %3751 = vset.pattern.permute.xlu0 0
      %3752 = vperm.xlu0 %3751, %v3578
      %v3753 = vpop.permute.xlu0 %3752
      %3756 = vset.pattern.permute.xlu0 0
      %3757 = vperm.xlu0 %3756, %v3579
      %v3758 = vpop.permute.xlu0 %3757
      %v3760 = vmul.f32 %v3472, %v3583
      %v3761 = vmul.f32 %v3473, %v3588
      %v3762 = vmul.f32 %v3474, %v3593
      %v3763 = vmul.f32 %v3475, %v3598
      %v3764 = vmul.f32 %v3476, %v3603
      %v3765 = vmul.f32 %v3477, %v3608
      %v3766 = vmul.f32 %v3478, %v3613
      %v3767 = vmul.f32 %v3479, %v3618
      %v3768 = vmul.f32 %v3480, %v3623
      %v3769 = vmul.f32 %v3481, %v3628
      %v3770 = vmul.f32 %v3482, %v3633
      %v3771 = vmul.f32 %v3483, %v3638
      %v3772 = vmul.f32 %v3484, %v3643
      %v3773 = vmul.f32 %v3485, %v3648
      %v3774 = vmul.f32 %v3486, %v3653
      %v3775 = vmul.f32 %v3487, %v3658
      %v3776 = vmul.f32 %v3488, %v3663
      %v3777 = vmul.f32 %v3489, %v3668
      %v3778 = vmul.f32 %v3490, %v3673
      %v3779 = vmul.f32 %v3491, %v3678
      %v3780 = vmul.f32 %v3492, %v3683
      %v3781 = vmul.f32 %v3493, %v3688
      %v3782 = vmul.f32 %v3494, %v3693
      %v3783 = vmul.f32 %v3495, %v3698
      %v3784 = vmul.f32 %v3496, %v3703
      %v3785 = vmul.f32 %v3497, %v3708
      %v3786 = vmul.f32 %v3498, %v3713
      %v3787 = vmul.f32 %v3499, %v3718
      %v3788 = vmul.f32 %v3500, %v3723
      %v3789 = vmul.f32 %v3501, %v3728
      %v3790 = vmul.f32 %v3502, %v3733
      %v3791 = vmul.f32 %v3503, %v3738
      %v3792 = vmul.f32 %v3504, %v3743
      %v3793 = vmul.f32 %v3505, %v3748
      %v3794 = vmul.f32 %v3506, %v3753
      %v3795 = vmul.f32 %v3507, %v3758
      %v3796 = vsel %vm927, %v3760, 0.0
      %v3797 = vsel %vm927, %v3761, 0.0
      %v3798 = vadd.f32 %v3796, %v3797
      %v3799 = vsel %vm927, %v3762, 0.0
      %v3800 = vadd.f32 %v3798, %v3799
      %v3801 = vsel %vm927, %v3763, 0.0
      %v3802 = vadd.f32 %v3800, %v3801
      %v3803 = vsel %vm927, %v3764, 0.0
      %v3804 = vadd.f32 %v3802, %v3803
      %v3805 = vsel %vm927, %v3765, 0.0
      %v3806 = vadd.f32 %v3804, %v3805
      %v3807 = vsel %vm927, %v3766, 0.0
      %v3808 = vadd.f32 %v3806, %v3807
      %v3809 = vsel %vm927, %v3767, 0.0
      %v3810 = vadd.f32 %v3808, %v3809
      %v3811 = vsel %vm927, %v3768, 0.0
      %v3812 = vadd.f32 %v3810, %v3811
      %v3813 = vsel %vm927, %v3769, 0.0
      %v3814 = vadd.f32 %v3812, %v3813
      %v3815 = vsel %vm927, %v3770, 0.0
      %v3816 = vadd.f32 %v3814, %v3815
      %v3817 = vsel %vm927, %v3771, 0.0
      %v3818 = vadd.f32 %v3816, %v3817
      %v3819 = vsel %vm927, %v3772, 0.0
      %v3820 = vadd.f32 %v3818, %v3819
      %v3821 = vsel %vm927, %v3773, 0.0
      %v3822 = vadd.f32 %v3820, %v3821
      %v3823 = vsel %vm927, %v3774, 0.0
      %v3824 = vadd.f32 %v3822, %v3823
      %v3825 = vsel %vm927, %v3775, 0.0
      %v3826 = vadd.f32 %v3824, %v3825
      %v3827 = vsel %vm927, %v3776, 0.0
      %v3828 = vadd.f32 %v3826, %v3827
      %v3829 = vsel %vm927, %v3777, 0.0
      %v3830 = vadd.f32 %v3828, %v3829
      %v3831 = vsel %vm927, %v3778, 0.0
      %v3832 = vadd.f32 %v3830, %v3831
      %v3833 = vsel %vm927, %v3779, 0.0
      %v3834 = vadd.f32 %v3832, %v3833
      %v3835 = vsel %vm927, %v3780, 0.0
      %v3836 = vadd.f32 %v3834, %v3835
      %v3837 = vsel %vm927, %v3781, 0.0
      %v3838 = vadd.f32 %v3836, %v3837
      %v3839 = vsel %vm927, %v3782, 0.0
      %v3840 = vadd.f32 %v3838, %v3839
      %v3841 = vsel %vm927, %v3783, 0.0
      %v3842 = vadd.f32 %v3840, %v3841
      %v3843 = vsel %vm927, %v3784, 0.0
      %v3844 = vadd.f32 %v3842, %v3843
      %v3845 = vsel %vm927, %v3785, 0.0
      %v3846 = vadd.f32 %v3844, %v3845
      %v3847 = vsel %vm927, %v3786, 0.0
      %v3848 = vadd.f32 %v3846, %v3847
      %v3849 = vsel %vm927, %v3787, 0.0
      %v3850 = vadd.f32 %v3848, %v3849
      %v3851 = vsel %vm927, %v3788, 0.0
      %v3852 = vadd.f32 %v3850, %v3851
      %v3853 = vsel %vm927, %v3789, 0.0
      %v3854 = vadd.f32 %v3852, %v3853
      %v3855 = vsel %vm927, %v3790, 0.0
      %v3856 = vadd.f32 %v3854, %v3855
      %v3857 = vsel %vm927, %v3791, 0.0
      %v3858 = vadd.f32 %v3856, %v3857
      %v3859 = vsel %vm927, %v3792, 0.0
      %v3860 = vadd.f32 %v3858, %v3859
      %v3861 = vsel %vm927, %v3793, 0.0
      %v3862 = vadd.f32 %v3860, %v3861
      %v3863 = vsel %vm927, %v3794, 0.0
      %v3864 = vadd.f32 %v3862, %v3863
      %v3865 = vsel %vm927, %v3795, 0.0
      %v3866 = vadd.f32 %v3864, %v3865
      %v3867 = vrot.slane %v3866, 4
      %v3868 = vadd.f32 %v3866, %v3867
      %v3869 = vrot.slane %v3868, 2
      %v3870 = vadd.f32 %v3868, %v3869
      %v3871 = vrot.slane %v3870, 1
      %v3872 = vadd.f32 %v3870, %v3871
      %v3873 = vmul.f32 %v3760, %v3472
      %v3874 = vmul.f32 %v3761, %v3473
      %v3875 = vmul.f32 %v3762, %v3474
      %v3876 = vmul.f32 %v3763, %v3475
      %v3877 = vmul.f32 %v3764, %v3476
      %v3878 = vmul.f32 %v3765, %v3477
      %v3879 = vmul.f32 %v3766, %v3478
      %v3880 = vmul.f32 %v3767, %v3479
      %v3881 = vmul.f32 %v3768, %v3480
      %v3882 = vmul.f32 %v3769, %v3481
      %v3883 = vmul.f32 %v3770, %v3482
      %v3884 = vmul.f32 %v3771, %v3483
      %v3885 = vmul.f32 %v3772, %v3484
      %v3886 = vmul.f32 %v3773, %v3485
      %v3887 = vmul.f32 %v3774, %v3486
      %v3888 = vmul.f32 %v3775, %v3487
      %v3889 = vmul.f32 %v3776, %v3488
      %v3890 = vmul.f32 %v3777, %v3489
      %v3891 = vmul.f32 %v3778, %v3490
      %v3892 = vmul.f32 %v3779, %v3491
      %v3893 = vmul.f32 %v3780, %v3492
      %v3894 = vmul.f32 %v3781, %v3493
      %v3895 = vmul.f32 %v3782, %v3494
      %v3896 = vmul.f32 %v3783, %v3495
      %v3897 = vmul.f32 %v3784, %v3496
      %v3898 = vmul.f32 %v3785, %v3497
      %v3899 = vmul.f32 %v3786, %v3498
      %v3900 = vmul.f32 %v3787, %v3499
      %v3901 = vmul.f32 %v3788, %v3500
      %v3902 = vmul.f32 %v3789, %v3501
      %v3903 = vmul.f32 %v3790, %v3502
      %v3904 = vmul.f32 %v3791, %v3503
      %v3905 = vmul.f32 %v3792, %v3504
      %v3906 = vmul.f32 %v3793, %v3505
      %v3907 = vmul.f32 %v3794, %v3506
      %v3908 = vmul.f32 %v3795, %v3507
      %v3909 = vsel %vm927, %v3873, 0.0
      %v3910 = vsel %vm927, %v3874, 0.0
      %v3911 = vadd.f32 %v3909, %v3910
      %v3912 = vsel %vm927, %v3875, 0.0
      %v3913 = vadd.f32 %v3911, %v3912
      %v3914 = vsel %vm927, %v3876, 0.0
      %v3915 = vadd.f32 %v3913, %v3914
      %v3916 = vsel %vm927, %v3877, 0.0
      %v3917 = vadd.f32 %v3915, %v3916
      %v3918 = vsel %vm927, %v3878, 0.0
      %v3919 = vadd.f32 %v3917, %v3918
      %v3920 = vsel %vm927, %v3879, 0.0
      %v3921 = vadd.f32 %v3919, %v3920
      %v3922 = vsel %vm927, %v3880, 0.0
      %v3923 = vadd.f32 %v3921, %v3922
      %v3924 = vsel %vm927, %v3881, 0.0
      %v3925 = vadd.f32 %v3923, %v3924
      %v3926 = vsel %vm927, %v3882, 0.0
      %v3927 = vadd.f32 %v3925, %v3926
      %v3928 = vsel %vm927, %v3883, 0.0
      %v3929 = vadd.f32 %v3927, %v3928
      %v3930 = vsel %vm927, %v3884, 0.0
      %v3931 = vadd.f32 %v3929, %v3930
      %v3932 = vsel %vm927, %v3885, 0.0
      %v3933 = vadd.f32 %v3931, %v3932
      %v3934 = vsel %vm927, %v3886, 0.0
      %v3935 = vadd.f32 %v3933, %v3934
      %v3936 = vsel %vm927, %v3887, 0.0
      %v3937 = vadd.f32 %v3935, %v3936
      %v3938 = vsel %vm927, %v3888, 0.0
      %v3939 = vadd.f32 %v3937, %v3938
      %v3940 = vsel %vm927, %v3889, 0.0
      %v3941 = vadd.f32 %v3939, %v3940
      %v3942 = vsel %vm927, %v3890, 0.0
      %v3943 = vadd.f32 %v3941, %v3942
      %v3944 = vsel %vm927, %v3891, 0.0
      %v3945 = vadd.f32 %v3943, %v3944
      %v3946 = vsel %vm927, %v3892, 0.0
      %v3947 = vadd.f32 %v3945, %v3946
      %v3948 = vsel %vm927, %v3893, 0.0
      %v3949 = vadd.f32 %v3947, %v3948
      %v3950 = vsel %vm927, %v3894, 0.0
      %v3951 = vadd.f32 %v3949, %v3950
      %v3952 = vsel %vm927, %v3895, 0.0
      %v3953 = vadd.f32 %v3951, %v3952
      %v3954 = vsel %vm927, %v3896, 0.0
      %v3955 = vadd.f32 %v3953, %v3954
      %v3956 = vsel %vm927, %v3897, 0.0
      %v3957 = vadd.f32 %v3955, %v3956
      %v3958 = vsel %vm927, %v3898, 0.0
      %v3959 = vadd.f32 %v3957, %v3958
      %v3960 = vsel %vm927, %v3899, 0.0
      %v3961 = vadd.f32 %v3959, %v3960
      %v3962 = vsel %vm927, %v3900, 0.0
      %v3963 = vadd.f32 %v3961, %v3962
      %v3964 = vsel %vm927, %v3901, 0.0
      %v3965 = vadd.f32 %v3963, %v3964
      %v3966 = vsel %vm927, %v3902, 0.0
      %v3967 = vadd.f32 %v3965, %v3966
      %v3968 = vsel %vm927, %v3903, 0.0
      %v3969 = vadd.f32 %v3967, %v3968
      %v3970 = vsel %vm927, %v3904, 0.0
      %v3971 = vadd.f32 %v3969, %v3970
      %v3972 = vsel %vm927, %v3905, 0.0
      %v3973 = vadd.f32 %v3971, %v3972
      %v3974 = vsel %vm927, %v3906, 0.0
      %v3975 = vadd.f32 %v3973, %v3974
      %v3976 = vsel %vm927, %v3907, 0.0
      %v3977 = vadd.f32 %v3975, %v3976
      %v3978 = vsel %vm927, %v3908, 0.0
      %v3979 = vadd.f32 %v3977, %v3978
      %v3980 = vrot.slane %v3979, 4
      %v3981 = vadd.f32 %v3979, %v3980
      %v3982 = vrot.slane %v3981, 2
      %v3983 = vadd.f32 %v3981, %v3982
      %v3984 = vrot.slane %v3983, 1
      %v3985 = vadd.f32 %v3983, %v3984
      %vm3986 = vcmask 1040384
      %v3987 = vsel %vm3986, %v3872, %v3985
      %vm3988 = vcmask 25600
      %3989 = vst.msk [vmem:[%s289] sm:$0x3] %vm3988, %v3987
      %p3990 = scmp.lt.s32.totalorder %s19, 1
      %s3991 = scalar_select %p3990, %s19, 1
      %s3992 = smul.addr %s3991, 36
      %s3993 = smul.addr %s3992, 8
      %s3994 = scalar_lea.vmem %s6, %s3993
      %p3995 = scmp.lt.s32.totalorder %s19, 1
      %s3996 = scalar_select %p3995, %s19, 1
      %s3997 = smul.addr %s3996, 2
      %s3998 = scalar_lea.vmem %s7, %s3997
      // Predicated region
      $region45: #{block_forward.4} parent=43 // pred_check
        %p3999 = pneg %p168
      $region46: #{block_forward.4} parent=43 // pred_check_branch
        %4001 = sbr.rel (%p3999) target = $region48
      $region47: #{block_forward.4} parent=43 // pred_region
        _
      $region48: #{block_forward.4} parent=43 // pred_fallthru
        _
      // Predicated region
      $region49: #{block_forward.4} parent=43 // pred_check
        %p4002 = pneg %p194
      $region50: #{block_forward.4} parent=43 // pred_check_branch
        %4004 = sbr.rel (%p4002) target = $region52
      $region51: #{block_forward.4} parent=43 // pred_region
        _
      $region52: #{block_forward.4} parent=43 // pred_fallthru
        _
    $region44: #{block_forward.4} parent=5 // pred_fallthru
      _
    %p4005 = scmp.le.s32.totalorder 2, %s14
    // Predicated region
    $region53: #{block_forward.4} parent=5 // pred_check
      %p4006 = pneg %p4005
    $region54: #{block_forward.4} parent=5 // pred_check_branch
      %4008 = sbr.rel (%p4006) target = $region56
    $region55: #{block_forward.4} parent=5 // pred_region
      %s4009 = ssub.s32 %s14, 2
      // Predicated region
      $region57: #{block_forward.4} parent=55 // pred_check
        %p4010 = pneg %p174
      $region58: #{block_forward.4} parent=55 // pred_check_branch
        %4012 = sbr.rel (%p4010) target = $region60
      $region59: #{block_forward.4} parent=55 // pred_region
        %p4013 = scmp.lt.s32.totalorder %s20, 1
        %s4014 = scalar_select %p4013, %s20, 1
        %s4015 = smul.addr %s4014, 36
        %s4016 = smul.addr %s4015, 8
        %s4017 = scalar_lea.vmem %s6, %s4016
      $region60: #{block_forward.4} parent=55 // pred_fallthru
        _
      // Predicated region
      $region61: #{block_forward.4} parent=55 // pred_check
        %p4018 = pneg %p200
      $region62: #{block_forward.4} parent=55 // pred_check_branch
        %4020 = sbr.rel (%p4018) target = $region64
      $region63: #{block_forward.4} parent=55 // pred_region
        %p4021 = scmp.lt.s32.totalorder %s20, 1
        %s4022 = scalar_select %p4021, %s20, 1
        %s4023 = smul.addr %s4022, 2
        %s4024 = scalar_lea.vmem %s7, %s4023
      $region64: #{block_forward.4} parent=55 // pred_fallthru
        _
    $region56: #{block_forward.4} parent=5 // pred_fallthru
      _
  $region6: #{block_forward.4} parent=0 // loop_footer
    %s18 = sadd.s32 1, %s14
  $region7: #{block_forward.4} parent=0 // loop_footer_branch
    %13 = sbr.rel target = $region3
  $region8: #{block_forward.4} parent=0 // loop_exit
    _

// kernel: block_forward.3
$region0: #{block_forward.3}
  #allocation0 [shape = 'u32[]', space=smem, size = 0x4, offset = 0x4, fixed_abs, tag = 'smem constant byte address 0x4 - core index']
  #allocation1 [shape = 'u32[144,128]{1,0:T(1,128)}', space=vmem, size = 0x12000, scoped, tag = 'internal scratch']
  %s0 = inlined_call_operand.vmem [shape: bf16[2,326,4], index: 0, kind: input, shape index: {}]
  %s1 = inlined_call_operand.vmem [shape: bf16[9,4,4], index: 1, kind: input, shape index: {}]
  %s2 = inlined_call_operand.vmem [shape: f32[288,1], index: 2, kind: input, shape index: {}]
  %s3 = inlined_call_operand.vmem [shape: f32[2,288,4], index: 3, kind: output, shape index: {0}]
  %s4 = inlined_call_operand.vmem [shape: f32[2,2,4], index: 4, kind: output, shape index: {1}]
  %5 = xla_tuple %s3, %s4
  %s6 = sld [smem:[#allocation0]]
  $region53: #{block_forward.3} parent=0
    _
  %s8 = ssub.s32 1, %s6
  %s9 = scalar_select 0, %s8, %s6
  loop: start=0, step=1, limit=4
  $region2: #{block_forward.3} parent=0 // loop_pre_header
    _
  $region3: #{block_forward.3} parent=0 // loop_header
    %s11 = sphi 0, %s15
    %p12 = scmp.ge.s32.totalorder %s11, 4
    %s21 = sphi 0, %s23
    %s24 = sphi 0, %s21
    %s25 = sphi 0, %s24
    %s41 = sphi 0, %s25
    %s45 = sphi 0, %s45
    %s47 = sphi 0, %s45
    %s48 = sphi 0, %s47
    %s62 = sphi 0, %s48
    %s66 = sphi 0, %s66
    %s68 = sphi 0, %s66
    %s69 = sphi 0, %s68
    %s83 = sphi 0, %s69
    %s89 = sphi 0, %s91
    %s92 = sphi 0, %s89
    %s93 = sphi 0, %s92
    %s109 = sphi 0, %s93
    %s115 = sphi 0, %s117
    %s118 = sphi 0, %s115
    %s119 = sphi 0, %s118
    %s135 = sphi 0, %s119
  $region4: #{block_forward.3} parent=0 // loop_header_branch
    %14 = sbr.rel (%p12) target = $region8
  $region5: #{block_forward.3} parent=0 // loop_body
    %s16 = ssub.s32 %s11, 1
    %s17 = ssub.s32 %s11, 2
    %s18 = sadd.s32 %s11, 1
    %s19 = ssub.s32 %s11, %s18
    %p20 = scmp.eq.s32.totalorder %s19, 0
    %s22 = sadd.s32 %s21, 1
    %s23 = scalar_select %p20, %s21, %s22
    %p26 = pneg %p20
    %p27 = scmp.eq.s32.totalorder %s11, 1
    %p28 = por %p26, %p27
    %p29 = scmp.ne.s32.totalorder %s21, %s24
    %p30 = scmp.eq.s32.totalorder %s11, 0
    %p31 = por %p29, %p30
    %p32 = scmp.ne.s32.totalorder %s21, %s24
    %p33 = scmp.eq.s32.totalorder %s16, 1
    %p34 = por %p32, %p33
    %p35 = scmp.ne.s32.totalorder %s24, %s25
    %p36 = scmp.eq.s32.totalorder %s16, 0
    %p37 = por %p35, %p36
    %p38 = scmp.ne.s32.totalorder %s24, %s25
    %p39 = scmp.eq.s32.totalorder %s17, 1
    %p40 = por %p38, %p39
    %p42 = scmp.ne.s32.totalorder %s25, %s41
    %p43 = scmp.eq.s32.totalorder %s17, 0
    %p44 = por %p42, %p43
    %s46 = sadd.s32 %s45, 1
    %p49 = scmp.eq.s32.totalorder %s11, 1
    %p50 = scmp.ne.s32.totalorder %s45, %s47
    %p51 = scmp.eq.s32.totalorder %s11, 0
    %p52 = por %p50, %p51
    %p53 = scmp.ne.s32.totalorder %s45, %s47
    %p54 = scmp.eq.s32.totalorder %s16, 1
    %p55 = por %p53, %p54
    %p56 = scmp.ne.s32.totalorder %s47, %s48
    %p57 = scmp.eq.s32.totalorder %s16, 0
    %p58 = por %p56, %p57
    %p59 = scmp.ne.s32.totalorder %s47, %s48
    %p60 = scmp.eq.s32.totalorder %s17, 1
    %p61 = por %p59, %p60
    %p63 = scmp.ne.s32.totalorder %s48, %s62
    %p64 = scmp.eq.s32.totalorder %s17, 0
    %p65 = por %p63, %p64
    %s67 = sadd.s32 %s66, 1
    %p70 = scmp.eq.s32.totalorder %s11, 1
    %p71 = scmp.ne.s32.totalorder %s66, %s68
    %p72 = scmp.eq.s32.totalorder %s11, 0
    %p73 = por %p71, %p72
    %p74 = scmp.ne.s32.totalorder %s66, %s68
    %p75 = scmp.eq.s32.totalorder %s16, 1
    %p76 = por %p74, %p75
    %p77 = scmp.ne.s32.totalorder %s68, %s69
    %p78 = scmp.eq.s32.totalorder %s16, 0
    %p79 = por %p77, %p78
    %p80 = scmp.ne.s32.totalorder %s68, %s69
    %p81 = scmp.eq.s32.totalorder %s17, 1
    %p82 = por %p80, %p81
    %p84 = scmp.ne.s32.totalorder %s69, %s83
    %p85 = scmp.eq.s32.totalorder %s17, 0
    %p86 = por %p84, %p85
    %s87 = ssub.s32 %s11, %s18
    %p88 = scmp.eq.s32.totalorder %s87, 0
    %s90 = sadd.s32 %s89, 1
    %s91 = scalar_select %p88, %s89, %s90
    %p94 = pneg %p88
    %p95 = scmp.eq.s32.totalorder %s11, 1
    %p96 = por %p94, %p95
    %p97 = scmp.ne.s32.totalorder %s89, %s92
    %p98 = scmp.eq.s32.totalorder %s11, 0
    %p99 = por %p97, %p98
    %p100 = scmp.ne.s32.totalorder %s89, %s92
    %p101 = scmp.eq.s32.totalorder %s16, 1
    %p102 = por %p100, %p101
    %p103 = scmp.ne.s32.totalorder %s92, %s93
    %p104 = scmp.eq.s32.totalorder %s16, 0
    %p105 = por %p103, %p104
    %p106 = scmp.ne.s32.totalorder %s92, %s93
    %p107 = scmp.eq.s32.totalorder %s17, 1
    %p108 = por %p106, %p107
    %p110 = scmp.ne.s32.totalorder %s93, %s109
    %p111 = scmp.eq.s32.totalorder %s17, 0
    %p112 = por %p110, %p111
    %s113 = ssub.s32 %s11, %s18
    %p114 = scmp.eq.s32.totalorder %s113, 0
    %s116 = sadd.s32 %s115, 1
    %s117 = scalar_select %p114, %s115, %s116
    %p120 = pneg %p114
    %p121 = scmp.eq.s32.totalorder %s11, 1
    %p122 = por %p120, %p121
    %p123 = scmp.ne.s32.totalorder %s115, %s118
    %p124 = scmp.eq.s32.totalorder %s11, 0
    %p125 = por %p123, %p124
    %p126 = scmp.ne.s32.totalorder %s115, %s118
    %p127 = scmp.eq.s32.totalorder %s16, 1
    %p128 = por %p126, %p127
    %p129 = scmp.ne.s32.totalorder %s118, %s119
    %p130 = scmp.eq.s32.totalorder %s16, 0
    %p131 = por %p129, %p130
    %p132 = scmp.ne.s32.totalorder %s118, %s119
    %p133 = scmp.eq.s32.totalorder %s17, 1
    %p134 = por %p132, %p133
    %p136 = scmp.ne.s32.totalorder %s119, %s135
    %p137 = scmp.eq.s32.totalorder %s17, 0
    %p138 = por %p136, %p137
    %p139 = scmp.le.s32.totalorder 1, %s11
    %p140 = scmp.lt.s32.totalorder %s11, 3
    %p141 = pnand %p139, %p140
    %p142 = pneg %p141
    // Predicated region
    $region9: #{block_forward.3} parent=5 // pred_check
      _
    $region10: #{block_forward.3} parent=5 // pred_check_branch
      %144 = sbr.rel (%p141) target = $region12
    $region11: #{block_forward.3} parent=5 // pred_region
      %s145 = ssub.s32 %s11, 1
      // Predicated region
      $region13: #{block_forward.3} parent=11 // pred_check
        %p146 = pneg %p58
      $region14: #{block_forward.3} parent=11 // pred_check_branch
        %148 = sbr.rel (%p146) target = $region16
      $region15: #{block_forward.3} parent=11 // pred_region
        _
      $region16: #{block_forward.3} parent=11 // pred_fallthru
        _
      // Predicated region
      $region17: #{block_forward.3} parent=11 // pred_check
        %p149 = pneg %p79
      $region18: #{block_forward.3} parent=11 // pred_check_branch
        %151 = sbr.rel (%p149) target = $region20
      $region19: #{block_forward.3} parent=11 // pred_region
        _
      $region20: #{block_forward.3} parent=11 // pred_fallthru
        _
    $region12: #{block_forward.3} parent=5 // pred_fallthru
      _
    %p152 = scmp.lt.s32.totalorder %s11, 2
    // Predicated region
    $region21: #{block_forward.3} parent=5 // pred_check
      %p153 = pneg %p152
    $region22: #{block_forward.3} parent=5 // pred_check_branch
      %155 = sbr.rel (%p153) target = $region24
    $region23: #{block_forward.3} parent=5 // pred_region
      // Predicated region
      $region25: #{block_forward.3} parent=23 // pred_check
        %p156 = pneg %p31
      $region26: #{block_forward.3} parent=23 // pred_check_branch
        %158 = sbr.rel (%p156) target = $region28
      $region27: #{block_forward.3} parent=23 // pred_region
        %p159 = scmp.lt.s32.totalorder %s11, 1
        %s160 = scalar_select %p159, %s11, 1
        %s161 = smul.addr %s160, 41
        %s162 = smul.addr %s161, 4
        %s163 = scalar_lea.vmem %s0, %s162
      $region28: #{block_forward.3} parent=23 // pred_fallthru
        _
    $region24: #{block_forward.3} parent=5 // pred_fallthru
      _
    %p164 = scmp.le.s32.totalorder 1, %s11
    %p165 = scmp.lt.s32.totalorder %s11, 3
    %p166 = pnand %p164, %p165
    %p167 = pneg %p166
    // Predicated region
    $region29: #{block_forward.3} parent=5 // pred_check
      _
    $region30: #{block_forward.3} parent=5 // pred_check_branch
      %169 = sbr.rel (%p166) target = $region32
    $region31: #{block_forward.3} parent=5 // pred_region
      %s170 = ssub.s32 %s11, 1
      %p171 = scmp.lt.s32.totalorder %s16, 1
      %s172 = scalar_select %p171, %s16, 1
      %s173 = smul.addr %s172, 41
      %s174 = smul.addr %s173, 4
      %s175 = scalar_lea.vmem %s0, %s174
      %p176 = pneg %p37
      %p177 = pneg %p34
      %p178 = pneg %p58
      %p179 = pneg %p55
      %p180 = pneg %p79
      %p181 = pneg %p76
      %p182 = pneg %p105
      %p183 = pneg %p102
      %p184 = scmp.lt.s32.totalorder %s16, 1
      %s185 = scalar_select %p184, %s16, 1
      %s186 = smul.addr %s185, 36
      %s187 = smul.addr %s186, 8
      %s188 = scalar_lea.vmem %s3, %s187
      %p189 = pneg %p131
      %p190 = pneg %p128
      %p191 = scmp.lt.s32.totalorder %s16, 1
      %s192 = scalar_select %p191, %s16, 1
      %s193 = smul.addr %s192, 2
      %s194 = scalar_lea.vmem %s4, %s193
      %p195 = scmp.lt.s32.totalorder %s16, 1
      %s196 = scalar_select %p195, %s16, 1
      %s197 = smul.addr %s196, 41
      %s198 = smul.addr %s197, 4
      %s199 = scalar_lea.vmem %s0, %s198
      %p200 = scmp.lt.s32.totalorder %s16, 1
      %s201 = scalar_select %p200, %s16, 1
      %s202 = smul.addr %s201, 36
      %s203 = smul.addr %s202, 8
      %s204 = scalar_lea.vmem %s3, %s203
      %p205 = scmp.lt.s32.totalorder %s16, 1
      %s206 = scalar_select %p205, %s16, 1
      %s207 = smul.addr %s206, 2
      %s208 = scalar_lea.vmem %s4, %s207
      %v210 = vld [vmem:[%s199] sm:$0xf]
      %v211 = vld [vmem:[%s199 + $0x4] sm:$0xf]
      %v212 = vld [vmem:[%s199 + $0x8] sm:$0xf]
      %v213 = vld [vmem:[%s199 + $0xc] sm:$0xf]
      %v214 = vld [vmem:[%s199 + $0x10] sm:$0xf]
      %v215 = vld [vmem:[%s199 + $0x14] sm:$0xf]
      %v216 = vld [vmem:[%s199 + $0x18] sm:$0xf]
      %v217 = vld [vmem:[%s199 + $0x1c] sm:$0xf]
      %v218 = vld [vmem:[%s199 + $0x20] sm:$0xf]
      %v219 = vld [vmem:[%s199 + $0x24] sm:$0xf]
      %v220 = vld [vmem:[%s199 + $0x28] sm:$0xf]
      %v221 = vld [vmem:[%s199 + $0x2c] sm:$0xf]
      %v222 = vld [vmem:[%s199 + $0x30] sm:$0xf]
      %v223 = vld [vmem:[%s199 + $0x34] sm:$0xf]
      %v224 = vld [vmem:[%s199 + $0x38] sm:$0xf]
      %v225 = vld [vmem:[%s199 + $0x3c] sm:$0xf]
      %v226 = vld [vmem:[%s199 + $0x40] sm:$0xf]
      %v227 = vld [vmem:[%s199 + $0x44] sm:$0xf]
      %v228 = vld [vmem:[%s199 + $0x48] sm:$0xf]
      %v229 = vld [vmem:[%s199 + $0x4c] sm:$0xf]
      %v230 = vld [vmem:[%s199 + $0x50] sm:$0xf]
      %v231 = vld [vmem:[%s199 + $0x54] sm:$0xf]
      %v232 = vld [vmem:[%s199 + $0x58] sm:$0xf]
      %v233 = vld [vmem:[%s199 + $0x5c] sm:$0xf]
      %v234 = vld [vmem:[%s199 + $0x60] sm:$0xf]
      %v235 = vld [vmem:[%s199 + $0x64] sm:$0xf]
      %v236 = vld [vmem:[%s199 + $0x68] sm:$0xf]
      %v237 = vld [vmem:[%s199 + $0x6c] sm:$0xf]
      %v238 = vld [vmem:[%s199 + $0x70] sm:$0xf]
      %v239 = vld [vmem:[%s199 + $0x74] sm:$0xf]
      %v240 = vld [vmem:[%s199 + $0x78] sm:$0xf]
      %v241 = vld [vmem:[%s199 + $0x7c] sm:$0xf]
      %v242 = vld [vmem:[%s199 + $0x80] sm:$0xf]
      %v243 = vld [vmem:[%s199 + $0x84] sm:$0xf]
      %v244 = vld [vmem:[%s199 + $0x88] sm:$0xf]
      %v245 = vld [vmem:[%s199 + $0x8c] sm:$0xf]
      %v246 = vld [vmem:[%s1] sm:$0x3]
      %v247 = vld [vmem:[%s199 + $0x90] sm:$0x1]
      %s248 = scalar_lea.vmem %s1, 2
      %v249 = vld [vmem:[%s248] sm:$0x3]
      %v287 = vunpack.c.l.b16 %v210
      %v288 = vunpack.c.l.b16 %v211
      %v289 = vunpack.c.l.b16 %v212
      %v290 = vunpack.c.l.b16 %v213
      %v291 = vunpack.c.l.b16 %v214
      %v292 = vunpack.c.l.b16 %v215
      %v293 = vunpack.c.l.b16 %v216
      %v294 = vunpack.c.l.b16 %v217
      %v295 = vunpack.c.l.b16 %v218
      %v296 = vunpack.c.l.b16 %v219
      %v297 = vunpack.c.l.b16 %v220
      %v298 = vunpack.c.l.b16 %v221
      %v299 = vunpack.c.l.b16 %v222
      %v300 = vunpack.c.l.b16 %v223
      %v301 = vunpack.c.l.b16 %v224
      %v302 = vunpack.c.l.b16 %v225
      %v303 = vunpack.c.l.b16 %v226
      %v304 = vunpack.c.l.b16 %v227
      %v305 = vunpack.c.l.b16 %v228
      %v306 = vunpack.c.l.b16 %v229
      %v307 = vunpack.c.l.b16 %v230
      %v308 = vunpack.c.l.b16 %v231
      %v309 = vunpack.c.l.b16 %v232
      %v310 = vunpack.c.l.b16 %v233
      %v311 = vunpack.c.l.b16 %v234
      %v312 = vunpack.c.l.b16 %v235
      %v313 = vunpack.c.l.b16 %v236
      %v314 = vunpack.c.l.b16 %v237
      %v315 = vunpack.c.l.b16 %v238
      %v316 = vunpack.c.l.b16 %v239
      %v317 = vunpack.c.l.b16 %v240
      %v318 = vunpack.c.l.b16 %v241
      %v319 = vunpack.c.l.b16 %v242
      %v320 = vunpack.c.l.b16 %v243
      %v321 = vunpack.c.l.b16 %v244
      %v322 = vunpack.c.l.b16 %v245
      %v323 = vunpack.c.l.b16 %v247
      %v324 = vpack.c.b16 %v288, %v287
      %v325 = vpack.c.b16 %v290, %v289
      %v326 = vpack.c.b16 %v292, %v291
      %v327 = vpack.c.b16 %v294, %v293
      %v328 = vpack.c.b16 %v296, %v295
      %v329 = vpack.c.b16 %v298, %v297
      %v330 = vpack.c.b16 %v300, %v299
      %v331 = vpack.c.b16 %v302, %v301
      %v332 = vpack.c.b16 %v304, %v303
      %v333 = vpack.c.b16 %v306, %v305
      %v334 = vpack.c.b16 %v308, %v307
      %v335 = vpack.c.b16 %v310, %v309
      %v336 = vpack.c.b16 %v312, %v311
      %v337 = vpack.c.b16 %v314, %v313
      %v338 = vpack.c.b16 %v316, %v315
      %v339 = vpack.c.b16 %v318, %v317
      %v340 = vpack.c.b16 %v320, %v319
      %v341 = vpack.c.b16 %v322, %v321
      %v342 = vpack.c.b16 %v323, %v323
      %vm343 = vsmask.f32 7424
      %v345 = vshrl.u32 %v324, 16
      %v347 = vshll.u32 %v324, 16
      %v349 = vrot.slane %v347, 1
      %v350 = vor.u32 %v345, %v349
      %v352 = vshll.u32 %v325, 16
      %v354 = vrot.slane %v352, 1
      %v355 = vsel %vm343, %v350, %v354
      %v356 = vshrl.u32 %v325, 16
      %v358 = vor.u32 %v356, %v354
      %v360 = vshll.u32 %v326, 16
      %v362 = vrot.slane %v360, 1
      %v363 = vsel %vm343, %v358, %v362
      %v364 = vshrl.u32 %v326, 16
      %v366 = vor.u32 %v364, %v362
      %v368 = vshll.u32 %v327, 16
      %v370 = vrot.slane %v368, 1
      %v371 = vsel %vm343, %v366, %v370
      %v372 = vshrl.u32 %v327, 16
      %v374 = vor.u32 %v372, %v370
      %v376 = vshll.u32 %v328, 16
      %v378 = vrot.slane %v376, 1
      %v379 = vsel %vm343, %v374, %v378
      %v380 = vshrl.u32 %v328, 16
      %v382 = vor.u32 %v380, %v378
      %v384 = vshll.u32 %v329, 16
      %v386 = vrot.slane %v384, 1
      %v387 = vsel %vm343, %v382, %v386
      %v388 = vshrl.u32 %v329, 16
      %v390 = vor.u32 %v388, %v386
      %v392 = vshll.u32 %v330, 16
      %v394 = vrot.slane %v392, 1
      %v395 = vsel %vm343, %v390, %v394
      %v396 = vshrl.u32 %v330, 16
      %v398 = vor.u32 %v396, %v394
      %v400 = vshll.u32 %v331, 16
      %v402 = vrot.slane %v400, 1
      %v403 = vsel %vm343, %v398, %v402
      %v404 = vshrl.u32 %v331, 16
      %v406 = vor.u32 %v404, %v402
      %v408 = vshll.u32 %v332, 16
      %v410 = vrot.slane %v408, 1
      %v411 = vsel %vm343, %v406, %v410
      %v412 = vshrl.u32 %v332, 16
      %v414 = vor.u32 %v412, %v410
      %v416 = vshll.u32 %v333, 16
      %v418 = vrot.slane %v416, 1
      %v419 = vsel %vm343, %v414, %v418
      %v420 = vshrl.u32 %v333, 16
      %v422 = vor.u32 %v420, %v418
      %v424 = vshll.u32 %v334, 16
      %v426 = vrot.slane %v424, 1
      %v427 = vsel %vm343, %v422, %v426
      %v428 = vshrl.u32 %v334, 16
      %v430 = vor.u32 %v428, %v426
      %v432 = vshll.u32 %v335, 16
      %v434 = vrot.slane %v432, 1
      %v435 = vsel %vm343, %v430, %v434
      %v436 = vshrl.u32 %v335, 16
      %v438 = vor.u32 %v436, %v434
      %v440 = vshll.u32 %v336, 16
      %v442 = vrot.slane %v440, 1
      %v443 = vsel %vm343, %v438, %v442
      %v444 = vshrl.u32 %v336, 16
      %v446 = vor.u32 %v444, %v442
      %v448 = vshll.u32 %v337, 16
      %v450 = vrot.slane %v448, 1
      %v451 = vsel %vm343, %v446, %v450
      %v452 = vshrl.u32 %v337, 16
      %v454 = vor.u32 %v452, %v450
      %v456 = vshll.u32 %v338, 16
      %v458 = vrot.slane %v456, 1
      %v459 = vsel %vm343, %v454, %v458
      %v460 = vshrl.u32 %v338, 16
      %v462 = vor.u32 %v460, %v458
      %v464 = vshll.u32 %v339, 16
      %v466 = vrot.slane %v464, 1
      %v467 = vsel %vm343, %v462, %v466
      %v468 = vshrl.u32 %v339, 16
      %v470 = vor.u32 %v468, %v466
      %v472 = vshll.u32 %v340, 16
      %v474 = vrot.slane %v472, 1
      %v475 = vsel %vm343, %v470, %v474
      %v476 = vshrl.u32 %v340, 16
      %v478 = vor.u32 %v476, %v474
      %v480 = vshll.u32 %v341, 16
      %v482 = vrot.slane %v480, 1
      %v483 = vsel %vm343, %v478, %v482
      %v484 = vshrl.u32 %v341, 16
      %v486 = vor.u32 %v484, %v482
      %v488 = vshll.u32 %v342, 16
      %v490 = vrot.slane %v488, 1
      %v491 = vsel %vm343, %v486, %v490
      %vm492 = vcmask 31744
      %v494 = vsel %vm492, %v355, 0
      %v497 = vsel %vm492, %v363, 0
      %v500 = vsel %vm492, %v371, 0
      %v503 = vsel %vm492, %v379, 0
      %v506 = vsel %vm492, %v387, 0
      %v509 = vsel %vm492, %v395, 0
      %v512 = vsel %vm492, %v403, 0
      %v515 = vsel %vm492, %v411, 0
      %v518 = vsel %vm492, %v419, 0
      %v521 = vsel %vm492, %v427, 0
      %v524 = vsel %vm492, %v435, 0
      %v527 = vsel %vm492, %v443, 0
      %v530 = vsel %vm492, %v451, 0
      %v533 = vsel %vm492, %v459, 0
      %v536 = vsel %vm492, %v467, 0
      %v539 = vsel %vm492, %v475, 0
      %v542 = vsel %vm492, %v483, 0
      %v545 = vsel %vm492, %v491, 0
      %vm547 = vcmask 1041408
      %v549 = vsel %vm547, %v249, 0
      %551 = vmatprep.subr.bf16.mxu0 0
      %552 = vmatpush1.bf16.msra.mxu0 %v549
      %553 = vmatprep.subr.bf16.mxu0 0
      %554 = vmatpush1.bf16.msra.mxu0 0
      %555 = vmatprep.subr.bf16.mxu0 0
      %556 = vmatpush1.bf16.msra.mxu0 0
      %557 = vmatprep.subr.bf16.mxu0 0
      %558 = vmatpush1.bf16.msra.mxu0 0
      %559 = vmatprep.subr.bf16.mxu0 0
      %560 = vmatpush1.bf16.msra.mxu0 0
      %561 = vmatprep.subr.bf16.mxu0 0
      %562 = vmatpush1.bf16.msra.mxu0 0
      %563 = vmatprep.subr.bf16.mxu0 0
      %564 = vmatpush1.bf16.msra.mxu0 0
      %565 = vmatprep.subr.bf16.mxu0 0
      %566 = vmatpush1.bf16.msra.mxu0 0
      %567 = vmatprep.subr.bf16.mxu0 0
      %568 = vmatpush1.bf16.msra.mxu0 0
      %569 = vmatprep.subr.bf16.mxu0 0
      %570 = vmatpush1.bf16.msra.mxu0 0
      %571 = vmatprep.subr.bf16.mxu0 0
      %572 = vmatpush1.bf16.msra.mxu0 0
      %573 = vmatprep.subr.bf16.mxu0 0
      %574 = vmatpush1.bf16.msra.mxu0 0
      %575 = vmatprep.subr.bf16.mxu0 0
      %576 = vmatpush1.bf16.msra.mxu0 0
      %577 = vmatprep.subr.bf16.mxu0 0
      %578 = vmatpush1.bf16.msra.mxu0 0
      %579 = vmatprep.subr.bf16.mxu0 0
      %580 = vmatpush1.bf16.msra.mxu0 0
      %581 = vmatprep.subr.bf16.mxu0 0
      %582 = vmatpush1.bf16.msra.mxu0 0
      %583 = vmatprep.mubr.bf16.mxu0 0
      %584 = vmatmul.mubr.bf16.gmra.mrb[0].mxu0 %v494
      %v585 = vpop.f32.mrb[0].mxu0
      %v586 = vadd.f32 0.0, %v585
      %v587 = vpop.f32.mrb[0].mxu0
      %v588 = vpop.f32.mrb[0].mxu0
      %v589 = vadd.f32 0.0, %v588
      %v590 = vpop.f32.mrb[0].mxu0
      %591 = vmatprep.mubr.bf16.mxu0 0
      %592 = vmatmul.mubr.bf16.gmra.mrb[0].mxu0 %v497
      %v593 = vpop.f32.mrb[0].mxu0
      %v594 = vadd.f32 0.0, %v593
      %v595 = vpop.f32.mrb[0].mxu0
      %v596 = vpop.f32.mrb[0].mxu0
      %v597 = vadd.f32 0.0, %v596
      %v598 = vpop.f32.mrb[0].mxu0
      %599 = vmatprep.mubr.bf16.mxu0 0
      %600 = vmatmul.mubr.bf16.gmra.mrb[0].mxu0 %v500
      %v601 = vpop.f32.mrb[0].mxu0
      %v602 = vadd.f32 0.0, %v601
      %v603 = vpop.f32.mrb[0].mxu0
      %v604 = vpop.f32.mrb[0].mxu0
      %v605 = vadd.f32 0.0, %v604
      %v606 = vpop.f32.mrb[0].mxu0
      %607 = vmatprep.mubr.bf16.mxu0 0
      %608 = vmatmul.mubr.bf16.gmra.mrb[0].mxu0 %v503
      %v609 = vpop.f32.mrb[0].mxu0
      %v610 = vadd.f32 0.0, %v609
      %v611 = vpop.f32.mrb[0].mxu0
      %v612 = vpop.f32.mrb[0].mxu0
      %v613 = vadd.f32 0.0, %v612
      %v614 = vpop.f32.mrb[0].mxu0
      %615 = vmatprep.mubr.bf16.mxu0 0
      %616 = vmatmul.mubr.bf16.gmra.mrb[0].mxu0 %v506
      %v617 = vpop.f32.mrb[0].mxu0
      %v618 = vadd.f32 0.0, %v617
      %v619 = vpop.f32.mrb[0].mxu0
      %v620 = vpop.f32.mrb[0].mxu0
      %v621 = vadd.f32 0.0, %v620
      %v622 = vpop.f32.mrb[0].mxu0
      %623 = vmatprep.mubr.bf16.mxu0 0
      %624 = vmatmul.mubr.bf16.gmra.mrb[0].mxu0 %v509
      %v625 = vpop.f32.mrb[0].mxu0
      %v626 = vadd.f32 0.0, %v625
      %v627 = vpop.f32.mrb[0].mxu0
      %v628 = vpop.f32.mrb[0].mxu0
      %v629 = vadd.f32 0.0, %v628
      %v630 = vpop.f32.mrb[0].mxu0
      %631 = vmatprep.mubr.bf16.mxu0 0
      %632 = vmatmul.mubr.bf16.gmra.mrb[0].mxu0 %v512
      %v633 = vpop.f32.mrb[0].mxu0
      %v634 = vadd.f32 0.0, %v633
      %v635 = vpop.f32.mrb[0].mxu0
      %v636 = vpop.f32.mrb[0].mxu0
      %v637 = vadd.f32 0.0, %v636
      %v638 = vpop.f32.mrb[0].mxu0
      %639 = vmatprep.mubr.bf16.mxu0 0
      %640 = vmatmul.mubr.bf16.gmra.mrb[0].mxu0 %v515
      %v641 = vpop.f32.mrb[0].mxu0
      %v642 = vadd.f32 0.0, %v641
      %v643 = vpop.f32.mrb[0].mxu0
      %v644 = vpop.f32.mrb[0].mxu0
      %v645 = vadd.f32 0.0, %v644
      %v646 = vpop.f32.mrb[0].mxu0
      %647 = vmatprep.mubr.bf16.mxu0 0
      %648 = vmatmul.mubr.bf16.gmra.mrb[0].mxu0 %v518
      %v649 = vpop.f32.mrb[0].mxu0
      %v650 = vadd.f32 0.0, %v649
      %v651 = vpop.f32.mrb[0].mxu0
      %v652 = vpop.f32.mrb[0].mxu0
      %v653 = vadd.f32 0.0, %v652
      %v654 = vpop.f32.mrb[0].mxu0
      %655 = vmatprep.mubr.bf16.mxu0 0
      %656 = vmatmul.mubr.bf16.gmra.mrb[0].mxu0 %v521
      %v657 = vpop.f32.mrb[0].mxu0
      %v658 = vadd.f32 0.0, %v657
      %v659 = vpop.f32.mrb[0].mxu0
      %v660 = vpop.f32.mrb[0].mxu0
      %v661 = vadd.f32 0.0, %v660
      %v662 = vpop.f32.mrb[0].mxu0
      %663 = vmatprep.mubr.bf16.mxu0 0
      %664 = vmatmul.mubr.bf16.gmra.mrb[0].mxu0 %v524
      %v665 = vpop.f32.mrb[0].mxu0
      %v666 = vadd.f32 0.0, %v665
      %v667 = vpop.f32.mrb[0].mxu0
      %v668 = vpop.f32.mrb[0].mxu0
      %v669 = vadd.f32 0.0, %v668
      %v670 = vpop.f32.mrb[0].mxu0
      %671 = vmatprep.mubr.bf16.mxu0 0
      %672 = vmatmul.mubr.bf16.gmra.mrb[0].mxu0 %v527
      %v673 = vpop.f32.mrb[0].mxu0
      %v674 = vadd.f32 0.0, %v673
      %v675 = vpop.f32.mrb[0].mxu0
      %v676 = vpop.f32.mrb[0].mxu0
      %v677 = vadd.f32 0.0, %v676
      %v678 = vpop.f32.mrb[0].mxu0
      %679 = vmatprep.mubr.bf16.mxu0 0
      %680 = vmatmul.mubr.bf16.gmra.mrb[0].mxu0 %v530
      %v681 = vpop.f32.mrb[0].mxu0
      %v682 = vadd.f32 0.0, %v681
      %v683 = vpop.f32.mrb[0].mxu0
      %v684 = vpop.f32.mrb[0].mxu0
      %v685 = vadd.f32 0.0, %v684
      %v686 = vpop.f32.mrb[0].mxu0
      %687 = vmatprep.mubr.bf16.mxu0 0
      %688 = vmatmul.mubr.bf16.gmra.mrb[0].mxu0 %v533
      %v689 = vpop.f32.mrb[0].mxu0
      %v690 = vadd.f32 0.0, %v689
      %v691 = vpop.f32.mrb[0].mxu0
      %v692 = vpop.f32.mrb[0].mxu0
      %v693 = vadd.f32 0.0, %v692
      %v694 = vpop.f32.mrb[0].mxu0
      %695 = vmatprep.mubr.bf16.mxu0 0
      %696 = vmatmul.mubr.bf16.gmra.mrb[0].mxu0 %v536
      %v697 = vpop.f32.mrb[0].mxu0
      %v698 = vadd.f32 0.0, %v697
      %v699 = vpop.f32.mrb[0].mxu0
      %v700 = vpop.f32.mrb[0].mxu0
      %v701 = vadd.f32 0.0, %v700
      %v702 = vpop.f32.mrb[0].mxu0
      %703 = vmatprep.mubr.bf16.mxu0 0
      %704 = vmatmul.mubr.bf16.gmra.mrb[0].mxu0 %v539
      %v705 = vpop.f32.mrb[0].mxu0
      %v706 = vadd.f32 0.0, %v705
      %v707 = vpop.f32.mrb[0].mxu0
      %v708 = vpop.f32.mrb[0].mxu0
      %v709 = vadd.f32 0.0, %v708
      %v710 = vpop.f32.mrb[0].mxu0
      %711 = vmatprep.mubr.bf16.mxu0 0
      %712 = vmatmul.mubr.bf16.gmra.mrb[0].mxu0 %v542
      %v713 = vpop.f32.mrb[0].mxu0
      %v714 = vadd.f32 0.0, %v713
      %v715 = vpop.f32.mrb[0].mxu0
      %v716 = vpop.f32.mrb[0].mxu0
      %v717 = vadd.f32 0.0, %v716
      %v718 = vpop.f32.mrb[0].mxu0
      %719 = vmatprep.mubr.bf16.mxu0 0
      %720 = vmatmul.mubr.bf16.gmra.mrb[0].mxu0 %v545
      %v721 = vpop.f32.mrb[0].mxu0
      %v722 = vadd.f32 0.0, %v721
      %v723 = vpop.f32.mrb[0].mxu0
      %v724 = vpop.f32.mrb[0].mxu0
      %v725 = vadd.f32 0.0, %v724
      %v726 = vpop.f32.mrb[0].mxu0
      %727 = vdwg.mxu0
      %v728 = vsel %vm492, %v324, 0
      %v730 = vsel %vm492, %v325, 0
      %v732 = vsel %vm492, %v326, 0
      %v734 = vsel %vm492, %v327, 0
      %v736 = vsel %vm492, %v328, 0
      %v738 = vsel %vm492, %v329, 0
      %v740 = vsel %vm492, %v330, 0
      %v742 = vsel %vm492, %v331, 0
      %v744 = vsel %vm492, %v332, 0
      %v746 = vsel %vm492, %v333, 0
      %v748 = vsel %vm492, %v334, 0
      %v750 = vsel %vm492, %v335, 0
      %v752 = vsel %vm492, %v336, 0
      %v754 = vsel %vm492, %v337, 0
      %v756 = vsel %vm492, %v338, 0
      %v758 = vsel %vm492, %v339, 0
      %v760 = vsel %vm492, %v340, 0
      %v762 = vsel %vm492, %v341, 0
      %v765 = vsel %vm547, %v246, 0
      %767 = vmatprep.subr.bf16.mxu0 0
      %768 = vmatpush1.bf16.msra.mxu0 %v765
      %769 = vmatprep.subr.bf16.mxu0 0
      %770 = vmatpush1.bf16.msra.mxu0 0
      %771 = vmatprep.subr.bf16.mxu0 0
      %772 = vmatpush1.bf16.msra.mxu0 0
      %773 = vmatprep.subr.bf16.mxu0 0
      %774 = vmatpush1.bf16.msra.mxu0 0
      %775 = vmatprep.subr.bf16.mxu0 0
      %776 = vmatpush1.bf16.msra.mxu0 0
      %777 = vmatprep.subr.bf16.mxu0 0
      %778 = vmatpush1.bf16.msra.mxu0 0
      %779 = vmatprep.subr.bf16.mxu0 0
      %780 = vmatpush1.bf16.msra.mxu0 0
      %781 = vmatprep.subr.bf16.mxu0 0
      %782 = vmatpush1.bf16.msra.mxu0 0
      %783 = vmatprep.subr.bf16.mxu0 0
      %784 = vmatpush1.bf16.msra.mxu0 0
      %785 = vmatprep.subr.bf16.mxu0 0
      %786 = vmatpush1.bf16.msra.mxu0 0
      %787 = vmatprep.subr.bf16.mxu0 0
      %788 = vmatpush1.bf16.msra.mxu0 0
      %789 = vmatprep.subr.bf16.mxu0 0
      %790 = vmatpush1.bf16.msra.mxu0 0
      %791 = vmatprep.subr.bf16.mxu0 0
      %792 = vmatpush1.bf16.msra.mxu0 0
      %793 = vmatprep.subr.bf16.mxu0 0
      %794 = vmatpush1.bf16.msra.mxu0 0
      %795 = vmatprep.subr.bf16.mxu0 0
      %796 = vmatpush1.bf16.msra.mxu0 0
      %797 = vmatprep.subr.bf16.mxu0 0
      %798 = vmatpush1.bf16.msra.mxu0 0
      %799 = vmatprep.mubr.bf16.mxu0 0
      %800 = vmatmul.mubr.bf16.gmra.mrb[0].mxu0 %v728
      %v801 = vpop.f32.mrb[0].mxu0
      %v802 = vadd.f32 %v586, %v801
      %v803 = vpop.f32.mrb[0].mxu0
      %v804 = vpop.f32.mrb[0].mxu0
      %v805 = vadd.f32 %v589, %v804
      %v806 = vpop.f32.mrb[0].mxu0
      %807 = vmatprep.mubr.bf16.mxu0 0
      %808 = vmatmul.mubr.bf16.gmra.mrb[0].mxu0 %v730
      %v809 = vpop.f32.mrb[0].mxu0
      %v810 = vadd.f32 %v594, %v809
      %v811 = vpop.f32.mrb[0].mxu0
      %v812 = vpop.f32.mrb[0].mxu0
      %v813 = vadd.f32 %v597, %v812
      %v814 = vpop.f32.mrb[0].mxu0
      %815 = vmatprep.mubr.bf16.mxu0 0
      %816 = vmatmul.mubr.bf16.gmra.mrb[0].mxu0 %v732
      %v817 = vpop.f32.mrb[0].mxu0
      %v818 = vadd.f32 %v602, %v817
      %v819 = vpop.f32.mrb[0].mxu0
      %v820 = vpop.f32.mrb[0].mxu0
      %v821 = vadd.f32 %v605, %v820
      %v822 = vpop.f32.mrb[0].mxu0
      %823 = vmatprep.mubr.bf16.mxu0 0
      %824 = vmatmul.mubr.bf16.gmra.mrb[0].mxu0 %v734
      %v825 = vpop.f32.mrb[0].mxu0
      %v826 = vadd.f32 %v610, %v825
      %v827 = vpop.f32.mrb[0].mxu0
      %v828 = vpop.f32.mrb[0].mxu0
      %v829 = vadd.f32 %v613, %v828
      %v830 = vpop.f32.mrb[0].mxu0
      %831 = vmatprep.mubr.bf16.mxu0 0
      %832 = vmatmul.mubr.bf16.gmra.mrb[0].mxu0 %v736
      %v833 = vpop.f32.mrb[0].mxu0
      %v834 = vadd.f32 %v618, %v833
      %v835 = vpop.f32.mrb[0].mxu0
      %v836 = vpop.f32.mrb[0].mxu0
      %v837 = vadd.f32 %v621, %v836
      %v838 = vpop.f32.mrb[0].mxu0
      %839 = vmatprep.mubr.bf16.mxu0 0
      %840 = vmatmul.mubr.bf16.gmra.mrb[0].mxu0 %v738
      %v841 = vpop.f32.mrb[0].mxu0
      %v842 = vadd.f32 %v626, %v841
      %v843 = vpop.f32.mrb[0].mxu0
      %v844 = vpop.f32.mrb[0].mxu0
      %v845 = vadd.f32 %v629, %v844
      %v846 = vpop.f32.mrb[0].mxu0
      %847 = vmatprep.mubr.bf16.mxu0 0
      %848 = vmatmul.mubr.bf16.gmra.mrb[0].mxu0 %v740
      %v849 = vpop.f32.mrb[0].mxu0
      %v850 = vadd.f32 %v634, %v849
      %v851 = vpop.f32.mrb[0].mxu0
      %v852 = vpop.f32.mrb[0].mxu0
      %v853 = vadd.f32 %v637, %v852
      %v854 = vpop.f32.mrb[0].mxu0
      %855 = vmatprep.mubr.bf16.mxu0 0
      %856 = vmatmul.mubr.bf16.gmra.mrb[0].mxu0 %v742
      %v857 = vpop.f32.mrb[0].mxu0
      %v858 = vadd.f32 %v642, %v857
      %v859 = vpop.f32.mrb[0].mxu0
      %v860 = vpop.f32.mrb[0].mxu0
      %v861 = vadd.f32 %v645, %v860
      %v862 = vpop.f32.mrb[0].mxu0
      %863 = vmatprep.mubr.bf16.mxu0 0
      %864 = vmatmul.mubr.bf16.gmra.mrb[0].mxu0 %v744
      %v865 = vpop.f32.mrb[0].mxu0
      %v866 = vadd.f32 %v650, %v865
      %v867 = vpop.f32.mrb[0].mxu0
      %v868 = vpop.f32.mrb[0].mxu0
      %v869 = vadd.f32 %v653, %v868
      %v870 = vpop.f32.mrb[0].mxu0
      %871 = vmatprep.mubr.bf16.mxu0 0
      %872 = vmatmul.mubr.bf16.gmra.mrb[0].mxu0 %v746
      %v873 = vpop.f32.mrb[0].mxu0
      %v874 = vadd.f32 %v658, %v873
      %v875 = vpop.f32.mrb[0].mxu0
      %v876 = vpop.f32.mrb[0].mxu0
      %v877 = vadd.f32 %v661, %v876
      %v878 = vpop.f32.mrb[0].mxu0
      %879 = vmatprep.mubr.bf16.mxu0 0
      %880 = vmatmul.mubr.bf16.gmra.mrb[0].mxu0 %v748
      %v881 = vpop.f32.mrb[0].mxu0
      %v882 = vadd.f32 %v666, %v881
      %v883 = vpop.f32.mrb[0].mxu0
      %v884 = vpop.f32.mrb[0].mxu0
      %v885 = vadd.f32 %v669, %v884
      %v886 = vpop.f32.mrb[0].mxu0
      %887 = vmatprep.mubr.bf16.mxu0 0
      %888 = vmatmul.mubr.bf16.gmra.mrb[0].mxu0 %v750
      %v889 = vpop.f32.mrb[0].mxu0
      %v890 = vadd.f32 %v674, %v889
      %v891 = vpop.f32.mrb[0].mxu0
      %v892 = vpop.f32.mrb[0].mxu0
      %v893 = vadd.f32 %v677, %v892
      %v894 = vpop.f32.mrb[0].mxu0
      %895 = vmatprep.mubr.bf16.mxu0 0
      %896 = vmatmul.mubr.bf16.gmra.mrb[0].mxu0 %v752
      %v897 = vpop.f32.mrb[0].mxu0
      %v898 = vadd.f32 %v682, %v897
      %v899 = vpop.f32.mrb[0].mxu0
      %v900 = vpop.f32.mrb[0].mxu0
      %v901 = vadd.f32 %v685, %v900
      %v902 = vpop.f32.mrb[0].mxu0
      %903 = vmatprep.mubr.bf16.mxu0 0
      %904 = vmatmul.mubr.bf16.gmra.mrb[0].mxu0 %v754
      %v905 = vpop.f32.mrb[0].mxu0
      %v906 = vadd.f32 %v690, %v905
      %v907 = vpop.f32.mrb[0].mxu0
      %v908 = vpop.f32.mrb[0].mxu0
      %v909 = vadd.f32 %v693, %v908
      %v910 = vpop.f32.mrb[0].mxu0
      %911 = vmatprep.mubr.bf16.mxu0 0
      %912 = vmatmul.mubr.bf16.gmra.mrb[0].mxu0 %v756
      %v913 = vpop.f32.mrb[0].mxu0
      %v914 = vadd.f32 %v698, %v913
      %v915 = vpop.f32.mrb[0].mxu0
      %v916 = vpop.f32.mrb[0].mxu0
      %v917 = vadd.f32 %v701, %v916
      %v918 = vpop.f32.mrb[0].mxu0
      %919 = vmatprep.mubr.bf16.mxu0 0
      %920 = vmatmul.mubr.bf16.gmra.mrb[0].mxu0 %v758
      %v921 = vpop.f32.mrb[0].mxu0
      %v922 = vadd.f32 %v706, %v921
      %v923 = vpop.f32.mrb[0].mxu0
      %v924 = vpop.f32.mrb[0].mxu0
      %v925 = vadd.f32 %v709, %v924
      %v926 = vpop.f32.mrb[0].mxu0
      %927 = vmatprep.mubr.bf16.mxu0 0
      %928 = vmatmul.mubr.bf16.gmra.mrb[0].mxu0 %v760
      %v929 = vpop.f32.mrb[0].mxu0
      %v930 = vadd.f32 %v714, %v929
      %v931 = vpop.f32.mrb[0].mxu0
      %v932 = vpop.f32.mrb[0].mxu0
      %v933 = vadd.f32 %v717, %v932
      %v934 = vpop.f32.mrb[0].mxu0
      %935 = vmatprep.mubr.bf16.mxu0 0
      %936 = vmatmul.mubr.bf16.gmra.mrb[0].mxu0 %v762
      %v937 = vpop.f32.mrb[0].mxu0
      %v938 = vadd.f32 %v722, %v937
      %v939 = vpop.f32.mrb[0].mxu0
      %v940 = vpop.f32.mrb[0].mxu0
      %v941 = vadd.f32 %v725, %v940
      %v942 = vpop.f32.mrb[0].mxu0
      %943 = vdwg.mxu0
      %v944 = vld [vmem:[%s199] sm:$0xe]
      %s945 = scalar_lea.vmem %s1, 4
      %v946 = vld [vmem:[%s945] sm:$0x3]
      %v948 = vunpack.c.l.b16 %v944
      %v949 = vpack.c.b16 %v288, %v948
      %vm950 = vcmask 1046528
      %v951 = vrot.slane %v949, 1
      %v952 = vrot.slane %v325, 1
      %v953 = vsel %vm950, %v951, %v952
      %v954 = vrot.slane %v326, 1
      %v955 = vsel %vm950, %v952, %v954
      %v956 = vrot.slane %v327, 1
      %v957 = vsel %vm950, %v954, %v956
      %v958 = vrot.slane %v328, 1
      %v959 = vsel %vm950, %v956, %v958
      %v960 = vrot.slane %v329, 1
      %v961 = vsel %vm950, %v958, %v960
      %v962 = vrot.slane %v330, 1
      %v963 = vsel %vm950, %v960, %v962
      %v964 = vrot.slane %v331, 1
      %v965 = vsel %vm950, %v962, %v964
      %v966 = vrot.slane %v332, 1
      %v967 = vsel %vm950, %v964, %v966
      %v968 = vrot.slane %v333, 1
      %v969 = vsel %vm950, %v966, %v968
      %v970 = vrot.slane %v334, 1
      %v971 = vsel %vm950, %v968, %v970
      %v972 = vrot.slane %v335, 1
      %v973 = vsel %vm950, %v970, %v972
      %v974 = vrot.slane %v336, 1
      %v975 = vsel %vm950, %v972, %v974
      %v976 = vrot.slane %v337, 1
      %v977 = vsel %vm950, %v974, %v976
      %v978 = vrot.slane %v338, 1
      %v979 = vsel %vm950, %v976, %v978
      %v980 = vrot.slane %v339, 1
      %v981 = vsel %vm950, %v978, %v980
      %v982 = vrot.slane %v340, 1
      %v983 = vsel %vm950, %v980, %v982
      %v984 = vrot.slane %v341, 1
      %v985 = vsel %vm950, %v982, %v984
      %v986 = vrot.slane %v342, 1
      %v987 = vsel %vm950, %v984, %v986
      %v989 = vsel %vm492, %v953, 0
      %v992 = vsel %vm492, %v955, 0
      %v995 = vsel %vm492, %v957, 0
      %v998 = vsel %vm492, %v959, 0
      %v1001 = vsel %vm492, %v961, 0
      %v1004 = vsel %vm492, %v963, 0
      %v1007 = vsel %vm492, %v965, 0
      %v1010 = vsel %vm492, %v967, 0
      %v1013 = vsel %vm492, %v969, 0
      %v1016 = vsel %vm492, %v971, 0
      %v1019 = vsel %vm492, %v973, 0
      %v1022 = vsel %vm492, %v975, 0
      %v1025 = vsel %vm492, %v977, 0
      %v1028 = vsel %vm492, %v979, 0
      %v1031 = vsel %vm492, %v981, 0
      %v1034 = vsel %vm492, %v983, 0
      %v1037 = vsel %vm492, %v985, 0
      %v1040 = vsel %vm492, %v987, 0
      %v1043 = vsel %vm547, %v946, 0
      %1045 = vmatprep.subr.bf16.mxu0 0
      %1046 = vmatpush1.bf16.msra.mxu0 %v1043
      %1047 = vmatprep.subr.bf16.mxu0 0
      %1048 = vmatpush1.bf16.msra.mxu0 0
      %1049 = vmatprep.subr.bf16.mxu0 0
      %1050 = vmatpush1.bf16.msra.mxu0 0
      %1051 = vmatprep.subr.bf16.mxu0 0
      %1052 = vmatpush1.bf16.msra.mxu0 0
      %1053 = vmatprep.subr.bf16.mxu0 0
      %1054 = vmatpush1.bf16.msra.mxu0 0
      %1055 = vmatprep.subr.bf16.mxu0 0
      %1056 = vmatpush1.bf16.msra.mxu0 0
      %1057 = vmatprep.subr.bf16.mxu0 0
      %1058 = vmatpush1.bf16.msra.mxu0 0
      %1059 = vmatprep.subr.bf16.mxu0 0
      %1060 = vmatpush1.bf16.msra.mxu0 0
      %1061 = vmatprep.subr.bf16.mxu0 0
      %1062 = vmatpush1.bf16.msra.mxu0 0
      %1063 = vmatprep.subr.bf16.mxu0 0
      %1064 = vmatpush1.bf16.msra.mxu0 0
      %1065 = vmatprep.subr.bf16.mxu0 0
      %1066 = vmatpush1.bf16.msra.mxu0 0
      %1067 = vmatprep.subr.bf16.mxu0 0
      %1068 = vmatpush1.bf16.msra.mxu0 0
      %1069 = vmatprep.subr.bf16.mxu0 0
      %1070 = vmatpush1.bf16.msra.mxu0 0
      %1071 = vmatprep.subr.bf16.mxu0 0
      %1072 = vmatpush1.bf16.msra.mxu0 0
      %1073 = vmatprep.subr.bf16.mxu0 0
      %1074 = vmatpush1.bf16.msra.mxu0 0
      %1075 = vmatprep.subr.bf16.mxu0 0
      %1076 = vmatpush1.bf16.msra.mxu0 0
      %1077 = vmatprep.mubr.bf16.mxu0 0
      %1078 = vmatmul.mubr.bf16.gmra.mrb[0].mxu0 %v989
      %v1079 = vpop.f32.mrb[0].mxu0
      %v1080 = vadd.f32 0.0, %v1079
      %v1081 = vpop.f32.mrb[0].mxu0
      %v1082 = vpop.f32.mrb[0].mxu0
      %v1083 = vadd.f32 0.0, %v1082
      %v1084 = vpop.f32.mrb[0].mxu0
      %1085 = vmatprep.mubr.bf16.mxu0 0
      %1086 = vmatmul.mubr.bf16.gmra.mrb[0].mxu0 %v992
      %v1087 = vpop.f32.mrb[0].mxu0
      %v1088 = vadd.f32 0.0, %v1087
      %v1089 = vpop.f32.mrb[0].mxu0
      %v1090 = vpop.f32.mrb[0].mxu0
      %v1091 = vadd.f32 0.0, %v1090
      %v1092 = vpop.f32.mrb[0].mxu0
      %1093 = vmatprep.mubr.bf16.mxu0 0
      %1094 = vmatmul.mubr.bf16.gmra.mrb[0].mxu0 %v995
      %v1095 = vpop.f32.mrb[0].mxu0
      %v1096 = vadd.f32 0.0, %v1095
      %v1097 = vpop.f32.mrb[0].mxu0
      %v1098 = vpop.f32.mrb[0].mxu0
      %v1099 = vadd.f32 0.0, %v1098
      %v1100 = vpop.f32.mrb[0].mxu0
      %1101 = vmatprep.mubr.bf16.mxu0 0
      %1102 = vmatmul.mubr.bf16.gmra.mrb[0].mxu0 %v998
      %v1103 = vpop.f32.mrb[0].mxu0
      %v1104 = vadd.f32 0.0, %v1103
      %v1105 = vpop.f32.mrb[0].mxu0
      %v1106 = vpop.f32.mrb[0].mxu0
      %v1107 = vadd.f32 0.0, %v1106
      %v1108 = vpop.f32.mrb[0].mxu0
      %1109 = vmatprep.mubr.bf16.mxu0 0
      %1110 = vmatmul.mubr.bf16.gmra.mrb[0].mxu0 %v1001
      %v1111 = vpop.f32.mrb[0].mxu0
      %v1112 = vadd.f32 0.0, %v1111
      %v1113 = vpop.f32.mrb[0].mxu0
      %v1114 = vpop.f32.mrb[0].mxu0
      %v1115 = vadd.f32 0.0, %v1114
      %v1116 = vpop.f32.mrb[0].mxu0
      %1117 = vmatprep.mubr.bf16.mxu0 0
      %1118 = vmatmul.mubr.bf16.gmra.mrb[0].mxu0 %v1004
      %v1119 = vpop.f32.mrb[0].mxu0
      %v1120 = vadd.f32 0.0, %v1119
      %v1121 = vpop.f32.mrb[0].mxu0
      %v1122 = vpop.f32.mrb[0].mxu0
      %v1123 = vadd.f32 0.0, %v1122
      %v1124 = vpop.f32.mrb[0].mxu0
      %1125 = vmatprep.mubr.bf16.mxu0 0
      %1126 = vmatmul.mubr.bf16.gmra.mrb[0].mxu0 %v1007
      %v1127 = vpop.f32.mrb[0].mxu0
      %v1128 = vadd.f32 0.0, %v1127
      %v1129 = vpop.f32.mrb[0].mxu0
      %v1130 = vpop.f32.mrb[0].mxu0
      %v1131 = vadd.f32 0.0, %v1130
      %v1132 = vpop.f32.mrb[0].mxu0
      %1133 = vmatprep.mubr.bf16.mxu0 0
      %1134 = vmatmul.mubr.bf16.gmra.mrb[0].mxu0 %v1010
      %v1135 = vpop.f32.mrb[0].mxu0
      %v1136 = vadd.f32 0.0, %v1135
      %v1137 = vpop.f32.mrb[0].mxu0
      %v1138 = vpop.f32.mrb[0].mxu0
      %v1139 = vadd.f32 0.0, %v1138
      %v1140 = vpop.f32.mrb[0].mxu0
      %1141 = vmatprep.mubr.bf16.mxu0 0
      %1142 = vmatmul.mubr.bf16.gmra.mrb[0].mxu0 %v1013
      %v1143 = vpop.f32.mrb[0].mxu0
      %v1144 = vadd.f32 0.0, %v1143
      %v1145 = vpop.f32.mrb[0].mxu0
      %v1146 = vpop.f32.mrb[0].mxu0
      %v1147 = vadd.f32 0.0, %v1146
      %v1148 = vpop.f32.mrb[0].mxu0
      %1149 = vmatprep.mubr.bf16.mxu0 0
      %1150 = vmatmul.mubr.bf16.gmra.mrb[0].mxu0 %v1016
      %v1151 = vpop.f32.mrb[0].mxu0
      %v1152 = vadd.f32 0.0, %v1151
      %v1153 = vpop.f32.mrb[0].mxu0
      %v1154 = vpop.f32.mrb[0].mxu0
      %v1155 = vadd.f32 0.0, %v1154
      %v1156 = vpop.f32.mrb[0].mxu0
      %1157 = vmatprep.mubr.bf16.mxu0 0
      %1158 = vmatmul.mubr.bf16.gmra.mrb[0].mxu0 %v1019
      %v1159 = vpop.f32.mrb[0].mxu0
      %v1160 = vadd.f32 0.0, %v1159
      %v1161 = vpop.f32.mrb[0].mxu0
      %v1162 = vpop.f32.mrb[0].mxu0
      %v1163 = vadd.f32 0.0, %v1162
      %v1164 = vpop.f32.mrb[0].mxu0
      %1165 = vmatprep.mubr.bf16.mxu0 0
      %1166 = vmatmul.mubr.bf16.gmra.mrb[0].mxu0 %v1022
      %v1167 = vpop.f32.mrb[0].mxu0
      %v1168 = vadd.f32 0.0, %v1167
      %v1169 = vpop.f32.mrb[0].mxu0
      %v1170 = vpop.f32.mrb[0].mxu0
      %v1171 = vadd.f32 0.0, %v1170
      %v1172 = vpop.f32.mrb[0].mxu0
      %1173 = vmatprep.mubr.bf16.mxu0 0
      %1174 = vmatmul.mubr.bf16.gmra.mrb[0].mxu0 %v1025
      %v1175 = vpop.f32.mrb[0].mxu0
      %v1176 = vadd.f32 0.0, %v1175
      %v1177 = vpop.f32.mrb[0].mxu0
      %v1178 = vpop.f32.mrb[0].mxu0
      %v1179 = vadd.f32 0.0, %v1178
      %v1180 = vpop.f32.mrb[0].mxu0
      %1181 = vmatprep.mubr.bf16.mxu0 0
      %1182 = vmatmul.mubr.bf16.gmra.mrb[0].mxu0 %v1028
      %v1183 = vpop.f32.mrb[0].mxu0
      %v1184 = vadd.f32 0.0, %v1183
      %v1185 = vpop.f32.mrb[0].mxu0
      %v1186 = vpop.f32.mrb[0].mxu0
      %v1187 = vadd.f32 0.0, %v1186
      %v1188 = vpop.f32.mrb[0].mxu0
      %1189 = vmatprep.mubr.bf16.mxu0 0
      %1190 = vmatmul.mubr.bf16.gmra.mrb[0].mxu0 %v1031
      %v1191 = vpop.f32.mrb[0].mxu0
      %v1192 = vadd.f32 0.0, %v1191
      %v1193 = vpop.f32.mrb[0].mxu0
      %v1194 = vpop.f32.mrb[0].mxu0
      %v1195 = vadd.f32 0.0, %v1194
      %v1196 = vpop.f32.mrb[0].mxu0
      %1197 = vmatprep.mubr.bf16.mxu0 0
      %1198 = vmatmul.mubr.bf16.gmra.mrb[0].mxu0 %v1034
      %v1199 = vpop.f32.mrb[0].mxu0
      %v1200 = vadd.f32 0.0, %v1199
      %v1201 = vpop.f32.mrb[0].mxu0
      %v1202 = vpop.f32.mrb[0].mxu0
      %v1203 = vadd.f32 0.0, %v1202
      %v1204 = vpop.f32.mrb[0].mxu0
      %1205 = vmatprep.mubr.bf16.mxu0 0
      %1206 = vmatmul.mubr.bf16.gmra.mrb[0].mxu0 %v1037
      %v1207 = vpop.f32.mrb[0].mxu0
      %v1208 = vadd.f32 0.0, %v1207
      %v1209 = vpop.f32.mrb[0].mxu0
      %v1210 = vpop.f32.mrb[0].mxu0
      %v1211 = vadd.f32 0.0, %v1210
      %v1212 = vpop.f32.mrb[0].mxu0
      %1213 = vmatprep.mubr.bf16.mxu0 0
      %1214 = vmatmul.mubr.bf16.gmra.mrb[0].mxu0 %v1040
      %v1215 = vpop.f32.mrb[0].mxu0
      %v1216 = vadd.f32 0.0, %v1215
      %v1217 = vpop.f32.mrb[0].mxu0
      %v1218 = vpop.f32.mrb[0].mxu0
      %v1219 = vadd.f32 0.0, %v1218
      %v1220 = vpop.f32.mrb[0].mxu0
      %1221 = vdwg.mxu0
      %v1222 = vadd.f32 %v802, %v1080
      %v1223 = vadd.f32 %v805, %v1083
      %v1224 = vadd.f32 %v810, %v1088
      %v1225 = vadd.f32 %v813, %v1091
      %v1226 = vadd.f32 %v818, %v1096
      %v1227 = vadd.f32 %v821, %v1099
      %v1228 = vadd.f32 %v826, %v1104
      %v1229 = vadd.f32 %v829, %v1107
      %v1230 = vadd.f32 %v834, %v1112
      %v1231 = vadd.f32 %v837, %v1115
      %v1232 = vadd.f32 %v842, %v1120
      %v1233 = vadd.f32 %v845, %v1123
      %v1234 = vadd.f32 %v850, %v1128
      %v1235 = vadd.f32 %v853, %v1131
      %v1236 = vadd.f32 %v858, %v1136
      %v1237 = vadd.f32 %v861, %v1139
      %v1238 = vadd.f32 %v866, %v1144
      %v1239 = vadd.f32 %v869, %v1147
      %v1240 = vadd.f32 %v874, %v1152
      %v1241 = vadd.f32 %v877, %v1155
      %v1242 = vadd.f32 %v882, %v1160
      %v1243 = vadd.f32 %v885, %v1163
      %v1244 = vadd.f32 %v890, %v1168
      %v1245 = vadd.f32 %v893, %v1171
      %v1246 = vadd.f32 %v898, %v1176
      %v1247 = vadd.f32 %v901, %v1179
      %v1248 = vadd.f32 %v906, %v1184
      %v1249 = vadd.f32 %v909, %v1187
      %v1250 = vadd.f32 %v914, %v1192
      %v1251 = vadd.f32 %v917, %v1195
      %v1252 = vadd.f32 %v922, %v1200
      %v1253 = vadd.f32 %v925, %v1203
      %v1254 = vadd.f32 %v930, %v1208
      %v1255 = vadd.f32 %v933, %v1211
      %v1256 = vadd.f32 %v938, %v1216
      %v1257 = vadd.f32 %v941, %v1219
      %v1258 = vld [vmem:[%s199 + $0x8] sm:$0xe]
      %v1259 = vld [vmem:[%s199 + $0xc] sm:$0xf]
      %v1260 = vld [vmem:[%s199 + $0x10] sm:$0xf]
      %v1261 = vld [vmem:[%s199 + $0x14] sm:$0xf]
      %v1262 = vld [vmem:[%s199 + $0x18] sm:$0xf]
      %v1263 = vld [vmem:[%s199 + $0x1c] sm:$0xf]
      %v1264 = vld [vmem:[%s199 + $0x20] sm:$0xf]
      %v1265 = vld [vmem:[%s199 + $0x24] sm:$0xf]
      %v1266 = vld [vmem:[%s199 + $0x28] sm:$0xf]
      %v1267 = vld [vmem:[%s199 + $0x2c] sm:$0xf]
      %v1268 = vld [vmem:[%s199 + $0x30] sm:$0xf]
      %v1269 = vld [vmem:[%s199 + $0x34] sm:$0xf]
      %v1270 = vld [vmem:[%s199 + $0x38] sm:$0xf]
      %v1271 = vld [vmem:[%s199 + $0x3c] sm:$0xf]
      %v1272 = vld [vmem:[%s199 + $0x40] sm:$0xf]
      %v1273 = vld [vmem:[%s199 + $0x44] sm:$0xf]
      %v1274 = vld [vmem:[%s199 + $0x48] sm:$0xf]
      %v1275 = vld [vmem:[%s199 + $0x4c] sm:$0xf]
      %v1276 = vld [vmem:[%s199 + $0x50] sm:$0xf]
      %v1277 = vld [vmem:[%s199 + $0x54] sm:$0xf]
      %v1278 = vld [vmem:[%s199 + $0x58] sm:$0xf]
      %v1279 = vld [vmem:[%s199 + $0x5c] sm:$0xf]
      %v1280 = vld [vmem:[%s199 + $0x60] sm:$0xf]
      %v1281 = vld [vmem:[%s199 + $0x64] sm:$0xf]
      %v1282 = vld [vmem:[%s199 + $0x68] sm:$0xf]
      %v1283 = vld [vmem:[%s199 + $0x6c] sm:$0xf]
      %v1284 = vld [vmem:[%s199 + $0x70] sm:$0xf]
      %v1285 = vld [vmem:[%s199 + $0x74] sm:$0xf]
      %v1286 = vld [vmem:[%s199 + $0x78] sm:$0xf]
      %v1287 = vld [vmem:[%s199 + $0x7c] sm:$0xf]
      %v1288 = vld [vmem:[%s199 + $0x80] sm:$0xf]
      %v1289 = vld [vmem:[%s199 + $0x84] sm:$0xf]
      %v1290 = vld [vmem:[%s199 + $0x88] sm:$0xf]
      %v1291 = vld [vmem:[%s199 + $0x8c] sm:$0xf]
      %v1292 = vld [vmem:[%s199 + $0x90] sm:$0xf]
      %v1293 = vld [vmem:[%s199 + $0x94] sm:$0xf]
      %v1294 = vld [vmem:[%s199 + $0x98] sm:$0x1]
      %s1295 = scalar_lea.vmem %s1, 6
      %v1296 = vld [vmem:[%s1295] sm:$0x3]
      %v1334 = vunpack.c.l.b16 %v1258
      %v1335 = vunpack.c.l.b16 %v1259
      %v1336 = vunpack.c.l.b16 %v1260
      %v1337 = vunpack.c.l.b16 %v1261
      %v1338 = vunpack.c.l.b16 %v1262
      %v1339 = vunpack.c.l.b16 %v1263
      %v1340 = vunpack.c.l.b16 %v1264
      %v1341 = vunpack.c.l.b16 %v1265
      %v1342 = vunpack.c.l.b16 %v1266
      %v1343 = vunpack.c.l.b16 %v1267
      %v1344 = vunpack.c.l.b16 %v1268
      %v1345 = vunpack.c.l.b16 %v1269
      %v1346 = vunpack.c.l.b16 %v1270
      %v1347 = vunpack.c.l.b16 %v1271
      %v1348 = vunpack.c.l.b16 %v1272
      %v1349 = vunpack.c.l.b16 %v1273
      %v1350 = vunpack.c.l.b16 %v1274
      %v1351 = vunpack.c.l.b16 %v1275
      %v1352 = vunpack.c.l.b16 %v1276
      %v1353 = vunpack.c.l.b16 %v1277
      %v1354 = vunpack.c.l.b16 %v1278
      %v1355 = vunpack.c.l.b16 %v1279
      %v1356 = vunpack.c.l.b16 %v1280
      %v1357 = vunpack.c.l.b16 %v1281
      %v1358 = vunpack.c.l.b16 %v1282
      %v1359 = vunpack.c.l.b16 %v1283
      %v1360 = vunpack.c.l.b16 %v1284
      %v1361 = vunpack.c.l.b16 %v1285
      %v1362 = vunpack.c.l.b16 %v1286
      %v1363 = vunpack.c.l.b16 %v1287
      %v1364 = vunpack.c.l.b16 %v1288
      %v1365 = vunpack.c.l.b16 %v1289
      %v1366 = vunpack.c.l.b16 %v1290
      %v1367 = vunpack.c.l.b16 %v1291
      %v1368 = vunpack.c.l.b16 %v1292
      %v1369 = vunpack.c.l.b16 %v1293
      %v1370 = vunpack.c.l.b16 %v1294
      %v1371 = vpack.c.b16 %v1335, %v1334
      %v1372 = vpack.c.b16 %v1337, %v1336
      %v1373 = vpack.c.b16 %v1339, %v1338
      %v1374 = vpack.c.b16 %v1341, %v1340
      %v1375 = vpack.c.b16 %v1343, %v1342
      %v1376 = vpack.c.b16 %v1345, %v1344
      %v1377 = vpack.c.b16 %v1347, %v1346
      %v1378 = vpack.c.b16 %v1349, %v1348
      %v1379 = vpack.c.b16 %v1351, %v1350
      %v1380 = vpack.c.b16 %v1353, %v1352
      %v1381 = vpack.c.b16 %v1355, %v1354
      %v1382 = vpack.c.b16 %v1357, %v1356
      %v1383 = vpack.c.b16 %v1359, %v1358
      %v1384 = vpack.c.b16 %v1361, %v1360
      %v1385 = vpack.c.b16 %v1363, %v1362
      %v1386 = vpack.c.b16 %v1365, %v1364
      %v1387 = vpack.c.b16 %v1367, %v1366
      %v1388 = vpack.c.b16 %v1369, %v1368
      %v1389 = vpack.c.b16 %v1370, %v1370
      %v1390 = vrot.slane %v1371, 1
      %v1391 = vrot.slane %v1372, 1
      %v1392 = vsel %vm950, %v1390, %v1391
      %v1393 = vrot.slane %v1373, 1
      %v1394 = vsel %vm950, %v1391, %v1393
      %v1395 = vrot.slane %v1374, 1
      %v1396 = vsel %vm950, %v1393, %v1395
      %v1397 = vrot.slane %v1375, 1
      %v1398 = vsel %vm950, %v1395, %v1397
      %v1399 = vrot.slane %v1376, 1
      %v1400 = vsel %vm950, %v1397, %v1399
      %v1401 = vrot.slane %v1377, 1
      %v1402 = vsel %vm950, %v1399, %v1401
      %v1403 = vrot.slane %v1378, 1
      %v1404 = vsel %vm950, %v1401, %v1403
      %v1405 = vrot.slane %v1379, 1
      %v1406 = vsel %vm950, %v1403, %v1405
      %v1407 = vrot.slane %v1380, 1
      %v1408 = vsel %vm950, %v1405, %v1407
      %v1409 = vrot.slane %v1381, 1
      %v1410 = vsel %vm950, %v1407, %v1409
      %v1411 = vrot.slane %v1382, 1
      %v1412 = vsel %vm950, %v1409, %v1411
      %v1413 = vrot.slane %v1383, 1
      %v1414 = vsel %vm950, %v1411, %v1413
      %v1415 = vrot.slane %v1384, 1
      %v1416 = vsel %vm950, %v1413, %v1415
      %v1417 = vrot.slane %v1385, 1
      %v1418 = vsel %vm950, %v1415, %v1417
      %v1419 = vrot.slane %v1386, 1
      %v1420 = vsel %vm950, %v1417, %v1419
      %v1421 = vrot.slane %v1387, 1
      %v1422 = vsel %vm950, %v1419, %v1421
      %v1423 = vrot.slane %v1388, 1
      %v1424 = vsel %vm950, %v1421, %v1423
      %v1425 = vrot.slane %v1389, 1
      %v1426 = vsel %vm950, %v1423, %v1425
      %v1428 = vsel %vm492, %v1392, 0
      %v1431 = vsel %vm492, %v1394, 0
      %v1434 = vsel %vm492, %v1396, 0
      %v1437 = vsel %vm492, %v1398, 0
      %v1440 = vsel %vm492, %v1400, 0
      %v1443 = vsel %vm492, %v1402, 0
      %v1446 = vsel %vm492, %v1404, 0
      %v1449 = vsel %vm492, %v1406, 0
      %v1452 = vsel %vm492, %v1408, 0
      %v1455 = vsel %vm492, %v1410, 0
      %v1458 = vsel %vm492, %v1412, 0
      %v1461 = vsel %vm492, %v1414, 0
      %v1464 = vsel %vm492, %v1416, 0
      %v1467 = vsel %vm492, %v1418, 0
      %v1470 = vsel %vm492, %v1420, 0
      %v1473 = vsel %vm492, %v1422, 0
      %v1476 = vsel %vm492, %v1424, 0
      %v1479 = vsel %vm492, %v1426, 0
      %v1482 = vsel %vm547, %v1296, 0
      %1484 = vmatprep.subr.bf16.mxu0 0
      %1485 = vmatpush1.bf16.msra.mxu0 %v1482
      %1486 = vmatprep.subr.bf16.mxu0 0
      %1487 = vmatpush1.bf16.msra.mxu0 0
      %1488 = vmatprep.subr.bf16.mxu0 0
      %1489 = vmatpush1.bf16.msra.mxu0 0
      %1490 = vmatprep.subr.bf16.mxu0 0
      %1491 = vmatpush1.bf16.msra.mxu0 0
      %1492 = vmatprep.subr.bf16.mxu0 0
      %1493 = vmatpush1.bf16.msra.mxu0 0
      %1494 = vmatprep.subr.bf16.mxu0 0
      %1495 = vmatpush1.bf16.msra.mxu0 0
      %1496 = vmatprep.subr.bf16.mxu0 0
      %1497 = vmatpush1.bf16.msra.mxu0 0
      %1498 = vmatprep.subr.bf16.mxu0 0
      %1499 = vmatpush1.bf16.msra.mxu0 0
      %1500 = vmatprep.subr.bf16.mxu0 0
      %1501 = vmatpush1.bf16.msra.mxu0 0
      %1502 = vmatprep.subr.bf16.mxu0 0
      %1503 = vmatpush1.bf16.msra.mxu0 0
      %1504 = vmatprep.subr.bf16.mxu0 0
      %1505 = vmatpush1.bf16.msra.mxu0 0
      %1506 = vmatprep.subr.bf16.mxu0 0
      %1507 = vmatpush1.bf16.msra.mxu0 0
      %1508 = vmatprep.subr.bf16.mxu0 0
      %1509 = vmatpush1.bf16.msra.mxu0 0
      %1510 = vmatprep.subr.bf16.mxu0 0
      %1511 = vmatpush1.bf16.msra.mxu0 0
      %1512 = vmatprep.subr.bf16.mxu0 0
      %1513 = vmatpush1.bf16.msra.mxu0 0
      %1514 = vmatprep.subr.bf16.mxu0 0
      %1515 = vmatpush1.bf16.msra.mxu0 0
      %1516 = vmatprep.mubr.bf16.mxu0 0
      %1517 = vmatmul.mubr.bf16.gmra.mrb[0].mxu0 %v1428
      %v1518 = vpop.f32.mrb[0].mxu0
      %v1519 = vadd.f32 0.0, %v1518
      %v1520 = vpop.f32.mrb[0].mxu0
      %v1521 = vpop.f32.mrb[0].mxu0
      %v1522 = vadd.f32 0.0, %v1521
      %v1523 = vpop.f32.mrb[0].mxu0
      %1524 = vmatprep.mubr.bf16.mxu0 0
      %1525 = vmatmul.mubr.bf16.gmra.mrb[0].mxu0 %v1431
      %v1526 = vpop.f32.mrb[0].mxu0
      %v1527 = vadd.f32 0.0, %v1526
      %v1528 = vpop.f32.mrb[0].mxu0
      %v1529 = vpop.f32.mrb[0].mxu0
      %v1530 = vadd.f32 0.0, %v1529
      %v1531 = vpop.f32.mrb[0].mxu0
      %1532 = vmatprep.mubr.bf16.mxu0 0
      %1533 = vmatmul.mubr.bf16.gmra.mrb[0].mxu0 %v1434
      %v1534 = vpop.f32.mrb[0].mxu0
      %v1535 = vadd.f32 0.0, %v1534
      %v1536 = vpop.f32.mrb[0].mxu0
      %v1537 = vpop.f32.mrb[0].mxu0
      %v1538 = vadd.f32 0.0, %v1537
      %v1539 = vpop.f32.mrb[0].mxu0
      %1540 = vmatprep.mubr.bf16.mxu0 0
      %1541 = vmatmul.mubr.bf16.gmra.mrb[0].mxu0 %v1437
      %v1542 = vpop.f32.mrb[0].mxu0
      %v1543 = vadd.f32 0.0, %v1542
      %v1544 = vpop.f32.mrb[0].mxu0
      %v1545 = vpop.f32.mrb[0].mxu0
      %v1546 = vadd.f32 0.0, %v1545
      %v1547 = vpop.f32.mrb[0].mxu0
      %1548 = vmatprep.mubr.bf16.mxu0 0
      %1549 = vmatmul.mubr.bf16.gmra.mrb[0].mxu0 %v1440
      %v1550 = vpop.f32.mrb[0].mxu0
      %v1551 = vadd.f32 0.0, %v1550
      %v1552 = vpop.f32.mrb[0].mxu0
      %v1553 = vpop.f32.mrb[0].mxu0
      %v1554 = vadd.f32 0.0, %v1553
      %v1555 = vpop.f32.mrb[0].mxu0
      %1556 = vmatprep.mubr.bf16.mxu0 0
      %1557 = vmatmul.mubr.bf16.gmra.mrb[0].mxu0 %v1443
      %v1558 = vpop.f32.mrb[0].mxu0
      %v1559 = vadd.f32 0.0, %v1558
      %v1560 = vpop.f32.mrb[0].mxu0
      %v1561 = vpop.f32.mrb[0].mxu0
      %v1562 = vadd.f32 0.0, %v1561
      %v1563 = vpop.f32.mrb[0].mxu0
      %1564 = vmatprep.mubr.bf16.mxu0 0
      %1565 = vmatmul.mubr.bf16.gmra.mrb[0].mxu0 %v1446
      %v1566 = vpop.f32.mrb[0].mxu0
      %v1567 = vadd.f32 0.0, %v1566
      %v1568 = vpop.f32.mrb[0].mxu0
      %v1569 = vpop.f32.mrb[0].mxu0
      %v1570 = vadd.f32 0.0, %v1569
      %v1571 = vpop.f32.mrb[0].mxu0
      %1572 = vmatprep.mubr.bf16.mxu0 0
      %1573 = vmatmul.mubr.bf16.gmra.mrb[0].mxu0 %v1449
      %v1574 = vpop.f32.mrb[0].mxu0
      %v1575 = vadd.f32 0.0, %v1574
      %v1576 = vpop.f32.mrb[0].mxu0
      %v1577 = vpop.f32.mrb[0].mxu0
      %v1578 = vadd.f32 0.0, %v1577
      %v1579 = vpop.f32.mrb[0].mxu0
      %1580 = vmatprep.mubr.bf16.mxu0 0
      %1581 = vmatmul.mubr.bf16.gmra.mrb[0].mxu0 %v1452
      %v1582 = vpop.f32.mrb[0].mxu0
      %v1583 = vadd.f32 0.0, %v1582
      %v1584 = vpop.f32.mrb[0].mxu0
      %v1585 = vpop.f32.mrb[0].mxu0
      %v1586 = vadd.f32 0.0, %v1585
      %v1587 = vpop.f32.mrb[0].mxu0
      %1588 = vmatprep.mubr.bf16.mxu0 0
      %1589 = vmatmul.mubr.bf16.gmra.mrb[0].mxu0 %v1455
      %v1590 = vpop.f32.mrb[0].mxu0
      %v1591 = vadd.f32 0.0, %v1590
      %v1592 = vpop.f32.mrb[0].mxu0
      %v1593 = vpop.f32.mrb[0].mxu0
      %v1594 = vadd.f32 0.0, %v1593
      %v1595 = vpop.f32.mrb[0].mxu0
      %1596 = vmatprep.mubr.bf16.mxu0 0
      %1597 = vmatmul.mubr.bf16.gmra.mrb[0].mxu0 %v1458
      %v1598 = vpop.f32.mrb[0].mxu0
      %v1599 = vadd.f32 0.0, %v1598
      %v1600 = vpop.f32.mrb[0].mxu0
      %v1601 = vpop.f32.mrb[0].mxu0
      %v1602 = vadd.f32 0.0, %v1601
      %v1603 = vpop.f32.mrb[0].mxu0
      %1604 = vmatprep.mubr.bf16.mxu0 0
      %1605 = vmatmul.mubr.bf16.gmra.mrb[0].mxu0 %v1461
      %v1606 = vpop.f32.mrb[0].mxu0
      %v1607 = vadd.f32 0.0, %v1606
      %v1608 = vpop.f32.mrb[0].mxu0
      %v1609 = vpop.f32.mrb[0].mxu0
      %v1610 = vadd.f32 0.0, %v1609
      %v1611 = vpop.f32.mrb[0].mxu0
      %1612 = vmatprep.mubr.bf16.mxu0 0
      %1613 = vmatmul.mubr.bf16.gmra.mrb[0].mxu0 %v1464
      %v1614 = vpop.f32.mrb[0].mxu0
      %v1615 = vadd.f32 0.0, %v1614
      %v1616 = vpop.f32.mrb[0].mxu0
      %v1617 = vpop.f32.mrb[0].mxu0
      %v1618 = vadd.f32 0.0, %v1617
      %v1619 = vpop.f32.mrb[0].mxu0
      %1620 = vmatprep.mubr.bf16.mxu0 0
      %1621 = vmatmul.mubr.bf16.gmra.mrb[0].mxu0 %v1467
      %v1622 = vpop.f32.mrb[0].mxu0
      %v1623 = vadd.f32 0.0, %v1622
      %v1624 = vpop.f32.mrb[0].mxu0
      %v1625 = vpop.f32.mrb[0].mxu0
      %v1626 = vadd.f32 0.0, %v1625
      %v1627 = vpop.f32.mrb[0].mxu0
      %1628 = vmatprep.mubr.bf16.mxu0 0
      %1629 = vmatmul.mubr.bf16.gmra.mrb[0].mxu0 %v1470
      %v1630 = vpop.f32.mrb[0].mxu0
      %v1631 = vadd.f32 0.0, %v1630
      %v1632 = vpop.f32.mrb[0].mxu0
      %v1633 = vpop.f32.mrb[0].mxu0
      %v1634 = vadd.f32 0.0, %v1633
      %v1635 = vpop.f32.mrb[0].mxu0
      %1636 = vmatprep.mubr.bf16.mxu0 0
      %1637 = vmatmul.mubr.bf16.gmra.mrb[0].mxu0 %v1473
      %v1638 = vpop.f32.mrb[0].mxu0
      %v1639 = vadd.f32 0.0, %v1638
      %v1640 = vpop.f32.mrb[0].mxu0
      %v1641 = vpop.f32.mrb[0].mxu0
      %v1642 = vadd.f32 0.0, %v1641
      %v1643 = vpop.f32.mrb[0].mxu0
      %1644 = vmatprep.mubr.bf16.mxu0 0
      %1645 = vmatmul.mubr.bf16.gmra.mrb[0].mxu0 %v1476
      %v1646 = vpop.f32.mrb[0].mxu0
      %v1647 = vadd.f32 0.0, %v1646
      %v1648 = vpop.f32.mrb[0].mxu0
      %v1649 = vpop.f32.mrb[0].mxu0
      %v1650 = vadd.f32 0.0, %v1649
      %v1651 = vpop.f32.mrb[0].mxu0
      %1652 = vmatprep.mubr.bf16.mxu0 0
      %1653 = vmatmul.mubr.bf16.gmra.mrb[0].mxu0 %v1479
      %v1654 = vpop.f32.mrb[0].mxu0
      %v1655 = vadd.f32 0.0, %v1654
      %v1656 = vpop.f32.mrb[0].mxu0
      %v1657 = vpop.f32.mrb[0].mxu0
      %v1658 = vadd.f32 0.0, %v1657
      %v1659 = vpop.f32.mrb[0].mxu0
      %1660 = vdwg.mxu0
      %v1661 = vadd.f32 %v1222, %v1519
      %v1662 = vadd.f32 %v1223, %v1522
      %v1663 = vadd.f32 %v1224, %v1527
      %v1664 = vadd.f32 %v1225, %v1530
      %v1665 = vadd.f32 %v1226, %v1535
      %v1666 = vadd.f32 %v1227, %v1538
      %v1667 = vadd.f32 %v1228, %v1543
      %v1668 = vadd.f32 %v1229, %v1546
      %v1669 = vadd.f32 %v1230, %v1551
      %v1670 = vadd.f32 %v1231, %v1554
      %v1671 = vadd.f32 %v1232, %v1559
      %v1672 = vadd.f32 %v1233, %v1562
      %v1673 = vadd.f32 %v1234, %v1567
      %v1674 = vadd.f32 %v1235, %v1570
      %v1675 = vadd.f32 %v1236, %v1575
      %v1676 = vadd.f32 %v1237, %v1578
      %v1677 = vadd.f32 %v1238, %v1583
      %v1678 = vadd.f32 %v1239, %v1586
      %v1679 = vadd.f32 %v1240, %v1591
      %v1680 = vadd.f32 %v1241, %v1594
      %v1681 = vadd.f32 %v1242, %v1599
      %v1682 = vadd.f32 %v1243, %v1602
      %v1683 = vadd.f32 %v1244, %v1607
      %v1684 = vadd.f32 %v1245, %v1610
      %v1685 = vadd.f32 %v1246, %v1615
      %v1686 = vadd.f32 %v1247, %v1618
      %v1687 = vadd.f32 %v1248, %v1623
      %v1688 = vadd.f32 %v1249, %v1626
      %v1689 = vadd.f32 %v1250, %v1631
      %v1690 = vadd.f32 %v1251, %v1634
      %v1691 = vadd.f32 %v1252, %v1639
      %v1692 = vadd.f32 %v1253, %v1642
      %v1693 = vadd.f32 %v1254, %v1647
      %v1694 = vadd.f32 %v1255, %v1650
      %v1695 = vadd.f32 %v1256, %v1655
      %v1696 = vadd.f32 %v1257, %v1658
      %v1697 = vld [vmem:[%s199 + $0x98] sm:$0x3]
      %s1698 = scalar_lea.vmem %s1, 8
      %v1699 = vld [vmem:[%s1698] sm:$0x3]
      %v1701 = vunpack.c.l.b16 %v1697
      %v1702 = vpack.c.b16 %v1701, %v1701
      %vm1703 = vsmask.f32 6400
      %v1705 = vshrl.u32 %v1371, 16
      %v1707 = vrot.slane %v1705, 1
      %v1708 = vshll.u32 %v1371, 16
      %v1710 = vrot.slane %v1708, 2
      %v1711 = vor.u32 %v1707, %v1710
      %v1713 = vshrl.u32 %v1372, 16
      %v1715 = vrot.slane %v1713, 1
      %v1716 = vshll.u32 %v1372, 16
      %v1718 = vrot.slane %v1716, 2
      %v1719 = vor.u32 %v1715, %v1718
      %v1720 = vsel %vm1703, %v1711, %v1719
      %v1722 = vshrl.u32 %v1373, 16
      %v1724 = vrot.slane %v1722, 1
      %v1725 = vshll.u32 %v1373, 16
      %v1727 = vrot.slane %v1725, 2
      %v1728 = vor.u32 %v1724, %v1727
      %v1729 = vsel %vm1703, %v1719, %v1728
      %v1731 = vshrl.u32 %v1374, 16
      %v1733 = vrot.slane %v1731, 1
      %v1734 = vshll.u32 %v1374, 16
      %v1736 = vrot.slane %v1734, 2
      %v1737 = vor.u32 %v1733, %v1736
      %v1738 = vsel %vm1703, %v1728, %v1737
      %v1740 = vshrl.u32 %v1375, 16
      %v1742 = vrot.slane %v1740, 1
      %v1743 = vshll.u32 %v1375, 16
      %v1745 = vrot.slane %v1743, 2
      %v1746 = vor.u32 %v1742, %v1745
      %v1747 = vsel %vm1703, %v1737, %v1746
      %v1749 = vshrl.u32 %v1376, 16
      %v1751 = vrot.slane %v1749, 1
      %v1752 = vshll.u32 %v1376, 16
      %v1754 = vrot.slane %v1752, 2
      %v1755 = vor.u32 %v1751, %v1754
      %v1756 = vsel %vm1703, %v1746, %v1755
      %v1758 = vshrl.u32 %v1377, 16
      %v1760 = vrot.slane %v1758, 1
      %v1761 = vshll.u32 %v1377, 16
      %v1763 = vrot.slane %v1761, 2
      %v1764 = vor.u32 %v1760, %v1763
      %v1765 = vsel %vm1703, %v1755, %v1764
      %v1767 = vshrl.u32 %v1378, 16
      %v1769 = vrot.slane %v1767, 1
      %v1770 = vshll.u32 %v1378, 16
      %v1772 = vrot.slane %v1770, 2
      %v1773 = vor.u32 %v1769, %v1772
      %v1774 = vsel %vm1703, %v1764, %v1773
      %v1776 = vshrl.u32 %v1379, 16
      %v1778 = vrot.slane %v1776, 1
      %v1779 = vshll.u32 %v1379, 16
      %v1781 = vrot.slane %v1779, 2
      %v1782 = vor.u32 %v1778, %v1781
      %v1783 = vsel %vm1703, %v1773, %v1782
      %v1785 = vshrl.u32 %v1380, 16
      %v1787 = vrot.slane %v1785, 1
      %v1788 = vshll.u32 %v1380, 16
      %v1790 = vrot.slane %v1788, 2
      %v1791 = vor.u32 %v1787, %v1790
      %v1792 = vsel %vm1703, %v1782, %v1791
      %v1794 = vshrl.u32 %v1381, 16
      %v1796 = vrot.slane %v1794, 1
      %v1797 = vshll.u32 %v1381, 16
      %v1799 = vrot.slane %v1797, 2
      %v1800 = vor.u32 %v1796, %v1799
      %v1801 = vsel %vm1703, %v1791, %v1800
      %v1803 = vshrl.u32 %v1382, 16
      %v1805 = vrot.slane %v1803, 1
      %v1806 = vshll.u32 %v1382, 16
      %v1808 = vrot.slane %v1806, 2
      %v1809 = vor.u32 %v1805, %v1808
      %v1810 = vsel %vm1703, %v1800, %v1809
      %v1812 = vshrl.u32 %v1383, 16
      %v1814 = vrot.slane %v1812, 1
      %v1815 = vshll.u32 %v1383, 16
      %v1817 = vrot.slane %v1815, 2
      %v1818 = vor.u32 %v1814, %v1817
      %v1819 = vsel %vm1703, %v1809, %v1818
      %v1821 = vshrl.u32 %v1384, 16
      %v1823 = vrot.slane %v1821, 1
      %v1824 = vshll.u32 %v1384, 16
      %v1826 = vrot.slane %v1824, 2
      %v1827 = vor.u32 %v1823, %v1826
      %v1828 = vsel %vm1703, %v1818, %v1827
      %v1830 = vshrl.u32 %v1385, 16
      %v1832 = vrot.slane %v1830, 1
      %v1833 = vshll.u32 %v1385, 16
      %v1835 = vrot.slane %v1833, 2
      %v1836 = vor.u32 %v1832, %v1835
      %v1837 = vsel %vm1703, %v1827, %v1836
      %v1839 = vshrl.u32 %v1386, 16
      %v1841 = vrot.slane %v1839, 1
      %v1842 = vshll.u32 %v1386, 16
      %v1844 = vrot.slane %v1842, 2
      %v1845 = vor.u32 %v1841, %v1844
      %v1846 = vsel %vm1703, %v1836, %v1845
      %v1848 = vshrl.u32 %v1387, 16
      %v1850 = vrot.slane %v1848, 1
      %v1851 = vshll.u32 %v1387, 16
      %v1853 = vrot.slane %v1851, 2
      %v1854 = vor.u32 %v1850, %v1853
      %v1855 = vsel %vm1703, %v1845, %v1854
      %v1857 = vshrl.u32 %v1388, 16
      %v1859 = vrot.slane %v1857, 1
      %v1860 = vshll.u32 %v1388, 16
      %v1862 = vrot.slane %v1860, 2
      %v1863 = vor.u32 %v1859, %v1862
      %v1864 = vsel %vm1703, %v1854, %v1863
      %v1866 = vshrl.u32 %v1702, 16
      %v1868 = vrot.slane %v1866, 1
      %v1869 = vshll.u32 %v1702, 16
      %v1871 = vrot.slane %v1869, 2
      %v1872 = vor.u32 %v1868, %v1871
      %v1873 = vsel %vm1703, %v1863, %v1872
      %v1875 = vsel %vm492, %v1720, 0
      %v1878 = vsel %vm492, %v1729, 0
      %v1881 = vsel %vm492, %v1738, 0
      %v1884 = vsel %vm492, %v1747, 0
      %v1887 = vsel %vm492, %v1756, 0
      %v1890 = vsel %vm492, %v1765, 0
      %v1893 = vsel %vm492, %v1774, 0
      %v1896 = vsel %vm492, %v1783, 0
      %v1899 = vsel %vm492, %v1792, 0
      %v1902 = vsel %vm492, %v1801, 0
      %v1905 = vsel %vm492, %v1810, 0
      %v1908 = vsel %vm492, %v1819, 0
      %v1911 = vsel %vm492, %v1828, 0
      %v1914 = vsel %vm492, %v1837, 0
      %v1917 = vsel %vm492, %v1846, 0
      %v1920 = vsel %vm492, %v1855, 0
      %v1923 = vsel %vm492, %v1864, 0
      %v1926 = vsel %vm492, %v1873, 0
      %v1929 = vsel %vm547, %v1699, 0
      %1931 = vmatprep.subr.bf16.mxu0 0
      %1932 = vmatpush1.bf16.msra.mxu0 %v1929
      %1933 = vmatprep.subr.bf16.mxu0 0
      %1934 = vmatpush1.bf16.msra.mxu0 0
      %1935 = vmatprep.subr.bf16.mxu0 0
      %1936 = vmatpush1.bf16.msra.mxu0 0
      %1937 = vmatprep.subr.bf16.mxu0 0
      %1938 = vmatpush1.bf16.msra.mxu0 0
      %1939 = vmatprep.subr.bf16.mxu0 0
      %1940 = vmatpush1.bf16.msra.mxu0 0
      %1941 = vmatprep.subr.bf16.mxu0 0
      %1942 = vmatpush1.bf16.msra.mxu0 0
      %1943 = vmatprep.subr.bf16.mxu0 0
      %1944 = vmatpush1.bf16.msra.mxu0 0
      %1945 = vmatprep.subr.bf16.mxu0 0
      %1946 = vmatpush1.bf16.msra.mxu0 0
      %1947 = vmatprep.subr.bf16.mxu0 0
      %1948 = vmatpush1.bf16.msra.mxu0 0
      %1949 = vmatprep.subr.bf16.mxu0 0
      %1950 = vmatpush1.bf16.msra.mxu0 0
      %1951 = vmatprep.subr.bf16.mxu0 0
      %1952 = vmatpush1.bf16.msra.mxu0 0
      %1953 = vmatprep.subr.bf16.mxu0 0
      %1954 = vmatpush1.bf16.msra.mxu0 0
      %1955 = vmatprep.subr.bf16.mxu0 0
      %1956 = vmatpush1.bf16.msra.mxu0 0
      %1957 = vmatprep.subr.bf16.mxu0 0
      %1958 = vmatpush1.bf16.msra.mxu0 0
      %1959 = vmatprep.subr.bf16.mxu0 0
      %1960 = vmatpush1.bf16.msra.mxu0 0
      %1961 = vmatprep.subr.bf16.mxu0 0
      %1962 = vmatpush1.bf16.msra.mxu0 0
      %1963 = vmatprep.mubr.bf16.mxu0 0
      %1964 = vmatmul.mubr.bf16.gmra.mrb[0].mxu0 %v1875
      %v1965 = vpop.f32.mrb[0].mxu0
      %v1966 = vadd.f32 0.0, %v1965
      %v1967 = vpop.f32.mrb[0].mxu0
      %v1968 = vpop.f32.mrb[0].mxu0
      %v1969 = vadd.f32 0.0, %v1968
      %v1970 = vpop.f32.mrb[0].mxu0
      %1971 = vmatprep.mubr.bf16.mxu0 0
      %1972 = vmatmul.mubr.bf16.gmra.mrb[0].mxu0 %v1878
      %v1973 = vpop.f32.mrb[0].mxu0
      %v1974 = vadd.f32 0.0, %v1973
      %v1975 = vpop.f32.mrb[0].mxu0
      %v1976 = vpop.f32.mrb[0].mxu0
      %v1977 = vadd.f32 0.0, %v1976
      %v1978 = vpop.f32.mrb[0].mxu0
      %1979 = vmatprep.mubr.bf16.mxu0 0
      %1980 = vmatmul.mubr.bf16.gmra.mrb[0].mxu0 %v1881
      %v1981 = vpop.f32.mrb[0].mxu0
      %v1982 = vadd.f32 0.0, %v1981
      %v1983 = vpop.f32.mrb[0].mxu0
      %v1984 = vpop.f32.mrb[0].mxu0
      %v1985 = vadd.f32 0.0, %v1984
      %v1986 = vpop.f32.mrb[0].mxu0
      %1987 = vmatprep.mubr.bf16.mxu0 0
      %1988 = vmatmul.mubr.bf16.gmra.mrb[0].mxu0 %v1884
      %v1989 = vpop.f32.mrb[0].mxu0
      %v1990 = vadd.f32 0.0, %v1989
      %v1991 = vpop.f32.mrb[0].mxu0
      %v1992 = vpop.f32.mrb[0].mxu0
      %v1993 = vadd.f32 0.0, %v1992
      %v1994 = vpop.f32.mrb[0].mxu0
      %1995 = vmatprep.mubr.bf16.mxu0 0
      %1996 = vmatmul.mubr.bf16.gmra.mrb[0].mxu0 %v1887
      %v1997 = vpop.f32.mrb[0].mxu0
      %v1998 = vadd.f32 0.0, %v1997
      %v1999 = vpop.f32.mrb[0].mxu0
      %v2000 = vpop.f32.mrb[0].mxu0
      %v2001 = vadd.f32 0.0, %v2000
      %v2002 = vpop.f32.mrb[0].mxu0
      %2003 = vmatprep.mubr.bf16.mxu0 0
      %2004 = vmatmul.mubr.bf16.gmra.mrb[0].mxu0 %v1890
      %v2005 = vpop.f32.mrb[0].mxu0
      %v2006 = vadd.f32 0.0, %v2005
      %v2007 = vpop.f32.mrb[0].mxu0
      %v2008 = vpop.f32.mrb[0].mxu0
      %v2009 = vadd.f32 0.0, %v2008
      %v2010 = vpop.f32.mrb[0].mxu0
      %2011 = vmatprep.mubr.bf16.mxu0 0
      %2012 = vmatmul.mubr.bf16.gmra.mrb[0].mxu0 %v1893
      %v2013 = vpop.f32.mrb[0].mxu0
      %v2014 = vadd.f32 0.0, %v2013
      %v2015 = vpop.f32.mrb[0].mxu0
      %v2016 = vpop.f32.mrb[0].mxu0
      %v2017 = vadd.f32 0.0, %v2016
      %v2018 = vpop.f32.mrb[0].mxu0
      %2019 = vmatprep.mubr.bf16.mxu0 0
      %2020 = vmatmul.mubr.bf16.gmra.mrb[0].mxu0 %v1896
      %v2021 = vpop.f32.mrb[0].mxu0
      %v2022 = vadd.f32 0.0, %v2021
      %v2023 = vpop.f32.mrb[0].mxu0
      %v2024 = vpop.f32.mrb[0].mxu0
      %v2025 = vadd.f32 0.0, %v2024
      %v2026 = vpop.f32.mrb[0].mxu0
      %2027 = vmatprep.mubr.bf16.mxu0 0
      %2028 = vmatmul.mubr.bf16.gmra.mrb[0].mxu0 %v1899
      %v2029 = vpop.f32.mrb[0].mxu0
      %v2030 = vadd.f32 0.0, %v2029
      %v2031 = vpop.f32.mrb[0].mxu0
      %v2032 = vpop.f32.mrb[0].mxu0
      %v2033 = vadd.f32 0.0, %v2032
      %v2034 = vpop.f32.mrb[0].mxu0
      %2035 = vmatprep.mubr.bf16.mxu0 0
      %2036 = vmatmul.mubr.bf16.gmra.mrb[0].mxu0 %v1902
      %v2037 = vpop.f32.mrb[0].mxu0
      %v2038 = vadd.f32 0.0, %v2037
      %v2039 = vpop.f32.mrb[0].mxu0
      %v2040 = vpop.f32.mrb[0].mxu0
      %v2041 = vadd.f32 0.0, %v2040
      %v2042 = vpop.f32.mrb[0].mxu0
      %2043 = vmatprep.mubr.bf16.mxu0 0
      %2044 = vmatmul.mubr.bf16.gmra.mrb[0].mxu0 %v1905
      %v2045 = vpop.f32.mrb[0].mxu0
      %v2046 = vadd.f32 0.0, %v2045
      %v2047 = vpop.f32.mrb[0].mxu0
      %v2048 = vpop.f32.mrb[0].mxu0
      %v2049 = vadd.f32 0.0, %v2048
      %v2050 = vpop.f32.mrb[0].mxu0
      %2051 = vmatprep.mubr.bf16.mxu0 0
      %2052 = vmatmul.mubr.bf16.gmra.mrb[0].mxu0 %v1908
      %v2053 = vpop.f32.mrb[0].mxu0
      %v2054 = vadd.f32 0.0, %v2053
      %v2055 = vpop.f32.mrb[0].mxu0
      %v2056 = vpop.f32.mrb[0].mxu0
      %v2057 = vadd.f32 0.0, %v2056
      %v2058 = vpop.f32.mrb[0].mxu0
      %2059 = vmatprep.mubr.bf16.mxu0 0
      %2060 = vmatmul.mubr.bf16.gmra.mrb[0].mxu0 %v1911
      %v2061 = vpop.f32.mrb[0].mxu0
      %v2062 = vadd.f32 0.0, %v2061
      %v2063 = vpop.f32.mrb[0].mxu0
      %v2064 = vpop.f32.mrb[0].mxu0
      %v2065 = vadd.f32 0.0, %v2064
      %v2066 = vpop.f32.mrb[0].mxu0
      %2067 = vmatprep.mubr.bf16.mxu0 0
      %2068 = vmatmul.mubr.bf16.gmra.mrb[0].mxu0 %v1914
      %v2069 = vpop.f32.mrb[0].mxu0
      %v2070 = vadd.f32 0.0, %v2069
      %v2071 = vpop.f32.mrb[0].mxu0
      %v2072 = vpop.f32.mrb[0].mxu0
      %v2073 = vadd.f32 0.0, %v2072
      %v2074 = vpop.f32.mrb[0].mxu0
      %2075 = vmatprep.mubr.bf16.mxu0 0
      %2076 = vmatmul.mubr.bf16.gmra.mrb[0].mxu0 %v1917
      %v2077 = vpop.f32.mrb[0].mxu0
      %v2078 = vadd.f32 0.0, %v2077
      %v2079 = vpop.f32.mrb[0].mxu0
      %v2080 = vpop.f32.mrb[0].mxu0
      %v2081 = vadd.f32 0.0, %v2080
      %v2082 = vpop.f32.mrb[0].mxu0
      %2083 = vmatprep.mubr.bf16.mxu0 0
      %2084 = vmatmul.mubr.bf16.gmra.mrb[0].mxu0 %v1920
      %v2085 = vpop.f32.mrb[0].mxu0
      %v2086 = vadd.f32 0.0, %v2085
      %v2087 = vpop.f32.mrb[0].mxu0
      %v2088 = vpop.f32.mrb[0].mxu0
      %v2089 = vadd.f32 0.0, %v2088
      %v2090 = vpop.f32.mrb[0].mxu0
      %2091 = vmatprep.mubr.bf16.mxu0 0
      %2092 = vmatmul.mubr.bf16.gmra.mrb[0].mxu0 %v1923
      %v2093 = vpop.f32.mrb[0].mxu0
      %v2094 = vadd.f32 0.0, %v2093
      %v2095 = vpop.f32.mrb[0].mxu0
      %v2096 = vpop.f32.mrb[0].mxu0
      %v2097 = vadd.f32 0.0, %v2096
      %v2098 = vpop.f32.mrb[0].mxu0
      %2099 = vmatprep.mubr.bf16.mxu0 0
      %2100 = vmatmul.mubr.bf16.gmra.mrb[0].mxu0 %v1926
      %v2101 = vpop.f32.mrb[0].mxu0
      %v2102 = vadd.f32 0.0, %v2101
      %v2103 = vpop.f32.mrb[0].mxu0
      %v2104 = vpop.f32.mrb[0].mxu0
      %v2105 = vadd.f32 0.0, %v2104
      %v2106 = vpop.f32.mrb[0].mxu0
      %2107 = vdwg.mxu0
      %v2108 = vadd.f32 %v1661, %v1966
      %v2109 = vadd.f32 %v1662, %v1969
      %v2110 = vadd.f32 %v1663, %v1974
      %v2111 = vadd.f32 %v1664, %v1977
      %v2112 = vadd.f32 %v1665, %v1982
      %v2113 = vadd.f32 %v1666, %v1985
      %v2114 = vadd.f32 %v1667, %v1990
      %v2115 = vadd.f32 %v1668, %v1993
      %v2116 = vadd.f32 %v1669, %v1998
      %v2117 = vadd.f32 %v1670, %v2001
      %v2118 = vadd.f32 %v1671, %v2006
      %v2119 = vadd.f32 %v1672, %v2009
      %v2120 = vadd.f32 %v1673, %v2014
      %v2121 = vadd.f32 %v1674, %v2017
      %v2122 = vadd.f32 %v1675, %v2022
      %v2123 = vadd.f32 %v1676, %v2025
      %v2124 = vadd.f32 %v1677, %v2030
      %v2125 = vadd.f32 %v1678, %v2033
      %v2126 = vadd.f32 %v1679, %v2038
      %v2127 = vadd.f32 %v1680, %v2041
      %v2128 = vadd.f32 %v1681, %v2046
      %v2129 = vadd.f32 %v1682, %v2049
      %v2130 = vadd.f32 %v1683, %v2054
      %v2131 = vadd.f32 %v1684, %v2057
      %v2132 = vadd.f32 %v1685, %v2062
      %v2133 = vadd.f32 %v1686, %v2065
      %v2134 = vadd.f32 %v1687, %v2070
      %v2135 = vadd.f32 %v1688, %v2073
      %v2136 = vadd.f32 %v1689, %v2078
      %v2137 = vadd.f32 %v1690, %v2081
      %v2138 = vadd.f32 %v1691, %v2086
      %v2139 = vadd.f32 %v1692, %v2089
      %v2140 = vadd.f32 %v1693, %v2094
      %v2141 = vadd.f32 %v1694, %v2097
      %v2142 = vadd.f32 %v1695, %v2102
      %v2143 = vadd.f32 %v1696, %v2105
      %v2144 = vld [vmem:[%s199 + $0x8] sm:$0xc]
      %s2145 = scalar_lea.vmem %s1, 10
      %v2146 = vld [vmem:[%s2145] sm:$0x3]
      %v2148 = vunpack.c.l.b16 %v2144
      %v2149 = vpack.c.b16 %v1335, %v2148
      %vm2150 = vcmask 1045504
      %v2151 = vrot.slane %v2149, 2
      %v2152 = vrot.slane %v1372, 2
      %v2153 = vsel %vm2150, %v2151, %v2152
      %v2154 = vrot.slane %v1373, 2
      %v2155 = vsel %vm2150, %v2152, %v2154
      %v2156 = vrot.slane %v1374, 2
      %v2157 = vsel %vm2150, %v2154, %v2156
      %v2158 = vrot.slane %v1375, 2
      %v2159 = vsel %vm2150, %v2156, %v2158
      %v2160 = vrot.slane %v1376, 2
      %v2161 = vsel %vm2150, %v2158, %v2160
      %v2162 = vrot.slane %v1377, 2
      %v2163 = vsel %vm2150, %v2160, %v2162
      %v2164 = vrot.slane %v1378, 2
      %v2165 = vsel %vm2150, %v2162, %v2164
      %v2166 = vrot.slane %v1379, 2
      %v2167 = vsel %vm2150, %v2164, %v2166
      %v2168 = vrot.slane %v1380, 2
      %v2169 = vsel %vm2150, %v2166, %v2168
      %v2170 = vrot.slane %v1381, 2
      %v2171 = vsel %vm2150, %v2168, %v2170
      %v2172 = vrot.slane %v1382, 2
      %v2173 = vsel %vm2150, %v2170, %v2172
      %v2174 = vrot.slane %v1383, 2
      %v2175 = vsel %vm2150, %v2172, %v2174
      %v2176 = vrot.slane %v1384, 2
      %v2177 = vsel %vm2150, %v2174, %v2176
      %v2178 = vrot.slane %v1385, 2
      %v2179 = vsel %vm2150, %v2176, %v2178
      %v2180 = vrot.slane %v1386, 2
      %v2181 = vsel %vm2150, %v2178, %v2180
      %v2182 = vrot.slane %v1387, 2
      %v2183 = vsel %vm2150, %v2180, %v2182
      %v2184 = vrot.slane %v1388, 2
      %v2185 = vsel %vm2150, %v2182, %v2184
      %v2186 = vrot.slane %v1702, 2
      %v2187 = vsel %vm2150, %v2184, %v2186
      %v2189 = vsel %vm492, %v2153, 0
      %v2192 = vsel %vm492, %v2155, 0
      %v2195 = vsel %vm492, %v2157, 0
      %v2198 = vsel %vm492, %v2159, 0
      %v2201 = vsel %vm492, %v2161, 0
      %v2204 = vsel %vm492, %v2163, 0
      %v2207 = vsel %vm492, %v2165, 0
      %v2210 = vsel %vm492, %v2167, 0
      %v2213 = vsel %vm492, %v2169, 0
      %v2216 = vsel %vm492, %v2171, 0
      %v2219 = vsel %vm492, %v2173, 0
      %v2222 = vsel %vm492, %v2175, 0
      %v2225 = vsel %vm492, %v2177, 0
      %v2228 = vsel %vm492, %v2179, 0
      %v2231 = vsel %vm492, %v2181, 0
      %v2234 = vsel %vm492, %v2183, 0
      %v2237 = vsel %vm492, %v2185, 0
      %v2240 = vsel %vm492, %v2187, 0
      %v2243 = vsel %vm547, %v2146, 0
      %2245 = vmatprep.subr.bf16.mxu0 0
      %2246 = vmatpush1.bf16.msra.mxu0 %v2243
      %2247 = vmatprep.subr.bf16.mxu0 0
      %2248 = vmatpush1.bf16.msra.mxu0 0
      %2249 = vmatprep.subr.bf16.mxu0 0
      %2250 = vmatpush1.bf16.msra.mxu0 0
      %2251 = vmatprep.subr.bf16.mxu0 0
      %2252 = vmatpush1.bf16.msra.mxu0 0
      %2253 = vmatprep.subr.bf16.mxu0 0
      %2254 = vmatpush1.bf16.msra.mxu0 0
      %2255 = vmatprep.subr.bf16.mxu0 0
      %2256 = vmatpush1.bf16.msra.mxu0 0
      %2257 = vmatprep.subr.bf16.mxu0 0
      %2258 = vmatpush1.bf16.msra.mxu0 0
      %2259 = vmatprep.subr.bf16.mxu0 0
      %2260 = vmatpush1.bf16.msra.mxu0 0
      %2261 = vmatprep.subr.bf16.mxu0 0
      %2262 = vmatpush1.bf16.msra.mxu0 0
      %2263 = vmatprep.subr.bf16.mxu0 0
      %2264 = vmatpush1.bf16.msra.mxu0 0
      %2265 = vmatprep.subr.bf16.mxu0 0
      %2266 = vmatpush1.bf16.msra.mxu0 0
      %2267 = vmatprep.subr.bf16.mxu0 0
      %2268 = vmatpush1.bf16.msra.mxu0 0
      %2269 = vmatprep.subr.bf16.mxu0 0
      %2270 = vmatpush1.bf16.msra.mxu0 0
      %2271 = vmatprep.subr.bf16.mxu0 0
      %2272 = vmatpush1.bf16.msra.mxu0 0
      %2273 = vmatprep.subr.bf16.mxu0 0
      %2274 = vmatpush1.bf16.msra.mxu0 0
      %2275 = vmatprep.subr.bf16.mxu0 0
      %2276 = vmatpush1.bf16.msra.mxu0 0
      %2277 = vmatprep.mubr.bf16.mxu0 0
      %2278 = vmatmul.mubr.bf16.gmra.mrb[0].mxu0 %v2189
      %v2279 = vpop.f32.mrb[0].mxu0
      %v2280 = vadd.f32 0.0, %v2279
      %v2281 = vpop.f32.mrb[0].mxu0
      %v2282 = vpop.f32.mrb[0].mxu0
      %v2283 = vadd.f32 0.0, %v2282
      %v2284 = vpop.f32.mrb[0].mxu0
      %2285 = vmatprep.mubr.bf16.mxu0 0
      %2286 = vmatmul.mubr.bf16.gmra.mrb[0].mxu0 %v2192
      %v2287 = vpop.f32.mrb[0].mxu0
      %v2288 = vadd.f32 0.0, %v2287
      %v2289 = vpop.f32.mrb[0].mxu0
      %v2290 = vpop.f32.mrb[0].mxu0
      %v2291 = vadd.f32 0.0, %v2290
      %v2292 = vpop.f32.mrb[0].mxu0
      %2293 = vmatprep.mubr.bf16.mxu0 0
      %2294 = vmatmul.mubr.bf16.gmra.mrb[0].mxu0 %v2195
      %v2295 = vpop.f32.mrb[0].mxu0
      %v2296 = vadd.f32 0.0, %v2295
      %v2297 = vpop.f32.mrb[0].mxu0
      %v2298 = vpop.f32.mrb[0].mxu0
      %v2299 = vadd.f32 0.0, %v2298
      %v2300 = vpop.f32.mrb[0].mxu0
      %2301 = vmatprep.mubr.bf16.mxu0 0
      %2302 = vmatmul.mubr.bf16.gmra.mrb[0].mxu0 %v2198
      %v2303 = vpop.f32.mrb[0].mxu0
      %v2304 = vadd.f32 0.0, %v2303
      %v2305 = vpop.f32.mrb[0].mxu0
      %v2306 = vpop.f32.mrb[0].mxu0
      %v2307 = vadd.f32 0.0, %v2306
      %v2308 = vpop.f32.mrb[0].mxu0
      %2309 = vmatprep.mubr.bf16.mxu0 0
      %2310 = vmatmul.mubr.bf16.gmra.mrb[0].mxu0 %v2201
      %v2311 = vpop.f32.mrb[0].mxu0
      %v2312 = vadd.f32 0.0, %v2311
      %v2313 = vpop.f32.mrb[0].mxu0
      %v2314 = vpop.f32.mrb[0].mxu0
      %v2315 = vadd.f32 0.0, %v2314
      %v2316 = vpop.f32.mrb[0].mxu0
      %2317 = vmatprep.mubr.bf16.mxu0 0
      %2318 = vmatmul.mubr.bf16.gmra.mrb[0].mxu0 %v2204
      %v2319 = vpop.f32.mrb[0].mxu0
      %v2320 = vadd.f32 0.0, %v2319
      %v2321 = vpop.f32.mrb[0].mxu0
      %v2322 = vpop.f32.mrb[0].mxu0
      %v2323 = vadd.f32 0.0, %v2322
      %v2324 = vpop.f32.mrb[0].mxu0
      %2325 = vmatprep.mubr.bf16.mxu0 0
      %2326 = vmatmul.mubr.bf16.gmra.mrb[0].mxu0 %v2207
      %v2327 = vpop.f32.mrb[0].mxu0
      %v2328 = vadd.f32 0.0, %v2327
      %v2329 = vpop.f32.mrb[0].mxu0
      %v2330 = vpop.f32.mrb[0].mxu0
      %v2331 = vadd.f32 0.0, %v2330
      %v2332 = vpop.f32.mrb[0].mxu0
      %2333 = vmatprep.mubr.bf16.mxu0 0
      %2334 = vmatmul.mubr.bf16.gmra.mrb[0].mxu0 %v2210
      %v2335 = vpop.f32.mrb[0].mxu0
      %v2336 = vadd.f32 0.0, %v2335
      %v2337 = vpop.f32.mrb[0].mxu0
      %v2338 = vpop.f32.mrb[0].mxu0
      %v2339 = vadd.f32 0.0, %v2338
      %v2340 = vpop.f32.mrb[0].mxu0
      %2341 = vmatprep.mubr.bf16.mxu0 0
      %2342 = vmatmul.mubr.bf16.gmra.mrb[0].mxu0 %v2213
      %v2343 = vpop.f32.mrb[0].mxu0
      %v2344 = vadd.f32 0.0, %v2343
      %v2345 = vpop.f32.mrb[0].mxu0
      %v2346 = vpop.f32.mrb[0].mxu0
      %v2347 = vadd.f32 0.0, %v2346
      %v2348 = vpop.f32.mrb[0].mxu0
      %2349 = vmatprep.mubr.bf16.mxu0 0
      %2350 = vmatmul.mubr.bf16.gmra.mrb[0].mxu0 %v2216
      %v2351 = vpop.f32.mrb[0].mxu0
      %v2352 = vadd.f32 0.0, %v2351
      %v2353 = vpop.f32.mrb[0].mxu0
      %v2354 = vpop.f32.mrb[0].mxu0
      %v2355 = vadd.f32 0.0, %v2354
      %v2356 = vpop.f32.mrb[0].mxu0
      %2357 = vmatprep.mubr.bf16.mxu0 0
      %2358 = vmatmul.mubr.bf16.gmra.mrb[0].mxu0 %v2219
      %v2359 = vpop.f32.mrb[0].mxu0
      %v2360 = vadd.f32 0.0, %v2359
      %v2361 = vpop.f32.mrb[0].mxu0
      %v2362 = vpop.f32.mrb[0].mxu0
      %v2363 = vadd.f32 0.0, %v2362
      %v2364 = vpop.f32.mrb[0].mxu0
      %2365 = vmatprep.mubr.bf16.mxu0 0
      %2366 = vmatmul.mubr.bf16.gmra.mrb[0].mxu0 %v2222
      %v2367 = vpop.f32.mrb[0].mxu0
      %v2368 = vadd.f32 0.0, %v2367
      %v2369 = vpop.f32.mrb[0].mxu0
      %v2370 = vpop.f32.mrb[0].mxu0
      %v2371 = vadd.f32 0.0, %v2370
      %v2372 = vpop.f32.mrb[0].mxu0
      %2373 = vmatprep.mubr.bf16.mxu0 0
      %2374 = vmatmul.mubr.bf16.gmra.mrb[0].mxu0 %v2225
      %v2375 = vpop.f32.mrb[0].mxu0
      %v2376 = vadd.f32 0.0, %v2375
      %v2377 = vpop.f32.mrb[0].mxu0
      %v2378 = vpop.f32.mrb[0].mxu0
      %v2379 = vadd.f32 0.0, %v2378
      %v2380 = vpop.f32.mrb[0].mxu0
      %2381 = vmatprep.mubr.bf16.mxu0 0
      %2382 = vmatmul.mubr.bf16.gmra.mrb[0].mxu0 %v2228
      %v2383 = vpop.f32.mrb[0].mxu0
      %v2384 = vadd.f32 0.0, %v2383
      %v2385 = vpop.f32.mrb[0].mxu0
      %v2386 = vpop.f32.mrb[0].mxu0
      %v2387 = vadd.f32 0.0, %v2386
      %v2388 = vpop.f32.mrb[0].mxu0
      %2389 = vmatprep.mubr.bf16.mxu0 0
      %2390 = vmatmul.mubr.bf16.gmra.mrb[0].mxu0 %v2231
      %v2391 = vpop.f32.mrb[0].mxu0
      %v2392 = vadd.f32 0.0, %v2391
      %v2393 = vpop.f32.mrb[0].mxu0
      %v2394 = vpop.f32.mrb[0].mxu0
      %v2395 = vadd.f32 0.0, %v2394
      %v2396 = vpop.f32.mrb[0].mxu0
      %2397 = vmatprep.mubr.bf16.mxu0 0
      %2398 = vmatmul.mubr.bf16.gmra.mrb[0].mxu0 %v2234
      %v2399 = vpop.f32.mrb[0].mxu0
      %v2400 = vadd.f32 0.0, %v2399
      %v2401 = vpop.f32.mrb[0].mxu0
      %v2402 = vpop.f32.mrb[0].mxu0
      %v2403 = vadd.f32 0.0, %v2402
      %v2404 = vpop.f32.mrb[0].mxu0
      %2405 = vmatprep.mubr.bf16.mxu0 0
      %2406 = vmatmul.mubr.bf16.gmra.mrb[0].mxu0 %v2237
      %v2407 = vpop.f32.mrb[0].mxu0
      %v2408 = vadd.f32 0.0, %v2407
      %v2409 = vpop.f32.mrb[0].mxu0
      %v2410 = vpop.f32.mrb[0].mxu0
      %v2411 = vadd.f32 0.0, %v2410
      %v2412 = vpop.f32.mrb[0].mxu0
      %2413 = vmatprep.mubr.bf16.mxu0 0
      %2414 = vmatmul.mubr.bf16.gmra.mrb[0].mxu0 %v2240
      %v2415 = vpop.f32.mrb[0].mxu0
      %v2416 = vadd.f32 0.0, %v2415
      %v2417 = vpop.f32.mrb[0].mxu0
      %v2418 = vpop.f32.mrb[0].mxu0
      %v2419 = vadd.f32 0.0, %v2418
      %v2420 = vpop.f32.mrb[0].mxu0
      %2421 = vdwg.mxu0
      %v2422 = vadd.f32 %v2108, %v2280
      %v2423 = vadd.f32 %v2109, %v2283
      %v2424 = vadd.f32 %v2110, %v2288
      %v2425 = vadd.f32 %v2111, %v2291
      %v2426 = vadd.f32 %v2112, %v2296
      %v2427 = vadd.f32 %v2113, %v2299
      %v2428 = vadd.f32 %v2114, %v2304
      %v2429 = vadd.f32 %v2115, %v2307
      %v2430 = vadd.f32 %v2116, %v2312
      %v2431 = vadd.f32 %v2117, %v2315
      %v2432 = vadd.f32 %v2118, %v2320
      %v2433 = vadd.f32 %v2119, %v2323
      %v2434 = vadd.f32 %v2120, %v2328
      %v2435 = vadd.f32 %v2121, %v2331
      %v2436 = vadd.f32 %v2122, %v2336
      %v2437 = vadd.f32 %v2123, %v2339
      %v2438 = vadd.f32 %v2124, %v2344
      %v2439 = vadd.f32 %v2125, %v2347
      %v2440 = vadd.f32 %v2126, %v2352
      %v2441 = vadd.f32 %v2127, %v2355
      %v2442 = vadd.f32 %v2128, %v2360
      %v2443 = vadd.f32 %v2129, %v2363
      %v2444 = vadd.f32 %v2130, %v2368
      %v2445 = vadd.f32 %v2131, %v2371
      %v2446 = vadd.f32 %v2132, %v2376
      %v2447 = vadd.f32 %v2133, %v2379
      %v2448 = vadd.f32 %v2134, %v2384
      %v2449 = vadd.f32 %v2135, %v2387
      %v2450 = vadd.f32 %v2136, %v2392
      %v2451 = vadd.f32 %v2137, %v2395
      %v2452 = vadd.f32 %v2138, %v2400
      %v2453 = vadd.f32 %v2139, %v2403
      %v2454 = vadd.f32 %v2140, %v2408
      %v2455 = vadd.f32 %v2141, %v2411
      %v2456 = vadd.f32 %v2142, %v2416
      %v2457 = vadd.f32 %v2143, %v2419
      %v2458 = vld [vmem:[%s199 + $0x10] sm:$0xc]
      %v2459 = vld [vmem:[%s199 + $0x14] sm:$0xf]
      %v2460 = vld [vmem:[%s199 + $0x18] sm:$0xf]
      %v2461 = vld [vmem:[%s199 + $0x1c] sm:$0xf]
      %v2462 = vld [vmem:[%s199 + $0x20] sm:$0xf]
      %v2463 = vld [vmem:[%s199 + $0x24] sm:$0xf]
      %v2464 = vld [vmem:[%s199 + $0x28] sm:$0xf]
      %v2465 = vld [vmem:[%s199 + $0x2c] sm:$0xf]
      %v2466 = vld [vmem:[%s199 + $0x30] sm:$0xf]
      %v2467 = vld [vmem:[%s199 + $0x34] sm:$0xf]
      %v2468 = vld [vmem:[%s199 + $0x38] sm:$0xf]
      %v2469 = vld [vmem:[%s199 + $0x3c] sm:$0xf]
      %v2470 = vld [vmem:[%s199 + $0x40] sm:$0xf]
      %v2471 = vld [vmem:[%s199 + $0x44] sm:$0xf]
      %v2472 = vld [vmem:[%s199 + $0x48] sm:$0xf]
      %v2473 = vld [vmem:[%s199 + $0x4c] sm:$0xf]
      %v2474 = vld [vmem:[%s199 + $0x50] sm:$0xf]
      %v2475 = vld [vmem:[%s199 + $0x54] sm:$0xf]
      %v2476 = vld [vmem:[%s199 + $0x58] sm:$0xf]
      %v2477 = vld [vmem:[%s199 + $0x5c] sm:$0xf]
      %v2478 = vld [vmem:[%s199 + $0x60] sm:$0xf]
      %v2479 = vld [vmem:[%s199 + $0x64] sm:$0xf]
      %v2480 = vld [vmem:[%s199 + $0x68] sm:$0xf]
      %v2481 = vld [vmem:[%s199 + $0x6c] sm:$0xf]
      %v2482 = vld [vmem:[%s199 + $0x70] sm:$0xf]
      %v2483 = vld [vmem:[%s199 + $0x74] sm:$0xf]
      %v2484 = vld [vmem:[%s199 + $0x78] sm:$0xf]
      %v2485 = vld [vmem:[%s199 + $0x7c] sm:$0xf]
      %v2486 = vld [vmem:[%s199 + $0x80] sm:$0xf]
      %v2487 = vld [vmem:[%s199 + $0x84] sm:$0xf]
      %v2488 = vld [vmem:[%s199 + $0x88] sm:$0xf]
      %v2489 = vld [vmem:[%s199 + $0x8c] sm:$0xf]
      %v2490 = vld [vmem:[%s199 + $0x90] sm:$0xf]
      %v2491 = vld [vmem:[%s199 + $0x94] sm:$0xf]
      %v2492 = vld [vmem:[%s199 + $0x98] sm:$0xf]
      %v2493 = vld [vmem:[%s199 + $0x9c] sm:$0xf]
      %v2494 = vld [vmem:[%s199 + $0xa0] sm:$0x3]
      %s2495 = scalar_lea.vmem %s1, 12
      %v2496 = vld [vmem:[%s2495] sm:$0x3]
      %v2534 = vunpack.c.l.b16 %v2458
      %v2535 = vunpack.c.l.b16 %v2459
      %v2536 = vunpack.c.l.b16 %v2460
      %v2537 = vunpack.c.l.b16 %v2461
      %v2538 = vunpack.c.l.b16 %v2462
      %v2539 = vunpack.c.l.b16 %v2463
      %v2540 = vunpack.c.l.b16 %v2464
      %v2541 = vunpack.c.l.b16 %v2465
      %v2542 = vunpack.c.l.b16 %v2466
      %v2543 = vunpack.c.l.b16 %v2467
      %v2544 = vunpack.c.l.b16 %v2468
      %v2545 = vunpack.c.l.b16 %v2469
      %v2546 = vunpack.c.l.b16 %v2470
      %v2547 = vunpack.c.l.b16 %v2471
      %v2548 = vunpack.c.l.b16 %v2472
      %v2549 = vunpack.c.l.b16 %v2473
      %v2550 = vunpack.c.l.b16 %v2474
      %v2551 = vunpack.c.l.b16 %v2475
      %v2552 = vunpack.c.l.b16 %v2476
      %v2553 = vunpack.c.l.b16 %v2477
      %v2554 = vunpack.c.l.b16 %v2478
      %v2555 = vunpack.c.l.b16 %v2479
      %v2556 = vunpack.c.l.b16 %v2480
      %v2557 = vunpack.c.l.b16 %v2481
      %v2558 = vunpack.c.l.b16 %v2482
      %v2559 = vunpack.c.l.b16 %v2483
      %v2560 = vunpack.c.l.b16 %v2484
      %v2561 = vunpack.c.l.b16 %v2485
      %v2562 = vunpack.c.l.b16 %v2486
      %v2563 = vunpack.c.l.b16 %v2487
      %v2564 = vunpack.c.l.b16 %v2488
      %v2565 = vunpack.c.l.b16 %v2489
      %v2566 = vunpack.c.l.b16 %v2490
      %v2567 = vunpack.c.l.b16 %v2491
      %v2568 = vunpack.c.l.b16 %v2492
      %v2569 = vunpack.c.l.b16 %v2493
      %v2570 = vunpack.c.l.b16 %v2494
      %v2571 = vpack.c.b16 %v2535, %v2534
      %v2572 = vpack.c.b16 %v2537, %v2536
      %v2573 = vpack.c.b16 %v2539, %v2538
      %v2574 = vpack.c.b16 %v2541, %v2540
      %v2575 = vpack.c.b16 %v2543, %v2542
      %v2576 = vpack.c.b16 %v2545, %v2544
      %v2577 = vpack.c.b16 %v2547, %v2546
      %v2578 = vpack.c.b16 %v2549, %v2548
      %v2579 = vpack.c.b16 %v2551, %v2550
      %v2580 = vpack.c.b16 %v2553, %v2552
      %v2581 = vpack.c.b16 %v2555, %v2554
      %v2582 = vpack.c.b16 %v2557, %v2556
      %v2583 = vpack.c.b16 %v2559, %v2558
      %v2584 = vpack.c.b16 %v2561, %v2560
      %v2585 = vpack.c.b16 %v2563, %v2562
      %v2586 = vpack.c.b16 %v2565, %v2564
      %v2587 = vpack.c.b16 %v2567, %v2566
      %v2588 = vpack.c.b16 %v2569, %v2568
      %v2589 = vpack.c.b16 %v2570, %v2570
      %v2590 = vrot.slane %v2571, 2
      %v2591 = vrot.slane %v2572, 2
      %v2592 = vsel %vm2150, %v2590, %v2591
      %v2593 = vrot.slane %v2573, 2
      %v2594 = vsel %vm2150, %v2591, %v2593
      %v2595 = vrot.slane %v2574, 2
      %v2596 = vsel %vm2150, %v2593, %v2595
      %v2597 = vrot.slane %v2575, 2
      %v2598 = vsel %vm2150, %v2595, %v2597
      %v2599 = vrot.slane %v2576, 2
      %v2600 = vsel %vm2150, %v2597, %v2599
      %v2601 = vrot.slane %v2577, 2
      %v2602 = vsel %vm2150, %v2599, %v2601
      %v2603 = vrot.slane %v2578, 2
      %v2604 = vsel %vm2150, %v2601, %v2603
      %v2605 = vrot.slane %v2579, 2
      %v2606 = vsel %vm2150, %v2603, %v2605
      %v2607 = vrot.slane %v2580, 2
      %v2608 = vsel %vm2150, %v2605, %v2607
      %v2609 = vrot.slane %v2581, 2
      %v2610 = vsel %vm2150, %v2607, %v2609
      %v2611 = vrot.slane %v2582, 2
      %v2612 = vsel %vm2150, %v2609, %v2611
      %v2613 = vrot.slane %v2583, 2
      %v2614 = vsel %vm2150, %v2611, %v2613
      %v2615 = vrot.slane %v2584, 2
      %v2616 = vsel %vm2150, %v2613, %v2615
      %v2617 = vrot.slane %v2585, 2
      %v2618 = vsel %vm2150, %v2615, %v2617
      %v2619 = vrot.slane %v2586, 2
      %v2620 = vsel %vm2150, %v2617, %v2619
      %v2621 = vrot.slane %v2587, 2
      %v2622 = vsel %vm2150, %v2619, %v2621
      %v2623 = vrot.slane %v2588, 2
      %v2624 = vsel %vm2150, %v2621, %v2623
      %v2625 = vrot.slane %v2589, 2
      %v2626 = vsel %vm2150, %v2623, %v2625
      %v2628 = vsel %vm492, %v2592, 0
      %v2631 = vsel %vm492, %v2594, 0
      %v2634 = vsel %vm492, %v2596, 0
      %v2637 = vsel %vm492, %v2598, 0
      %v2640 = vsel %vm492, %v2600, 0
      %v2643 = vsel %vm492, %v2602, 0
      %v2646 = vsel %vm492, %v2604, 0
      %v2649 = vsel %vm492, %v2606, 0
      %v2652 = vsel %vm492, %v2608, 0
      %v2655 = vsel %vm492, %v2610, 0
      %v2658 = vsel %vm492, %v2612, 0
      %v2661 = vsel %vm492, %v2614, 0
      %v2664 = vsel %vm492, %v2616, 0
      %v2667 = vsel %vm492, %v2618, 0
      %v2670 = vsel %vm492, %v2620, 0
      %v2673 = vsel %vm492, %v2622, 0
      %v2676 = vsel %vm492, %v2624, 0
      %v2679 = vsel %vm492, %v2626, 0
      %v2682 = vsel %vm547, %v2496, 0
      %2684 = vmatprep.subr.bf16.mxu0 0
      %2685 = vmatpush1.bf16.msra.mxu0 %v2682
      %2686 = vmatprep.subr.bf16.mxu0 0
      %2687 = vmatpush1.bf16.msra.mxu0 0
      %2688 = vmatprep.subr.bf16.mxu0 0
      %2689 = vmatpush1.bf16.msra.mxu0 0
      %2690 = vmatprep.subr.bf16.mxu0 0
      %2691 = vmatpush1.bf16.msra.mxu0 0
      %2692 = vmatprep.subr.bf16.mxu0 0
      %2693 = vmatpush1.bf16.msra.mxu0 0
      %2694 = vmatprep.subr.bf16.mxu0 0
      %2695 = vmatpush1.bf16.msra.mxu0 0
      %2696 = vmatprep.subr.bf16.mxu0 0
      %2697 = vmatpush1.bf16.msra.mxu0 0
      %2698 = vmatprep.subr.bf16.mxu0 0
      %2699 = vmatpush1.bf16.msra.mxu0 0
      %2700 = vmatprep.subr.bf16.mxu0 0
      %2701 = vmatpush1.bf16.msra.mxu0 0
      %2702 = vmatprep.subr.bf16.mxu0 0
      %2703 = vmatpush1.bf16.msra.mxu0 0
      %2704 = vmatprep.subr.bf16.mxu0 0
      %2705 = vmatpush1.bf16.msra.mxu0 0
      %2706 = vmatprep.subr.bf16.mxu0 0
      %2707 = vmatpush1.bf16.msra.mxu0 0
      %2708 = vmatprep.subr.bf16.mxu0 0
      %2709 = vmatpush1.bf16.msra.mxu0 0
      %2710 = vmatprep.subr.bf16.mxu0 0
      %2711 = vmatpush1.bf16.msra.mxu0 0
      %2712 = vmatprep.subr.bf16.mxu0 0
      %2713 = vmatpush1.bf16.msra.mxu0 0
      %2714 = vmatprep.subr.bf16.mxu0 0
      %2715 = vmatpush1.bf16.msra.mxu0 0
      %2716 = vmatprep.mubr.bf16.mxu0 0
      %2717 = vmatmul.mubr.bf16.gmra.mrb[0].mxu0 %v2628
      %v2718 = vpop.f32.mrb[0].mxu0
      %v2719 = vadd.f32 0.0, %v2718
      %v2720 = vpop.f32.mrb[0].mxu0
      %v2721 = vpop.f32.mrb[0].mxu0
      %v2722 = vadd.f32 0.0, %v2721
      %v2723 = vpop.f32.mrb[0].mxu0
      %2724 = vmatprep.mubr.bf16.mxu0 0
      %2725 = vmatmul.mubr.bf16.gmra.mrb[0].mxu0 %v2631
      %v2726 = vpop.f32.mrb[0].mxu0
      %v2727 = vadd.f32 0.0, %v2726
      %v2728 = vpop.f32.mrb[0].mxu0
      %v2729 = vpop.f32.mrb[0].mxu0
      %v2730 = vadd.f32 0.0, %v2729
      %v2731 = vpop.f32.mrb[0].mxu0
      %2732 = vmatprep.mubr.bf16.mxu0 0
      %2733 = vmatmul.mubr.bf16.gmra.mrb[0].mxu0 %v2634
      %v2734 = vpop.f32.mrb[0].mxu0
      %v2735 = vadd.f32 0.0, %v2734
      %v2736 = vpop.f32.mrb[0].mxu0
      %v2737 = vpop.f32.mrb[0].mxu0
      %v2738 = vadd.f32 0.0, %v2737
      %v2739 = vpop.f32.mrb[0].mxu0
      %2740 = vmatprep.mubr.bf16.mxu0 0
      %2741 = vmatmul.mubr.bf16.gmra.mrb[0].mxu0 %v2637
      %v2742 = vpop.f32.mrb[0].mxu0
      %v2743 = vadd.f32 0.0, %v2742
      %v2744 = vpop.f32.mrb[0].mxu0
      %v2745 = vpop.f32.mrb[0].mxu0
      %v2746 = vadd.f32 0.0, %v2745
      %v2747 = vpop.f32.mrb[0].mxu0
      %2748 = vmatprep.mubr.bf16.mxu0 0
      %2749 = vmatmul.mubr.bf16.gmra.mrb[0].mxu0 %v2640
      %v2750 = vpop.f32.mrb[0].mxu0
      %v2751 = vadd.f32 0.0, %v2750
      %v2752 = vpop.f32.mrb[0].mxu0
      %v2753 = vpop.f32.mrb[0].mxu0
      %v2754 = vadd.f32 0.0, %v2753
      %v2755 = vpop.f32.mrb[0].mxu0
      %2756 = vmatprep.mubr.bf16.mxu0 0
      %2757 = vmatmul.mubr.bf16.gmra.mrb[0].mxu0 %v2643
      %v2758 = vpop.f32.mrb[0].mxu0
      %v2759 = vadd.f32 0.0, %v2758
      %v2760 = vpop.f32.mrb[0].mxu0
      %v2761 = vpop.f32.mrb[0].mxu0
      %v2762 = vadd.f32 0.0, %v2761
      %v2763 = vpop.f32.mrb[0].mxu0
      %2764 = vmatprep.mubr.bf16.mxu0 0
      %2765 = vmatmul.mubr.bf16.gmra.mrb[0].mxu0 %v2646
      %v2766 = vpop.f32.mrb[0].mxu0
      %v2767 = vadd.f32 0.0, %v2766
      %v2768 = vpop.f32.mrb[0].mxu0
      %v2769 = vpop.f32.mrb[0].mxu0
      %v2770 = vadd.f32 0.0, %v2769
      %v2771 = vpop.f32.mrb[0].mxu0
      %2772 = vmatprep.mubr.bf16.mxu0 0
      %2773 = vmatmul.mubr.bf16.gmra.mrb[0].mxu0 %v2649
      %v2774 = vpop.f32.mrb[0].mxu0
      %v2775 = vadd.f32 0.0, %v2774
      %v2776 = vpop.f32.mrb[0].mxu0
      %v2777 = vpop.f32.mrb[0].mxu0
      %v2778 = vadd.f32 0.0, %v2777
      %v2779 = vpop.f32.mrb[0].mxu0
      %2780 = vmatprep.mubr.bf16.mxu0 0
      %2781 = vmatmul.mubr.bf16.gmra.mrb[0].mxu0 %v2652
      %v2782 = vpop.f32.mrb[0].mxu0
      %v2783 = vadd.f32 0.0, %v2782
      %v2784 = vpop.f32.mrb[0].mxu0
      %v2785 = vpop.f32.mrb[0].mxu0
      %v2786 = vadd.f32 0.0, %v2785
      %v2787 = vpop.f32.mrb[0].mxu0
      %2788 = vmatprep.mubr.bf16.mxu0 0
      %2789 = vmatmul.mubr.bf16.gmra.mrb[0].mxu0 %v2655
      %v2790 = vpop.f32.mrb[0].mxu0
      %v2791 = vadd.f32 0.0, %v2790
      %v2792 = vpop.f32.mrb[0].mxu0
      %v2793 = vpop.f32.mrb[0].mxu0
      %v2794 = vadd.f32 0.0, %v2793
      %v2795 = vpop.f32.mrb[0].mxu0
      %2796 = vmatprep.mubr.bf16.mxu0 0
      %2797 = vmatmul.mubr.bf16.gmra.mrb[0].mxu0 %v2658
      %v2798 = vpop.f32.mrb[0].mxu0
      %v2799 = vadd.f32 0.0, %v2798
      %v2800 = vpop.f32.mrb[0].mxu0
      %v2801 = vpop.f32.mrb[0].mxu0
      %v2802 = vadd.f32 0.0, %v2801
      %v2803 = vpop.f32.mrb[0].mxu0
      %2804 = vmatprep.mubr.bf16.mxu0 0
      %2805 = vmatmul.mubr.bf16.gmra.mrb[0].mxu0 %v2661
      %v2806 = vpop.f32.mrb[0].mxu0
      %v2807 = vadd.f32 0.0, %v2806
      %v2808 = vpop.f32.mrb[0].mxu0
      %v2809 = vpop.f32.mrb[0].mxu0
      %v2810 = vadd.f32 0.0, %v2809
      %v2811 = vpop.f32.mrb[0].mxu0
      %2812 = vmatprep.mubr.bf16.mxu0 0
      %2813 = vmatmul.mubr.bf16.gmra.mrb[0].mxu0 %v2664
      %v2814 = vpop.f32.mrb[0].mxu0
      %v2815 = vadd.f32 0.0, %v2814
      %v2816 = vpop.f32.mrb[0].mxu0
      %v2817 = vpop.f32.mrb[0].mxu0
      %v2818 = vadd.f32 0.0, %v2817
      %v2819 = vpop.f32.mrb[0].mxu0
      %2820 = vmatprep.mubr.bf16.mxu0 0
      %2821 = vmatmul.mubr.bf16.gmra.mrb[0].mxu0 %v2667
      %v2822 = vpop.f32.mrb[0].mxu0
      %v2823 = vadd.f32 0.0, %v2822
      %v2824 = vpop.f32.mrb[0].mxu0
      %v2825 = vpop.f32.mrb[0].mxu0
      %v2826 = vadd.f32 0.0, %v2825
      %v2827 = vpop.f32.mrb[0].mxu0
      %2828 = vmatprep.mubr.bf16.mxu0 0
      %2829 = vmatmul.mubr.bf16.gmra.mrb[0].mxu0 %v2670
      %v2830 = vpop.f32.mrb[0].mxu0
      %v2831 = vadd.f32 0.0, %v2830
      %v2832 = vpop.f32.mrb[0].mxu0
      %v2833 = vpop.f32.mrb[0].mxu0
      %v2834 = vadd.f32 0.0, %v2833
      %v2835 = vpop.f32.mrb[0].mxu0
      %2836 = vmatprep.mubr.bf16.mxu0 0
      %2837 = vmatmul.mubr.bf16.gmra.mrb[0].mxu0 %v2673
      %v2838 = vpop.f32.mrb[0].mxu0
      %v2839 = vadd.f32 0.0, %v2838
      %v2840 = vpop.f32.mrb[0].mxu0
      %v2841 = vpop.f32.mrb[0].mxu0
      %v2842 = vadd.f32 0.0, %v2841
      %v2843 = vpop.f32.mrb[0].mxu0
      %2844 = vmatprep.mubr.bf16.mxu0 0
      %2845 = vmatmul.mubr.bf16.gmra.mrb[0].mxu0 %v2676
      %v2846 = vpop.f32.mrb[0].mxu0
      %v2847 = vadd.f32 0.0, %v2846
      %v2848 = vpop.f32.mrb[0].mxu0
      %v2849 = vpop.f32.mrb[0].mxu0
      %v2850 = vadd.f32 0.0, %v2849
      %v2851 = vpop.f32.mrb[0].mxu0
      %2852 = vmatprep.mubr.bf16.mxu0 0
      %2853 = vmatmul.mubr.bf16.gmra.mrb[0].mxu0 %v2679
      %v2854 = vpop.f32.mrb[0].mxu0
      %v2855 = vadd.f32 0.0, %v2854
      %v2856 = vpop.f32.mrb[0].mxu0
      %v2857 = vpop.f32.mrb[0].mxu0
      %v2858 = vadd.f32 0.0, %v2857
      %v2859 = vpop.f32.mrb[0].mxu0
      %2860 = vdwg.mxu0
      %v2861 = vadd.f32 %v2422, %v2719
      %v2862 = vadd.f32 %v2423, %v2722
      %v2863 = vadd.f32 %v2424, %v2727
      %v2864 = vadd.f32 %v2425, %v2730
      %v2865 = vadd.f32 %v2426, %v2735
      %v2866 = vadd.f32 %v2427, %v2738
      %v2867 = vadd.f32 %v2428, %v2743
      %v2868 = vadd.f32 %v2429, %v2746
      %v2869 = vadd.f32 %v2430, %v2751
      %v2870 = vadd.f32 %v2431, %v2754
      %v2871 = vadd.f32 %v2432, %v2759
      %v2872 = vadd.f32 %v2433, %v2762
      %v2873 = vadd.f32 %v2434, %v2767
      %v2874 = vadd.f32 %v2435, %v2770
      %v2875 = vadd.f32 %v2436, %v2775
      %v2876 = vadd.f32 %v2437, %v2778
      %v2877 = vadd.f32 %v2438, %v2783
      %v2878 = vadd.f32 %v2439, %v2786
      %v2879 = vadd.f32 %v2440, %v2791
      %v2880 = vadd.f32 %v2441, %v2794
      %v2881 = vadd.f32 %v2442, %v2799
      %v2882 = vadd.f32 %v2443, %v2802
      %v2883 = vadd.f32 %v2444, %v2807
      %v2884 = vadd.f32 %v2445, %v2810
      %v2885 = vadd.f32 %v2446, %v2815
      %v2886 = vadd.f32 %v2447, %v2818
      %v2887 = vadd.f32 %v2448, %v2823
      %v2888 = vadd.f32 %v2449, %v2826
      %v2889 = vadd.f32 %v2450, %v2831
      %v2890 = vadd.f32 %v2451, %v2834
      %v2891 = vadd.f32 %v2452, %v2839
      %v2892 = vadd.f32 %v2453, %v2842
      %v2893 = vadd.f32 %v2454, %v2847
      %v2894 = vadd.f32 %v2455, %v2850
      %v2895 = vadd.f32 %v2456, %v2855
      %v2896 = vadd.f32 %v2457, %v2858
      %v2897 = vld [vmem:[%s199 + $0xa0] sm:$0x7]
      %s2898 = scalar_lea.vmem %s1, 14
      %v2899 = vld [vmem:[%s2898] sm:$0x3]
      %v2901 = vunpack.c.l.b16 %v2897
      %v2902 = vpack.c.b16 %v2901, %v2901
      %vm2903 = vsmask.f32 5376
      %v2905 = vshrl.u32 %v2571, 16
      %v2907 = vrot.slane %v2905, 2
      %v2908 = vshll.u32 %v2571, 16
      %v2910 = vrot.slane %v2908, 3
      %v2911 = vor.u32 %v2907, %v2910
      %v2913 = vshrl.u32 %v2572, 16
      %v2915 = vrot.slane %v2913, 2
      %v2916 = vshll.u32 %v2572, 16
      %v2918 = vrot.slane %v2916, 3
      %v2919 = vor.u32 %v2915, %v2918
      %v2920 = vsel %vm2903, %v2911, %v2919
      %v2922 = vshrl.u32 %v2573, 16
      %v2924 = vrot.slane %v2922, 2
      %v2925 = vshll.u32 %v2573, 16
      %v2927 = vrot.slane %v2925, 3
      %v2928 = vor.u32 %v2924, %v2927
      %v2929 = vsel %vm2903, %v2919, %v2928
      %v2931 = vshrl.u32 %v2574, 16
      %v2933 = vrot.slane %v2931, 2
      %v2934 = vshll.u32 %v2574, 16
      %v2936 = vrot.slane %v2934, 3
      %v2937 = vor.u32 %v2933, %v2936
      %v2938 = vsel %vm2903, %v2928, %v2937
      %v2940 = vshrl.u32 %v2575, 16
      %v2942 = vrot.slane %v2940, 2
      %v2943 = vshll.u32 %v2575, 16
      %v2945 = vrot.slane %v2943, 3
      %v2946 = vor.u32 %v2942, %v2945
      %v2947 = vsel %vm2903, %v2937, %v2946
      %v2949 = vshrl.u32 %v2576, 16
      %v2951 = vrot.slane %v2949, 2
      %v2952 = vshll.u32 %v2576, 16
      %v2954 = vrot.slane %v2952, 3
      %v2955 = vor.u32 %v2951, %v2954
      %v2956 = vsel %vm2903, %v2946, %v2955
      %v2958 = vshrl.u32 %v2577, 16
      %v2960 = vrot.slane %v2958, 2
      %v2961 = vshll.u32 %v2577, 16
      %v2963 = vrot.slane %v2961, 3
      %v2964 = vor.u32 %v2960, %v2963
      %v2965 = vsel %vm2903, %v2955, %v2964
      %v2967 = vshrl.u32 %v2578, 16
      %v2969 = vrot.slane %v2967, 2
      %v2970 = vshll.u32 %v2578, 16
      %v2972 = vrot.slane %v2970, 3
      %v2973 = vor.u32 %v2969, %v2972
      %v2974 = vsel %vm2903, %v2964, %v2973
      %v2976 = vshrl.u32 %v2579, 16
      %v2978 = vrot.slane %v2976, 2
      %v2979 = vshll.u32 %v2579, 16
      %v2981 = vrot.slane %v2979, 3
      %v2982 = vor.u32 %v2978, %v2981
      %v2983 = vsel %vm2903, %v2973, %v2982
      %v2985 = vshrl.u32 %v2580, 16
      %v2987 = vrot.slane %v2985, 2
      %v2988 = vshll.u32 %v2580, 16
      %v2990 = vrot.slane %v2988, 3
      %v2991 = vor.u32 %v2987, %v2990
      %v2992 = vsel %vm2903, %v2982, %v2991
      %v2994 = vshrl.u32 %v2581, 16
      %v2996 = vrot.slane %v2994, 2
      %v2997 = vshll.u32 %v2581, 16
      %v2999 = vrot.slane %v2997, 3
      %v3000 = vor.u32 %v2996, %v2999
      %v3001 = vsel %vm2903, %v2991, %v3000
      %v3003 = vshrl.u32 %v2582, 16
      %v3005 = vrot.slane %v3003, 2
      %v3006 = vshll.u32 %v2582, 16
      %v3008 = vrot.slane %v3006, 3
      %v3009 = vor.u32 %v3005, %v3008
      %v3010 = vsel %vm2903, %v3000, %v3009
      %v3012 = vshrl.u32 %v2583, 16
      %v3014 = vrot.slane %v3012, 2
      %v3015 = vshll.u32 %v2583, 16
      %v3017 = vrot.slane %v3015, 3
      %v3018 = vor.u32 %v3014, %v3017
      %v3019 = vsel %vm2903, %v3009, %v3018
      %v3021 = vshrl.u32 %v2584, 16
      %v3023 = vrot.slane %v3021, 2
      %v3024 = vshll.u32 %v2584, 16
      %v3026 = vrot.slane %v3024, 3
      %v3027 = vor.u32 %v3023, %v3026
      %v3028 = vsel %vm2903, %v3018, %v3027
      %v3030 = vshrl.u32 %v2585, 16
      %v3032 = vrot.slane %v3030, 2
      %v3033 = vshll.u32 %v2585, 16
      %v3035 = vrot.slane %v3033, 3
      %v3036 = vor.u32 %v3032, %v3035
      %v3037 = vsel %vm2903, %v3027, %v3036
      %v3039 = vshrl.u32 %v2586, 16
      %v3041 = vrot.slane %v3039, 2
      %v3042 = vshll.u32 %v2586, 16
      %v3044 = vrot.slane %v3042, 3
      %v3045 = vor.u32 %v3041, %v3044
      %v3046 = vsel %vm2903, %v3036, %v3045
      %v3048 = vshrl.u32 %v2587, 16
      %v3050 = vrot.slane %v3048, 2
      %v3051 = vshll.u32 %v2587, 16
      %v3053 = vrot.slane %v3051, 3
      %v3054 = vor.u32 %v3050, %v3053
      %v3055 = vsel %vm2903, %v3045, %v3054
      %v3057 = vshrl.u32 %v2588, 16
      %v3059 = vrot.slane %v3057, 2
      %v3060 = vshll.u32 %v2588, 16
      %v3062 = vrot.slane %v3060, 3
      %v3063 = vor.u32 %v3059, %v3062
      %v3064 = vsel %vm2903, %v3054, %v3063
      %v3066 = vshrl.u32 %v2902, 16
      %v3068 = vrot.slane %v3066, 2
      %v3069 = vshll.u32 %v2902, 16
      %v3071 = vrot.slane %v3069, 3
      %v3072 = vor.u32 %v3068, %v3071
      %v3073 = vsel %vm2903, %v3063, %v3072
      %v3075 = vsel %vm492, %v2920, 0
      %v3078 = vsel %vm492, %v2929, 0
      %v3081 = vsel %vm492, %v2938, 0
      %v3084 = vsel %vm492, %v2947, 0
      %v3087 = vsel %vm492, %v2956, 0
      %v3090 = vsel %vm492, %v2965, 0
      %v3093 = vsel %vm492, %v2974, 0
      %v3096 = vsel %vm492, %v2983, 0
      %v3099 = vsel %vm492, %v2992, 0
      %v3102 = vsel %vm492, %v3001, 0
      %v3105 = vsel %vm492, %v3010, 0
      %v3108 = vsel %vm492, %v3019, 0
      %v3111 = vsel %vm492, %v3028, 0
      %v3114 = vsel %vm492, %v3037, 0
      %v3117 = vsel %vm492, %v3046, 0
      %v3120 = vsel %vm492, %v3055, 0
      %v3123 = vsel %vm492, %v3064, 0
      %v3126 = vsel %vm492, %v3073, 0
      %v3129 = vsel %vm547, %v2899, 0
      %3131 = vmatprep.subr.bf16.mxu0 0
      %3132 = vmatpush1.bf16.msra.mxu0 %v3129
      %3133 = vmatprep.subr.bf16.mxu0 0
      %3134 = vmatpush1.bf16.msra.mxu0 0
      %3135 = vmatprep.subr.bf16.mxu0 0
      %3136 = vmatpush1.bf16.msra.mxu0 0
      %3137 = vmatprep.subr.bf16.mxu0 0
      %3138 = vmatpush1.bf16.msra.mxu0 0
      %3139 = vmatprep.subr.bf16.mxu0 0
      %3140 = vmatpush1.bf16.msra.mxu0 0
      %3141 = vmatprep.subr.bf16.mxu0 0
      %3142 = vmatpush1.bf16.msra.mxu0 0
      %3143 = vmatprep.subr.bf16.mxu0 0
      %3144 = vmatpush1.bf16.msra.mxu0 0
      %3145 = vmatprep.subr.bf16.mxu0 0
      %3146 = vmatpush1.bf16.msra.mxu0 0
      %3147 = vmatprep.subr.bf16.mxu0 0
      %3148 = vmatpush1.bf16.msra.mxu0 0
      %3149 = vmatprep.subr.bf16.mxu0 0
      %3150 = vmatpush1.bf16.msra.mxu0 0
      %3151 = vmatprep.subr.bf16.mxu0 0
      %3152 = vmatpush1.bf16.msra.mxu0 0
      %3153 = vmatprep.subr.bf16.mxu0 0
      %3154 = vmatpush1.bf16.msra.mxu0 0
      %3155 = vmatprep.subr.bf16.mxu0 0
      %3156 = vmatpush1.bf16.msra.mxu0 0
      %3157 = vmatprep.subr.bf16.mxu0 0
      %3158 = vmatpush1.bf16.msra.mxu0 0
      %3159 = vmatprep.subr.bf16.mxu0 0
      %3160 = vmatpush1.bf16.msra.mxu0 0
      %3161 = vmatprep.subr.bf16.mxu0 0
      %3162 = vmatpush1.bf16.msra.mxu0 0
      %3163 = vmatprep.mubr.bf16.mxu0 0
      %3164 = vmatmul.mubr.bf16.gmra.mrb[0].mxu0 %v3075
      %v3165 = vpop.f32.mrb[0].mxu0
      %v3166 = vadd.f32 0.0, %v3165
      %v3167 = vpop.f32.mrb[0].mxu0
      %v3168 = vpop.f32.mrb[0].mxu0
      %v3169 = vadd.f32 0.0, %v3168
      %v3170 = vpop.f32.mrb[0].mxu0
      %3171 = vmatprep.mubr.bf16.mxu0 0
      %3172 = vmatmul.mubr.bf16.gmra.mrb[0].mxu0 %v3078
      %v3173 = vpop.f32.mrb[0].mxu0
      %v3174 = vadd.f32 0.0, %v3173
      %v3175 = vpop.f32.mrb[0].mxu0
      %v3176 = vpop.f32.mrb[0].mxu0
      %v3177 = vadd.f32 0.0, %v3176
      %v3178 = vpop.f32.mrb[0].mxu0
      %3179 = vmatprep.mubr.bf16.mxu0 0
      %3180 = vmatmul.mubr.bf16.gmra.mrb[0].mxu0 %v3081
      %v3181 = vpop.f32.mrb[0].mxu0
      %v3182 = vadd.f32 0.0, %v3181
      %v3183 = vpop.f32.mrb[0].mxu0
      %v3184 = vpop.f32.mrb[0].mxu0
      %v3185 = vadd.f32 0.0, %v3184
      %v3186 = vpop.f32.mrb[0].mxu0
      %3187 = vmatprep.mubr.bf16.mxu0 0
      %3188 = vmatmul.mubr.bf16.gmra.mrb[0].mxu0 %v3084
      %v3189 = vpop.f32.mrb[0].mxu0
      %v3190 = vadd.f32 0.0, %v3189
      %v3191 = vpop.f32.mrb[0].mxu0
      %v3192 = vpop.f32.mrb[0].mxu0
      %v3193 = vadd.f32 0.0, %v3192
      %v3194 = vpop.f32.mrb[0].mxu0
      %3195 = vmatprep.mubr.bf16.mxu0 0
      %3196 = vmatmul.mubr.bf16.gmra.mrb[0].mxu0 %v3087
      %v3197 = vpop.f32.mrb[0].mxu0
      %v3198 = vadd.f32 0.0, %v3197
      %v3199 = vpop.f32.mrb[0].mxu0
      %v3200 = vpop.f32.mrb[0].mxu0
      %v3201 = vadd.f32 0.0, %v3200
      %v3202 = vpop.f32.mrb[0].mxu0
      %3203 = vmatprep.mubr.bf16.mxu0 0
      %3204 = vmatmul.mubr.bf16.gmra.mrb[0].mxu0 %v3090
      %v3205 = vpop.f32.mrb[0].mxu0
      %v3206 = vadd.f32 0.0, %v3205
      %v3207 = vpop.f32.mrb[0].mxu0
      %v3208 = vpop.f32.mrb[0].mxu0
      %v3209 = vadd.f32 0.0, %v3208
      %v3210 = vpop.f32.mrb[0].mxu0
      %3211 = vmatprep.mubr.bf16.mxu0 0
      %3212 = vmatmul.mubr.bf16.gmra.mrb[0].mxu0 %v3093
      %v3213 = vpop.f32.mrb[0].mxu0
      %v3214 = vadd.f32 0.0, %v3213
      %v3215 = vpop.f32.mrb[0].mxu0
      %v3216 = vpop.f32.mrb[0].mxu0
      %v3217 = vadd.f32 0.0, %v3216
      %v3218 = vpop.f32.mrb[0].mxu0
      %3219 = vmatprep.mubr.bf16.mxu0 0
      %3220 = vmatmul.mubr.bf16.gmra.mrb[0].mxu0 %v3096
      %v3221 = vpop.f32.mrb[0].mxu0
      %v3222 = vadd.f32 0.0, %v3221
      %v3223 = vpop.f32.mrb[0].mxu0
      %v3224 = vpop.f32.mrb[0].mxu0
      %v3225 = vadd.f32 0.0, %v3224
      %v3226 = vpop.f32.mrb[0].mxu0
      %3227 = vmatprep.mubr.bf16.mxu0 0
      %3228 = vmatmul.mubr.bf16.gmra.mrb[0].mxu0 %v3099
      %v3229 = vpop.f32.mrb[0].mxu0
      %v3230 = vadd.f32 0.0, %v3229
      %v3231 = vpop.f32.mrb[0].mxu0
      %v3232 = vpop.f32.mrb[0].mxu0
      %v3233 = vadd.f32 0.0, %v3232
      %v3234 = vpop.f32.mrb[0].mxu0
      %3235 = vmatprep.mubr.bf16.mxu0 0
      %3236 = vmatmul.mubr.bf16.gmra.mrb[0].mxu0 %v3102
      %v3237 = vpop.f32.mrb[0].mxu0
      %v3238 = vadd.f32 0.0, %v3237
      %v3239 = vpop.f32.mrb[0].mxu0
      %v3240 = vpop.f32.mrb[0].mxu0
      %v3241 = vadd.f32 0.0, %v3240
      %v3242 = vpop.f32.mrb[0].mxu0
      %3243 = vmatprep.mubr.bf16.mxu0 0
      %3244 = vmatmul.mubr.bf16.gmra.mrb[0].mxu0 %v3105
      %v3245 = vpop.f32.mrb[0].mxu0
      %v3246 = vadd.f32 0.0, %v3245
      %v3247 = vpop.f32.mrb[0].mxu0
      %v3248 = vpop.f32.mrb[0].mxu0
      %v3249 = vadd.f32 0.0, %v3248
      %v3250 = vpop.f32.mrb[0].mxu0
      %3251 = vmatprep.mubr.bf16.mxu0 0
      %3252 = vmatmul.mubr.bf16.gmra.mrb[0].mxu0 %v3108
      %v3253 = vpop.f32.mrb[0].mxu0
      %v3254 = vadd.f32 0.0, %v3253
      %v3255 = vpop.f32.mrb[0].mxu0
      %v3256 = vpop.f32.mrb[0].mxu0
      %v3257 = vadd.f32 0.0, %v3256
      %v3258 = vpop.f32.mrb[0].mxu0
      %3259 = vmatprep.mubr.bf16.mxu0 0
      %3260 = vmatmul.mubr.bf16.gmra.mrb[0].mxu0 %v3111
      %v3261 = vpop.f32.mrb[0].mxu0
      %v3262 = vadd.f32 0.0, %v3261
      %v3263 = vpop.f32.mrb[0].mxu0
      %v3264 = vpop.f32.mrb[0].mxu0
      %v3265 = vadd.f32 0.0, %v3264
      %v3266 = vpop.f32.mrb[0].mxu0
      %3267 = vmatprep.mubr.bf16.mxu0 0
      %3268 = vmatmul.mubr.bf16.gmra.mrb[0].mxu0 %v3114
      %v3269 = vpop.f32.mrb[0].mxu0
      %v3270 = vadd.f32 0.0, %v3269
      %v3271 = vpop.f32.mrb[0].mxu0
      %v3272 = vpop.f32.mrb[0].mxu0
      %v3273 = vadd.f32 0.0, %v3272
      %v3274 = vpop.f32.mrb[0].mxu0
      %3275 = vmatprep.mubr.bf16.mxu0 0
      %3276 = vmatmul.mubr.bf16.gmra.mrb[0].mxu0 %v3117
      %v3277 = vpop.f32.mrb[0].mxu0
      %v3278 = vadd.f32 0.0, %v3277
      %v3279 = vpop.f32.mrb[0].mxu0
      %v3280 = vpop.f32.mrb[0].mxu0
      %v3281 = vadd.f32 0.0, %v3280
      %v3282 = vpop.f32.mrb[0].mxu0
      %3283 = vmatprep.mubr.bf16.mxu0 0
      %3284 = vmatmul.mubr.bf16.gmra.mrb[0].mxu0 %v3120
      %v3285 = vpop.f32.mrb[0].mxu0
      %v3286 = vadd.f32 0.0, %v3285
      %v3287 = vpop.f32.mrb[0].mxu0
      %v3288 = vpop.f32.mrb[0].mxu0
      %v3289 = vadd.f32 0.0, %v3288
      %v3290 = vpop.f32.mrb[0].mxu0
      %3291 = vmatprep.mubr.bf16.mxu0 0
      %3292 = vmatmul.mubr.bf16.gmra.mrb[0].mxu0 %v3123
      %v3293 = vpop.f32.mrb[0].mxu0
      %v3294 = vadd.f32 0.0, %v3293
      %v3295 = vpop.f32.mrb[0].mxu0
      %v3296 = vpop.f32.mrb[0].mxu0
      %v3297 = vadd.f32 0.0, %v3296
      %v3298 = vpop.f32.mrb[0].mxu0
      %3299 = vmatprep.mubr.bf16.mxu0 0
      %3300 = vmatmul.mubr.bf16.gmra.mrb[0].mxu0 %v3126
      %v3301 = vpop.f32.mrb[0].mxu0
      %v3302 = vadd.f32 0.0, %v3301
      %v3303 = vpop.f32.mrb[0].mxu0
      %v3304 = vpop.f32.mrb[0].mxu0
      %v3305 = vadd.f32 0.0, %v3304
      %v3306 = vpop.f32.mrb[0].mxu0
      %3307 = vdwg.mxu0
      %v3308 = vadd.f32 %v2861, %v3166
      %v3309 = vadd.f32 %v2862, %v3169
      %v3310 = vadd.f32 %v2863, %v3174
      %v3311 = vadd.f32 %v2864, %v3177
      %v3312 = vadd.f32 %v2865, %v3182
      %v3313 = vadd.f32 %v2866, %v3185
      %v3314 = vadd.f32 %v2867, %v3190
      %v3315 = vadd.f32 %v2868, %v3193
      %v3316 = vadd.f32 %v2869, %v3198
      %v3317 = vadd.f32 %v2870, %v3201
      %v3318 = vadd.f32 %v2871, %v3206
      %v3319 = vadd.f32 %v2872, %v3209
      %v3320 = vadd.f32 %v2873, %v3214
      %v3321 = vadd.f32 %v2874, %v3217
      %v3322 = vadd.f32 %v2875, %v3222
      %v3323 = vadd.f32 %v2876, %v3225
      %v3324 = vadd.f32 %v2877, %v3230
      %v3325 = vadd.f32 %v2878, %v3233
      %v3326 = vadd.f32 %v2879, %v3238
      %v3327 = vadd.f32 %v2880, %v3241
      %v3328 = vadd.f32 %v2881, %v3246
      %v3329 = vadd.f32 %v2882, %v3249
      %v3330 = vadd.f32 %v2883, %v3254
      %v3331 = vadd.f32 %v2884, %v3257
      %v3332 = vadd.f32 %v2885, %v3262
      %v3333 = vadd.f32 %v2886, %v3265
      %v3334 = vadd.f32 %v2887, %v3270
      %v3335 = vadd.f32 %v2888, %v3273
      %v3336 = vadd.f32 %v2889, %v3278
      %v3337 = vadd.f32 %v2890, %v3281
      %v3338 = vadd.f32 %v2891, %v3286
      %v3339 = vadd.f32 %v2892, %v3289
      %v3340 = vadd.f32 %v2893, %v3294
      %v3341 = vadd.f32 %v2894, %v3297
      %v3342 = vadd.f32 %v2895, %v3302
      %v3343 = vadd.f32 %v2896, %v3305
      %v3344 = vld [vmem:[%s199 + $0x10] sm:$0x8]
      %s3345 = scalar_lea.vmem %s1, 16
      %v3346 = vld [vmem:[%s3345] sm:$0x3]
      %v3348 = vunpack.c.l.b16 %v3344
      %v3349 = vpack.c.b16 %v2535, %v3348
      %vm3350 = vcmask 1044480
      %v3351 = vrot.slane %v3349, 3
      %v3352 = vrot.slane %v2572, 3
      %v3353 = vsel %vm3350, %v3351, %v3352
      %v3354 = vrot.slane %v2573, 3
      %v3355 = vsel %vm3350, %v3352, %v3354
      %v3356 = vrot.slane %v2574, 3
      %v3357 = vsel %vm3350, %v3354, %v3356
      %v3358 = vrot.slane %v2575, 3
      %v3359 = vsel %vm3350, %v3356, %v3358
      %v3360 = vrot.slane %v2576, 3
      %v3361 = vsel %vm3350, %v3358, %v3360
      %v3362 = vrot.slane %v2577, 3
      %v3363 = vsel %vm3350, %v3360, %v3362
      %v3364 = vrot.slane %v2578, 3
      %v3365 = vsel %vm3350, %v3362, %v3364
      %v3366 = vrot.slane %v2579, 3
      %v3367 = vsel %vm3350, %v3364, %v3366
      %v3368 = vrot.slane %v2580, 3
      %v3369 = vsel %vm3350, %v3366, %v3368
      %v3370 = vrot.slane %v2581, 3
      %v3371 = vsel %vm3350, %v3368, %v3370
      %v3372 = vrot.slane %v2582, 3
      %v3373 = vsel %vm3350, %v3370, %v3372
      %v3374 = vrot.slane %v2583, 3
      %v3375 = vsel %vm3350, %v3372, %v3374
      %v3376 = vrot.slane %v2584, 3
      %v3377 = vsel %vm3350, %v3374, %v3376
      %v3378 = vrot.slane %v2585, 3
      %v3379 = vsel %vm3350, %v3376, %v3378
      %v3380 = vrot.slane %v2586, 3
      %v3381 = vsel %vm3350, %v3378, %v3380
      %v3382 = vrot.slane %v2587, 3
      %v3383 = vsel %vm3350, %v3380, %v3382
      %v3384 = vrot.slane %v2588, 3
      %v3385 = vsel %vm3350, %v3382, %v3384
      %v3386 = vrot.slane %v2902, 3
      %v3387 = vsel %vm3350, %v3384, %v3386
      %v3389 = vsel %vm492, %v3353, 0
      %v3392 = vsel %vm492, %v3355, 0
      %v3395 = vsel %vm492, %v3357, 0
      %v3398 = vsel %vm492, %v3359, 0
      %v3401 = vsel %vm492, %v3361, 0
      %v3404 = vsel %vm492, %v3363, 0
      %v3407 = vsel %vm492, %v3365, 0
      %v3410 = vsel %vm492, %v3367, 0
      %v3413 = vsel %vm492, %v3369, 0
      %v3416 = vsel %vm492, %v3371, 0
      %v3419 = vsel %vm492, %v3373, 0
      %v3422 = vsel %vm492, %v3375, 0
      %v3425 = vsel %vm492, %v3377, 0
      %v3428 = vsel %vm492, %v3379, 0
      %v3431 = vsel %vm492, %v3381, 0
      %v3434 = vsel %vm492, %v3383, 0
      %v3437 = vsel %vm492, %v3385, 0
      %v3440 = vsel %vm492, %v3387, 0
      %v3443 = vsel %vm547, %v3346, 0
      %3445 = vmatprep.subr.bf16.mxu0 0
      %3446 = vmatpush1.bf16.msra.mxu0 %v3443
      %3447 = vmatprep.subr.bf16.mxu0 0
      %3448 = vmatpush1.bf16.msra.mxu0 0
      %3449 = vmatprep.subr.bf16.mxu0 0
      %3450 = vmatpush1.bf16.msra.mxu0 0
      %3451 = vmatprep.subr.bf16.mxu0 0
      %3452 = vmatpush1.bf16.msra.mxu0 0
      %3453 = vmatprep.subr.bf16.mxu0 0
      %3454 = vmatpush1.bf16.msra.mxu0 0
      %3455 = vmatprep.subr.bf16.mxu0 0
      %3456 = vmatpush1.bf16.msra.mxu0 0
      %3457 = vmatprep.subr.bf16.mxu0 0
      %3458 = vmatpush1.bf16.msra.mxu0 0
      %3459 = vmatprep.subr.bf16.mxu0 0
      %3460 = vmatpush1.bf16.msra.mxu0 0
      %3461 = vmatprep.subr.bf16.mxu0 0
      %3462 = vmatpush1.bf16.msra.mxu0 0
      %3463 = vmatprep.subr.bf16.mxu0 0
      %3464 = vmatpush1.bf16.msra.mxu0 0
      %3465 = vmatprep.subr.bf16.mxu0 0
      %3466 = vmatpush1.bf16.msra.mxu0 0
      %3467 = vmatprep.subr.bf16.mxu0 0
      %3468 = vmatpush1.bf16.msra.mxu0 0
      %3469 = vmatprep.subr.bf16.mxu0 0
      %3470 = vmatpush1.bf16.msra.mxu0 0
      %3471 = vmatprep.subr.bf16.mxu0 0
      %3472 = vmatpush1.bf16.msra.mxu0 0
      %3473 = vmatprep.subr.bf16.mxu0 0
      %3474 = vmatpush1.bf16.msra.mxu0 0
      %3475 = vmatprep.subr.bf16.mxu0 0
      %3476 = vmatpush1.bf16.msra.mxu0 0
      %3477 = vmatprep.mubr.bf16.mxu0 0
      %3478 = vmatmul.mubr.bf16.gmra.mrb[0].mxu0 %v3389
      %v3479 = vpop.f32.mrb[0].mxu0
      %v3480 = vadd.f32 0.0, %v3479
      %v3481 = vpop.f32.mrb[0].mxu0
      %v3482 = vpop.f32.mrb[0].mxu0
      %v3483 = vadd.f32 0.0, %v3482
      %v3484 = vpop.f32.mrb[0].mxu0
      %3485 = vmatprep.mubr.bf16.mxu0 0
      %3486 = vmatmul.mubr.bf16.gmra.mrb[0].mxu0 %v3392
      %v3487 = vpop.f32.mrb[0].mxu0
      %v3488 = vadd.f32 0.0, %v3487
      %v3489 = vpop.f32.mrb[0].mxu0
      %v3490 = vpop.f32.mrb[0].mxu0
      %v3491 = vadd.f32 0.0, %v3490
      %v3492 = vpop.f32.mrb[0].mxu0
      %3493 = vmatprep.mubr.bf16.mxu0 0
      %3494 = vmatmul.mubr.bf16.gmra.mrb[0].mxu0 %v3395
      %v3495 = vpop.f32.mrb[0].mxu0
      %v3496 = vadd.f32 0.0, %v3495
      %v3497 = vpop.f32.mrb[0].mxu0
      %v3498 = vpop.f32.mrb[0].mxu0
      %v3499 = vadd.f32 0.0, %v3498
      %v3500 = vpop.f32.mrb[0].mxu0
      %3501 = vmatprep.mubr.bf16.mxu0 0
      %3502 = vmatmul.mubr.bf16.gmra.mrb[0].mxu0 %v3398
      %v3503 = vpop.f32.mrb[0].mxu0
      %v3504 = vadd.f32 0.0, %v3503
      %v3505 = vpop.f32.mrb[0].mxu0
      %v3506 = vpop.f32.mrb[0].mxu0
      %v3507 = vadd.f32 0.0, %v3506
      %v3508 = vpop.f32.mrb[0].mxu0
      %3509 = vmatprep.mubr.bf16.mxu0 0
      %3510 = vmatmul.mubr.bf16.gmra.mrb[0].mxu0 %v3401
      %v3511 = vpop.f32.mrb[0].mxu0
      %v3512 = vadd.f32 0.0, %v3511
      %v3513 = vpop.f32.mrb[0].mxu0
      %v3514 = vpop.f32.mrb[0].mxu0
      %v3515 = vadd.f32 0.0, %v3514
      %v3516 = vpop.f32.mrb[0].mxu0
      %3517 = vmatprep.mubr.bf16.mxu0 0
      %3518 = vmatmul.mubr.bf16.gmra.mrb[0].mxu0 %v3404
      %v3519 = vpop.f32.mrb[0].mxu0
      %v3520 = vadd.f32 0.0, %v3519
      %v3521 = vpop.f32.mrb[0].mxu0
      %v3522 = vpop.f32.mrb[0].mxu0
      %v3523 = vadd.f32 0.0, %v3522
      %v3524 = vpop.f32.mrb[0].mxu0
      %3525 = vmatprep.mubr.bf16.mxu0 0
      %3526 = vmatmul.mubr.bf16.gmra.mrb[0].mxu0 %v3407
      %v3527 = vpop.f32.mrb[0].mxu0
      %v3528 = vadd.f32 0.0, %v3527
      %v3529 = vpop.f32.mrb[0].mxu0
      %v3530 = vpop.f32.mrb[0].mxu0
      %v3531 = vadd.f32 0.0, %v3530
      %v3532 = vpop.f32.mrb[0].mxu0
      %3533 = vmatprep.mubr.bf16.mxu0 0
      %3534 = vmatmul.mubr.bf16.gmra.mrb[0].mxu0 %v3410
      %v3535 = vpop.f32.mrb[0].mxu0
      %v3536 = vadd.f32 0.0, %v3535
      %v3537 = vpop.f32.mrb[0].mxu0
      %v3538 = vpop.f32.mrb[0].mxu0
      %v3539 = vadd.f32 0.0, %v3538
      %v3540 = vpop.f32.mrb[0].mxu0
      %3541 = vmatprep.mubr.bf16.mxu0 0
      %3542 = vmatmul.mubr.bf16.gmra.mrb[0].mxu0 %v3413
      %v3543 = vpop.f32.mrb[0].mxu0
      %v3544 = vadd.f32 0.0, %v3543
      %v3545 = vpop.f32.mrb[0].mxu0
      %v3546 = vpop.f32.mrb[0].mxu0
      %v3547 = vadd.f32 0.0, %v3546
      %v3548 = vpop.f32.mrb[0].mxu0
      %3549 = vmatprep.mubr.bf16.mxu0 0
      %3550 = vmatmul.mubr.bf16.gmra.mrb[0].mxu0 %v3416
      %v3551 = vpop.f32.mrb[0].mxu0
      %v3552 = vadd.f32 0.0, %v3551
      %v3553 = vpop.f32.mrb[0].mxu0
      %v3554 = vpop.f32.mrb[0].mxu0
      %v3555 = vadd.f32 0.0, %v3554
      %v3556 = vpop.f32.mrb[0].mxu0
      %3557 = vmatprep.mubr.bf16.mxu0 0
      %3558 = vmatmul.mubr.bf16.gmra.mrb[0].mxu0 %v3419
      %v3559 = vpop.f32.mrb[0].mxu0
      %v3560 = vadd.f32 0.0, %v3559
      %v3561 = vpop.f32.mrb[0].mxu0
      %v3562 = vpop.f32.mrb[0].mxu0
      %v3563 = vadd.f32 0.0, %v3562
      %v3564 = vpop.f32.mrb[0].mxu0
      %3565 = vmatprep.mubr.bf16.mxu0 0
      %3566 = vmatmul.mubr.bf16.gmra.mrb[0].mxu0 %v3422
      %v3567 = vpop.f32.mrb[0].mxu0
      %v3568 = vadd.f32 0.0, %v3567
      %v3569 = vpop.f32.mrb[0].mxu0
      %v3570 = vpop.f32.mrb[0].mxu0
      %v3571 = vadd.f32 0.0, %v3570
      %v3572 = vpop.f32.mrb[0].mxu0
      %3573 = vmatprep.mubr.bf16.mxu0 0
      %3574 = vmatmul.mubr.bf16.gmra.mrb[0].mxu0 %v3425
      %v3575 = vpop.f32.mrb[0].mxu0
      %v3576 = vadd.f32 0.0, %v3575
      %v3577 = vpop.f32.mrb[0].mxu0
      %v3578 = vpop.f32.mrb[0].mxu0
      %v3579 = vadd.f32 0.0, %v3578
      %v3580 = vpop.f32.mrb[0].mxu0
      %3581 = vmatprep.mubr.bf16.mxu0 0
      %3582 = vmatmul.mubr.bf16.gmra.mrb[0].mxu0 %v3428
      %v3583 = vpop.f32.mrb[0].mxu0
      %v3584 = vadd.f32 0.0, %v3583
      %v3585 = vpop.f32.mrb[0].mxu0
      %v3586 = vpop.f32.mrb[0].mxu0
      %v3587 = vadd.f32 0.0, %v3586
      %v3588 = vpop.f32.mrb[0].mxu0
      %3589 = vmatprep.mubr.bf16.mxu0 0
      %3590 = vmatmul.mubr.bf16.gmra.mrb[0].mxu0 %v3431
      %v3591 = vpop.f32.mrb[0].mxu0
      %v3592 = vadd.f32 0.0, %v3591
      %v3593 = vpop.f32.mrb[0].mxu0
      %v3594 = vpop.f32.mrb[0].mxu0
      %v3595 = vadd.f32 0.0, %v3594
      %v3596 = vpop.f32.mrb[0].mxu0
      %3597 = vmatprep.mubr.bf16.mxu0 0
      %3598 = vmatmul.mubr.bf16.gmra.mrb[0].mxu0 %v3434
      %v3599 = vpop.f32.mrb[0].mxu0
      %v3600 = vadd.f32 0.0, %v3599
      %v3601 = vpop.f32.mrb[0].mxu0
      %v3602 = vpop.f32.mrb[0].mxu0
      %v3603 = vadd.f32 0.0, %v3602
      %v3604 = vpop.f32.mrb[0].mxu0
      %3605 = vmatprep.mubr.bf16.mxu0 0
      %3606 = vmatmul.mubr.bf16.gmra.mrb[0].mxu0 %v3437
      %v3607 = vpop.f32.mrb[0].mxu0
      %v3608 = vadd.f32 0.0, %v3607
      %v3609 = vpop.f32.mrb[0].mxu0
      %v3610 = vpop.f32.mrb[0].mxu0
      %v3611 = vadd.f32 0.0, %v3610
      %v3612 = vpop.f32.mrb[0].mxu0
      %3613 = vmatprep.mubr.bf16.mxu0 0
      %3614 = vmatmul.mubr.bf16.gmra.mrb[0].mxu0 %v3440
      %v3615 = vpop.f32.mrb[0].mxu0
      %v3616 = vadd.f32 0.0, %v3615
      %v3617 = vpop.f32.mrb[0].mxu0
      %v3618 = vpop.f32.mrb[0].mxu0
      %v3619 = vadd.f32 0.0, %v3618
      %v3620 = vpop.f32.mrb[0].mxu0
      %3621 = vdwg.mxu0
      %v3622 = vadd.f32 %v3308, %v3480
      %v3623 = vadd.f32 %v3309, %v3483
      %v3624 = vadd.f32 %v3310, %v3488
      %v3625 = vadd.f32 %v3311, %v3491
      %v3626 = vadd.f32 %v3312, %v3496
      %v3627 = vadd.f32 %v3313, %v3499
      %v3628 = vadd.f32 %v3314, %v3504
      %v3629 = vadd.f32 %v3315, %v3507
      %v3630 = vadd.f32 %v3316, %v3512
      %v3631 = vadd.f32 %v3317, %v3515
      %v3632 = vadd.f32 %v3318, %v3520
      %v3633 = vadd.f32 %v3319, %v3523
      %v3634 = vadd.f32 %v3320, %v3528
      %v3635 = vadd.f32 %v3321, %v3531
      %v3636 = vadd.f32 %v3322, %v3536
      %v3637 = vadd.f32 %v3323, %v3539
      %v3638 = vadd.f32 %v3324, %v3544
      %v3639 = vadd.f32 %v3325, %v3547
      %v3640 = vadd.f32 %v3326, %v3552
      %v3641 = vadd.f32 %v3327, %v3555
      %v3642 = vadd.f32 %v3328, %v3560
      %v3643 = vadd.f32 %v3329, %v3563
      %v3644 = vadd.f32 %v3330, %v3568
      %v3645 = vadd.f32 %v3331, %v3571
      %v3646 = vadd.f32 %v3332, %v3576
      %v3647 = vadd.f32 %v3333, %v3579
      %v3648 = vadd.f32 %v3334, %v3584
      %v3649 = vadd.f32 %v3335, %v3587
      %v3650 = vadd.f32 %v3336, %v3592
      %v3651 = vadd.f32 %v3337, %v3595
      %v3652 = vadd.f32 %v3338, %v3600
      %v3653 = vadd.f32 %v3339, %v3603
      %v3654 = vadd.f32 %v3340, %v3608
      %v3655 = vadd.f32 %v3341, %v3611
      %v3656 = vadd.f32 %v3342, %v3616
      %v3657 = vadd.f32 %v3343, %v3619
      %3658 = vst.msk [vmem:[%s204] sm:$0xff] %vm492, %v3622
      %3659 = vst.msk [vmem:[%s204 + $0x8] sm:$0xff] %vm492, %v3623
      %3660 = vst.msk [vmem:[%s204 + $0x10] sm:$0xff] %vm492, %v3624
      %3661 = vst.msk [vmem:[%s204 + $0x18] sm:$0xff] %vm492, %v3625
      %3662 = vst.msk [vmem:[%s204 + $0x20] sm:$0xff] %vm492, %v3626
      %3663 = vst.msk [vmem:[%s204 + $0x28] sm:$0xff] %vm492, %v3627
      %3664 = vst.msk [vmem:[%s204 + $0x30] sm:$0xff] %vm492, %v3628
      %3665 = vst.msk [vmem:[%s204 + $0x38] sm:$0xff] %vm492, %v3629
      %3666 = vst.msk [vmem:[%s204 + $0x40] sm:$0xff] %vm492, %v3630
      %3667 = vst.msk [vmem:[%s204 + $0x48] sm:$0xff] %vm492, %v3631
      %3668 = vst.msk [vmem:[%s204 + $0x50] sm:$0xff] %vm492, %v3632
      %3669 = vst.msk [vmem:[%s204 + $0x58] sm:$0xff] %vm492, %v3633
      %3670 = vst.msk [vmem:[%s204 + $0x60] sm:$0xff] %vm492, %v3634
      %3671 = vst.msk [vmem:[%s204 + $0x68] sm:$0xff] %vm492, %v3635
      %3672 = vst.msk [vmem:[%s204 + $0x70] sm:$0xff] %vm492, %v3636
      %3673 = vst.msk [vmem:[%s204 + $0x78] sm:$0xff] %vm492, %v3637
      %3674 = vst.msk [vmem:[%s204 + $0x80] sm:$0xff] %vm492, %v3638
      %3675 = vst.msk [vmem:[%s204 + $0x88] sm:$0xff] %vm492, %v3639
      %3676 = vst.msk [vmem:[%s204 + $0x90] sm:$0xff] %vm492, %v3640
      %3677 = vst.msk [vmem:[%s204 + $0x98] sm:$0xff] %vm492, %v3641
      %3678 = vst.msk [vmem:[%s204 + $0xa0] sm:$0xff] %vm492, %v3642
      %3679 = vst.msk [vmem:[%s204 + $0xa8] sm:$0xff] %vm492, %v3643
      %3680 = vst.msk [vmem:[%s204 + $0xb0] sm:$0xff] %vm492, %v3644
      %3681 = vst.msk [vmem:[%s204 + $0xb8] sm:$0xff] %vm492, %v3645
      %3682 = vst.msk [vmem:[%s204 + $0xc0] sm:$0xff] %vm492, %v3646
      %3683 = vst.msk [vmem:[%s204 + $0xc8] sm:$0xff] %vm492, %v3647
      %3684 = vst.msk [vmem:[%s204 + $0xd0] sm:$0xff] %vm492, %v3648
      %3685 = vst.msk [vmem:[%s204 + $0xd8] sm:$0xff] %vm492, %v3649
      %3686 = vst.msk [vmem:[%s204 + $0xe0] sm:$0xff] %vm492, %v3650
      %3687 = vst.msk [vmem:[%s204 + $0xe8] sm:$0xff] %vm492, %v3651
      %3688 = vst.msk [vmem:[%s204 + $0xf0] sm:$0xff] %vm492, %v3652
      %3689 = vst.msk [vmem:[%s204 + $0xf8] sm:$0xff] %vm492, %v3653
      %3690 = vst.msk [vmem:[%s204 + $0x100] sm:$0xff] %vm492, %v3654
      %3691 = vst.msk [vmem:[%s204 + $0x108] sm:$0xff] %vm492, %v3655
      %3692 = vst.msk [vmem:[%s204 + $0x110] sm:$0xff] %vm492, %v3656
      %3693 = vst.msk [vmem:[%s204 + $0x118] sm:$0xff] %vm492, %v3657
      %v3694 = vld [vmem:[%s2] sm:$0xff]
      %v3695 = vld [vmem:[%s2 + $0x8] sm:$0xff]
      %v3696 = vld [vmem:[%s2 + $0x10] sm:$0xff]
      %v3697 = vld [vmem:[%s2 + $0x18] sm:$0xff]
      %v3698 = vld [vmem:[%s2 + $0x20] sm:$0xff]
      %v3699 = vld [vmem:[%s2 + $0x28] sm:$0xff]
      %v3700 = vld [vmem:[%s2 + $0x30] sm:$0xff]
      %v3701 = vld [vmem:[%s2 + $0x38] sm:$0xff]
      %v3702 = vld [vmem:[%s2 + $0x40] sm:$0xff]
      %v3703 = vld [vmem:[%s2 + $0x48] sm:$0xff]
      %v3704 = vld [vmem:[%s2 + $0x50] sm:$0xff]
      %v3705 = vld [vmem:[%s2 + $0x58] sm:$0xff]
      %v3706 = vld [vmem:[%s2 + $0x60] sm:$0xff]
      %v3707 = vld [vmem:[%s2 + $0x68] sm:$0xff]
      %v3708 = vld [vmem:[%s2 + $0x70] sm:$0xff]
      %v3709 = vld [vmem:[%s2 + $0x78] sm:$0xff]
      %v3710 = vld [vmem:[%s2 + $0x80] sm:$0xff]
      %v3711 = vld [vmem:[%s2 + $0x88] sm:$0xff]
      %v3712 = vld [vmem:[%s2 + $0x90] sm:$0xff]
      %v3713 = vld [vmem:[%s2 + $0x98] sm:$0xff]
      %v3714 = vld [vmem:[%s2 + $0xa0] sm:$0xff]
      %v3715 = vld [vmem:[%s2 + $0xa8] sm:$0xff]
      %v3716 = vld [vmem:[%s2 + $0xb0] sm:$0xff]
      %v3717 = vld [vmem:[%s2 + $0xb8] sm:$0xff]
      %v3718 = vld [vmem:[%s2 + $0xc0] sm:$0xff]
      %v3719 = vld [vmem:[%s2 + $0xc8] sm:$0xff]
      %v3720 = vld [vmem:[%s2 + $0xd0] sm:$0xff]
      %v3721 = vld [vmem:[%s2 + $0xd8] sm:$0xff]
      %v3722 = vld [vmem:[%s2 + $0xe0] sm:$0xff]
      %v3723 = vld [vmem:[%s2 + $0xe8] sm:$0xff]
      %v3724 = vld [vmem:[%s2 + $0xf0] sm:$0xff]
      %v3725 = vld [vmem:[%s2 + $0xf8] sm:$0xff]
      %v3726 = vld [vmem:[%s2 + $0x100] sm:$0xff]
      %v3727 = vld [vmem:[%s2 + $0x108] sm:$0xff]
      %v3728 = vld [vmem:[%s2 + $0x110] sm:$0xff]
      %v3729 = vld [vmem:[%s2 + $0x118] sm:$0xff]
      %3731 = vset.pattern.permute.xlu0 0
      %3732 = vperm.xlu0 %3731, %v3694
      %v3733 = vpop.permute.xlu0 %3732
      %3736 = vset.pattern.permute.xlu0 0
      %3737 = vperm.xlu0 %3736, %v3695
      %v3738 = vpop.permute.xlu0 %3737
      %3741 = vset.pattern.permute.xlu0 0
      %3742 = vperm.xlu0 %3741, %v3696
      %v3743 = vpop.permute.xlu0 %3742
      %3746 = vset.pattern.permute.xlu0 0
      %3747 = vperm.xlu0 %3746, %v3697
      %v3748 = vpop.permute.xlu0 %3747
      %3751 = vset.pattern.permute.xlu0 0
      %3752 = vperm.xlu0 %3751, %v3698
      %v3753 = vpop.permute.xlu0 %3752
      %3756 = vset.pattern.permute.xlu0 0
      %3757 = vperm.xlu0 %3756, %v3699
      %v3758 = vpop.permute.xlu0 %3757
      %3761 = vset.pattern.permute.xlu0 0
      %3762 = vperm.xlu0 %3761, %v3700
      %v3763 = vpop.permute.xlu0 %3762
      %3766 = vset.pattern.permute.xlu0 0
      %3767 = vperm.xlu0 %3766, %v3701
      %v3768 = vpop.permute.xlu0 %3767
      %3771 = vset.pattern.permute.xlu0 0
      %3772 = vperm.xlu0 %3771, %v3702
      %v3773 = vpop.permute.xlu0 %3772
      %3776 = vset.pattern.permute.xlu0 0
      %3777 = vperm.xlu0 %3776, %v3703
      %v3778 = vpop.permute.xlu0 %3777
      %3781 = vset.pattern.permute.xlu0 0
      %3782 = vperm.xlu0 %3781, %v3704
      %v3783 = vpop.permute.xlu0 %3782
      %3786 = vset.pattern.permute.xlu0 0
      %3787 = vperm.xlu0 %3786, %v3705
      %v3788 = vpop.permute.xlu0 %3787
      %3791 = vset.pattern.permute.xlu0 0
      %3792 = vperm.xlu0 %3791, %v3706
      %v3793 = vpop.permute.xlu0 %3792
      %3796 = vset.pattern.permute.xlu0 0
      %3797 = vperm.xlu0 %3796, %v3707
      %v3798 = vpop.permute.xlu0 %3797
      %3801 = vset.pattern.permute.xlu0 0
      %3802 = vperm.xlu0 %3801, %v3708
      %v3803 = vpop.permute.xlu0 %3802
      %3806 = vset.pattern.permute.xlu0 0
      %3807 = vperm.xlu0 %3806, %v3709
      %v3808 = vpop.permute.xlu0 %3807
      %3811 = vset.pattern.permute.xlu0 0
      %3812 = vperm.xlu0 %3811, %v3710
      %v3813 = vpop.permute.xlu0 %3812
      %3816 = vset.pattern.permute.xlu0 0
      %3817 = vperm.xlu0 %3816, %v3711
      %v3818 = vpop.permute.xlu0 %3817
      %3821 = vset.pattern.permute.xlu0 0
      %3822 = vperm.xlu0 %3821, %v3712
      %v3823 = vpop.permute.xlu0 %3822
      %3826 = vset.pattern.permute.xlu0 0
      %3827 = vperm.xlu0 %3826, %v3713
      %v3828 = vpop.permute.xlu0 %3827
      %3831 = vset.pattern.permute.xlu0 0
      %3832 = vperm.xlu0 %3831, %v3714
      %v3833 = vpop.permute.xlu0 %3832
      %3836 = vset.pattern.permute.xlu0 0
      %3837 = vperm.xlu0 %3836, %v3715
      %v3838 = vpop.permute.xlu0 %3837
      %3841 = vset.pattern.permute.xlu0 0
      %3842 = vperm.xlu0 %3841, %v3716
      %v3843 = vpop.permute.xlu0 %3842
      %3846 = vset.pattern.permute.xlu0 0
      %3847 = vperm.xlu0 %3846, %v3717
      %v3848 = vpop.permute.xlu0 %3847
      %3851 = vset.pattern.permute.xlu0 0
      %3852 = vperm.xlu0 %3851, %v3718
      %v3853 = vpop.permute.xlu0 %3852
      %3856 = vset.pattern.permute.xlu0 0
      %3857 = vperm.xlu0 %3856, %v3719
      %v3858 = vpop.permute.xlu0 %3857
      %3861 = vset.pattern.permute.xlu0 0
      %3862 = vperm.xlu0 %3861, %v3720
      %v3863 = vpop.permute.xlu0 %3862
      %3866 = vset.pattern.permute.xlu0 0
      %3867 = vperm.xlu0 %3866, %v3721
      %v3868 = vpop.permute.xlu0 %3867
      %3871 = vset.pattern.permute.xlu0 0
      %3872 = vperm.xlu0 %3871, %v3722
      %v3873 = vpop.permute.xlu0 %3872
      %3876 = vset.pattern.permute.xlu0 0
      %3877 = vperm.xlu0 %3876, %v3723
      %v3878 = vpop.permute.xlu0 %3877
      %3881 = vset.pattern.permute.xlu0 0
      %3882 = vperm.xlu0 %3881, %v3724
      %v3883 = vpop.permute.xlu0 %3882
      %3886 = vset.pattern.permute.xlu0 0
      %3887 = vperm.xlu0 %3886, %v3725
      %v3888 = vpop.permute.xlu0 %3887
      %3891 = vset.pattern.permute.xlu0 0
      %3892 = vperm.xlu0 %3891, %v3726
      %v3893 = vpop.permute.xlu0 %3892
      %3896 = vset.pattern.permute.xlu0 0
      %3897 = vperm.xlu0 %3896, %v3727
      %v3898 = vpop.permute.xlu0 %3897
      %3901 = vset.pattern.permute.xlu0 0
      %3902 = vperm.xlu0 %3901, %v3728
      %v3903 = vpop.permute.xlu0 %3902
      %3906 = vset.pattern.permute.xlu0 0
      %3907 = vperm.xlu0 %3906, %v3729
      %v3908 = vpop.permute.xlu0 %3907
      %v3910 = vmul.f32 %v3622, %v3733
      %v3911 = vmul.f32 %v3623, %v3738
      %v3912 = vmul.f32 %v3624, %v3743
      %v3913 = vmul.f32 %v3625, %v3748
      %v3914 = vmul.f32 %v3626, %v3753
      %v3915 = vmul.f32 %v3627, %v3758
      %v3916 = vmul.f32 %v3628, %v3763
      %v3917 = vmul.f32 %v3629, %v3768
      %v3918 = vmul.f32 %v3630, %v3773
      %v3919 = vmul.f32 %v3631, %v3778
      %v3920 = vmul.f32 %v3632, %v3783
      %v3921 = vmul.f32 %v3633, %v3788
      %v3922 = vmul.f32 %v3634, %v3793
      %v3923 = vmul.f32 %v3635, %v3798
      %v3924 = vmul.f32 %v3636, %v3803
      %v3925 = vmul.f32 %v3637, %v3808
      %v3926 = vmul.f32 %v3638, %v3813
      %v3927 = vmul.f32 %v3639, %v3818
      %v3928 = vmul.f32 %v3640, %v3823
      %v3929 = vmul.f32 %v3641, %v3828
      %v3930 = vmul.f32 %v3642, %v3833
      %v3931 = vmul.f32 %v3643, %v3838
      %v3932 = vmul.f32 %v3644, %v3843
      %v3933 = vmul.f32 %v3645, %v3848
      %v3934 = vmul.f32 %v3646, %v3853
      %v3935 = vmul.f32 %v3647, %v3858
      %v3936 = vmul.f32 %v3648, %v3863
      %v3937 = vmul.f32 %v3649, %v3868
      %v3938 = vmul.f32 %v3650, %v3873
      %v3939 = vmul.f32 %v3651, %v3878
      %v3940 = vmul.f32 %v3652, %v3883
      %v3941 = vmul.f32 %v3653, %v3888
      %v3942 = vmul.f32 %v3654, %v3893
      %v3943 = vmul.f32 %v3655, %v3898
      %v3944 = vmul.f32 %v3656, %v3903
      %v3945 = vmul.f32 %v3657, %v3908
      %v3946 = vsel %vm492, %v3910, 0.0
      %v3947 = vsel %vm492, %v3911, 0.0
      %v3948 = vadd.f32 %v3946, %v3947
      %v3949 = vsel %vm492, %v3912, 0.0
      %v3950 = vadd.f32 %v3948, %v3949
      %v3951 = vsel %vm492, %v3913, 0.0
      %v3952 = vadd.f32 %v3950, %v3951
      %v3953 = vsel %vm492, %v3914, 0.0
      %v3954 = vadd.f32 %v3952, %v3953
      %v3955 = vsel %vm492, %v3915, 0.0
      %v3956 = vadd.f32 %v3954, %v3955
      %v3957 = vsel %vm492, %v3916, 0.0
      %v3958 = vadd.f32 %v3956, %v3957
      %v3959 = vsel %vm492, %v3917, 0.0
      %v3960 = vadd.f32 %v3958, %v3959
      %v3961 = vsel %vm492, %v3918, 0.0
      %v3962 = vadd.f32 %v3960, %v3961
      %v3963 = vsel %vm492, %v3919, 0.0
      %v3964 = vadd.f32 %v3962, %v3963
      %v3965 = vsel %vm492, %v3920, 0.0
      %v3966 = vadd.f32 %v3964, %v3965
      %v3967 = vsel %vm492, %v3921, 0.0
      %v3968 = vadd.f32 %v3966, %v3967
      %v3969 = vsel %vm492, %v3922, 0.0
      %v3970 = vadd.f32 %v3968, %v3969
      %v3971 = vsel %vm492, %v3923, 0.0
      %v3972 = vadd.f32 %v3970, %v3971
      %v3973 = vsel %vm492, %v3924, 0.0
      %v3974 = vadd.f32 %v3972, %v3973
      %v3975 = vsel %vm492, %v3925, 0.0
      %v3976 = vadd.f32 %v3974, %v3975
      %v3977 = vsel %vm492, %v3926, 0.0
      %v3978 = vadd.f32 %v3976, %v3977
      %v3979 = vsel %vm492, %v3927, 0.0
      %v3980 = vadd.f32 %v3978, %v3979
      %v3981 = vsel %vm492, %v3928, 0.0
      %v3982 = vadd.f32 %v3980, %v3981
      %v3983 = vsel %vm492, %v3929, 0.0
      %v3984 = vadd.f32 %v3982, %v3983
      %v3985 = vsel %vm492, %v3930, 0.0
      %v3986 = vadd.f32 %v3984, %v3985
      %v3987 = vsel %vm492, %v3931, 0.0
      %v3988 = vadd.f32 %v3986, %v3987
      %v3989 = vsel %vm492, %v3932, 0.0
      %v3990 = vadd.f32 %v3988, %v3989
      %v3991 = vsel %vm492, %v3933, 0.0
      %v3992 = vadd.f32 %v3990, %v3991
      %v3993 = vsel %vm492, %v3934, 0.0
      %v3994 = vadd.f32 %v3992, %v3993
      %v3995 = vsel %vm492, %v3935, 0.0
      %v3996 = vadd.f32 %v3994, %v3995
      %v3997 = vsel %vm492, %v3936, 0.0
      %v3998 = vadd.f32 %v3996, %v3997
      %v3999 = vsel %vm492, %v3937, 0.0
      %v4000 = vadd.f32 %v3998, %v3999
      %v4001 = vsel %vm492, %v3938, 0.0
      %v4002 = vadd.f32 %v4000, %v4001
      %v4003 = vsel %vm492, %v3939, 0.0
      %v4004 = vadd.f32 %v4002, %v4003
      %v4005 = vsel %vm492, %v3940, 0.0
      %v4006 = vadd.f32 %v4004, %v4005
      %v4007 = vsel %vm492, %v3941, 0.0
      %v4008 = vadd.f32 %v4006, %v4007
      %v4009 = vsel %vm492, %v3942, 0.0
      %v4010 = vadd.f32 %v4008, %v4009
      %v4011 = vsel %vm492, %v3943, 0.0
      %v4012 = vadd.f32 %v4010, %v4011
      %v4013 = vsel %vm492, %v3944, 0.0
      %v4014 = vadd.f32 %v4012, %v4013
      %v4015 = vsel %vm492, %v3945, 0.0
      %v4016 = vadd.f32 %v4014, %v4015
      %v4017 = vrot.slane %v4016, 4
      %v4018 = vadd.f32 %v4016, %v4017
      %v4019 = vrot.slane %v4018, 2
      %v4020 = vadd.f32 %v4018, %v4019
      %v4021 = vrot.slane %v4020, 1
      %v4022 = vadd.f32 %v4020, %v4021
      %v4023 = vmul.f32 %v3910, %v3622
      %v4024 = vmul.f32 %v3911, %v3623
      %v4025 = vmul.f32 %v3912, %v3624
      %v4026 = vmul.f32 %v3913, %v3625
      %v4027 = vmul.f32 %v3914, %v3626
      %v4028 = vmul.f32 %v3915, %v3627
      %v4029 = vmul.f32 %v3916, %v3628
      %v4030 = vmul.f32 %v3917, %v3629
      %v4031 = vmul.f32 %v3918, %v3630
      %v4032 = vmul.f32 %v3919, %v3631
      %v4033 = vmul.f32 %v3920, %v3632
      %v4034 = vmul.f32 %v3921, %v3633
      %v4035 = vmul.f32 %v3922, %v3634
      %v4036 = vmul.f32 %v3923, %v3635
      %v4037 = vmul.f32 %v3924, %v3636
      %v4038 = vmul.f32 %v3925, %v3637
      %v4039 = vmul.f32 %v3926, %v3638
      %v4040 = vmul.f32 %v3927, %v3639
      %v4041 = vmul.f32 %v3928, %v3640
      %v4042 = vmul.f32 %v3929, %v3641
      %v4043 = vmul.f32 %v3930, %v3642
      %v4044 = vmul.f32 %v3931, %v3643
      %v4045 = vmul.f32 %v3932, %v3644
      %v4046 = vmul.f32 %v3933, %v3645
      %v4047 = vmul.f32 %v3934, %v3646
      %v4048 = vmul.f32 %v3935, %v3647
      %v4049 = vmul.f32 %v3936, %v3648
      %v4050 = vmul.f32 %v3937, %v3649
      %v4051 = vmul.f32 %v3938, %v3650
      %v4052 = vmul.f32 %v3939, %v3651
      %v4053 = vmul.f32 %v3940, %v3652
      %v4054 = vmul.f32 %v3941, %v3653
      %v4055 = vmul.f32 %v3942, %v3654
      %v4056 = vmul.f32 %v3943, %v3655
      %v4057 = vmul.f32 %v3944, %v3656
      %v4058 = vmul.f32 %v3945, %v3657
      %v4059 = vsel %vm492, %v4023, 0.0
      %v4060 = vsel %vm492, %v4024, 0.0
      %v4061 = vadd.f32 %v4059, %v4060
      %v4062 = vsel %vm492, %v4025, 0.0
      %v4063 = vadd.f32 %v4061, %v4062
      %v4064 = vsel %vm492, %v4026, 0.0
      %v4065 = vadd.f32 %v4063, %v4064
      %v4066 = vsel %vm492, %v4027, 0.0
      %v4067 = vadd.f32 %v4065, %v4066
      %v4068 = vsel %vm492, %v4028, 0.0
      %v4069 = vadd.f32 %v4067, %v4068
      %v4070 = vsel %vm492, %v4029, 0.0
      %v4071 = vadd.f32 %v4069, %v4070
      %v4072 = vsel %vm492, %v4030, 0.0
      %v4073 = vadd.f32 %v4071, %v4072
      %v4074 = vsel %vm492, %v4031, 0.0
      %v4075 = vadd.f32 %v4073, %v4074
      %v4076 = vsel %vm492, %v4032, 0.0
      %v4077 = vadd.f32 %v4075, %v4076
      %v4078 = vsel %vm492, %v4033, 0.0
      %v4079 = vadd.f32 %v4077, %v4078
      %v4080 = vsel %vm492, %v4034, 0.0
      %v4081 = vadd.f32 %v4079, %v4080
      %v4082 = vsel %vm492, %v4035, 0.0
      %v4083 = vadd.f32 %v4081, %v4082
      %v4084 = vsel %vm492, %v4036, 0.0
      %v4085 = vadd.f32 %v4083, %v4084
      %v4086 = vsel %vm492, %v4037, 0.0
      %v4087 = vadd.f32 %v4085, %v4086
      %v4088 = vsel %vm492, %v4038, 0.0
      %v4089 = vadd.f32 %v4087, %v4088
      %v4090 = vsel %vm492, %v4039, 0.0
      %v4091 = vadd.f32 %v4089, %v4090
      %v4092 = vsel %vm492, %v4040, 0.0
      %v4093 = vadd.f32 %v4091, %v4092
      %v4094 = vsel %vm492, %v4041, 0.0
      %v4095 = vadd.f32 %v4093, %v4094
      %v4096 = vsel %vm492, %v4042, 0.0
      %v4097 = vadd.f32 %v4095, %v4096
      %v4098 = vsel %vm492, %v4043, 0.0
      %v4099 = vadd.f32 %v4097, %v4098
      %v4100 = vsel %vm492, %v4044, 0.0
      %v4101 = vadd.f32 %v4099, %v4100
      %v4102 = vsel %vm492, %v4045, 0.0
      %v4103 = vadd.f32 %v4101, %v4102
      %v4104 = vsel %vm492, %v4046, 0.0
      %v4105 = vadd.f32 %v4103, %v4104
      %v4106 = vsel %vm492, %v4047, 0.0
      %v4107 = vadd.f32 %v4105, %v4106
      %v4108 = vsel %vm492, %v4048, 0.0
      %v4109 = vadd.f32 %v4107, %v4108
      %v4110 = vsel %vm492, %v4049, 0.0
      %v4111 = vadd.f32 %v4109, %v4110
      %v4112 = vsel %vm492, %v4050, 0.0
      %v4113 = vadd.f32 %v4111, %v4112
      %v4114 = vsel %vm492, %v4051, 0.0
      %v4115 = vadd.f32 %v4113, %v4114
      %v4116 = vsel %vm492, %v4052, 0.0
      %v4117 = vadd.f32 %v4115, %v4116
      %v4118 = vsel %vm492, %v4053, 0.0
      %v4119 = vadd.f32 %v4117, %v4118
      %v4120 = vsel %vm492, %v4054, 0.0
      %v4121 = vadd.f32 %v4119, %v4120
      %v4122 = vsel %vm492, %v4055, 0.0
      %v4123 = vadd.f32 %v4121, %v4122
      %v4124 = vsel %vm492, %v4056, 0.0
      %v4125 = vadd.f32 %v4123, %v4124
      %v4126 = vsel %vm492, %v4057, 0.0
      %v4127 = vadd.f32 %v4125, %v4126
      %v4128 = vsel %vm492, %v4058, 0.0
      %v4129 = vadd.f32 %v4127, %v4128
      %v4130 = vrot.slane %v4129, 4
      %v4131 = vadd.f32 %v4129, %v4130
      %v4132 = vrot.slane %v4131, 2
      %v4133 = vadd.f32 %v4131, %v4132
      %v4134 = vrot.slane %v4133, 1
      %v4135 = vadd.f32 %v4133, %v4134
      %vm4136 = vcmask 1040384
      %v4137 = vsel %vm4136, %v4022, %v4135
      %vm4138 = vcmask 25600
      %4139 = vst.msk [vmem:[%s208] sm:$0x3] %vm4138, %v4137
      %p4140 = scmp.lt.s32.totalorder %s16, 1
      %s4141 = scalar_select %p4140, %s16, 1
      %s4142 = smul.addr %s4141, 36
      %s4143 = smul.addr %s4142, 8
      %s4144 = scalar_lea.vmem %s3, %s4143
      %p4145 = scmp.lt.s32.totalorder %s16, 1
      %s4146 = scalar_select %p4145, %s16, 1
      %s4147 = smul.addr %s4146, 2
      %s4148 = scalar_lea.vmem %s4, %s4147
      // Predicated region
      $region33: #{block_forward.3} parent=31 // pred_check
        %p4149 = pneg %p102
      $region34: #{block_forward.3} parent=31 // pred_check_branch
        %4151 = sbr.rel (%p4149) target = $region36
      $region35: #{block_forward.3} parent=31 // pred_region
        _
      $region36: #{block_forward.3} parent=31 // pred_fallthru
        _
      // Predicated region
      $region37: #{block_forward.3} parent=31 // pred_check
        %p4152 = pneg %p128
      $region38: #{block_forward.3} parent=31 // pred_check_branch
        %4154 = sbr.rel (%p4152) target = $region40
      $region39: #{block_forward.3} parent=31 // pred_region
        _
      $region40: #{block_forward.3} parent=31 // pred_fallthru
        _
    $region32: #{block_forward.3} parent=5 // pred_fallthru
      _
    %p4155 = scmp.le.s32.totalorder 2, %s11
    // Predicated region
    $region41: #{block_forward.3} parent=5 // pred_check
      %p4156 = pneg %p4155
    $region42: #{block_forward.3} parent=5 // pred_check_branch
      %4158 = sbr.rel (%p4156) target = $region44
    $region43: #{block_forward.3} parent=5 // pred_region
      %s4159 = ssub.s32 %s11, 2
      // Predicated region
      $region45: #{block_forward.3} parent=43 // pred_check
        %p4160 = pneg %p108
      $region46: #{block_forward.3} parent=43 // pred_check_branch
        %4162 = sbr.rel (%p4160) target = $region48
      $region47: #{block_forward.3} parent=43 // pred_region
        %p4163 = scmp.lt.s32.totalorder %s17, 1
        %s4164 = scalar_select %p4163, %s17, 1
        %s4165 = smul.addr %s4164, 36
        %s4166 = smul.addr %s4165, 8
        %s4167 = scalar_lea.vmem %s3, %s4166
      $region48: #{block_forward.3} parent=43 // pred_fallthru
        _
      // Predicated region
      $region49: #{block_forward.3} parent=43 // pred_check
        %p4168 = pneg %p134
      $region50: #{block_forward.3} parent=43 // pred_check_branch
        %4170 = sbr.rel (%p4168) target = $region52
      $region51: #{block_forward.3} parent=43 // pred_region
        %p4171 = scmp.lt.s32.totalorder %s17, 1
        %s4172 = scalar_select %p4171, %s17, 1
        %s4173 = smul.addr %s4172, 2
        %s4174 = scalar_lea.vmem %s4, %s4173
      $region52: #{block_forward.3} parent=43 // pred_fallthru
        _
    $region44: #{block_forward.3} parent=5 // pred_fallthru
      _
  $region6: #{block_forward.3} parent=0 // loop_footer
    %s15 = sadd.s32 1, %s11
  $region7: #{block_forward.3} parent=0 // loop_footer_branch
    %10 = sbr.rel target = $region3
  $region8: #{block_forward.3} parent=0 // loop_exit
    _

</llo_original>
